<compile_context>
chip_gen: v7x
topology: tpu7x:2x2x1
jax: 0.10.0
libtpu: 0.0.40
codegen_flags: <defaults>
</compile_context>

<pallas_src>
import jax
import jax.numpy as jnp
from jax.experimental import pallas as pl
from jax.experimental.pallas import tpu as pltpu

EPS = 1e-5      # nn.BatchNorm2d default eps
LANES = 128     # TPU lane width


def _round_up(v, m):
    return (v + m - 1) // m * m


# ---------------------------------------------------------------------------
# In-kernel 3x3 conv: 9 shifted (H*W, Cp) x (Cp, Cp) bf16 matmuls, f32 acc.
# pad_ref holds the zero-haloed activation (H+2, W+2, Cp) in bf16.
# ---------------------------------------------------------------------------
def _conv3x3_from_padded(pad_ref, w_ref, H, W, Cp):
    acc = None
    for kh in range(3):
        for kw in range(3):
            tap = pad_ref[kh:kh + H, kw:kw + W, :].reshape(H * W, Cp)
            part = jnp.dot(tap, w_ref[3 * kh + kw],
                           preferred_element_type=jnp.float32)
            acc = part if acc is None else acc + part
    return acc                                            # (H*W, Cp) float32


def _accumulate_stats(stats_ref, acc):
    # Global per-channel sum and sum-of-squares (E[x^2]-E[x]^2 later, in f32).
    stats_ref[0:1, :] = stats_ref[0:1, :] + jnp.sum(acc, axis=0, keepdims=True)
    stats_ref[1:2, :] = stats_ref[1:2, :] + jnp.sum(acc * acc, axis=0,
                                                    keepdims=True)


# ---------------------------------------------------------------------------
# Kernel 1: conv1 + batch-stat accumulation.
# ---------------------------------------------------------------------------
def _conv1_stats_kernel(x_ref, w_ref, y_ref, stats_ref, pad_ref):
    H, W, Cp = x_ref.shape

    @pl.when(pl.program_id(0) == 0)
    def _init():
        stats_ref[...] = jnp.zeros_like(stats_ref)
        pad_ref[...] = jnp.zeros_like(pad_ref)   # halo stays zero afterwards

    pad_ref[1:H + 1, 1:W + 1, :] = x_ref[...].astype(jnp.bfloat16)
    acc = _conv3x3_from_padded(pad_ref, w_ref, H, W, Cp)
    y_ref[...] = acc.reshape(H, W, Cp)
    _accumulate_stats(stats_ref, acc)


# ---------------------------------------------------------------------------
# Kernel 2: bn1 (folded scale/shift) + relu + conv2 + batch-stat accumulation.
# ---------------------------------------------------------------------------
def _bn_relu_conv2_stats_kernel(y1_ref, aff_ref, w_ref, y2_ref, stats_ref,
                                pad_ref):
    H, W, Cp = y1_ref.shape

    @pl.when(pl.program_id(0) == 0)
    def _init():
        stats_ref[...] = jnp.zeros_like(stats_ref)
        pad_ref[...] = jnp.zeros_like(pad_ref)

    scale = aff_ref[0:1, :].reshape(1, 1, Cp)
    shift = aff_ref[1:2, :].reshape(1, 1, Cp)
    a = jnp.maximum(y1_ref[...] * scale + shift, 0.0)       # bn1 + relu (f32)
    pad_ref[1:H + 1, 1:W + 1, :] = a.astype(jnp.bfloat16)
    acc = _conv3x3_from_padded(pad_ref, w_ref, H, W, Cp)
    y2_ref[...] = acc.reshape(H, W, Cp)
    _accumulate_stats(stats_ref, acc)


# ---------------------------------------------------------------------------
# Kernel 3: bn2 (folded) + residual add + relu.  Fully parallel per image.
# ---------------------------------------------------------------------------
def _bn2_res_relu_kernel(y2_ref, aff_ref, x_ref, o_ref):
    Cp = y2_ref.shape[-1]
    scale = aff_ref[0:1, :].reshape(1, 1, Cp)
    shift = aff_ref[1:2, :].reshape(1, 1, Cp)
    o_ref[...] = jnp.maximum(y2_ref[...] * scale + shift + x_ref[...], 0.0)


# ---------------------------------------------------------------------------
# pallas_call wrappers
# ---------------------------------------------------------------------------
def _conv_stage(act, wmat, affine=None):
    """conv (optionally preceded by fused bn+relu) over grid=(N,).

    Returns (pre-BN conv output f32 (N,H,W,Cp), per-channel [sum; sumsq] (2,Cp)).
    """
    N, H, W, Cp = act.shape

    act_spec = pl.BlockSpec((None, H, W, Cp), lambda n: (n, 0, 0, 0))
    w_spec = pl.BlockSpec((9, Cp, Cp), lambda n: (0, 0, 0))
    aff_spec = pl.BlockSpec((2, Cp), lambda n: (0, 0))
    y_spec = pl.BlockSpec((None, H, W, Cp), lambda n: (n, 0, 0, 0))
    stats_spec = pl.BlockSpec((2, Cp), lambda n: (0, 0))   # resident accumulator

    if affine is None:
        kernel = _conv1_stats_kernel
        operands = (act, wmat)
        in_specs = [act_spec, w_spec]
    else:
        kernel = _bn_relu_conv2_stats_kernel
        operands = (act, affine, wmat)
        in_specs = [act_spec, aff_spec, w_spec]

    blk_bytes = (H * W * Cp * 4          # act tile (f32)
                 + 9 * Cp * Cp * 2       # weights (bf16, resident)
                 + H * W * Cp * 4        # y tile (f32)
                 + 4 * Cp * 4)           # stats + affine
    scratch_bytes = (H + 2) * (W + 2) * Cp * 2
    vmem_limit = int(min(3 * 2 * blk_bytes + scratch_bytes + (4 << 20),
                         100 * 1024 * 1024))

    flops = 2 * N * H * W * 9 * Cp * Cp
    bytes_accessed = int(act.size * act.dtype.itemsize + wmat.size * 2
                         + N * H * W * Cp * 4 + 2 * Cp * 4)

    return pl.pallas_call(
        kernel,
        out_shape=(jax.ShapeDtypeStruct((N, H, W, Cp), jnp.float32),
                   jax.ShapeDtypeStruct((2, Cp), jnp.float32)),
        grid=(N,),
        in_specs=in_specs,
        out_specs=(y_spec, stats_spec),
        scratch_shapes=[pltpu.VMEM((H + 2, W + 2, Cp), jnp.bfloat16)],
        compiler_params=pltpu.CompilerParams(
            # stats accumulate across the batch axis -> must be "arbitrary"
            dimension_semantics=("arbitrary",),
            vmem_limit_bytes=vmem_limit),
        cost_estimate=pl.CostEstimate(flops=flops, transcendentals=0,
                                      bytes_accessed=bytes_accessed),
    )(*operands)


def _finalize(y2, aff2, x_p):
    N, H, W, Cp = y2.shape
    tile_spec = pl.BlockSpec((None, H, W, Cp), lambda n: (n, 0, 0, 0))
    aff_spec = pl.BlockSpec((2, Cp), lambda n: (0, 0))
    blk_bytes = 3 * H * W * Cp * 4 + 2 * Cp * 4
    vmem_limit = int(min(3 * 2 * blk_bytes + (4 << 20), 100 * 1024 * 1024))
    return pl.pallas_call(
        _bn2_res_relu_kernel,
        out_shape=jax.ShapeDtypeStruct((N, H, W, Cp), jnp.float32),
        grid=(N,),
        in_specs=[tile_spec, aff_spec, tile_spec],
        out_specs=tile_spec,
        compiler_params=pltpu.CompilerParams(
            dimension_semantics=("parallel",),   # independent per image
            vmem_limit_bytes=vmem_limit),
    )(y2, aff2, x_p)


# ---------------------------------------------------------------------------
# Host-side glue (tiny ops only: layout, channel padding, BN affine fold)
# ---------------------------------------------------------------------------
def _pack_weight(w, Cp):
    # PyTorch (Cout, Cin, 3, 3) -> (9, Cp_in, Cp_out) bf16, tap index = 3*kh+kw
    Cout, Cin = w.shape[0], w.shape[1]
    wt = jnp.transpose(w.astype(jnp.float32), (2, 3, 1, 0)).reshape(9, Cin, Cout)
    wt = jnp.pad(wt, ((0, 0), (0, Cp - Cin), (0, Cp - Cout)))
    return wt.astype(jnp.bfloat16)


def _bn_affine(stats, gamma, beta, count, Cp):
    # Fold batch mean/var + gamma/beta into a per-channel (scale, shift) pair.
    C = gamma.shape[0]
    gamma_p = jnp.pad(gamma.astype(jnp.float32), (0, Cp - C))
    beta_p = jnp.pad(beta.astype(jnp.float32), (0, Cp - C))
    mean = stats[0] / count
    var = jnp.maximum(stats[1] / count - mean * mean, 0.0)   # biased, f32 sums
    rstd = jax.lax.rsqrt(var + EPS)
    scale = gamma_p * rstd
    shift = beta_p - mean * scale
    return jnp.stack([scale, shift], axis=0)                 # (2, Cp) f32


def basic_block_forward(x_nchw, w1, g1, b1, w2, g2, b2):
    """BasicBlock(inplanes=planes, stride=1, downsample=None) forward."""
    N, C, H, W = x_nchw.shape
    planes = w1.shape[0]
    assert C == planes, "no downsample => inplanes must equal planes"

    Cp = _round_up(C, LANES)                 # lane-dense channel axis
    count = jnp.float32(N * H * W)

    # NCHW -> NHWC (channels on lanes), zero-pad channels to Cp.
    x = jnp.transpose(x_nchw, (0, 2, 3, 1)).astype(jnp.float32)
    x_p = jnp.pad(x, ((0, 0), (0, 0), (0, 0), (0, Cp - C)))

    w1m = _pack_weight(w1, Cp)
    w2m = _pack_weight(w2, Cp)

    # stage 1: conv1 + global batch statistics
    y1, s1 = _conv_stage(x_p, w1m)
    aff1 = _bn_affine(s1, g1, b1, count, Cp)

    # stage 2: bn1 + relu fused into conv2's prologue + conv2 statistics
    y2, s2 = _conv_stage(y1, w2m, affine=aff1)
    aff2 = _bn_affine(s2, g2, b2, count, Cp)

    # stage 3: bn2 + residual add + relu
    out = _finalize(y2, aff2, x_p)

    return jnp.transpose(out[..., :C], (0, 3, 1, 2))         # back to NCHW


# ---------------------------------------------------------------------------
# Pure-JAX f32 reference (NCHW) used only for a correctness check
# ---------------------------------------------------------------------------
def _ref_forward(x, w1, g1, b1, w2, g2, b2):
    def conv(a, w):
        return jax.lax.conv_general_dilated(
            a, w, window_strides=(1, 1), padding=((1, 1), (1, 1)),
            dimension_numbers=("NCHW", "OIHW", "NCHW"))

    def bn(a, g, b):
        mean = jnp.mean(a, axis=(0, 2, 3), keepdims=True)
        var = jnp.mean((a - mean) ** 2, axis=(0, 2, 3), keepdims=True)
        return (a - mean) * jax.lax.rsqrt(var + EPS) * g.reshape(1, -1, 1, 1) \
            + b.reshape(1, -1, 1, 1)

    out = jax.nn.relu(bn(conv(x, w1), g1, b1))
    out = bn(conv(out, w2), g2, b2) + x
    return jax.nn.relu(out)


if __name__ == "__main__":
    N, C, H, W = 2, 4, 16, 16              # inplanes = planes = 4, stride = 1
    key = jax.random.PRNGKey(0)
    ks = jax.random.split(key, 7)

    x = jax.random.normal(ks[0], (N, C, H, W), jnp.float32)
    fan_in = C * 3 * 3
    w1 = jax.random.normal(ks[1], (C, C, 3, 3), jnp.float32) * (2.0 / fan_in) ** 0.5
    w2 = jax.random.normal(ks[2], (C, C, 3, 3), jnp.float32) * (2.0 / fan_in) ** 0.5
    g1 = 1.0 + 0.1 * jax.random.normal(ks[3], (C,), jnp.float32)
    b1 = 0.1 * jax.random.normal(ks[4], (C,), jnp.float32)
    g2 = 1.0 + 0.1 * jax.random.normal(ks[5], (C,), jnp.float32)
    b2 = 0.1 * jax.random.normal(ks[6], (C,), jnp.float32)

    fwd = jax.jit(basic_block_forward)
    out = jax.block_until_ready(fwd(x, w1, g1, b1, w2, g2, b2))

    ref = _ref_forward(x, w1, g1, b1, w2, g2, b2)
    assert out.shape == (N, C, H, W), out.shape
    max_err = float(jnp.max(jnp.abs(out - ref)))
    # bf16 MXU operands (with f32 accumulation / f32 BN) vs. the pure-f32
    # reference -> tolerance looser than the old all-f32 kernel.
    assert jnp.allclose(out, ref, atol=1e-1, rtol=1e-1), f"max |err| = {max_err}"

    print("KERNEL_OK")
</pallas_src>

<mosaic_0001>
module attributes {stable_mosaic.version = 11 : i64} {
  func.func @_bn2_res_relu_kernel(%arg0: i32, %arg1: memref<1x16x16x128xf32, #tpu.memory_space<vmem>>, %arg2: memref<2x128xf32, #tpu.memory_space<vmem>>, %arg3: memref<1x16x16x128xf32, #tpu.memory_space<vmem>>, %arg4: memref<1x16x16x128xf32, #tpu.memory_space<vmem>>) attributes {dimension_semantics = [#tpu.dimension_semantics<parallel>], iteration_bounds = array<i64: 2>, scalar_prefetch = 0 : i64, scratch_operands = 0 : i64, tpu.core_type = #tpu.core_type<tc>, window_params = [{transform_indices = @transform_0, window_bounds = array<i64: 1, 16, 16, 128>}, {pipeline_mode = #tpu.pipeline_mode<synchronous>, transform_indices = @transform_1, window_bounds = array<i64: 2, 128>}, {transform_indices = @transform_2, window_bounds = array<i64: 1, 16, 16, 128>}, {transform_indices = @transform_3, window_bounds = array<i64: 1, 16, 16, 128>}]} {
    %c0 = arith.constant 0 : index
    %c0_0 = arith.constant 0 : index
    %0 = vector.load %arg2[%c0, %c0_0] : memref<2x128xf32, #tpu.memory_space<vmem>>, vector<1x128xf32>
    %1 = vector.shape_cast %0 : vector<1x128xf32> to vector<1x1x128xf32>
    %c1 = arith.constant 1 : index
    %c0_1 = arith.constant 0 : index
    %2 = vector.load %arg2[%c1, %c0_1] : memref<2x128xf32, #tpu.memory_space<vmem>>, vector<1x128xf32>
    %3 = vector.shape_cast %2 : vector<1x128xf32> to vector<1x1x128xf32>
    %c0_2 = arith.constant 0 : index
    %c0_3 = arith.constant 0 : index
    %c0_4 = arith.constant 0 : index
    %c0_5 = arith.constant 0 : index
    %4 = vector.load %arg1[%c0_2, %c0_3, %c0_4, %c0_5] : memref<1x16x16x128xf32, #tpu.memory_space<vmem>>, vector<1x16x16x128xf32>
    %5 = vector.shape_cast %4 : vector<1x16x16x128xf32> to vector<16x16x128xf32>
    %6 = vector.broadcast %1 : vector<1x1x128xf32> to vector<16x16x128xf32>
    %7 = arith.mulf %5, %6 : vector<16x16x128xf32>
    %8 = vector.broadcast %3 : vector<1x1x128xf32> to vector<16x16x128xf32>
    %9 = arith.addf %7, %8 : vector<16x16x128xf32>
    %c0_6 = arith.constant 0 : index
    %c0_7 = arith.constant 0 : index
    %c0_8 = arith.constant 0 : index
    %c0_9 = arith.constant 0 : index
    %10 = vector.load %arg3[%c0_6, %c0_7, %c0_8, %c0_9] : memref<1x16x16x128xf32, #tpu.memory_space<vmem>>, vector<1x16x16x128xf32>
    %11 = vector.shape_cast %10 : vector<1x16x16x128xf32> to vector<16x16x128xf32>
    %12 = arith.addf %9, %11 : vector<16x16x128xf32>
    %cst = arith.constant 0.000000e+00 : f32
    %13 = vector.broadcast %cst : f32 to vector<16x16x128xf32>
    %14 = arith.maximumf %12, %13 : vector<16x16x128xf32>
    %c0_10 = arith.constant 0 : index
    %c0_11 = arith.constant 0 : index
    %c0_12 = arith.constant 0 : index
    %c0_13 = arith.constant 0 : index
    %15 = vector.load %arg4[%c0_10, %c0_11, %c0_12, %c0_13] : memref<1x16x16x128xf32, #tpu.memory_space<vmem>>, vector<1x16x16x128xf32>
    %16 = vector.shape_cast %15 : vector<1x16x16x128xf32> to vector<16x16x128xf32>
    %17 = vector.shape_cast %14 : vector<16x16x128xf32> to vector<1x16x16x128xf32>
    tpu.vector_store %arg4[%c0_10, %c0_11, %c0_12, %c0_13], %17 {strides = array<i32>} : memref<1x16x16x128xf32, #tpu.memory_space<vmem>>, vector<1x16x16x128xf32>,
    return
  }
  func.func @transform_0(%arg0: i32) -> (i32, i32, i32, i32) {
    %c0_i32 = arith.constant 0 : i32
    %c0_i32_0 = arith.constant 0 : i32
    %c0_i32_1 = arith.constant 0 : i32
    %c0_i32_2 = arith.constant 0 : i32
    return %arg0, %c0_i32, %c0_i32_0, %c0_i32_1 : i32, i32, i32, i32
  }
  func.func @transform_1(%arg0: i32) -> (i32, i32) {
    %c0_i32 = arith.constant 0 : i32
    %c0_i32_0 = arith.constant 0 : i32
    %c0_i32_1 = arith.constant 0 : i32
    return %c0_i32, %c0_i32_0 : i32, i32
  }
  func.func @transform_2(%arg0: i32) -> (i32, i32, i32, i32) {
    %c0_i32 = arith.constant 0 : i32
    %c0_i32_0 = arith.constant 0 : i32
    %c0_i32_1 = arith.constant 0 : i32
    %c0_i32_2 = arith.constant 0 : i32
    return %arg0, %c0_i32, %c0_i32_0, %c0_i32_1 : i32, i32, i32, i32
  }
  func.func @transform_3(%arg0: i32) -> (i32, i32, i32, i32) {
    %c0_i32 = arith.constant 0 : i32
    %c0_i32_0 = arith.constant 0 : i32
    %c0_i32_1 = arith.constant 0 : i32
    %c0_i32_2 = arith.constant 0 : i32
    return %arg0, %c0_i32, %c0_i32_0, %c0_i32_1 : i32, i32, i32, i32
  }
}

module attributes {stable_mosaic.version = 11 : i64} {
  func.func @_bn_relu_conv2_stats_kernel(%arg0: i32, %arg1: memref<1x16x16x128xf32, #tpu.memory_space<vmem>>, %arg2: memref<2x128xf32, #tpu.memory_space<vmem>>, %arg3: memref<9x128x128xbf16, #tpu.memory_space<vmem>>, %arg4: memref<1x16x16x128xf32, #tpu.memory_space<vmem>>, %arg5: memref<2x128xf32, #tpu.memory_space<vmem>>, %arg6: memref<18x18x128xbf16, #tpu.memory_space<vmem>>) attributes {dimension_semantics = [#tpu.dimension_semantics<arbitrary>], iteration_bounds = array<i64: 2>, scalar_prefetch = 0 : i64, scratch_operands = 1 : i64, tpu.core_type = #tpu.core_type<tc>, window_params = [{transform_indices = @transform_0, window_bounds = array<i64: 1, 16, 16, 128>}, {pipeline_mode = #tpu.pipeline_mode<synchronous>, transform_indices = @transform_1, window_bounds = array<i64: 2, 128>}, {pipeline_mode = #tpu.pipeline_mode<synchronous>, transform_indices = @transform_2, window_bounds = array<i64: 9, 128, 128>}, {transform_indices = @transform_3, window_bounds = array<i64: 1, 16, 16, 128>}, {pipeline_mode = #tpu.pipeline_mode<synchronous>, transform_indices = @transform_4, window_bounds = array<i64: 2, 128>}]} {
    %c0_i32 = arith.constant 0 : i32
    %0 = arith.cmpi eq, %arg0, %c0_i32 : i32
    %1 = arith.extui %0 : i1 to i32
    %c0_i32_0 = arith.constant 0 : i32
    %2 = arith.cmpi ne, %1, %c0_i32_0 : i32
    scf.if %2 {
      %cst_80 = arith.constant 0.000000e+00 : f32
      %85 = vector.broadcast %cst_80 : f32 to vector<2x128xf32>
      %c0_81 = arith.constant 0 : index
      %c0_82 = arith.constant 0 : index
      %86 = vector.load %arg5[%c0_81, %c0_82] : memref<2x128xf32, #tpu.memory_space<vmem>>, vector<2x128xf32>
      tpu.vector_store %arg5[%c0_81, %c0_82], %85 {strides = array<i32>} : memref<2x128xf32, #tpu.memory_space<vmem>>, vector<2x128xf32>,
      %cst_83 = arith.constant 0.000000e+00 : bf16
      %87 = vector.broadcast %cst_83 : bf16 to vector<18x18x128xbf16>
      %c0_84 = arith.constant 0 : index
      %c0_85 = arith.constant 0 : index
      %c0_86 = arith.constant 0 : index
      %88 = vector.load %arg6[%c0_84, %c0_85, %c0_86] : memref<18x18x128xbf16, #tpu.memory_space<vmem>>, vector<18x18x128xbf16>
      tpu.vector_store %arg6[%c0_84, %c0_85, %c0_86], %87 {strides = array<i32>} : memref<18x18x128xbf16, #tpu.memory_space<vmem>>, vector<18x18x128xbf16>,
    } else {
    }
    %c0 = arith.constant 0 : index
    %c0_1 = arith.constant 0 : index
    %3 = vector.load %arg2[%c0, %c0_1] : memref<2x128xf32, #tpu.memory_space<vmem>>, vector<1x128xf32>
    %4 = vector.shape_cast %3 : vector<1x128xf32> to vector<1x1x128xf32>
    %c1 = arith.constant 1 : index
    %c0_2 = arith.constant 0 : index
    %5 = vector.load %arg2[%c1, %c0_2] : memref<2x128xf32, #tpu.memory_space<vmem>>, vector<1x128xf32>
    %6 = vector.shape_cast %5 : vector<1x128xf32> to vector<1x1x128xf32>
    %c0_3 = arith.constant 0 : index
    %c0_4 = arith.constant 0 : index
    %c0_5 = arith.constant 0 : index
    %c0_6 = arith.constant 0 : index
    %7 = vector.load %arg1[%c0_3, %c0_4, %c0_5, %c0_6] : memref<1x16x16x128xf32, #tpu.memory_space<vmem>>, vector<1x16x16x128xf32>
    %8 = vector.shape_cast %7 : vector<1x16x16x128xf32> to vector<16x16x128xf32>
    %9 = vector.broadcast %4 : vector<1x1x128xf32> to vector<16x16x128xf32>
    %10 = arith.mulf %8, %9 : vector<16x16x128xf32>
    %11 = vector.broadcast %6 : vector<1x1x128xf32> to vector<16x16x128xf32>
    %12 = arith.addf %10, %11 : vector<16x16x128xf32>
    %cst = arith.constant 0.000000e+00 : f32
    %13 = vector.broadcast %cst : f32 to vector<16x16x128xf32>
    %14 = arith.maximumf %12, %13 : vector<16x16x128xf32>
    %15 = arith.truncf %14 : vector<16x16x128xf32> to vector<16x16x128xbf16>
    %c1_7 = arith.constant 1 : index
    %c1_8 = arith.constant 1 : index
    %c0_9 = arith.constant 0 : index
    %16 = vector.load %arg6[%c1_7, %c1_8, %c0_9] : memref<18x18x128xbf16, #tpu.memory_space<vmem>>, vector<16x16x128xbf16>
    tpu.vector_store %arg6[%c1_7, %c1_8, %c0_9], %15 {strides = array<i32>} : memref<18x18x128xbf16, #tpu.memory_space<vmem>>, vector<16x16x128xbf16>,
    %c0_10 = arith.constant 0 : index
    %c0_11 = arith.constant 0 : index
    %c0_12 = arith.constant 0 : index
    %17 = vector.load %arg6[%c0_10, %c0_11, %c0_12] : memref<18x18x128xbf16, #tpu.memory_space<vmem>>, vector<16x16x128xbf16>
    %18 = vector.shape_cast %17 : vector<16x16x128xbf16> to vector<256x128xbf16>
    %c0_13 = arith.constant 0 : index
    %c0_14 = arith.constant 0 : index
    %c0_15 = arith.constant 0 : index
    %19 = vector.load %arg3[%c0_13, %c0_14, %c0_15] : memref<9x128x128xbf16, #tpu.memory_space<vmem>>, vector<1x128x128xbf16>
    %20 = vector.shape_cast %19 : vector<1x128x128xbf16> to vector<128x128xbf16>
    %cst_16 = arith.constant dense<0.000000e+00> : vector<256x128xf32>
    %21 = tpu.matmul %18, %20, %cst_16 {dimension_numbers = #tpu.dot_dimension_numbers<[1], [0], [0], [1], [0, 0, 1, 1], [], []>} : vector<256x128xbf16>, vector<128x128xbf16>, vector<256x128xf32> -> vector<256x128xf32>
    %c0_17 = arith.constant 0 : index
    %c1_18 = arith.constant 1 : index
    %c0_19 = arith.constant 0 : index
    %22 = vector.load %arg6[%c0_17, %c1_18, %c0_19] : memref<18x18x128xbf16, #tpu.memory_space<vmem>>, vector<16x16x128xbf16>
    %23 = vector.shape_cast %22 : vector<16x16x128xbf16> to vector<256x128xbf16>
    %c1_20 = arith.constant 1 : index
    %c0_21 = arith.constant 0 : index
    %c0_22 = arith.constant 0 : index
    %24 = vector.load %arg3[%c1_20, %c0_21, %c0_22] : memref<9x128x128xbf16, #tpu.memory_space<vmem>>, vector<1x128x128xbf16>
    %25 = vector.shape_cast %24 : vector<1x128x128xbf16> to vector<128x128xbf16>
    %cst_23 = arith.constant dense<0.000000e+00> : vector<256x128xf32>
    %26 = tpu.matmul %23, %25, %cst_23 {dimension_numbers = #tpu.dot_dimension_numbers<[1], [0], [0], [1], [0, 0, 1, 1], [], []>} : vector<256x128xbf16>, vector<128x128xbf16>, vector<256x128xf32> -> vector<256x128xf32>
    %27 = arith.addf %21, %26 : vector<256x128xf32>
    %c0_24 = arith.constant 0 : index
    %c2 = arith.constant 2 : index
    %c0_25 = arith.constant 0 : index
    %28 = vector.load %arg6[%c0_24, %c2, %c0_25] : memref<18x18x128xbf16, #tpu.memory_space<vmem>>, vector<16x16x128xbf16>
    %29 = vector.shape_cast %28 : vector<16x16x128xbf16> to vector<256x128xbf16>
    %c2_26 = arith.constant 2 : index
    %c0_27 = arith.constant 0 : index
    %c0_28 = arith.constant 0 : index
    %30 = vector.load %arg3[%c2_26, %c0_27, %c0_28] : memref<9x128x128xbf16, #tpu.memory_space<vmem>>, vector<1x128x128xbf16>
    %31 = vector.shape_cast %30 : vector<1x128x128xbf16> to vector<128x128xbf16>
    %cst_29 = arith.constant dense<0.000000e+00> : vector<256x128xf32>
    %32 = tpu.matmul %29, %31, %cst_29 {dimension_numbers = #tpu.dot_dimension_numbers<[1], [0], [0], [1], [0, 0, 1, 1], [], []>} : vector<256x128xbf16>, vector<128x128xbf16>, vector<256x128xf32> -> vector<256x128xf32>
    %33 = arith.addf %27, %32 : vector<256x128xf32>
    %c1_30 = arith.constant 1 : index
    %c0_31 = arith.constant 0 : index
    %c0_32 = arith.constant 0 : index
    %34 = vector.load %arg6[%c1_30, %c0_31, %c0_32] : memref<18x18x128xbf16, #tpu.memory_space<vmem>>, vector<16x16x128xbf16>
    %35 = vector.shape_cast %34 : vector<16x16x128xbf16> to vector<256x128xbf16>
    %c3 = arith.constant 3 : index
    %c0_33 = arith.constant 0 : index
    %c0_34 = arith.constant 0 : index
    %36 = vector.load %arg3[%c3, %c0_33, %c0_34] : memref<9x128x128xbf16, #tpu.memory_space<vmem>>, vector<1x128x128xbf16>
    %37 = vector.shape_cast %36 : vector<1x128x128xbf16> to vector<128x128xbf16>
    %cst_35 = arith.constant dense<0.000000e+00> : vector<256x128xf32>
    %38 = tpu.matmul %35, %37, %cst_35 {dimension_numbers = #tpu.dot_dimension_numbers<[1], [0], [0], [1], [0, 0, 1, 1], [], []>} : vector<256x128xbf16>, vector<128x128xbf16>, vector<256x128xf32> -> vector<256x128xf32>
    %39 = arith.addf %33, %38 : vector<256x128xf32>
    %c1_36 = arith.constant 1 : index
    %c1_37 = arith.constant 1 : index
    %c0_38 = arith.constant 0 : index
    %40 = vector.load %arg6[%c1_36, %c1_37, %c0_38] : memref<18x18x128xbf16, #tpu.memory_space<vmem>>, vector<16x16x128xbf16>
    %41 = vector.shape_cast %40 : vector<16x16x128xbf16> to vector<256x128xbf16>
    %c4 = arith.constant 4 : index
    %c0_39 = arith.constant 0 : index
    %c0_40 = arith.constant 0 : index
    %42 = vector.load %arg3[%c4, %c0_39, %c0_40] : memref<9x128x128xbf16, #tpu.memory_space<vmem>>, vector<1x128x128xbf16>
    %43 = vector.shape_cast %42 : vector<1x128x128xbf16> to vector<128x128xbf16>
    %cst_41 = arith.constant dense<0.000000e+00> : vector<256x128xf32>
    %44 = tpu.matmul %41, %43, %cst_41 {dimension_numbers = #tpu.dot_dimension_numbers<[1], [0], [0], [1], [0, 0, 1, 1], [], []>} : vector<256x128xbf16>, vector<128x128xbf16>, vector<256x128xf32> -> vector<256x128xf32>
    %45 = arith.addf %39, %44 : vector<256x128xf32>
    %c1_42 = arith.constant 1 : index
    %c2_43 = arith.constant 2 : index
    %c0_44 = arith.constant 0 : index
    %46 = vector.load %arg6[%c1_42, %c2_43, %c0_44] : memref<18x18x128xbf16, #tpu.memory_space<vmem>>, vector<16x16x128xbf16>
    %47 = vector.shape_cast %46 : vector<16x16x128xbf16> to vector<256x128xbf16>
    %c5 = arith.constant 5 : index
    %c0_45 = arith.constant 0 : index
    %c0_46 = arith.constant 0 : index
    %48 = vector.load %arg3[%c5, %c0_45, %c0_46] : memref<9x128x128xbf16, #tpu.memory_space<vmem>>, vector<1x128x128xbf16>
    %49 = vector.shape_cast %48 : vector<1x128x128xbf16> to vector<128x128xbf16>
    %cst_47 = arith.constant dense<0.000000e+00> : vector<256x128xf32>
    %50 = tpu.matmul %47, %49, %cst_47 {dimension_numbers = #tpu.dot_dimension_numbers<[1], [0], [0], [1], [0, 0, 1, 1], [], []>} : vector<256x128xbf16>, vector<128x128xbf16>, vector<256x128xf32> -> vector<256x128xf32>
    %51 = arith.addf %45, %50 : vector<256x128xf32>
    %c2_48 = arith.constant 2 : index
    %c0_49 = arith.constant 0 : index
    %c0_50 = arith.constant 0 : index
    %52 = vector.load %arg6[%c2_48, %c0_49, %c0_50] : memref<18x18x128xbf16, #tpu.memory_space<vmem>>, vector<16x16x128xbf16>
    %53 = vector.shape_cast %52 : vector<16x16x128xbf16> to vector<256x128xbf16>
    %c6 = arith.constant 6 : index
    %c0_51 = arith.constant 0 : index
    %c0_52 = arith.constant 0 : index
    %54 = vector.load %arg3[%c6, %c0_51, %c0_52] : memref<9x128x128xbf16, #tpu.memory_space<vmem>>, vector<1x128x128xbf16>
    %55 = vector.shape_cast %54 : vector<1x128x128xbf16> to vector<128x128xbf16>
    %cst_53 = arith.constant dense<0.000000e+00> : vector<256x128xf32>
    %56 = tpu.matmul %53, %55, %cst_53 {dimension_numbers = #tpu.dot_dimension_numbers<[1], [0], [0], [1], [0, 0, 1, 1], [], []>} : vector<256x128xbf16>, vector<128x128xbf16>, vector<256x128xf32> -> vector<256x128xf32>
    %57 = arith.addf %51, %56 : vector<256x128xf32>
    %c2_54 = arith.constant 2 : index
    %c1_55 = arith.constant 1 : index
    %c0_56 = arith.constant 0 : index
    %58 = vector.load %arg6[%c2_54, %c1_55, %c0_56] : memref<18x18x128xbf16, #tpu.memory_space<vmem>>, vector<16x16x128xbf16>
    %59 = vector.shape_cast %58 : vector<16x16x128xbf16> to vector<256x128xbf16>
    %c7 = arith.constant 7 : index
    %c0_57 = arith.constant 0 : index
    %c0_58 = arith.constant 0 : index
    %60 = vector.load %arg3[%c7, %c0_57, %c0_58] : memref<9x128x128xbf16, #tpu.memory_space<vmem>>, vector<1x128x128xbf16>
    %61 = vector.shape_cast %60 : vector<1x128x128xbf16> to vector<128x128xbf16>
    %cst_59 = arith.constant dense<0.000000e+00> : vector<256x128xf32>
    %62 = tpu.matmul %59, %61, %cst_59 {dimension_numbers = #tpu.dot_dimension_numbers<[1], [0], [0], [1], [0, 0, 1, 1], [], []>} : vector<256x128xbf16>, vector<128x128xbf16>, vector<256x128xf32> -> vector<256x128xf32>
    %63 = arith.addf %57, %62 : vector<256x128xf32>
    %c2_60 = arith.constant 2 : index
    %c2_61 = arith.constant 2 : index
    %c0_62 = arith.constant 0 : index
    %64 = vector.load %arg6[%c2_60, %c2_61, %c0_62] : memref<18x18x128xbf16, #tpu.memory_space<vmem>>, vector<16x16x128xbf16>
    %65 = vector.shape_cast %64 : vector<16x16x128xbf16> to vector<256x128xbf16>
    %c8 = arith.constant 8 : index
    %c0_63 = arith.constant 0 : index
    %c0_64 = arith.constant 0 : index
    %66 = vector.load %arg3[%c8, %c0_63, %c0_64] : memref<9x128x128xbf16, #tpu.memory_space<vmem>>, vector<1x128x128xbf16>
    %67 = vector.shape_cast %66 : vector<1x128x128xbf16> to vector<128x128xbf16>
    %cst_65 = arith.constant dense<0.000000e+00> : vector<256x128xf32>
    %68 = tpu.matmul %65, %67, %cst_65 {dimension_numbers = #tpu.dot_dimension_numbers<[1], [0], [0], [1], [0, 0, 1, 1], [], []>} : vector<256x128xbf16>, vector<128x128xbf16>, vector<256x128xf32> -> vector<256x128xf32>
    %69 = arith.addf %63, %68 : vector<256x128xf32>
    %70 = vector.shape_cast %69 : vector<256x128xf32> to vector<16x16x128xf32>
    %c0_66 = arith.constant 0 : index
    %c0_67 = arith.constant 0 : index
    %c0_68 = arith.constant 0 : index
    %c0_69 = arith.constant 0 : index
    %71 = vector.load %arg4[%c0_66, %c0_67, %c0_68, %c0_69] : memref<1x16x16x128xf32, #tpu.memory_space<vmem>>, vector<1x16x16x128xf32>
    %72 = vector.shape_cast %71 : vector<1x16x16x128xf32> to vector<16x16x128xf32>
    %73 = vector.shape_cast %70 : vector<16x16x128xf32> to vector<1x16x16x128xf32>
    tpu.vector_store %arg4[%c0_66, %c0_67, %c0_68, %c0_69], %73 {strides = array<i32>} : memref<1x16x16x128xf32, #tpu.memory_space<vmem>>, vector<1x16x16x128xf32>,
    %c0_70 = arith.constant 0 : index
    %c0_71 = arith.constant 0 : index
    %74 = vector.load %arg5[%c0_70, %c0_71] : memref<2x128xf32, #tpu.memory_space<vmem>>, vector<1x128xf32>
    %cst_72 = arith.constant dense<0.000000e+00> : vector<128xf32>
    %75 = vector.multi_reduction <add>, %69, %cst_72 [0] : vector<256x128xf32> to vector<128xf32>
    %76 = vector.shape_cast %75 : vector<128xf32> to vector<1x128xf32>
    %77 = arith.addf %74, %76 : vector<1x128xf32>
    %c0_73 = arith.constant 0 : index
    %c0_74 = arith.constant 0 : index
    %78 = vector.load %arg5[%c0_73, %c0_74] : memref<2x128xf32, #tpu.memory_space<vmem>>, vector<1x128xf32>
    tpu.vector_store %arg5[%c0_73, %c0_74], %77 {strides = array<i32>} : memref<2x128xf32, #tpu.memory_space<vmem>>, vector<1x128xf32>,
    %c1_75 = arith.constant 1 : index
    %c0_76 = arith.constant 0 : index
    %79 = vector.load %arg5[%c1_75, %c0_76] : memref<2x128xf32, #tpu.memory_space<vmem>>, vector<1x128xf32>
    %80 = arith.mulf %69, %69 : vector<256x128xf32>
    %cst_77 = arith.constant dense<0.000000e+00> : vector<128xf32>
    %81 = vector.multi_reduction <add>, %80, %cst_77 [0] : vector<256x128xf32> to vector<128xf32>
    %82 = vector.shape_cast %81 : vector<128xf32> to vector<1x128xf32>
    %83 = arith.addf %79, %82 : vector<1x128xf32>
    %c1_78 = arith.constant 1 : index
    %c0_79 = arith.constant 0 : index
    %84 = vector.load %arg5[%c1_78, %c0_79] : memref<2x128xf32, #tpu.memory_space<vmem>>, vector<1x128xf32>
    tpu.vector_store %arg5[%c1_78, %c0_79], %83 {strides = array<i32>} : memref<2x128xf32, #tpu.memory_space<vmem>>, vector<1x128xf32>,
    return
  }
  func.func @transform_0(%arg0: i32) -> (i32, i32, i32, i32) {
    %c0_i32 = arith.constant 0 : i32
    %c0_i32_0 = arith.constant 0 : i32
    %c0_i32_1 = arith.constant 0 : i32
    %c0_i32_2 = arith.constant 0 : i32
    return %arg0, %c0_i32, %c0_i32_0, %c0_i32_1 : i32, i32, i32, i32
  }
  func.func @transform_1(%arg0: i32) -> (i32, i32) {
    %c0_i32 = arith.constant 0 : i32
    %c0_i32_0 = arith.constant 0 : i32
    %c0_i32_1 = arith.constant 0 : i32
    return %c0_i32, %c0_i32_0 : i32, i32
  }
  func.func @transform_2(%arg0: i32) -> (i32, i32, i32) {
    %c0_i32 = arith.constant 0 : i32
    %c0_i32_0 = arith.constant 0 : i32
    %c0_i32_1 = arith.constant 0 : i32
    %c0_i32_2 = arith.constant 0 : i32
    return %c0_i32, %c0_i32_0, %c0_i32_1 : i32, i32, i32
  }
  func.func @transform_3(%arg0: i32) -> (i32, i32, i32, i32) {
    %c0_i32 = arith.constant 0 : i32
    %c0_i32_0 = arith.constant 0 : i32
    %c0_i32_1 = arith.constant 0 : i32
    %c0_i32_2 = arith.constant 0 : i32
    return %arg0, %c0_i32, %c0_i32_0, %c0_i32_1 : i32, i32, i32, i32
  }
  func.func @transform_4(%arg0: i32) -> (i32, i32) {
    %c0_i32 = arith.constant 0 : i32
    %c0_i32_0 = arith.constant 0 : i32
    %c0_i32_1 = arith.constant 0 : i32
    return %c0_i32, %c0_i32_0 : i32, i32
  }
}

module attributes {stable_mosaic.version = 11 : i64} {
  func.func @_conv1_stats_kernel(%arg0: i32, %arg1: memref<1x16x16x128xf32, #tpu.memory_space<vmem>>, %arg2: memref<9x128x128xbf16, #tpu.memory_space<vmem>>, %arg3: memref<1x16x16x128xf32, #tpu.memory_space<vmem>>, %arg4: memref<2x128xf32, #tpu.memory_space<vmem>>, %arg5: memref<18x18x128xbf16, #tpu.memory_space<vmem>>) attributes {dimension_semantics = [#tpu.dimension_semantics<arbitrary>], iteration_bounds = array<i64: 2>, scalar_prefetch = 0 : i64, scratch_operands = 1 : i64, tpu.core_type = #tpu.core_type<tc>, window_params = [{transform_indices = @transform_0, window_bounds = array<i64: 1, 16, 16, 128>}, {pipeline_mode = #tpu.pipeline_mode<synchronous>, transform_indices = @transform_1, window_bounds = array<i64: 9, 128, 128>}, {transform_indices = @transform_2, window_bounds = array<i64: 1, 16, 16, 128>}, {pipeline_mode = #tpu.pipeline_mode<synchronous>, transform_indices = @transform_3, window_bounds = array<i64: 2, 128>}]} {
    %c0_i32 = arith.constant 0 : i32
    %0 = arith.cmpi eq, %arg0, %c0_i32 : i32
    %1 = arith.extui %0 : i1 to i32
    %c0_i32_0 = arith.constant 0 : i32
    %2 = arith.cmpi ne, %1, %c0_i32_0 : i32
    scf.if %2 {
      %cst_75 = arith.constant 0.000000e+00 : f32
      %75 = vector.broadcast %cst_75 : f32 to vector<2x128xf32>
      %c0_76 = arith.constant 0 : index
      %c0_77 = arith.constant 0 : index
      %76 = vector.load %arg4[%c0_76, %c0_77] : memref<2x128xf32, #tpu.memory_space<vmem>>, vector<2x128xf32>
      tpu.vector_store %arg4[%c0_76, %c0_77], %75 {strides = array<i32>} : memref<2x128xf32, #tpu.memory_space<vmem>>, vector<2x128xf32>,
      %cst_78 = arith.constant 0.000000e+00 : bf16
      %77 = vector.broadcast %cst_78 : bf16 to vector<18x18x128xbf16>
      %c0_79 = arith.constant 0 : index
      %c0_80 = arith.constant 0 : index
      %c0_81 = arith.constant 0 : index
      %78 = vector.load %arg5[%c0_79, %c0_80, %c0_81] : memref<18x18x128xbf16, #tpu.memory_space<vmem>>, vector<18x18x128xbf16>
      tpu.vector_store %arg5[%c0_79, %c0_80, %c0_81], %77 {strides = array<i32>} : memref<18x18x128xbf16, #tpu.memory_space<vmem>>, vector<18x18x128xbf16>,
    } else {
    }
    %c0 = arith.constant 0 : index
    %c0_1 = arith.constant 0 : index
    %c0_2 = arith.constant 0 : index
    %c0_3 = arith.constant 0 : index
    %3 = vector.load %arg1[%c0, %c0_1, %c0_2, %c0_3] : memref<1x16x16x128xf32, #tpu.memory_space<vmem>>, vector<1x16x16x128xf32>
    %4 = vector.shape_cast %3 : vector<1x16x16x128xf32> to vector<16x16x128xf32>
    %5 = arith.truncf %4 : vector<16x16x128xf32> to vector<16x16x128xbf16>
    %c1 = arith.constant 1 : index
    %c1_4 = arith.constant 1 : index
    %c0_5 = arith.constant 0 : index
    %6 = vector.load %arg5[%c1, %c1_4, %c0_5] : memref<18x18x128xbf16, #tpu.memory_space<vmem>>, vector<16x16x128xbf16>
    tpu.vector_store %arg5[%c1, %c1_4, %c0_5], %5 {strides = array<i32>} : memref<18x18x128xbf16, #tpu.memory_space<vmem>>, vector<16x16x128xbf16>,
    %c0_6 = arith.constant 0 : index
    %c0_7 = arith.constant 0 : index
    %c0_8 = arith.constant 0 : index
    %7 = vector.load %arg5[%c0_6, %c0_7, %c0_8] : memref<18x18x128xbf16, #tpu.memory_space<vmem>>, vector<16x16x128xbf16>
    %8 = vector.shape_cast %7 : vector<16x16x128xbf16> to vector<256x128xbf16>
    %c0_9 = arith.constant 0 : index
    %c0_10 = arith.constant 0 : index
    %c0_11 = arith.constant 0 : index
    %9 = vector.load %arg2[%c0_9, %c0_10, %c0_11] : memref<9x128x128xbf16, #tpu.memory_space<vmem>>, vector<1x128x128xbf16>
    %10 = vector.shape_cast %9 : vector<1x128x128xbf16> to vector<128x128xbf16>
    %cst = arith.constant dense<0.000000e+00> : vector<256x128xf32>
    %11 = tpu.matmul %8, %10, %cst {dimension_numbers = #tpu.dot_dimension_numbers<[1], [0], [0], [1], [0, 0, 1, 1], [], []>} : vector<256x128xbf16>, vector<128x128xbf16>, vector<256x128xf32> -> vector<256x128xf32>
    %c0_12 = arith.constant 0 : index
    %c1_13 = arith.constant 1 : index
    %c0_14 = arith.constant 0 : index
    %12 = vector.load %arg5[%c0_12, %c1_13, %c0_14] : memref<18x18x128xbf16, #tpu.memory_space<vmem>>, vector<16x16x128xbf16>
    %13 = vector.shape_cast %12 : vector<16x16x128xbf16> to vector<256x128xbf16>
    %c1_15 = arith.constant 1 : index
    %c0_16 = arith.constant 0 : index
    %c0_17 = arith.constant 0 : index
    %14 = vector.load %arg2[%c1_15, %c0_16, %c0_17] : memref<9x128x128xbf16, #tpu.memory_space<vmem>>, vector<1x128x128xbf16>
    %15 = vector.shape_cast %14 : vector<1x128x128xbf16> to vector<128x128xbf16>
    %cst_18 = arith.constant dense<0.000000e+00> : vector<256x128xf32>
    %16 = tpu.matmul %13, %15, %cst_18 {dimension_numbers = #tpu.dot_dimension_numbers<[1], [0], [0], [1], [0, 0, 1, 1], [], []>} : vector<256x128xbf16>, vector<128x128xbf16>, vector<256x128xf32> -> vector<256x128xf32>
    %17 = arith.addf %11, %16 : vector<256x128xf32>
    %c0_19 = arith.constant 0 : index
    %c2 = arith.constant 2 : index
    %c0_20 = arith.constant 0 : index
    %18 = vector.load %arg5[%c0_19, %c2, %c0_20] : memref<18x18x128xbf16, #tpu.memory_space<vmem>>, vector<16x16x128xbf16>
    %19 = vector.shape_cast %18 : vector<16x16x128xbf16> to vector<256x128xbf16>
    %c2_21 = arith.constant 2 : index
    %c0_22 = arith.constant 0 : index
    %c0_23 = arith.constant 0 : index
    %20 = vector.load %arg2[%c2_21, %c0_22, %c0_23] : memref<9x128x128xbf16, #tpu.memory_space<vmem>>, vector<1x128x128xbf16>
    %21 = vector.shape_cast %20 : vector<1x128x128xbf16> to vector<128x128xbf16>
    %cst_24 = arith.constant dense<0.000000e+00> : vector<256x128xf32>
    %22 = tpu.matmul %19, %21, %cst_24 {dimension_numbers = #tpu.dot_dimension_numbers<[1], [0], [0], [1], [0, 0, 1, 1], [], []>} : vector<256x128xbf16>, vector<128x128xbf16>, vector<256x128xf32> -> vector<256x128xf32>
    %23 = arith.addf %17, %22 : vector<256x128xf32>
    %c1_25 = arith.constant 1 : index
    %c0_26 = arith.constant 0 : index
    %c0_27 = arith.constant 0 : index
    %24 = vector.load %arg5[%c1_25, %c0_26, %c0_27] : memref<18x18x128xbf16, #tpu.memory_space<vmem>>, vector<16x16x128xbf16>
    %25 = vector.shape_cast %24 : vector<16x16x128xbf16> to vector<256x128xbf16>
    %c3 = arith.constant 3 : index
    %c0_28 = arith.constant 0 : index
    %c0_29 = arith.constant 0 : index
    %26 = vector.load %arg2[%c3, %c0_28, %c0_29] : memref<9x128x128xbf16, #tpu.memory_space<vmem>>, vector<1x128x128xbf16>
    %27 = vector.shape_cast %26 : vector<1x128x128xbf16> to vector<128x128xbf16>
    %cst_30 = arith.constant dense<0.000000e+00> : vector<256x128xf32>
    %28 = tpu.matmul %25, %27, %cst_30 {dimension_numbers = #tpu.dot_dimension_numbers<[1], [0], [0], [1], [0, 0, 1, 1], [], []>} : vector<256x128xbf16>, vector<128x128xbf16>, vector<256x128xf32> -> vector<256x128xf32>
    %29 = arith.addf %23, %28 : vector<256x128xf32>
    %c1_31 = arith.constant 1 : index
    %c1_32 = arith.constant 1 : index
    %c0_33 = arith.constant 0 : index
    %30 = vector.load %arg5[%c1_31, %c1_32, %c0_33] : memref<18x18x128xbf16, #tpu.memory_space<vmem>>, vector<16x16x128xbf16>
    %31 = vector.shape_cast %30 : vector<16x16x128xbf16> to vector<256x128xbf16>
    %c4 = arith.constant 4 : index
    %c0_34 = arith.constant 0 : index
    %c0_35 = arith.constant 0 : index
    %32 = vector.load %arg2[%c4, %c0_34, %c0_35] : memref<9x128x128xbf16, #tpu.memory_space<vmem>>, vector<1x128x128xbf16>
    %33 = vector.shape_cast %32 : vector<1x128x128xbf16> to vector<128x128xbf16>
    %cst_36 = arith.constant dense<0.000000e+00> : vector<256x128xf32>
    %34 = tpu.matmul %31, %33, %cst_36 {dimension_numbers = #tpu.dot_dimension_numbers<[1], [0], [0], [1], [0, 0, 1, 1], [], []>} : vector<256x128xbf16>, vector<128x128xbf16>, vector<256x128xf32> -> vector<256x128xf32>
    %35 = arith.addf %29, %34 : vector<256x128xf32>
    %c1_37 = arith.constant 1 : index
    %c2_38 = arith.constant 2 : index
    %c0_39 = arith.constant 0 : index
    %36 = vector.load %arg5[%c1_37, %c2_38, %c0_39] : memref<18x18x128xbf16, #tpu.memory_space<vmem>>, vector<16x16x128xbf16>
    %37 = vector.shape_cast %36 : vector<16x16x128xbf16> to vector<256x128xbf16>
    %c5 = arith.constant 5 : index
    %c0_40 = arith.constant 0 : index
    %c0_41 = arith.constant 0 : index
    %38 = vector.load %arg2[%c5, %c0_40, %c0_41] : memref<9x128x128xbf16, #tpu.memory_space<vmem>>, vector<1x128x128xbf16>
    %39 = vector.shape_cast %38 : vector<1x128x128xbf16> to vector<128x128xbf16>
    %cst_42 = arith.constant dense<0.000000e+00> : vector<256x128xf32>
    %40 = tpu.matmul %37, %39, %cst_42 {dimension_numbers = #tpu.dot_dimension_numbers<[1], [0], [0], [1], [0, 0, 1, 1], [], []>} : vector<256x128xbf16>, vector<128x128xbf16>, vector<256x128xf32> -> vector<256x128xf32>
    %41 = arith.addf %35, %40 : vector<256x128xf32>
    %c2_43 = arith.constant 2 : index
    %c0_44 = arith.constant 0 : index
    %c0_45 = arith.constant 0 : index
    %42 = vector.load %arg5[%c2_43, %c0_44, %c0_45] : memref<18x18x128xbf16, #tpu.memory_space<vmem>>, vector<16x16x128xbf16>
    %43 = vector.shape_cast %42 : vector<16x16x128xbf16> to vector<256x128xbf16>
    %c6 = arith.constant 6 : index
    %c0_46 = arith.constant 0 : index
    %c0_47 = arith.constant 0 : index
    %44 = vector.load %arg2[%c6, %c0_46, %c0_47] : memref<9x128x128xbf16, #tpu.memory_space<vmem>>, vector<1x128x128xbf16>
    %45 = vector.shape_cast %44 : vector<1x128x128xbf16> to vector<128x128xbf16>
    %cst_48 = arith.constant dense<0.000000e+00> : vector<256x128xf32>
    %46 = tpu.matmul %43, %45, %cst_48 {dimension_numbers = #tpu.dot_dimension_numbers<[1], [0], [0], [1], [0, 0, 1, 1], [], []>} : vector<256x128xbf16>, vector<128x128xbf16>, vector<256x128xf32> -> vector<256x128xf32>
    %47 = arith.addf %41, %46 : vector<256x128xf32>
    %c2_49 = arith.constant 2 : index
    %c1_50 = arith.constant 1 : index
    %c0_51 = arith.constant 0 : index
    %48 = vector.load %arg5[%c2_49, %c1_50, %c0_51] : memref<18x18x128xbf16, #tpu.memory_space<vmem>>, vector<16x16x128xbf16>
    %49 = vector.shape_cast %48 : vector<16x16x128xbf16> to vector<256x128xbf16>
    %c7 = arith.constant 7 : index
    %c0_52 = arith.constant 0 : index
    %c0_53 = arith.constant 0 : index
    %50 = vector.load %arg2[%c7, %c0_52, %c0_53] : memref<9x128x128xbf16, #tpu.memory_space<vmem>>, vector<1x128x128xbf16>
    %51 = vector.shape_cast %50 : vector<1x128x128xbf16> to vector<128x128xbf16>
    %cst_54 = arith.constant dense<0.000000e+00> : vector<256x128xf32>
    %52 = tpu.matmul %49, %51, %cst_54 {dimension_numbers = #tpu.dot_dimension_numbers<[1], [0], [0], [1], [0, 0, 1, 1], [], []>} : vector<256x128xbf16>, vector<128x128xbf16>, vector<256x128xf32> -> vector<256x128xf32>
    %53 = arith.addf %47, %52 : vector<256x128xf32>
    %c2_55 = arith.constant 2 : index
    %c2_56 = arith.constant 2 : index
    %c0_57 = arith.constant 0 : index
    %54 = vector.load %arg5[%c2_55, %c2_56, %c0_57] : memref<18x18x128xbf16, #tpu.memory_space<vmem>>, vector<16x16x128xbf16>
    %55 = vector.shape_cast %54 : vector<16x16x128xbf16> to vector<256x128xbf16>
    %c8 = arith.constant 8 : index
    %c0_58 = arith.constant 0 : index
    %c0_59 = arith.constant 0 : index
    %56 = vector.load %arg2[%c8, %c0_58, %c0_59] : memref<9x128x128xbf16, #tpu.memory_space<vmem>>, vector<1x128x128xbf16>
    %57 = vector.shape_cast %56 : vector<1x128x128xbf16> to vector<128x128xbf16>
    %cst_60 = arith.constant dense<0.000000e+00> : vector<256x128xf32>
    %58 = tpu.matmul %55, %57, %cst_60 {dimension_numbers = #tpu.dot_dimension_numbers<[1], [0], [0], [1], [0, 0, 1, 1], [], []>} : vector<256x128xbf16>, vector<128x128xbf16>, vector<256x128xf32> -> vector<256x128xf32>
    %59 = arith.addf %53, %58 : vector<256x128xf32>
    %60 = vector.shape_cast %59 : vector<256x128xf32> to vector<16x16x128xf32>
    %c0_61 = arith.constant 0 : index
    %c0_62 = arith.constant 0 : index
    %c0_63 = arith.constant 0 : index
    %c0_64 = arith.constant 0 : index
    %61 = vector.load %arg3[%c0_61, %c0_62, %c0_63, %c0_64] : memref<1x16x16x128xf32, #tpu.memory_space<vmem>>, vector<1x16x16x128xf32>
    %62 = vector.shape_cast %61 : vector<1x16x16x128xf32> to vector<16x16x128xf32>
    %63 = vector.shape_cast %60 : vector<16x16x128xf32> to vector<1x16x16x128xf32>
    tpu.vector_store %arg3[%c0_61, %c0_62, %c0_63, %c0_64], %63 {strides = array<i32>} : memref<1x16x16x128xf32, #tpu.memory_space<vmem>>, vector<1x16x16x128xf32>,
    %c0_65 = arith.constant 0 : index
    %c0_66 = arith.constant 0 : index
    %64 = vector.load %arg4[%c0_65, %c0_66] : memref<2x128xf32, #tpu.memory_space<vmem>>, vector<1x128xf32>
    %cst_67 = arith.constant dense<0.000000e+00> : vector<128xf32>
    %65 = vector.multi_reduction <add>, %59, %cst_67 [0] : vector<256x128xf32> to vector<128xf32>
    %66 = vector.shape_cast %65 : vector<128xf32> to vector<1x128xf32>
    %67 = arith.addf %64, %66 : vector<1x128xf32>
    %c0_68 = arith.constant 0 : index
    %c0_69 = arith.constant 0 : index
    %68 = vector.load %arg4[%c0_68, %c0_69] : memref<2x128xf32, #tpu.memory_space<vmem>>, vector<1x128xf32>
    tpu.vector_store %arg4[%c0_68, %c0_69], %67 {strides = array<i32>} : memref<2x128xf32, #tpu.memory_space<vmem>>, vector<1x128xf32>,
    %c1_70 = arith.constant 1 : index
    %c0_71 = arith.constant 0 : index
    %69 = vector.load %arg4[%c1_70, %c0_71] : memref<2x128xf32, #tpu.memory_space<vmem>>, vector<1x128xf32>
    %70 = arith.mulf %59, %59 : vector<256x128xf32>
    %cst_72 = arith.constant dense<0.000000e+00> : vector<128xf32>
    %71 = vector.multi_reduction <add>, %70, %cst_72 [0] : vector<256x128xf32> to vector<128xf32>
    %72 = vector.shape_cast %71 : vector<128xf32> to vector<1x128xf32>
    %73 = arith.addf %69, %72 : vector<1x128xf32>
    %c1_73 = arith.constant 1 : index
    %c0_74 = arith.constant 0 : index
    %74 = vector.load %arg4[%c1_73, %c0_74] : memref<2x128xf32, #tpu.memory_space<vmem>>, vector<1x128xf32>
    tpu.vector_store %arg4[%c1_73, %c0_74], %73 {strides = array<i32>} : memref<2x128xf32, #tpu.memory_space<vmem>>, vector<1x128xf32>,
    return
  }
  func.func @transform_0(%arg0: i32) -> (i32, i32, i32, i32) {
    %c0_i32 = arith.constant 0 : i32
    %c0_i32_0 = arith.constant 0 : i32
    %c0_i32_1 = arith.constant 0 : i32
    %c0_i32_2 = arith.constant 0 : i32
    return %arg0, %c0_i32, %c0_i32_0, %c0_i32_1 : i32, i32, i32, i32
  }
  func.func @transform_1(%arg0: i32) -> (i32, i32, i32) {
    %c0_i32 = arith.constant 0 : i32
    %c0_i32_0 = arith.constant 0 : i32
    %c0_i32_1 = arith.constant 0 : i32
    %c0_i32_2 = arith.constant 0 : i32
    return %c0_i32, %c0_i32_0, %c0_i32_1 : i32, i32, i32
  }
  func.func @transform_2(%arg0: i32) -> (i32, i32, i32, i32) {
    %c0_i32 = arith.constant 0 : i32
    %c0_i32_0 = arith.constant 0 : i32
    %c0_i32_1 = arith.constant 0 : i32
    %c0_i32_2 = arith.constant 0 : i32
    return %arg0, %c0_i32, %c0_i32_0, %c0_i32_1 : i32, i32, i32, i32
  }
  func.func @transform_3(%arg0: i32) -> (i32, i32) {
    %c0_i32 = arith.constant 0 : i32
    %c0_i32_0 = arith.constant 0 : i32
    %c0_i32_1 = arith.constant 0 : i32
    return %c0_i32, %c0_i32_0 : i32, i32
  }
}

</mosaic_0001>

<llo_original>
// kernel: basic_block_forward.5
$region0: #{basic_block_forward.5}
  #allocation0 [shape = 'u32[]', space=smem, size = 0x4, offset = 0x4, fixed_abs, tag = 'smem constant byte address 0x4 - core index']
  #allocation1 [shape = 'u32[144,128]{1,0:T(1,128)}', space=vmem, size = 0x12000, scoped, tag = 'internal scratch']
  %s0 = inlined_call_operand.vmem [shape: f32[2,16,16,128], index: 0, kind: input, shape index: {}]
  %s1 = inlined_call_operand.vmem [shape: f32[2,128], index: 1, kind: input, shape index: {}]
  %s2 = inlined_call_operand.vmem [shape: f32[2,16,16,128], index: 2, kind: input, shape index: {}]
  %s3 = inlined_call_operand.vmem [shape: f32[2,16,16,128], index: 3, kind: output, shape index: {}]
  %s4 = sld [smem:[#allocation0]]
  $region45: #{basic_block_forward.5} parent=0
    _
  %s6 = ssub.s32 1, %s4
  %s7 = scalar_select 0, %s6, %s4
  loop: start=0, step=1, limit=4
  $region2: #{basic_block_forward.5} parent=0 // loop_pre_header
    _
  $region3: #{basic_block_forward.5} parent=0 // loop_header
    %s9 = sphi 0, %s13
    %p10 = scmp.ge.s32.totalorder %s9, 4
    %s19 = sphi 0, %s21
    %s22 = sphi 0, %s19
    %s23 = sphi 0, %s22
    %s39 = sphi 0, %s23
    %s43 = sphi 0, %s43
    %s45 = sphi 0, %s43
    %s46 = sphi 0, %s45
    %s60 = sphi 0, %s46
    %s66 = sphi 0, %s68
    %s69 = sphi 0, %s66
    %s70 = sphi 0, %s69
    %s86 = sphi 0, %s70
    %s92 = sphi 0, %s94
    %s95 = sphi 0, %s92
    %s96 = sphi 0, %s95
    %s112 = sphi 0, %s96
  $region4: #{basic_block_forward.5} parent=0 // loop_header_branch
    %12 = sbr.rel (%p10) target = $region8
  $region5: #{basic_block_forward.5} parent=0 // loop_body
    %s14 = ssub.s32 %s9, 1
    %s15 = ssub.s32 %s9, 2
    %s16 = sadd.s32 %s9, 1
    %s17 = ssub.s32 %s9, %s16
    %p18 = scmp.eq.s32.totalorder %s17, 0
    %s20 = sadd.s32 %s19, 1
    %s21 = scalar_select %p18, %s19, %s20
    %p24 = pneg %p18
    %p25 = scmp.eq.s32.totalorder %s9, 1
    %p26 = por %p24, %p25
    %p27 = scmp.ne.s32.totalorder %s19, %s22
    %p28 = scmp.eq.s32.totalorder %s9, 0
    %p29 = por %p27, %p28
    %p30 = scmp.ne.s32.totalorder %s19, %s22
    %p31 = scmp.eq.s32.totalorder %s14, 1
    %p32 = por %p30, %p31
    %p33 = scmp.ne.s32.totalorder %s22, %s23
    %p34 = scmp.eq.s32.totalorder %s14, 0
    %p35 = por %p33, %p34
    %p36 = scmp.ne.s32.totalorder %s22, %s23
    %p37 = scmp.eq.s32.totalorder %s15, 1
    %p38 = por %p36, %p37
    %p40 = scmp.ne.s32.totalorder %s23, %s39
    %p41 = scmp.eq.s32.totalorder %s15, 0
    %p42 = por %p40, %p41
    %s44 = sadd.s32 %s43, 1
    %p47 = scmp.eq.s32.totalorder %s9, 1
    %p48 = scmp.ne.s32.totalorder %s43, %s45
    %p49 = scmp.eq.s32.totalorder %s9, 0
    %p50 = por %p48, %p49
    %p51 = scmp.ne.s32.totalorder %s43, %s45
    %p52 = scmp.eq.s32.totalorder %s14, 1
    %p53 = por %p51, %p52
    %p54 = scmp.ne.s32.totalorder %s45, %s46
    %p55 = scmp.eq.s32.totalorder %s14, 0
    %p56 = por %p54, %p55
    %p57 = scmp.ne.s32.totalorder %s45, %s46
    %p58 = scmp.eq.s32.totalorder %s15, 1
    %p59 = por %p57, %p58
    %p61 = scmp.ne.s32.totalorder %s46, %s60
    %p62 = scmp.eq.s32.totalorder %s15, 0
    %p63 = por %p61, %p62
    %s64 = ssub.s32 %s9, %s16
    %p65 = scmp.eq.s32.totalorder %s64, 0
    %s67 = sadd.s32 %s66, 1
    %s68 = scalar_select %p65, %s66, %s67
    %p71 = pneg %p65
    %p72 = scmp.eq.s32.totalorder %s9, 1
    %p73 = por %p71, %p72
    %p74 = scmp.ne.s32.totalorder %s66, %s69
    %p75 = scmp.eq.s32.totalorder %s9, 0
    %p76 = por %p74, %p75
    %p77 = scmp.ne.s32.totalorder %s66, %s69
    %p78 = scmp.eq.s32.totalorder %s14, 1
    %p79 = por %p77, %p78
    %p80 = scmp.ne.s32.totalorder %s69, %s70
    %p81 = scmp.eq.s32.totalorder %s14, 0
    %p82 = por %p80, %p81
    %p83 = scmp.ne.s32.totalorder %s69, %s70
    %p84 = scmp.eq.s32.totalorder %s15, 1
    %p85 = por %p83, %p84
    %p87 = scmp.ne.s32.totalorder %s70, %s86
    %p88 = scmp.eq.s32.totalorder %s15, 0
    %p89 = por %p87, %p88
    %s90 = ssub.s32 %s9, %s16
    %p91 = scmp.eq.s32.totalorder %s90, 0
    %s93 = sadd.s32 %s92, 1
    %s94 = scalar_select %p91, %s92, %s93
    %p97 = pneg %p91
    %p98 = scmp.eq.s32.totalorder %s9, 1
    %p99 = por %p97, %p98
    %p100 = scmp.ne.s32.totalorder %s92, %s95
    %p101 = scmp.eq.s32.totalorder %s9, 0
    %p102 = por %p100, %p101
    %p103 = scmp.ne.s32.totalorder %s92, %s95
    %p104 = scmp.eq.s32.totalorder %s14, 1
    %p105 = por %p103, %p104
    %p106 = scmp.ne.s32.totalorder %s95, %s96
    %p107 = scmp.eq.s32.totalorder %s14, 0
    %p108 = por %p106, %p107
    %p109 = scmp.ne.s32.totalorder %s95, %s96
    %p110 = scmp.eq.s32.totalorder %s15, 1
    %p111 = por %p109, %p110
    %p113 = scmp.ne.s32.totalorder %s96, %s112
    %p114 = scmp.eq.s32.totalorder %s15, 0
    %p115 = por %p113, %p114
    %p116 = scmp.le.s32.totalorder 1, %s9
    %p117 = scmp.lt.s32.totalorder %s9, 3
    %p118 = pnand %p116, %p117
    %p119 = pneg %p118
    // Predicated region
    $region9: #{basic_block_forward.5} parent=5 // pred_check
      _
    $region10: #{basic_block_forward.5} parent=5 // pred_check_branch
      %121 = sbr.rel (%p118) target = $region12
    $region11: #{basic_block_forward.5} parent=5 // pred_region
      %s122 = ssub.s32 %s9, 1
      // Predicated region
      $region13: #{basic_block_forward.5} parent=11 // pred_check
        %p123 = pneg %p56
      $region14: #{basic_block_forward.5} parent=11 // pred_check_branch
        %125 = sbr.rel (%p123) target = $region16
      $region15: #{basic_block_forward.5} parent=11 // pred_region
        _
      $region16: #{basic_block_forward.5} parent=11 // pred_fallthru
        _
    $region12: #{basic_block_forward.5} parent=5 // pred_fallthru
      _
    %p126 = scmp.lt.s32.totalorder %s9, 2
    // Predicated region
    $region17: #{basic_block_forward.5} parent=5 // pred_check
      %p127 = pneg %p126
    $region18: #{basic_block_forward.5} parent=5 // pred_check_branch
      %129 = sbr.rel (%p127) target = $region20
    $region19: #{basic_block_forward.5} parent=5 // pred_region
      // Predicated region
      $region21: #{basic_block_forward.5} parent=19 // pred_check
        %p130 = pneg %p29
      $region22: #{basic_block_forward.5} parent=19 // pred_check_branch
        %132 = sbr.rel (%p130) target = $region24
      $region23: #{basic_block_forward.5} parent=19 // pred_region
        %p133 = scmp.lt.s32.totalorder %s9, 1
        %s134 = scalar_select %p133, %s9, 1
        %s135 = smul.addr %s134, 32
        %s136 = smul.addr %s135, 8
        %s137 = scalar_lea.vmem %s0, %s136
      $region24: #{basic_block_forward.5} parent=19 // pred_fallthru
        _
      // Predicated region
      $region25: #{basic_block_forward.5} parent=19 // pred_check
        %p138 = pneg %p76
      $region26: #{basic_block_forward.5} parent=19 // pred_check_branch
        %140 = sbr.rel (%p138) target = $region28
      $region27: #{basic_block_forward.5} parent=19 // pred_region
        %p141 = scmp.lt.s32.totalorder %s9, 1
        %s142 = scalar_select %p141, %s9, 1
        %s143 = smul.addr %s142, 32
        %s144 = smul.addr %s143, 8
        %s145 = scalar_lea.vmem %s2, %s144
      $region28: #{basic_block_forward.5} parent=19 // pred_fallthru
        _
    $region20: #{basic_block_forward.5} parent=5 // pred_fallthru
      _
    %p146 = scmp.le.s32.totalorder 1, %s9
    %p147 = scmp.lt.s32.totalorder %s9, 3
    %p148 = pnand %p146, %p147
    %p149 = pneg %p148
    // Predicated region
    $region29: #{basic_block_forward.5} parent=5 // pred_check
      _
    $region30: #{basic_block_forward.5} parent=5 // pred_check_branch
      %151 = sbr.rel (%p148) target = $region32
    $region31: #{basic_block_forward.5} parent=5 // pred_region
      %s152 = ssub.s32 %s9, 1
      %p153 = scmp.lt.s32.totalorder %s14, 1
      %s154 = scalar_select %p153, %s14, 1
      %s155 = smul.addr %s154, 32
      %s156 = smul.addr %s155, 8
      %s157 = scalar_lea.vmem %s0, %s156
      %p158 = pneg %p35
      %p159 = pneg %p32
      %p160 = pneg %p56
      %p161 = pneg %p53
      %p162 = scmp.lt.s32.totalorder %s14, 1
      %s163 = scalar_select %p162, %s14, 1
      %s164 = smul.addr %s163, 32
      %s165 = smul.addr %s164, 8
      %s166 = scalar_lea.vmem %s2, %s165
      %p167 = pneg %p82
      %p168 = pneg %p79
      %p169 = pneg %p108
      %p170 = pneg %p105
      %p171 = scmp.lt.s32.totalorder %s14, 1
      %s172 = scalar_select %p171, %s14, 1
      %s173 = smul.addr %s172, 32
      %s174 = smul.addr %s173, 8
      %s175 = scalar_lea.vmem %s3, %s174
      %p176 = scmp.lt.s32.totalorder %s14, 1
      %s177 = scalar_select %p176, %s14, 1
      %s178 = smul.addr %s177, 32
      %s179 = smul.addr %s178, 8
      %s180 = scalar_lea.vmem %s0, %s179
      %p181 = scmp.lt.s32.totalorder %s14, 1
      %s182 = scalar_select %p181, %s14, 1
      %s183 = smul.addr %s182, 32
      %s184 = smul.addr %s183, 8
      %s185 = scalar_lea.vmem %s2, %s184
      %p186 = scmp.lt.s32.totalorder %s14, 1
      %s187 = scalar_select %p186, %s14, 1
      %s188 = smul.addr %s187, 32
      %s189 = smul.addr %s188, 8
      %s190 = scalar_lea.vmem %s3, %s189
      %v191 = vld [vmem:[%s1] sm:$0x1]
      %v192 = vld [vmem:[%s1 + $0x1] sm:$0x1]
      %v193 = vld [vmem:[%s180] sm:$0xff]
      %v194 = vld [vmem:[%s180 + $0x8] sm:$0xff]
      %v195 = vld [vmem:[%s180 + $0x10] sm:$0xff]
      %v196 = vld [vmem:[%s180 + $0x18] sm:$0xff]
      %v197 = vld [vmem:[%s180 + $0x20] sm:$0xff]
      %v198 = vld [vmem:[%s180 + $0x28] sm:$0xff]
      %v199 = vld [vmem:[%s180 + $0x30] sm:$0xff]
      %v200 = vld [vmem:[%s180 + $0x38] sm:$0xff]
      %v201 = vld [vmem:[%s180 + $0x40] sm:$0xff]
      %v202 = vld [vmem:[%s180 + $0x48] sm:$0xff]
      %v203 = vld [vmem:[%s180 + $0x50] sm:$0xff]
      %v204 = vld [vmem:[%s180 + $0x58] sm:$0xff]
      %v205 = vld [vmem:[%s180 + $0x60] sm:$0xff]
      %v206 = vld [vmem:[%s180 + $0x68] sm:$0xff]
      %v207 = vld [vmem:[%s180 + $0x70] sm:$0xff]
      %v208 = vld [vmem:[%s180 + $0x78] sm:$0xff]
      %v209 = vld [vmem:[%s180 + $0x80] sm:$0xff]
      %v210 = vld [vmem:[%s180 + $0x88] sm:$0xff]
      %v211 = vld [vmem:[%s180 + $0x90] sm:$0xff]
      %v212 = vld [vmem:[%s180 + $0x98] sm:$0xff]
      %v213 = vld [vmem:[%s180 + $0xa0] sm:$0xff]
      %v214 = vld [vmem:[%s180 + $0xa8] sm:$0xff]
      %v215 = vld [vmem:[%s180 + $0xb0] sm:$0xff]
      %v216 = vld [vmem:[%s180 + $0xb8] sm:$0xff]
      %v217 = vld [vmem:[%s180 + $0xc0] sm:$0xff]
      %v218 = vld [vmem:[%s180 + $0xc8] sm:$0xff]
      %v219 = vld [vmem:[%s180 + $0xd0] sm:$0xff]
      %v220 = vld [vmem:[%s180 + $0xd8] sm:$0xff]
      %v221 = vld [vmem:[%s180 + $0xe0] sm:$0xff]
      %v222 = vld [vmem:[%s180 + $0xe8] sm:$0xff]
      %v223 = vld [vmem:[%s180 + $0xf0] sm:$0xff]
      %v224 = vld [vmem:[%s180 + $0xf8] sm:$0xff]
      %v225 = vlaneseq
      %v226 = vshrl.u32 %v225, 7
      %v227 = vsub.s32 0, %v226
      %v228 = vrot.slane %v191, %v227
      %v229 = vmul.f32 %v193, %v228
      %v230 = vmul.f32 %v194, %v228
      %v231 = vmul.f32 %v195, %v228
      %v232 = vmul.f32 %v196, %v228
      %v233 = vmul.f32 %v197, %v228
      %v234 = vmul.f32 %v198, %v228
      %v235 = vmul.f32 %v199, %v228
      %v236 = vmul.f32 %v200, %v228
      %v237 = vmul.f32 %v201, %v228
      %v238 = vmul.f32 %v202, %v228
      %v239 = vmul.f32 %v203, %v228
      %v240 = vmul.f32 %v204, %v228
      %v241 = vmul.f32 %v205, %v228
      %v242 = vmul.f32 %v206, %v228
      %v243 = vmul.f32 %v207, %v228
      %v244 = vmul.f32 %v208, %v228
      %v245 = vmul.f32 %v209, %v228
      %v246 = vmul.f32 %v210, %v228
      %v247 = vmul.f32 %v211, %v228
      %v248 = vmul.f32 %v212, %v228
      %v249 = vmul.f32 %v213, %v228
      %v250 = vmul.f32 %v214, %v228
      %v251 = vmul.f32 %v215, %v228
      %v252 = vmul.f32 %v216, %v228
      %v253 = vmul.f32 %v217, %v228
      %v254 = vmul.f32 %v218, %v228
      %v255 = vmul.f32 %v219, %v228
      %v256 = vmul.f32 %v220, %v228
      %v257 = vmul.f32 %v221, %v228
      %v258 = vmul.f32 %v222, %v228
      %v259 = vmul.f32 %v223, %v228
      %v260 = vmul.f32 %v224, %v228
      %v261 = vlaneseq
      %v262 = vshrl.u32 %v261, 7
      %v263 = vsub.s32 0, %v262
      %v264 = vrot.slane %v192, %v263
      %v265 = vadd.f32 %v229, %v264
      %v266 = vadd.f32 %v230, %v264
      %v267 = vadd.f32 %v231, %v264
      %v268 = vadd.f32 %v232, %v264
      %v269 = vadd.f32 %v233, %v264
      %v270 = vadd.f32 %v234, %v264
      %v271 = vadd.f32 %v235, %v264
      %v272 = vadd.f32 %v236, %v264
      %v273 = vadd.f32 %v237, %v264
      %v274 = vadd.f32 %v238, %v264
      %v275 = vadd.f32 %v239, %v264
      %v276 = vadd.f32 %v240, %v264
      %v277 = vadd.f32 %v241, %v264
      %v278 = vadd.f32 %v242, %v264
      %v279 = vadd.f32 %v243, %v264
      %v280 = vadd.f32 %v244, %v264
      %v281 = vadd.f32 %v245, %v264
      %v282 = vadd.f32 %v246, %v264
      %v283 = vadd.f32 %v247, %v264
      %v284 = vadd.f32 %v248, %v264
      %v285 = vadd.f32 %v249, %v264
      %v286 = vadd.f32 %v250, %v264
      %v287 = vadd.f32 %v251, %v264
      %v288 = vadd.f32 %v252, %v264
      %v289 = vadd.f32 %v253, %v264
      %v290 = vadd.f32 %v254, %v264
      %v291 = vadd.f32 %v255, %v264
      %v292 = vadd.f32 %v256, %v264
      %v293 = vadd.f32 %v257, %v264
      %v294 = vadd.f32 %v258, %v264
      %v295 = vadd.f32 %v259, %v264
      %v296 = vadd.f32 %v260, %v264
      %v297 = vld [vmem:[%s185] sm:$0xff]
      %v298 = vld [vmem:[%s185 + $0x8] sm:$0xff]
      %v299 = vld [vmem:[%s185 + $0x10] sm:$0xff]
      %v300 = vld [vmem:[%s185 + $0x18] sm:$0xff]
      %v301 = vld [vmem:[%s185 + $0x20] sm:$0xff]
      %v302 = vld [vmem:[%s185 + $0x28] sm:$0xff]
      %v303 = vld [vmem:[%s185 + $0x30] sm:$0xff]
      %v304 = vld [vmem:[%s185 + $0x38] sm:$0xff]
      %v305 = vld [vmem:[%s185 + $0x40] sm:$0xff]
      %v306 = vld [vmem:[%s185 + $0x48] sm:$0xff]
      %v307 = vld [vmem:[%s185 + $0x50] sm:$0xff]
      %v308 = vld [vmem:[%s185 + $0x58] sm:$0xff]
      %v309 = vld [vmem:[%s185 + $0x60] sm:$0xff]
      %v310 = vld [vmem:[%s185 + $0x68] sm:$0xff]
      %v311 = vld [vmem:[%s185 + $0x70] sm:$0xff]
      %v312 = vld [vmem:[%s185 + $0x78] sm:$0xff]
      %v313 = vld [vmem:[%s185 + $0x80] sm:$0xff]
      %v314 = vld [vmem:[%s185 + $0x88] sm:$0xff]
      %v315 = vld [vmem:[%s185 + $0x90] sm:$0xff]
      %v316 = vld [vmem:[%s185 + $0x98] sm:$0xff]
      %v317 = vld [vmem:[%s185 + $0xa0] sm:$0xff]
      %v318 = vld [vmem:[%s185 + $0xa8] sm:$0xff]
      %v319 = vld [vmem:[%s185 + $0xb0] sm:$0xff]
      %v320 = vld [vmem:[%s185 + $0xb8] sm:$0xff]
      %v321 = vld [vmem:[%s185 + $0xc0] sm:$0xff]
      %v322 = vld [vmem:[%s185 + $0xc8] sm:$0xff]
      %v323 = vld [vmem:[%s185 + $0xd0] sm:$0xff]
      %v324 = vld [vmem:[%s185 + $0xd8] sm:$0xff]
      %v325 = vld [vmem:[%s185 + $0xe0] sm:$0xff]
      %v326 = vld [vmem:[%s185 + $0xe8] sm:$0xff]
      %v327 = vld [vmem:[%s185 + $0xf0] sm:$0xff]
      %v328 = vld [vmem:[%s185 + $0xf8] sm:$0xff]
      %v329 = vadd.f32 %v265, %v297
      %v330 = vadd.f32 %v266, %v298
      %v331 = vadd.f32 %v267, %v299
      %v332 = vadd.f32 %v268, %v300
      %v333 = vadd.f32 %v269, %v301
      %v334 = vadd.f32 %v270, %v302
      %v335 = vadd.f32 %v271, %v303
      %v336 = vadd.f32 %v272, %v304
      %v337 = vadd.f32 %v273, %v305
      %v338 = vadd.f32 %v274, %v306
      %v339 = vadd.f32 %v275, %v307
      %v340 = vadd.f32 %v276, %v308
      %v341 = vadd.f32 %v277, %v309
      %v342 = vadd.f32 %v278, %v310
      %v343 = vadd.f32 %v279, %v311
      %v344 = vadd.f32 %v280, %v312
      %v345 = vadd.f32 %v281, %v313
      %v346 = vadd.f32 %v282, %v314
      %v347 = vadd.f32 %v283, %v315
      %v348 = vadd.f32 %v284, %v316
      %v349 = vadd.f32 %v285, %v317
      %v350 = vadd.f32 %v286, %v318
      %v351 = vadd.f32 %v287, %v319
      %v352 = vadd.f32 %v288, %v320
      %v353 = vadd.f32 %v289, %v321
      %v354 = vadd.f32 %v290, %v322
      %v355 = vadd.f32 %v291, %v323
      %v356 = vadd.f32 %v292, %v324
      %v357 = vadd.f32 %v293, %v325
      %v358 = vadd.f32 %v294, %v326
      %v359 = vadd.f32 %v295, %v327
      %v360 = vadd.f32 %v296, %v328
      %v361 = vmax.f32 %v329, 0.0
      %v362 = vmax.f32 %v330, 0.0
      %v363 = vmax.f32 %v331, 0.0
      %v364 = vmax.f32 %v332, 0.0
      %v365 = vmax.f32 %v333, 0.0
      %v366 = vmax.f32 %v334, 0.0
      %v367 = vmax.f32 %v335, 0.0
      %v368 = vmax.f32 %v336, 0.0
      %v369 = vmax.f32 %v337, 0.0
      %v370 = vmax.f32 %v338, 0.0
      %v371 = vmax.f32 %v339, 0.0
      %v372 = vmax.f32 %v340, 0.0
      %v373 = vmax.f32 %v341, 0.0
      %v374 = vmax.f32 %v342, 0.0
      %v375 = vmax.f32 %v343, 0.0
      %v376 = vmax.f32 %v344, 0.0
      %v377 = vmax.f32 %v345, 0.0
      %v378 = vmax.f32 %v346, 0.0
      %v379 = vmax.f32 %v347, 0.0
      %v380 = vmax.f32 %v348, 0.0
      %v381 = vmax.f32 %v349, 0.0
      %v382 = vmax.f32 %v350, 0.0
      %v383 = vmax.f32 %v351, 0.0
      %v384 = vmax.f32 %v352, 0.0
      %v385 = vmax.f32 %v353, 0.0
      %v386 = vmax.f32 %v354, 0.0
      %v387 = vmax.f32 %v355, 0.0
      %v388 = vmax.f32 %v356, 0.0
      %v389 = vmax.f32 %v357, 0.0
      %v390 = vmax.f32 %v358, 0.0
      %v391 = vmax.f32 %v359, 0.0
      %v392 = vmax.f32 %v360, 0.0
      %393 = vst [vmem:[%s190] sm:$0xff] %v361
      %394 = vst [vmem:[%s190 + $0x8] sm:$0xff] %v362
      %395 = vst [vmem:[%s190 + $0x10] sm:$0xff] %v363
      %396 = vst [vmem:[%s190 + $0x18] sm:$0xff] %v364
      %397 = vst [vmem:[%s190 + $0x20] sm:$0xff] %v365
      %398 = vst [vmem:[%s190 + $0x28] sm:$0xff] %v366
      %399 = vst [vmem:[%s190 + $0x30] sm:$0xff] %v367
      %400 = vst [vmem:[%s190 + $0x38] sm:$0xff] %v368
      %401 = vst [vmem:[%s190 + $0x40] sm:$0xff] %v369
      %402 = vst [vmem:[%s190 + $0x48] sm:$0xff] %v370
      %403 = vst [vmem:[%s190 + $0x50] sm:$0xff] %v371
      %404 = vst [vmem:[%s190 + $0x58] sm:$0xff] %v372
      %405 = vst [vmem:[%s190 + $0x60] sm:$0xff] %v373
      %406 = vst [vmem:[%s190 + $0x68] sm:$0xff] %v374
      %407 = vst [vmem:[%s190 + $0x70] sm:$0xff] %v375
      %408 = vst [vmem:[%s190 + $0x78] sm:$0xff] %v376
      %409 = vst [vmem:[%s190 + $0x80] sm:$0xff] %v377
      %410 = vst [vmem:[%s190 + $0x88] sm:$0xff] %v378
      %411 = vst [vmem:[%s190 + $0x90] sm:$0xff] %v379
      %412 = vst [vmem:[%s190 + $0x98] sm:$0xff] %v380
      %413 = vst [vmem:[%s190 + $0xa0] sm:$0xff] %v381
      %414 = vst [vmem:[%s190 + $0xa8] sm:$0xff] %v382
      %415 = vst [vmem:[%s190 + $0xb0] sm:$0xff] %v383
      %416 = vst [vmem:[%s190 + $0xb8] sm:$0xff] %v384
      %417 = vst [vmem:[%s190 + $0xc0] sm:$0xff] %v385
      %418 = vst [vmem:[%s190 + $0xc8] sm:$0xff] %v386
      %419 = vst [vmem:[%s190 + $0xd0] sm:$0xff] %v387
      %420 = vst [vmem:[%s190 + $0xd8] sm:$0xff] %v388
      %421 = vst [vmem:[%s190 + $0xe0] sm:$0xff] %v389
      %422 = vst [vmem:[%s190 + $0xe8] sm:$0xff] %v390
      %423 = vst [vmem:[%s190 + $0xf0] sm:$0xff] %v391
      %424 = vst [vmem:[%s190 + $0xf8] sm:$0xff] %v392
      %p425 = scmp.lt.s32.totalorder %s14, 1
      %s426 = scalar_select %p425, %s14, 1
      %s427 = smul.addr %s426, 32
      %s428 = smul.addr %s427, 8
      %s429 = scalar_lea.vmem %s3, %s428
      // Predicated region
      $region33: #{basic_block_forward.5} parent=31 // pred_check
        %p430 = pneg %p105
      $region34: #{basic_block_forward.5} parent=31 // pred_check_branch
        %432 = sbr.rel (%p430) target = $region36
      $region35: #{basic_block_forward.5} parent=31 // pred_region
        _
      $region36: #{basic_block_forward.5} parent=31 // pred_fallthru
        _
    $region32: #{basic_block_forward.5} parent=5 // pred_fallthru
      _
    %p433 = scmp.le.s32.totalorder 2, %s9
    // Predicated region
    $region37: #{basic_block_forward.5} parent=5 // pred_check
      %p434 = pneg %p433
    $region38: #{basic_block_forward.5} parent=5 // pred_check_branch
      %436 = sbr.rel (%p434) target = $region40
    $region39: #{basic_block_forward.5} parent=5 // pred_region
      %s437 = ssub.s32 %s9, 2
      // Predicated region
      $region41: #{basic_block_forward.5} parent=39 // pred_check
        %p438 = pneg %p111
      $region42: #{basic_block_forward.5} parent=39 // pred_check_branch
        %440 = sbr.rel (%p438) target = $region44
      $region43: #{basic_block_forward.5} parent=39 // pred_region
        %p441 = scmp.lt.s32.totalorder %s15, 1
        %s442 = scalar_select %p441, %s15, 1
        %s443 = smul.addr %s442, 32
        %s444 = smul.addr %s443, 8
        %s445 = scalar_lea.vmem %s3, %s444
      $region44: #{basic_block_forward.5} parent=39 // pred_fallthru
        _
    $region40: #{basic_block_forward.5} parent=5 // pred_fallthru
      _
  $region6: #{basic_block_forward.5} parent=0 // loop_footer
    %s13 = sadd.s32 1, %s9
  $region7: #{basic_block_forward.5} parent=0 // loop_footer_branch
    %8 = sbr.rel target = $region3
  $region8: #{basic_block_forward.5} parent=0 // loop_exit
    _

// kernel: basic_block_forward.3
$region0: #{basic_block_forward.3}
  #allocation0 [shape = 'u32[]', space=smem, size = 0x4, offset = 0x4, fixed_abs, tag = 'smem constant byte address 0x4 - core index']
  #allocation1 [shape = 'u32[144,128]{1,0:T(1,128)}', space=vmem, size = 0x12000, scoped, tag = 'internal scratch']
  #allocation2 [shape = 'bf16[18,18,128]{2,1,0:T(8,128)(2,1)}', space=vmem, size = 0x1b000, scoped, tag = 'scratch operand']
  %s0 = inlined_call_operand.vmem [shape: f32[2,16,16,128], index: 0, kind: input, shape index: {}]
  %s1 = inlined_call_operand.vmem [shape: bf16[9,128,128], index: 1, kind: input, shape index: {}]
  %s2 = inlined_call_operand.vmem [shape: f32[2,16,16,128], index: 2, kind: output, shape index: {0}]
  %s3 = inlined_call_operand.vmem [shape: f32[2,128], index: 3, kind: output, shape index: {1}]
  %4 = xla_tuple %s2, %s3
  %s5 = sld [smem:[#allocation0]]
  $region53: #{basic_block_forward.3} parent=0
    _
  %s7 = ssub.s32 1, %s5
  %s8 = scalar_select 0, %s7, %s5
  loop: start=0, step=1, limit=4
  $region2: #{basic_block_forward.3} parent=0 // loop_pre_header
    _
  $region3: #{basic_block_forward.3} parent=0 // loop_header
    %s10 = sphi 0, %s14
    %p11 = scmp.ge.s32.totalorder %s10, 4
    %s20 = sphi 0, %s22
    %s23 = sphi 0, %s20
    %s24 = sphi 0, %s23
    %s40 = sphi 0, %s24
    %s44 = sphi 0, %s44
    %s46 = sphi 0, %s44
    %s47 = sphi 0, %s46
    %s61 = sphi 0, %s47
    %s67 = sphi 0, %s69
    %s70 = sphi 0, %s67
    %s71 = sphi 0, %s70
    %s87 = sphi 0, %s71
    %s91 = sphi 0, %s91
    %s93 = sphi 0, %s91
    %s94 = sphi 0, %s93
    %s108 = sphi 0, %s94
  $region4: #{basic_block_forward.3} parent=0 // loop_header_branch
    %13 = sbr.rel (%p11) target = $region8
  $region5: #{basic_block_forward.3} parent=0 // loop_body
    %s15 = ssub.s32 %s10, 1
    %s16 = ssub.s32 %s10, 2
    %s17 = sadd.s32 %s10, 1
    %s18 = ssub.s32 %s10, %s17
    %p19 = scmp.eq.s32.totalorder %s18, 0
    %s21 = sadd.s32 %s20, 1
    %s22 = scalar_select %p19, %s20, %s21
    %p25 = pneg %p19
    %p26 = scmp.eq.s32.totalorder %s10, 1
    %p27 = por %p25, %p26
    %p28 = scmp.ne.s32.totalorder %s20, %s23
    %p29 = scmp.eq.s32.totalorder %s10, 0
    %p30 = por %p28, %p29
    %p31 = scmp.ne.s32.totalorder %s20, %s23
    %p32 = scmp.eq.s32.totalorder %s15, 1
    %p33 = por %p31, %p32
    %p34 = scmp.ne.s32.totalorder %s23, %s24
    %p35 = scmp.eq.s32.totalorder %s15, 0
    %p36 = por %p34, %p35
    %p37 = scmp.ne.s32.totalorder %s23, %s24
    %p38 = scmp.eq.s32.totalorder %s16, 1
    %p39 = por %p37, %p38
    %p41 = scmp.ne.s32.totalorder %s24, %s40
    %p42 = scmp.eq.s32.totalorder %s16, 0
    %p43 = por %p41, %p42
    %s45 = sadd.s32 %s44, 1
    %p48 = scmp.eq.s32.totalorder %s10, 1
    %p49 = scmp.ne.s32.totalorder %s44, %s46
    %p50 = scmp.eq.s32.totalorder %s10, 0
    %p51 = por %p49, %p50
    %p52 = scmp.ne.s32.totalorder %s44, %s46
    %p53 = scmp.eq.s32.totalorder %s15, 1
    %p54 = por %p52, %p53
    %p55 = scmp.ne.s32.totalorder %s46, %s47
    %p56 = scmp.eq.s32.totalorder %s15, 0
    %p57 = por %p55, %p56
    %p58 = scmp.ne.s32.totalorder %s46, %s47
    %p59 = scmp.eq.s32.totalorder %s16, 1
    %p60 = por %p58, %p59
    %p62 = scmp.ne.s32.totalorder %s47, %s61
    %p63 = scmp.eq.s32.totalorder %s16, 0
    %p64 = por %p62, %p63
    %s65 = ssub.s32 %s10, %s17
    %p66 = scmp.eq.s32.totalorder %s65, 0
    %s68 = sadd.s32 %s67, 1
    %s69 = scalar_select %p66, %s67, %s68
    %p72 = pneg %p66
    %p73 = scmp.eq.s32.totalorder %s10, 1
    %p74 = por %p72, %p73
    %p75 = scmp.ne.s32.totalorder %s67, %s70
    %p76 = scmp.eq.s32.totalorder %s10, 0
    %p77 = por %p75, %p76
    %p78 = scmp.ne.s32.totalorder %s67, %s70
    %p79 = scmp.eq.s32.totalorder %s15, 1
    %p80 = por %p78, %p79
    %p81 = scmp.ne.s32.totalorder %s70, %s71
    %p82 = scmp.eq.s32.totalorder %s15, 0
    %p83 = por %p81, %p82
    %p84 = scmp.ne.s32.totalorder %s70, %s71
    %p85 = scmp.eq.s32.totalorder %s16, 1
    %p86 = por %p84, %p85
    %p88 = scmp.ne.s32.totalorder %s71, %s87
    %p89 = scmp.eq.s32.totalorder %s16, 0
    %p90 = por %p88, %p89
    %s92 = sadd.s32 %s91, 1
    %p95 = scmp.eq.s32.totalorder %s10, 1
    %p96 = scmp.ne.s32.totalorder %s91, %s93
    %p97 = scmp.eq.s32.totalorder %s10, 0
    %p98 = por %p96, %p97
    %p99 = scmp.ne.s32.totalorder %s91, %s93
    %p100 = scmp.eq.s32.totalorder %s15, 1
    %p101 = por %p99, %p100
    %p102 = scmp.ne.s32.totalorder %s93, %s94
    %p103 = scmp.eq.s32.totalorder %s15, 0
    %p104 = por %p102, %p103
    %p105 = scmp.ne.s32.totalorder %s93, %s94
    %p106 = scmp.eq.s32.totalorder %s16, 1
    %p107 = por %p105, %p106
    %p109 = scmp.ne.s32.totalorder %s94, %s108
    %p110 = scmp.eq.s32.totalorder %s16, 0
    %p111 = por %p109, %p110
    %p112 = scmp.le.s32.totalorder 1, %s10
    %p113 = scmp.lt.s32.totalorder %s10, 3
    %p114 = pnand %p112, %p113
    %p115 = pneg %p114
    // Predicated region
    $region9: #{basic_block_forward.3} parent=5 // pred_check
      _
    $region10: #{basic_block_forward.3} parent=5 // pred_check_branch
      %117 = sbr.rel (%p114) target = $region12
    $region11: #{basic_block_forward.3} parent=5 // pred_region
      %s118 = ssub.s32 %s10, 1
      // Predicated region
      $region13: #{basic_block_forward.3} parent=11 // pred_check
        %p119 = pneg %p57
      $region14: #{basic_block_forward.3} parent=11 // pred_check_branch
        %121 = sbr.rel (%p119) target = $region16
      $region15: #{basic_block_forward.3} parent=11 // pred_region
        _
      $region16: #{basic_block_forward.3} parent=11 // pred_fallthru
        _
    $region12: #{basic_block_forward.3} parent=5 // pred_fallthru
      _
    %p122 = scmp.lt.s32.totalorder %s10, 2
    // Predicated region
    $region17: #{basic_block_forward.3} parent=5 // pred_check
      %p123 = pneg %p122
    $region18: #{basic_block_forward.3} parent=5 // pred_check_branch
      %125 = sbr.rel (%p123) target = $region20
    $region19: #{basic_block_forward.3} parent=5 // pred_region
      // Predicated region
      $region21: #{basic_block_forward.3} parent=19 // pred_check
        %p126 = pneg %p30
      $region22: #{basic_block_forward.3} parent=19 // pred_check_branch
        %128 = sbr.rel (%p126) target = $region24
      $region23: #{basic_block_forward.3} parent=19 // pred_region
        %p129 = scmp.lt.s32.totalorder %s10, 1
        %s130 = scalar_select %p129, %s10, 1
        %s131 = smul.addr %s130, 32
        %s132 = smul.addr %s131, 8
        %s133 = scalar_lea.vmem %s0, %s132
      $region24: #{basic_block_forward.3} parent=19 // pred_fallthru
        _
    $region20: #{basic_block_forward.3} parent=5 // pred_fallthru
      _
    %p134 = scmp.le.s32.totalorder 1, %s10
    %p135 = scmp.lt.s32.totalorder %s10, 3
    %p136 = pnand %p134, %p135
    %p137 = pneg %p136
    // Predicated region
    $region25: #{basic_block_forward.3} parent=5 // pred_check
      _
    $region26: #{basic_block_forward.3} parent=5 // pred_check_branch
      %139 = sbr.rel (%p136) target = $region28
    $region27: #{basic_block_forward.3} parent=5 // pred_region
      %s140 = ssub.s32 %s10, 1
      %p141 = scmp.lt.s32.totalorder %s15, 1
      %s142 = scalar_select %p141, %s15, 1
      %s143 = smul.addr %s142, 32
      %s144 = smul.addr %s143, 8
      %s145 = scalar_lea.vmem %s0, %s144
      %p146 = pneg %p36
      %p147 = pneg %p33
      %p148 = pneg %p57
      %p149 = pneg %p54
      %p150 = pneg %p83
      %p151 = pneg %p80
      %p152 = scmp.lt.s32.totalorder %s15, 1
      %s153 = scalar_select %p152, %s15, 1
      %s154 = smul.addr %s153, 32
      %s155 = smul.addr %s154, 8
      %s156 = scalar_lea.vmem %s2, %s155
      %p157 = pneg %p104
      %p158 = pneg %p101
      %p159 = scmp.lt.s32.totalorder %s15, 1
      %s160 = scalar_select %p159, %s15, 1
      %s161 = smul.addr %s160, 32
      %s162 = smul.addr %s161, 8
      %s163 = scalar_lea.vmem %s0, %s162
      %p164 = scmp.lt.s32.totalorder %s15, 1
      %s165 = scalar_select %p164, %s15, 1
      %s166 = smul.addr %s165, 32
      %s167 = smul.addr %s166, 8
      %s168 = scalar_lea.vmem %s2, %s167
      %p170 = scmp.eq.s32.totalorder %s15, 0
      // Predicated region
      $region29: #{basic_block_forward.3} parent=27 // pred_check
        %p171 = pneg %p170
      $region30: #{basic_block_forward.3} parent=27 // pred_check_branch
        %173 = sbr.rel (%p171) target = $region32
      $region31: #{basic_block_forward.3} parent=27 // pred_region
        %174 = vst [vmem:[%s3] sm:$0x3] 0.0
        %175 = vst [vmem:[#allocation2] sm:$0xf] 0
        %176 = vst [vmem:[#allocation2 + $0x4] sm:$0xf] 0
        %177 = vst [vmem:[#allocation2 + $0x8] sm:$0x1] 0
        %178 = vst [vmem:[#allocation2 + $0xc] sm:$0xf] 0
        %179 = vst [vmem:[#allocation2 + $0x10] sm:$0xf] 0
        %180 = vst [vmem:[#allocation2 + $0x14] sm:$0x1] 0
        %181 = vst [vmem:[#allocation2 + $0x18] sm:$0xf] 0
        %182 = vst [vmem:[#allocation2 + $0x1c] sm:$0xf] 0
        %183 = vst [vmem:[#allocation2 + $0x20] sm:$0x1] 0
        %184 = vst [vmem:[#allocation2 + $0x24] sm:$0xf] 0
        %185 = vst [vmem:[#allocation2 + $0x28] sm:$0xf] 0
        %186 = vst [vmem:[#allocation2 + $0x2c] sm:$0x1] 0
        %187 = vst [vmem:[#allocation2 + $0x30] sm:$0xf] 0
        %188 = vst [vmem:[#allocation2 + $0x34] sm:$0xf] 0
        %189 = vst [vmem:[#allocation2 + $0x38] sm:$0x1] 0
        %190 = vst [vmem:[#allocation2 + $0x3c] sm:$0xf] 0
        %191 = vst [vmem:[#allocation2 + $0x40] sm:$0xf] 0
        %192 = vst [vmem:[#allocation2 + $0x44] sm:$0x1] 0
        %193 = vst [vmem:[#allocation2 + $0x48] sm:$0xf] 0
        %194 = vst [vmem:[#allocation2 + $0x4c] sm:$0xf] 0
        %195 = vst [vmem:[#allocation2 + $0x50] sm:$0x1] 0
        %196 = vst [vmem:[#allocation2 + $0x54] sm:$0xf] 0
        %197 = vst [vmem:[#allocation2 + $0x58] sm:$0xf] 0
        %198 = vst [vmem:[#allocation2 + $0x5c] sm:$0x1] 0
        %199 = vst [vmem:[#allocation2 + $0x60] sm:$0xf] 0
        %200 = vst [vmem:[#allocation2 + $0x64] sm:$0xf] 0
        %201 = vst [vmem:[#allocation2 + $0x68] sm:$0x1] 0
        %202 = vst [vmem:[#allocation2 + $0x6c] sm:$0xf] 0
        %203 = vst [vmem:[#allocation2 + $0x70] sm:$0xf] 0
        %204 = vst [vmem:[#allocation2 + $0x74] sm:$0x1] 0
        %205 = vst [vmem:[#allocation2 + $0x78] sm:$0xf] 0
        %206 = vst [vmem:[#allocation2 + $0x7c] sm:$0xf] 0
        %207 = vst [vmem:[#allocation2 + $0x80] sm:$0x1] 0
        %208 = vst [vmem:[#allocation2 + $0x84] sm:$0xf] 0
        %209 = vst [vmem:[#allocation2 + $0x88] sm:$0xf] 0
        %210 = vst [vmem:[#allocation2 + $0x8c] sm:$0x1] 0
        %211 = vst [vmem:[#allocation2 + $0x90] sm:$0xf] 0
        %212 = vst [vmem:[#allocation2 + $0x94] sm:$0xf] 0
        %213 = vst [vmem:[#allocation2 + $0x98] sm:$0x1] 0
        %214 = vst [vmem:[#allocation2 + $0x9c] sm:$0xf] 0
        %215 = vst [vmem:[#allocation2 + $0xa0] sm:$0xf] 0
        %216 = vst [vmem:[#allocation2 + $0xa4] sm:$0x1] 0
        %217 = vst [vmem:[#allocation2 + $0xa8] sm:$0xf] 0
        %218 = vst [vmem:[#allocation2 + $0xac] sm:$0xf] 0
        %219 = vst [vmem:[#allocation2 + $0xb0] sm:$0x1] 0
        %220 = vst [vmem:[#allocation2 + $0xb4] sm:$0xf] 0
        %221 = vst [vmem:[#allocation2 + $0xb8] sm:$0xf] 0
        %222 = vst [vmem:[#allocation2 + $0xbc] sm:$0x1] 0
        %223 = vst [vmem:[#allocation2 + $0xc0] sm:$0xf] 0
        %224 = vst [vmem:[#allocation2 + $0xc4] sm:$0xf] 0
        %225 = vst [vmem:[#allocation2 + $0xc8] sm:$0x1] 0
        %226 = vst [vmem:[#allocation2 + $0xcc] sm:$0xf] 0
        %227 = vst [vmem:[#allocation2 + $0xd0] sm:$0xf] 0
        %228 = vst [vmem:[#allocation2 + $0xd4] sm:$0x1] 0
      $region32: #{basic_block_forward.3} parent=27 // pred_fallthru
        _
      %v229 = vld [vmem:[%s163] sm:$0xff]
      %v230 = vld [vmem:[%s163 + $0x8] sm:$0xff]
      %v231 = vld [vmem:[%s163 + $0x10] sm:$0xff]
      %v232 = vld [vmem:[%s163 + $0x18] sm:$0xff]
      %v233 = vld [vmem:[%s163 + $0x20] sm:$0xff]
      %v234 = vld [vmem:[%s163 + $0x28] sm:$0xff]
      %v235 = vld [vmem:[%s163 + $0x30] sm:$0xff]
      %v236 = vld [vmem:[%s163 + $0x38] sm:$0xff]
      %v237 = vld [vmem:[%s163 + $0x40] sm:$0xff]
      %v238 = vld [vmem:[%s163 + $0x48] sm:$0xff]
      %v239 = vld [vmem:[%s163 + $0x50] sm:$0xff]
      %v240 = vld [vmem:[%s163 + $0x58] sm:$0xff]
      %v241 = vld [vmem:[%s163 + $0x60] sm:$0xff]
      %v242 = vld [vmem:[%s163 + $0x68] sm:$0xff]
      %v243 = vld [vmem:[%s163 + $0x70] sm:$0xff]
      %v244 = vld [vmem:[%s163 + $0x78] sm:$0xff]
      %v245 = vld [vmem:[%s163 + $0x80] sm:$0xff]
      %v246 = vld [vmem:[%s163 + $0x88] sm:$0xff]
      %v247 = vld [vmem:[%s163 + $0x90] sm:$0xff]
      %v248 = vld [vmem:[%s163 + $0x98] sm:$0xff]
      %v249 = vld [vmem:[%s163 + $0xa0] sm:$0xff]
      %v250 = vld [vmem:[%s163 + $0xa8] sm:$0xff]
      %v251 = vld [vmem:[%s163 + $0xb0] sm:$0xff]
      %v252 = vld [vmem:[%s163 + $0xb8] sm:$0xff]
      %v253 = vld [vmem:[%s163 + $0xc0] sm:$0xff]
      %v254 = vld [vmem:[%s163 + $0xc8] sm:$0xff]
      %v255 = vld [vmem:[%s163 + $0xd0] sm:$0xff]
      %v256 = vld [vmem:[%s163 + $0xd8] sm:$0xff]
      %v257 = vld [vmem:[%s163 + $0xe0] sm:$0xff]
      %v258 = vld [vmem:[%s163 + $0xe8] sm:$0xff]
      %v259 = vld [vmem:[%s163 + $0xf0] sm:$0xff]
      %v260 = vld [vmem:[%s163 + $0xf8] sm:$0xff]
      %v261 = vpack.c.bf16 %v230, %v229
      %v262 = vpack.c.bf16 %v232, %v231
      %v263 = vpack.c.bf16 %v234, %v233
      %v264 = vpack.c.bf16 %v236, %v235
      %v265 = vpack.c.bf16 %v238, %v237
      %v266 = vpack.c.bf16 %v240, %v239
      %v267 = vpack.c.bf16 %v242, %v241
      %v268 = vpack.c.bf16 %v244, %v243
      %v269 = vpack.c.bf16 %v246, %v245
      %v270 = vpack.c.bf16 %v248, %v247
      %v271 = vpack.c.bf16 %v250, %v249
      %v272 = vpack.c.bf16 %v252, %v251
      %v273 = vpack.c.bf16 %v254, %v253
      %v274 = vpack.c.bf16 %v256, %v255
      %v275 = vpack.c.bf16 %v258, %v257
      %v276 = vpack.c.bf16 %v260, %v259
      %v293 = vunpack.c.l.b16 %v261
      %v294 = vunpack.c.h.b16 %v261
      %v295 = vunpack.c.l.b16 %v262
      %v296 = vunpack.c.h.b16 %v262
      %v297 = vunpack.c.l.b16 %v263
      %v298 = vunpack.c.h.b16 %v263
      %v299 = vunpack.c.l.b16 %v264
      %v300 = vunpack.c.h.b16 %v264
      %v301 = vunpack.c.l.b16 %v265
      %v302 = vunpack.c.h.b16 %v265
      %v303 = vunpack.c.l.b16 %v266
      %v304 = vunpack.c.h.b16 %v266
      %v305 = vunpack.c.l.b16 %v267
      %v306 = vunpack.c.h.b16 %v267
      %v307 = vunpack.c.l.b16 %v268
      %v308 = vunpack.c.h.b16 %v268
      %v309 = vunpack.c.l.b16 %v269
      %v310 = vunpack.c.h.b16 %v269
      %v311 = vunpack.c.l.b16 %v270
      %v312 = vunpack.c.h.b16 %v270
      %v313 = vunpack.c.l.b16 %v271
      %v314 = vunpack.c.h.b16 %v271
      %v315 = vunpack.c.l.b16 %v272
      %v316 = vunpack.c.h.b16 %v272
      %v317 = vunpack.c.l.b16 %v273
      %v318 = vunpack.c.h.b16 %v273
      %v319 = vunpack.c.l.b16 %v274
      %v320 = vunpack.c.h.b16 %v274
      %v321 = vunpack.c.l.b16 %v275
      %v322 = vunpack.c.h.b16 %v275
      %v323 = vunpack.c.l.b16 %v276
      %v324 = vunpack.c.h.b16 %v276
      %v325 = vpack.c.b16 %v293, %v293
      %v326 = vpack.c.b16 %v294, %v294
      %v327 = vpack.c.b16 %v295, %v295
      %v328 = vpack.c.b16 %v296, %v296
      %v329 = vpack.c.b16 %v297, %v297
      %v330 = vpack.c.b16 %v298, %v298
      %v331 = vpack.c.b16 %v299, %v299
      %v332 = vpack.c.b16 %v300, %v300
      %v333 = vpack.c.b16 %v301, %v301
      %v334 = vpack.c.b16 %v302, %v302
      %v335 = vpack.c.b16 %v303, %v303
      %v336 = vpack.c.b16 %v304, %v304
      %v337 = vpack.c.b16 %v305, %v305
      %v338 = vpack.c.b16 %v306, %v306
      %v339 = vpack.c.b16 %v307, %v307
      %v340 = vpack.c.b16 %v308, %v308
      %v341 = vpack.c.b16 %v309, %v309
      %v342 = vpack.c.b16 %v310, %v310
      %v343 = vpack.c.b16 %v311, %v311
      %v344 = vpack.c.b16 %v312, %v312
      %v345 = vpack.c.b16 %v313, %v313
      %v346 = vpack.c.b16 %v314, %v314
      %v347 = vpack.c.b16 %v315, %v315
      %v348 = vpack.c.b16 %v316, %v316
      %v349 = vpack.c.b16 %v317, %v317
      %v350 = vpack.c.b16 %v318, %v318
      %v351 = vpack.c.b16 %v319, %v319
      %v352 = vpack.c.b16 %v320, %v320
      %v353 = vpack.c.b16 %v321, %v321
      %v354 = vpack.c.b16 %v322, %v322
      %v355 = vpack.c.b16 %v323, %v323
      %v356 = vpack.c.b16 %v324, %v324
      %vm357 = vsmask.f32 256
      %vm358 = vsmask.f32 4368
      %vm359 = vmor %vm357, %vm358
      %v361 = vshrl.u32 %v325, 16
      %v363 = vrot.slane %v361, 7
      %v364 = vshll.u32 %v325, 16
      %v366 = vor.u32 %v363, %v364
      %v367 = vrot.slane %v363, 4
      %v369 = vshrl.u32 %v326, 16
      %v371 = vrot.slane %v369, 7
      %v372 = vshll.u32 %v326, 16
      %v374 = vor.u32 %v371, %v372
      %v375 = vsel %vm359, %v367, %v374
      %v376 = vrot.slane %v371, 4
      %v378 = vshrl.u32 %v327, 16
      %v380 = vrot.slane %v378, 7
      %v381 = vshll.u32 %v327, 16
      %v383 = vor.u32 %v380, %v381
      %v384 = vrot.slane %v380, 4
      %v386 = vshrl.u32 %v328, 16
      %v388 = vrot.slane %v386, 7
      %v389 = vshll.u32 %v328, 16
      %v391 = vor.u32 %v388, %v389
      %v392 = vsel %vm359, %v384, %v391
      %v393 = vrot.slane %v388, 4
      %v395 = vshrl.u32 %v329, 16
      %v397 = vrot.slane %v395, 7
      %v398 = vshll.u32 %v329, 16
      %v400 = vor.u32 %v397, %v398
      %v401 = vrot.slane %v397, 4
      %v403 = vshrl.u32 %v330, 16
      %v405 = vrot.slane %v403, 7
      %v406 = vshll.u32 %v330, 16
      %v408 = vor.u32 %v405, %v406
      %v409 = vsel %vm359, %v401, %v408
      %v410 = vrot.slane %v405, 4
      %v412 = vshrl.u32 %v331, 16
      %v414 = vrot.slane %v412, 7
      %v415 = vshll.u32 %v331, 16
      %v417 = vor.u32 %v414, %v415
      %v418 = vrot.slane %v414, 4
      %v420 = vshrl.u32 %v332, 16
      %v422 = vrot.slane %v420, 7
      %v423 = vshll.u32 %v332, 16
      %v425 = vor.u32 %v422, %v423
      %v426 = vsel %vm359, %v418, %v425
      %v427 = vrot.slane %v422, 4
      %v429 = vshrl.u32 %v333, 16
      %v431 = vrot.slane %v429, 7
      %v432 = vshll.u32 %v333, 16
      %v434 = vor.u32 %v431, %v432
      %v435 = vrot.slane %v431, 4
      %v437 = vshrl.u32 %v334, 16
      %v439 = vrot.slane %v437, 7
      %v440 = vshll.u32 %v334, 16
      %v442 = vor.u32 %v439, %v440
      %v443 = vsel %vm359, %v435, %v442
      %v444 = vrot.slane %v439, 4
      %v446 = vshrl.u32 %v335, 16
      %v448 = vrot.slane %v446, 7
      %v449 = vshll.u32 %v335, 16
      %v451 = vor.u32 %v448, %v449
      %v452 = vrot.slane %v448, 4
      %v454 = vshrl.u32 %v336, 16
      %v456 = vrot.slane %v454, 7
      %v457 = vshll.u32 %v336, 16
      %v459 = vor.u32 %v456, %v457
      %v460 = vsel %vm359, %v452, %v459
      %v461 = vrot.slane %v456, 4
      %v463 = vshrl.u32 %v337, 16
      %v465 = vrot.slane %v463, 7
      %v466 = vshll.u32 %v337, 16
      %v468 = vor.u32 %v465, %v466
      %v469 = vrot.slane %v465, 4
      %v471 = vshrl.u32 %v338, 16
      %v473 = vrot.slane %v471, 7
      %v474 = vshll.u32 %v338, 16
      %v476 = vor.u32 %v473, %v474
      %v477 = vsel %vm359, %v469, %v476
      %v478 = vrot.slane %v473, 4
      %v480 = vshrl.u32 %v339, 16
      %v482 = vrot.slane %v480, 7
      %v483 = vshll.u32 %v339, 16
      %v485 = vor.u32 %v482, %v483
      %v486 = vrot.slane %v482, 4
      %v488 = vshrl.u32 %v340, 16
      %v490 = vrot.slane %v488, 7
      %v491 = vshll.u32 %v340, 16
      %v493 = vor.u32 %v490, %v491
      %v494 = vsel %vm359, %v486, %v493
      %v495 = vrot.slane %v490, 4
      %v497 = vshrl.u32 %v341, 16
      %v499 = vrot.slane %v497, 7
      %v500 = vshll.u32 %v341, 16
      %v502 = vor.u32 %v499, %v500
      %v503 = vrot.slane %v499, 4
      %v505 = vshrl.u32 %v342, 16
      %v507 = vrot.slane %v505, 7
      %v508 = vshll.u32 %v342, 16
      %v510 = vor.u32 %v507, %v508
      %v511 = vsel %vm359, %v503, %v510
      %v512 = vrot.slane %v507, 4
      %v514 = vshrl.u32 %v343, 16
      %v516 = vrot.slane %v514, 7
      %v517 = vshll.u32 %v343, 16
      %v519 = vor.u32 %v516, %v517
      %v520 = vrot.slane %v516, 4
      %v522 = vshrl.u32 %v344, 16
      %v524 = vrot.slane %v522, 7
      %v525 = vshll.u32 %v344, 16
      %v527 = vor.u32 %v524, %v525
      %v528 = vsel %vm359, %v520, %v527
      %v529 = vrot.slane %v524, 4
      %v531 = vshrl.u32 %v345, 16
      %v533 = vrot.slane %v531, 7
      %v534 = vshll.u32 %v345, 16
      %v536 = vor.u32 %v533, %v534
      %v537 = vrot.slane %v533, 4
      %v539 = vshrl.u32 %v346, 16
      %v541 = vrot.slane %v539, 7
      %v542 = vshll.u32 %v346, 16
      %v544 = vor.u32 %v541, %v542
      %v545 = vsel %vm359, %v537, %v544
      %v546 = vrot.slane %v541, 4
      %v548 = vshrl.u32 %v347, 16
      %v550 = vrot.slane %v548, 7
      %v551 = vshll.u32 %v347, 16
      %v553 = vor.u32 %v550, %v551
      %v554 = vrot.slane %v550, 4
      %v556 = vshrl.u32 %v348, 16
      %v558 = vrot.slane %v556, 7
      %v559 = vshll.u32 %v348, 16
      %v561 = vor.u32 %v558, %v559
      %v562 = vsel %vm359, %v554, %v561
      %v563 = vrot.slane %v558, 4
      %v565 = vshrl.u32 %v349, 16
      %v567 = vrot.slane %v565, 7
      %v568 = vshll.u32 %v349, 16
      %v570 = vor.u32 %v567, %v568
      %v571 = vrot.slane %v567, 4
      %v573 = vshrl.u32 %v350, 16
      %v575 = vrot.slane %v573, 7
      %v576 = vshll.u32 %v350, 16
      %v578 = vor.u32 %v575, %v576
      %v579 = vsel %vm359, %v571, %v578
      %v580 = vrot.slane %v575, 4
      %v582 = vshrl.u32 %v351, 16
      %v584 = vrot.slane %v582, 7
      %v585 = vshll.u32 %v351, 16
      %v587 = vor.u32 %v584, %v585
      %v588 = vrot.slane %v584, 4
      %v590 = vshrl.u32 %v352, 16
      %v592 = vrot.slane %v590, 7
      %v593 = vshll.u32 %v352, 16
      %v595 = vor.u32 %v592, %v593
      %v596 = vsel %vm359, %v588, %v595
      %v597 = vrot.slane %v592, 4
      %v599 = vshrl.u32 %v353, 16
      %v601 = vrot.slane %v599, 7
      %v602 = vshll.u32 %v353, 16
      %v604 = vor.u32 %v601, %v602
      %v605 = vrot.slane %v601, 4
      %v607 = vshrl.u32 %v354, 16
      %v609 = vrot.slane %v607, 7
      %v610 = vshll.u32 %v354, 16
      %v612 = vor.u32 %v609, %v610
      %v613 = vsel %vm359, %v605, %v612
      %v614 = vrot.slane %v609, 4
      %v616 = vshrl.u32 %v355, 16
      %v618 = vrot.slane %v616, 7
      %v619 = vshll.u32 %v355, 16
      %v621 = vor.u32 %v618, %v619
      %v622 = vrot.slane %v618, 4
      %v624 = vshrl.u32 %v356, 16
      %v626 = vrot.slane %v624, 7
      %v627 = vshll.u32 %v356, 16
      %v629 = vor.u32 %v626, %v627
      %v630 = vsel %vm359, %v622, %v629
      %v631 = vrot.slane %v626, 4
      %s680 = scalar_lea.vmem [#allocation2], 12
      %vm681 = vcmask 1043456
      %vm682 = vsmask.f32 7938
      %vm683 = vmand %vm681, %vm682
      %v684 = vld [vmem:[%s680] sm:$0xf]
      %v685 = vsel %vm683, %v366, %v684
      %686 = vst [vmem:[%s680] sm:$0xf] %v685
      %687 = vst [vmem:[%s680 + $0x4] sm:$0xf] %v375
      %vm688 = vcmask 1040384
      %vm689 = vmand %vm688, %vm357
      %v690 = vld [vmem:[%s680 + $0x8] sm:$0x1]
      %v691 = vsel %vm689, %v376, %v690
      %692 = vst [vmem:[%s680 + $0x8] sm:$0x1] %v691
      %v693 = vld [vmem:[%s680 + $0xc] sm:$0xf]
      %v694 = vsel %vm683, %v383, %v693
      %695 = vst [vmem:[%s680 + $0xc] sm:$0xf] %v694
      %696 = vst [vmem:[%s680 + $0x10] sm:$0xf] %v392
      %v697 = vld [vmem:[%s680 + $0x14] sm:$0x1]
      %v698 = vsel %vm689, %v393, %v697
      %699 = vst [vmem:[%s680 + $0x14] sm:$0x1] %v698
      %v700 = vld [vmem:[%s680 + $0x18] sm:$0xf]
      %v701 = vsel %vm683, %v400, %v700
      %702 = vst [vmem:[%s680 + $0x18] sm:$0xf] %v701
      %703 = vst [vmem:[%s680 + $0x1c] sm:$0xf] %v409
      %v704 = vld [vmem:[%s680 + $0x20] sm:$0x1]
      %v705 = vsel %vm689, %v410, %v704
      %706 = vst [vmem:[%s680 + $0x20] sm:$0x1] %v705
      %v707 = vld [vmem:[%s680 + $0x24] sm:$0xf]
      %v708 = vsel %vm683, %v417, %v707
      %709 = vst [vmem:[%s680 + $0x24] sm:$0xf] %v708
      %710 = vst [vmem:[%s680 + $0x28] sm:$0xf] %v426
      %v711 = vld [vmem:[%s680 + $0x2c] sm:$0x1]
      %v712 = vsel %vm689, %v427, %v711
      %713 = vst [vmem:[%s680 + $0x2c] sm:$0x1] %v712
      %v714 = vld [vmem:[%s680 + $0x30] sm:$0xf]
      %v715 = vsel %vm683, %v434, %v714
      %716 = vst [vmem:[%s680 + $0x30] sm:$0xf] %v715
      %717 = vst [vmem:[%s680 + $0x34] sm:$0xf] %v443
      %v718 = vld [vmem:[%s680 + $0x38] sm:$0x1]
      %v719 = vsel %vm689, %v444, %v718
      %720 = vst [vmem:[%s680 + $0x38] sm:$0x1] %v719
      %v721 = vld [vmem:[%s680 + $0x3c] sm:$0xf]
      %v722 = vsel %vm683, %v451, %v721
      %723 = vst [vmem:[%s680 + $0x3c] sm:$0xf] %v722
      %724 = vst [vmem:[%s680 + $0x40] sm:$0xf] %v460
      %v725 = vld [vmem:[%s680 + $0x44] sm:$0x1]
      %v726 = vsel %vm689, %v461, %v725
      %727 = vst [vmem:[%s680 + $0x44] sm:$0x1] %v726
      %v728 = vld [vmem:[%s680 + $0x48] sm:$0xf]
      %v729 = vsel %vm683, %v468, %v728
      %730 = vst [vmem:[%s680 + $0x48] sm:$0xf] %v729
      %731 = vst [vmem:[%s680 + $0x4c] sm:$0xf] %v477
      %v732 = vld [vmem:[%s680 + $0x50] sm:$0x1]
      %v733 = vsel %vm689, %v478, %v732
      %734 = vst [vmem:[%s680 + $0x50] sm:$0x1] %v733
      %v735 = vld [vmem:[%s680 + $0x54] sm:$0xf]
      %v736 = vsel %vm683, %v485, %v735
      %737 = vst [vmem:[%s680 + $0x54] sm:$0xf] %v736
      %738 = vst [vmem:[%s680 + $0x58] sm:$0xf] %v494
      %v739 = vld [vmem:[%s680 + $0x5c] sm:$0x1]
      %v740 = vsel %vm689, %v495, %v739
      %741 = vst [vmem:[%s680 + $0x5c] sm:$0x1] %v740
      %v742 = vld [vmem:[%s680 + $0x60] sm:$0xf]
      %v743 = vsel %vm683, %v502, %v742
      %744 = vst [vmem:[%s680 + $0x60] sm:$0xf] %v743
      %745 = vst [vmem:[%s680 + $0x64] sm:$0xf] %v511
      %v746 = vld [vmem:[%s680 + $0x68] sm:$0x1]
      %v747 = vsel %vm689, %v512, %v746
      %748 = vst [vmem:[%s680 + $0x68] sm:$0x1] %v747
      %v749 = vld [vmem:[%s680 + $0x6c] sm:$0xf]
      %v750 = vsel %vm683, %v519, %v749
      %751 = vst [vmem:[%s680 + $0x6c] sm:$0xf] %v750
      %752 = vst [vmem:[%s680 + $0x70] sm:$0xf] %v528
      %v753 = vld [vmem:[%s680 + $0x74] sm:$0x1]
      %v754 = vsel %vm689, %v529, %v753
      %755 = vst [vmem:[%s680 + $0x74] sm:$0x1] %v754
      %v756 = vld [vmem:[%s680 + $0x78] sm:$0xf]
      %v757 = vsel %vm683, %v536, %v756
      %758 = vst [vmem:[%s680 + $0x78] sm:$0xf] %v757
      %759 = vst [vmem:[%s680 + $0x7c] sm:$0xf] %v545
      %v760 = vld [vmem:[%s680 + $0x80] sm:$0x1]
      %v761 = vsel %vm689, %v546, %v760
      %762 = vst [vmem:[%s680 + $0x80] sm:$0x1] %v761
      %v763 = vld [vmem:[%s680 + $0x84] sm:$0xf]
      %v764 = vsel %vm683, %v553, %v763
      %765 = vst [vmem:[%s680 + $0x84] sm:$0xf] %v764
      %766 = vst [vmem:[%s680 + $0x88] sm:$0xf] %v562
      %v767 = vld [vmem:[%s680 + $0x8c] sm:$0x1]
      %v768 = vsel %vm689, %v563, %v767
      %769 = vst [vmem:[%s680 + $0x8c] sm:$0x1] %v768
      %v770 = vld [vmem:[%s680 + $0x90] sm:$0xf]
      %v771 = vsel %vm683, %v570, %v770
      %772 = vst [vmem:[%s680 + $0x90] sm:$0xf] %v771
      %773 = vst [vmem:[%s680 + $0x94] sm:$0xf] %v579
      %v774 = vld [vmem:[%s680 + $0x98] sm:$0x1]
      %v775 = vsel %vm689, %v580, %v774
      %776 = vst [vmem:[%s680 + $0x98] sm:$0x1] %v775
      %v777 = vld [vmem:[%s680 + $0x9c] sm:$0xf]
      %v778 = vsel %vm683, %v587, %v777
      %779 = vst [vmem:[%s680 + $0x9c] sm:$0xf] %v778
      %780 = vst [vmem:[%s680 + $0xa0] sm:$0xf] %v596
      %v781 = vld [vmem:[%s680 + $0xa4] sm:$0x1]
      %v782 = vsel %vm689, %v597, %v781
      %783 = vst [vmem:[%s680 + $0xa4] sm:$0x1] %v782
      %v784 = vld [vmem:[%s680 + $0xa8] sm:$0xf]
      %v785 = vsel %vm683, %v604, %v784
      %786 = vst [vmem:[%s680 + $0xa8] sm:$0xf] %v785
      %787 = vst [vmem:[%s680 + $0xac] sm:$0xf] %v613
      %v788 = vld [vmem:[%s680 + $0xb0] sm:$0x1]
      %v789 = vsel %vm689, %v614, %v788
      %790 = vst [vmem:[%s680 + $0xb0] sm:$0x1] %v789
      %v791 = vld [vmem:[%s680 + $0xb4] sm:$0xf]
      %v792 = vsel %vm683, %v621, %v791
      %793 = vst [vmem:[%s680 + $0xb4] sm:$0xf] %v792
      %794 = vst [vmem:[%s680 + $0xb8] sm:$0xf] %v630
      %v795 = vld [vmem:[%s680 + $0xbc] sm:$0x1]
      %v796 = vsel %vm689, %v631, %v795
      %797 = vst [vmem:[%s680 + $0xbc] sm:$0x1] %v796
      %v798 = vld [vmem:[#allocation2] sm:$0xf]
      %v799 = vld [vmem:[#allocation2 + $0x4] sm:$0xf]
      %v800 = vld [vmem:[#allocation2 + $0xc] sm:$0xf]
      %v801 = vld [vmem:[#allocation2 + $0x10] sm:$0xf]
      %v802 = vld [vmem:[#allocation2 + $0x18] sm:$0xf]
      %v803 = vld [vmem:[#allocation2 + $0x1c] sm:$0xf]
      %v804 = vld [vmem:[#allocation2 + $0x24] sm:$0xf]
      %v805 = vld [vmem:[#allocation2 + $0x28] sm:$0xf]
      %v806 = vld [vmem:[#allocation2 + $0x30] sm:$0xf]
      %v807 = vld [vmem:[#allocation2 + $0x34] sm:$0xf]
      %v808 = vld [vmem:[#allocation2 + $0x3c] sm:$0xf]
      %v809 = vld [vmem:[#allocation2 + $0x40] sm:$0xf]
      %v810 = vld [vmem:[#allocation2 + $0x48] sm:$0xf]
      %v811 = vld [vmem:[#allocation2 + $0x4c] sm:$0xf]
      %v812 = vld [vmem:[#allocation2 + $0x54] sm:$0xf]
      %v813 = vld [vmem:[#allocation2 + $0x58] sm:$0xf]
      %v814 = vld [vmem:[#allocation2 + $0x60] sm:$0xf]
      %v815 = vld [vmem:[#allocation2 + $0x64] sm:$0xf]
      %v816 = vld [vmem:[#allocation2 + $0x6c] sm:$0xf]
      %v817 = vld [vmem:[#allocation2 + $0x70] sm:$0xf]
      %v818 = vld [vmem:[#allocation2 + $0x78] sm:$0xf]
      %v819 = vld [vmem:[#allocation2 + $0x7c] sm:$0xf]
      %v820 = vld [vmem:[#allocation2 + $0x84] sm:$0xf]
      %v821 = vld [vmem:[#allocation2 + $0x88] sm:$0xf]
      %v822 = vld [vmem:[#allocation2 + $0x90] sm:$0xf]
      %v823 = vld [vmem:[#allocation2 + $0x94] sm:$0xf]
      %v824 = vld [vmem:[#allocation2 + $0x9c] sm:$0xf]
      %v825 = vld [vmem:[#allocation2 + $0xa0] sm:$0xf]
      %v826 = vld [vmem:[#allocation2 + $0xa8] sm:$0xf]
      %v827 = vld [vmem:[#allocation2 + $0xac] sm:$0xf]
      %v828 = vld [vmem:[#allocation2 + $0xb4] sm:$0xf]
      %v829 = vld [vmem:[#allocation2 + $0xb8] sm:$0xf]
      %v830 = vld [vmem:[%s1] sm:$0xf]
      %v831 = vld [vmem:[%s1 + $0x4] sm:$0xf]
      %v832 = vld [vmem:[%s1 + $0x8] sm:$0xf]
      %v833 = vld [vmem:[%s1 + $0xc] sm:$0xf]
      %v834 = vld [vmem:[%s1 + $0x10] sm:$0xf]
      %v835 = vld [vmem:[%s1 + $0x14] sm:$0xf]
      %v836 = vld [vmem:[%s1 + $0x18] sm:$0xf]
      %v837 = vld [vmem:[%s1 + $0x1c] sm:$0xf]
      %v838 = vld [vmem:[%s1 + $0x20] sm:$0xf]
      %v839 = vld [vmem:[%s1 + $0x24] sm:$0xf]
      %v840 = vld [vmem:[%s1 + $0x28] sm:$0xf]
      %v841 = vld [vmem:[%s1 + $0x2c] sm:$0xf]
      %v842 = vld [vmem:[%s1 + $0x30] sm:$0xf]
      %v843 = vld [vmem:[%s1 + $0x34] sm:$0xf]
      %v844 = vld [vmem:[%s1 + $0x38] sm:$0xf]
      %v845 = vld [vmem:[%s1 + $0x3c] sm:$0xf]
      %v846 = vld [vmem:[#allocation2 + $0x8] sm:$0x1]
      %v847 = vld [vmem:[#allocation2 + $0x14] sm:$0x1]
      %v848 = vld [vmem:[#allocation2 + $0x20] sm:$0x1]
      %v849 = vld [vmem:[#allocation2 + $0x2c] sm:$0x1]
      %v850 = vld [vmem:[#allocation2 + $0x38] sm:$0x1]
      %v851 = vld [vmem:[#allocation2 + $0x44] sm:$0x1]
      %v852 = vld [vmem:[#allocation2 + $0x50] sm:$0x1]
      %v853 = vld [vmem:[#allocation2 + $0x5c] sm:$0x1]
      %v854 = vld [vmem:[#allocation2 + $0x68] sm:$0x1]
      %v855 = vld [vmem:[#allocation2 + $0x74] sm:$0x1]
      %v856 = vld [vmem:[#allocation2 + $0x80] sm:$0x1]
      %v857 = vld [vmem:[#allocation2 + $0x8c] sm:$0x1]
      %v858 = vld [vmem:[#allocation2 + $0x98] sm:$0x1]
      %v859 = vld [vmem:[#allocation2 + $0xa4] sm:$0x1]
      %v860 = vld [vmem:[#allocation2 + $0xb0] sm:$0x1]
      %v861 = vld [vmem:[#allocation2 + $0xbc] sm:$0x1]
      %vm862 = vsmask.f32 3328
      %vm863 = vsmask.f32 7440
      %vm864 = vmor %vm862, %vm863
      %v866 = vshrl.u32 %v798, 16
      %v868 = vrot.slane %v866, 4
      %v869 = vshll.u32 %v798, 16
      %v871 = vrot.slane %v869, 5
      %v872 = vor.u32 %v868, %v871
      %v873 = vrot.slane %v872, 4
      %v875 = vshll.u32 %v799, 16
      %v877 = vrot.slane %v875, 5
      %v878 = vsel %vm864, %v873, %v877
      %v879 = vshrl.u32 %v799, 16
      %v881 = vrot.slane %v879, 4
      %v882 = vor.u32 %v881, %v877
      %v883 = vrot.slane %v882, 4
      %v885 = vshll.u32 %v846, 16
      %v887 = vrot.slane %v885, 5
      %v888 = vsel %vm864, %v883, %v887
      %v890 = vshrl.u32 %v800, 16
      %v892 = vrot.slane %v890, 4
      %v893 = vshll.u32 %v800, 16
      %v895 = vrot.slane %v893, 5
      %v896 = vor.u32 %v892, %v895
      %v897 = vrot.slane %v896, 4
      %v899 = vshll.u32 %v801, 16
      %v901 = vrot.slane %v899, 5
      %v902 = vsel %vm864, %v897, %v901
      %v903 = vshrl.u32 %v801, 16
      %v905 = vrot.slane %v903, 4
      %v906 = vor.u32 %v905, %v901
      %v907 = vrot.slane %v906, 4
      %v909 = vshll.u32 %v847, 16
      %v911 = vrot.slane %v909, 5
      %v912 = vsel %vm864, %v907, %v911
      %v914 = vshrl.u32 %v802, 16
      %v916 = vrot.slane %v914, 4
      %v917 = vshll.u32 %v802, 16
      %v919 = vrot.slane %v917, 5
      %v920 = vor.u32 %v916, %v919
      %v921 = vrot.slane %v920, 4
      %v923 = vshll.u32 %v803, 16
      %v925 = vrot.slane %v923, 5
      %v926 = vsel %vm864, %v921, %v925
      %v927 = vshrl.u32 %v803, 16
      %v929 = vrot.slane %v927, 4
      %v930 = vor.u32 %v929, %v925
      %v931 = vrot.slane %v930, 4
      %v933 = vshll.u32 %v848, 16
      %v935 = vrot.slane %v933, 5
      %v936 = vsel %vm864, %v931, %v935
      %v938 = vshrl.u32 %v804, 16
      %v940 = vrot.slane %v938, 4
      %v941 = vshll.u32 %v804, 16
      %v943 = vrot.slane %v941, 5
      %v944 = vor.u32 %v940, %v943
      %v945 = vrot.slane %v944, 4
      %v947 = vshll.u32 %v805, 16
      %v949 = vrot.slane %v947, 5
      %v950 = vsel %vm864, %v945, %v949
      %v951 = vshrl.u32 %v805, 16
      %v953 = vrot.slane %v951, 4
      %v954 = vor.u32 %v953, %v949
      %v955 = vrot.slane %v954, 4
      %v957 = vshll.u32 %v849, 16
      %v959 = vrot.slane %v957, 5
      %v960 = vsel %vm864, %v955, %v959
      %v962 = vshrl.u32 %v806, 16
      %v964 = vrot.slane %v962, 4
      %v965 = vshll.u32 %v806, 16
      %v967 = vrot.slane %v965, 5
      %v968 = vor.u32 %v964, %v967
      %v969 = vrot.slane %v968, 4
      %v971 = vshll.u32 %v807, 16
      %v973 = vrot.slane %v971, 5
      %v974 = vsel %vm864, %v969, %v973
      %v975 = vshrl.u32 %v807, 16
      %v977 = vrot.slane %v975, 4
      %v978 = vor.u32 %v977, %v973
      %v979 = vrot.slane %v978, 4
      %v981 = vshll.u32 %v850, 16
      %v983 = vrot.slane %v981, 5
      %v984 = vsel %vm864, %v979, %v983
      %v986 = vshrl.u32 %v808, 16
      %v988 = vrot.slane %v986, 4
      %v989 = vshll.u32 %v808, 16
      %v991 = vrot.slane %v989, 5
      %v992 = vor.u32 %v988, %v991
      %v993 = vrot.slane %v992, 4
      %v995 = vshll.u32 %v809, 16
      %v997 = vrot.slane %v995, 5
      %v998 = vsel %vm864, %v993, %v997
      %v999 = vshrl.u32 %v809, 16
      %v1001 = vrot.slane %v999, 4
      %v1002 = vor.u32 %v1001, %v997
      %v1003 = vrot.slane %v1002, 4
      %v1005 = vshll.u32 %v851, 16
      %v1007 = vrot.slane %v1005, 5
      %v1008 = vsel %vm864, %v1003, %v1007
      %v1010 = vshrl.u32 %v810, 16
      %v1012 = vrot.slane %v1010, 4
      %v1013 = vshll.u32 %v810, 16
      %v1015 = vrot.slane %v1013, 5
      %v1016 = vor.u32 %v1012, %v1015
      %v1017 = vrot.slane %v1016, 4
      %v1019 = vshll.u32 %v811, 16
      %v1021 = vrot.slane %v1019, 5
      %v1022 = vsel %vm864, %v1017, %v1021
      %v1023 = vshrl.u32 %v811, 16
      %v1025 = vrot.slane %v1023, 4
      %v1026 = vor.u32 %v1025, %v1021
      %v1027 = vrot.slane %v1026, 4
      %v1029 = vshll.u32 %v852, 16
      %v1031 = vrot.slane %v1029, 5
      %v1032 = vsel %vm864, %v1027, %v1031
      %v1034 = vshrl.u32 %v812, 16
      %v1036 = vrot.slane %v1034, 4
      %v1037 = vshll.u32 %v812, 16
      %v1039 = vrot.slane %v1037, 5
      %v1040 = vor.u32 %v1036, %v1039
      %v1041 = vrot.slane %v1040, 4
      %v1043 = vshll.u32 %v813, 16
      %v1045 = vrot.slane %v1043, 5
      %v1046 = vsel %vm864, %v1041, %v1045
      %v1047 = vshrl.u32 %v813, 16
      %v1049 = vrot.slane %v1047, 4
      %v1050 = vor.u32 %v1049, %v1045
      %v1051 = vrot.slane %v1050, 4
      %v1053 = vshll.u32 %v853, 16
      %v1055 = vrot.slane %v1053, 5
      %v1056 = vsel %vm864, %v1051, %v1055
      %v1058 = vshrl.u32 %v814, 16
      %v1060 = vrot.slane %v1058, 4
      %v1061 = vshll.u32 %v814, 16
      %v1063 = vrot.slane %v1061, 5
      %v1064 = vor.u32 %v1060, %v1063
      %v1065 = vrot.slane %v1064, 4
      %v1067 = vshll.u32 %v815, 16
      %v1069 = vrot.slane %v1067, 5
      %v1070 = vsel %vm864, %v1065, %v1069
      %v1071 = vshrl.u32 %v815, 16
      %v1073 = vrot.slane %v1071, 4
      %v1074 = vor.u32 %v1073, %v1069
      %v1075 = vrot.slane %v1074, 4
      %v1077 = vshll.u32 %v854, 16
      %v1079 = vrot.slane %v1077, 5
      %v1080 = vsel %vm864, %v1075, %v1079
      %v1082 = vshrl.u32 %v816, 16
      %v1084 = vrot.slane %v1082, 4
      %v1085 = vshll.u32 %v816, 16
      %v1087 = vrot.slane %v1085, 5
      %v1088 = vor.u32 %v1084, %v1087
      %v1089 = vrot.slane %v1088, 4
      %v1091 = vshll.u32 %v817, 16
      %v1093 = vrot.slane %v1091, 5
      %v1094 = vsel %vm864, %v1089, %v1093
      %v1095 = vshrl.u32 %v817, 16
      %v1097 = vrot.slane %v1095, 4
      %v1098 = vor.u32 %v1097, %v1093
      %v1099 = vrot.slane %v1098, 4
      %v1101 = vshll.u32 %v855, 16
      %v1103 = vrot.slane %v1101, 5
      %v1104 = vsel %vm864, %v1099, %v1103
      %v1106 = vshrl.u32 %v818, 16
      %v1108 = vrot.slane %v1106, 4
      %v1109 = vshll.u32 %v818, 16
      %v1111 = vrot.slane %v1109, 5
      %v1112 = vor.u32 %v1108, %v1111
      %v1113 = vrot.slane %v1112, 4
      %v1115 = vshll.u32 %v819, 16
      %v1117 = vrot.slane %v1115, 5
      %v1118 = vsel %vm864, %v1113, %v1117
      %v1119 = vshrl.u32 %v819, 16
      %v1121 = vrot.slane %v1119, 4
      %v1122 = vor.u32 %v1121, %v1117
      %v1123 = vrot.slane %v1122, 4
      %v1125 = vshll.u32 %v856, 16
      %v1127 = vrot.slane %v1125, 5
      %v1128 = vsel %vm864, %v1123, %v1127
      %v1130 = vshrl.u32 %v820, 16
      %v1132 = vrot.slane %v1130, 4
      %v1133 = vshll.u32 %v820, 16
      %v1135 = vrot.slane %v1133, 5
      %v1136 = vor.u32 %v1132, %v1135
      %v1137 = vrot.slane %v1136, 4
      %v1139 = vshll.u32 %v821, 16
      %v1141 = vrot.slane %v1139, 5
      %v1142 = vsel %vm864, %v1137, %v1141
      %v1143 = vshrl.u32 %v821, 16
      %v1145 = vrot.slane %v1143, 4
      %v1146 = vor.u32 %v1145, %v1141
      %v1147 = vrot.slane %v1146, 4
      %v1149 = vshll.u32 %v857, 16
      %v1151 = vrot.slane %v1149, 5
      %v1152 = vsel %vm864, %v1147, %v1151
      %v1154 = vshrl.u32 %v822, 16
      %v1156 = vrot.slane %v1154, 4
      %v1157 = vshll.u32 %v822, 16
      %v1159 = vrot.slane %v1157, 5
      %v1160 = vor.u32 %v1156, %v1159
      %v1161 = vrot.slane %v1160, 4
      %v1163 = vshll.u32 %v823, 16
      %v1165 = vrot.slane %v1163, 5
      %v1166 = vsel %vm864, %v1161, %v1165
      %v1167 = vshrl.u32 %v823, 16
      %v1169 = vrot.slane %v1167, 4
      %v1170 = vor.u32 %v1169, %v1165
      %v1171 = vrot.slane %v1170, 4
      %v1173 = vshll.u32 %v858, 16
      %v1175 = vrot.slane %v1173, 5
      %v1176 = vsel %vm864, %v1171, %v1175
      %v1178 = vshrl.u32 %v824, 16
      %v1180 = vrot.slane %v1178, 4
      %v1181 = vshll.u32 %v824, 16
      %v1183 = vrot.slane %v1181, 5
      %v1184 = vor.u32 %v1180, %v1183
      %v1185 = vrot.slane %v1184, 4
      %v1187 = vshll.u32 %v825, 16
      %v1189 = vrot.slane %v1187, 5
      %v1190 = vsel %vm864, %v1185, %v1189
      %v1191 = vshrl.u32 %v825, 16
      %v1193 = vrot.slane %v1191, 4
      %v1194 = vor.u32 %v1193, %v1189
      %v1195 = vrot.slane %v1194, 4
      %v1197 = vshll.u32 %v859, 16
      %v1199 = vrot.slane %v1197, 5
      %v1200 = vsel %vm864, %v1195, %v1199
      %v1202 = vshrl.u32 %v826, 16
      %v1204 = vrot.slane %v1202, 4
      %v1205 = vshll.u32 %v826, 16
      %v1207 = vrot.slane %v1205, 5
      %v1208 = vor.u32 %v1204, %v1207
      %v1209 = vrot.slane %v1208, 4
      %v1211 = vshll.u32 %v827, 16
      %v1213 = vrot.slane %v1211, 5
      %v1214 = vsel %vm864, %v1209, %v1213
      %v1215 = vshrl.u32 %v827, 16
      %v1217 = vrot.slane %v1215, 4
      %v1218 = vor.u32 %v1217, %v1213
      %v1219 = vrot.slane %v1218, 4
      %v1221 = vshll.u32 %v860, 16
      %v1223 = vrot.slane %v1221, 5
      %v1224 = vsel %vm864, %v1219, %v1223
      %v1226 = vshrl.u32 %v828, 16
      %v1228 = vrot.slane %v1226, 4
      %v1229 = vshll.u32 %v828, 16
      %v1231 = vrot.slane %v1229, 5
      %v1232 = vor.u32 %v1228, %v1231
      %v1233 = vrot.slane %v1232, 4
      %v1235 = vshll.u32 %v829, 16
      %v1237 = vrot.slane %v1235, 5
      %v1238 = vsel %vm864, %v1233, %v1237
      %v1239 = vshrl.u32 %v829, 16
      %v1241 = vrot.slane %v1239, 4
      %v1242 = vor.u32 %v1241, %v1237
      %v1243 = vrot.slane %v1242, 4
      %v1245 = vshll.u32 %v861, 16
      %v1247 = vrot.slane %v1245, 5
      %v1248 = vsel %vm864, %v1243, %v1247
      %s1249 = scalar_lea.vmem %s1, 64
      %v1250 = vld [vmem:[%s1249] sm:$0xf]
      %v1251 = vld [vmem:[%s1249 + $0x4] sm:$0xf]
      %v1252 = vld [vmem:[%s1249 + $0x8] sm:$0xf]
      %v1253 = vld [vmem:[%s1249 + $0xc] sm:$0xf]
      %v1254 = vld [vmem:[%s1249 + $0x10] sm:$0xf]
      %v1255 = vld [vmem:[%s1249 + $0x14] sm:$0xf]
      %v1256 = vld [vmem:[%s1249 + $0x18] sm:$0xf]
      %v1257 = vld [vmem:[%s1249 + $0x1c] sm:$0xf]
      %v1258 = vld [vmem:[%s1249 + $0x20] sm:$0xf]
      %v1259 = vld [vmem:[%s1249 + $0x24] sm:$0xf]
      %v1260 = vld [vmem:[%s1249 + $0x28] sm:$0xf]
      %v1261 = vld [vmem:[%s1249 + $0x2c] sm:$0xf]
      %v1262 = vld [vmem:[%s1249 + $0x30] sm:$0xf]
      %v1263 = vld [vmem:[%s1249 + $0x34] sm:$0xf]
      %v1264 = vld [vmem:[%s1249 + $0x38] sm:$0xf]
      %v1265 = vld [vmem:[%s1249 + $0x3c] sm:$0xf]
      %v1266 = vunpack.c.l.b16 %v878
      %v1267 = vunpack.c.l.b16 %v888
      %v1268 = vunpack.c.l.b16 %v902
      %v1269 = vunpack.c.l.b16 %v912
      %v1270 = vunpack.c.l.b16 %v926
      %v1271 = vunpack.c.l.b16 %v936
      %v1272 = vunpack.c.l.b16 %v950
      %v1273 = vunpack.c.l.b16 %v960
      %v1274 = vunpack.c.l.b16 %v974
      %v1275 = vunpack.c.l.b16 %v984
      %v1276 = vunpack.c.l.b16 %v998
      %v1277 = vunpack.c.l.b16 %v1008
      %v1278 = vunpack.c.l.b16 %v1022
      %v1279 = vunpack.c.l.b16 %v1032
      %v1280 = vunpack.c.l.b16 %v1046
      %v1281 = vunpack.c.l.b16 %v1056
      %v1282 = vunpack.c.l.b16 %v1070
      %v1283 = vunpack.c.l.b16 %v1080
      %v1284 = vunpack.c.l.b16 %v1094
      %v1285 = vunpack.c.l.b16 %v1104
      %v1286 = vunpack.c.l.b16 %v1118
      %v1287 = vunpack.c.l.b16 %v1128
      %v1288 = vunpack.c.l.b16 %v1142
      %v1289 = vunpack.c.l.b16 %v1152
      %v1290 = vunpack.c.l.b16 %v1166
      %v1291 = vunpack.c.l.b16 %v1176
      %v1292 = vunpack.c.l.b16 %v1190
      %v1293 = vunpack.c.l.b16 %v1200
      %v1294 = vunpack.c.l.b16 %v1214
      %v1295 = vunpack.c.l.b16 %v1224
      %v1296 = vunpack.c.l.b16 %v1238
      %v1297 = vunpack.c.l.b16 %v1248
      %v1298 = vpack.c.b16 %v1267, %v1266
      %v1299 = vpack.c.b16 %v1269, %v1268
      %v1300 = vpack.c.b16 %v1271, %v1270
      %v1301 = vpack.c.b16 %v1273, %v1272
      %v1302 = vpack.c.b16 %v1275, %v1274
      %v1303 = vpack.c.b16 %v1277, %v1276
      %v1304 = vpack.c.b16 %v1279, %v1278
      %v1305 = vpack.c.b16 %v1281, %v1280
      %v1306 = vpack.c.b16 %v1283, %v1282
      %v1307 = vpack.c.b16 %v1285, %v1284
      %v1308 = vpack.c.b16 %v1287, %v1286
      %v1309 = vpack.c.b16 %v1289, %v1288
      %v1310 = vpack.c.b16 %v1291, %v1290
      %v1311 = vpack.c.b16 %v1293, %v1292
      %v1312 = vpack.c.b16 %v1295, %v1294
      %v1313 = vpack.c.b16 %v1297, %v1296
      %v1346 = vunpack.c.l.b16 %v1250
      %v1347 = vunpack.c.l.b16 %v1251
      %v1348 = vunpack.c.l.b16 %v1252
      %v1349 = vunpack.c.l.b16 %v1253
      %v1350 = vunpack.c.l.b16 %v1254
      %v1351 = vunpack.c.l.b16 %v1255
      %v1352 = vunpack.c.l.b16 %v1256
      %v1353 = vunpack.c.l.b16 %v1257
      %v1354 = vunpack.c.l.b16 %v1258
      %v1355 = vunpack.c.l.b16 %v1259
      %v1356 = vunpack.c.l.b16 %v1260
      %v1357 = vunpack.c.l.b16 %v1261
      %v1358 = vunpack.c.l.b16 %v1262
      %v1359 = vunpack.c.l.b16 %v1263
      %v1360 = vunpack.c.l.b16 %v1264
      %v1361 = vunpack.c.l.b16 %v1265
      %v1362 = vpack.c.b16 %v1347, %v1346
      %v1363 = vpack.c.b16 %v1349, %v1348
      %v1364 = vpack.c.b16 %v1351, %v1350
      %v1365 = vpack.c.b16 %v1353, %v1352
      %v1366 = vpack.c.b16 %v1355, %v1354
      %v1367 = vpack.c.b16 %v1357, %v1356
      %v1368 = vpack.c.b16 %v1359, %v1358
      %v1369 = vpack.c.b16 %v1361, %v1360
      %1378 = vmatprep.subr.bf16.mxu0 0
      %1379 = vmatpush1.bf16.msra.mxu0 %v1362
      %1380 = vmatprep.subr.bf16.mxu0 0
      %1381 = vmatpush1.bf16.msra.mxu0 %v1363
      %1382 = vmatprep.subr.bf16.mxu0 0
      %1383 = vmatpush1.bf16.msra.mxu0 %v1364
      %1384 = vmatprep.subr.bf16.mxu0 0
      %1385 = vmatpush1.bf16.msra.mxu0 %v1365
      %1386 = vmatprep.subr.bf16.mxu0 0
      %1387 = vmatpush1.bf16.msra.mxu0 %v1366
      %1388 = vmatprep.subr.bf16.mxu0 0
      %1389 = vmatpush1.bf16.msra.mxu0 %v1367
      %1390 = vmatprep.subr.bf16.mxu0 0
      %1391 = vmatpush1.bf16.msra.mxu0 %v1368
      %1392 = vmatprep.subr.bf16.mxu0 0
      %1393 = vmatpush1.bf16.msra.mxu0 %v1369
      %1394 = vmatprep.subr.bf16.mxu0 0
      %1395 = vmatpush1.bf16.msra.mxu0 0
      %1396 = vmatprep.subr.bf16.mxu0 0
      %1397 = vmatpush1.bf16.msra.mxu0 0
      %1398 = vmatprep.subr.bf16.mxu0 0
      %1399 = vmatpush1.bf16.msra.mxu0 0
      %1400 = vmatprep.subr.bf16.mxu0 0
      %1401 = vmatpush1.bf16.msra.mxu0 0
      %1402 = vmatprep.subr.bf16.mxu0 0
      %1403 = vmatpush1.bf16.msra.mxu0 0
      %1404 = vmatprep.subr.bf16.mxu0 0
      %1405 = vmatpush1.bf16.msra.mxu0 0
      %1406 = vmatprep.subr.bf16.mxu0 0
      %1407 = vmatpush1.bf16.msra.mxu0 0
      %1408 = vmatprep.subr.bf16.mxu0 0
      %1409 = vmatpush1.bf16.msra.mxu0 0
      %1410 = vmatprep.mubr.bf16.mxu0 0
      %1411 = vmatmul.mubr.bf16.gmra.mrb[0].mxu0 %v1298
      %v1412 = vpop.f32.mrb[0].mxu0
      %v1413 = vadd.f32 0.0, %v1412
      %v1414 = vpop.f32.mrb[0].mxu0
      %v1415 = vpop.f32.mrb[0].mxu0
      %v1416 = vadd.f32 0.0, %v1415
      %v1417 = vpop.f32.mrb[0].mxu0
      %1418 = vmatprep.mubr.bf16.mxu0 0
      %1419 = vmatmul.mubr.bf16.gmra.mrb[0].mxu0 %v1299
      %v1420 = vpop.f32.mrb[0].mxu0
      %v1421 = vadd.f32 0.0, %v1420
      %v1422 = vpop.f32.mrb[0].mxu0
      %v1423 = vpop.f32.mrb[0].mxu0
      %v1424 = vadd.f32 0.0, %v1423
      %v1425 = vpop.f32.mrb[0].mxu0
      %1426 = vmatprep.mubr.bf16.mxu0 0
      %1427 = vmatmul.mubr.bf16.gmra.mrb[0].mxu0 %v1300
      %v1428 = vpop.f32.mrb[0].mxu0
      %v1429 = vadd.f32 0.0, %v1428
      %v1430 = vpop.f32.mrb[0].mxu0
      %v1431 = vpop.f32.mrb[0].mxu0
      %v1432 = vadd.f32 0.0, %v1431
      %v1433 = vpop.f32.mrb[0].mxu0
      %1434 = vmatprep.mubr.bf16.mxu0 0
      %1435 = vmatmul.mubr.bf16.gmra.mrb[0].mxu0 %v1301
      %v1436 = vpop.f32.mrb[0].mxu0
      %v1437 = vadd.f32 0.0, %v1436
      %v1438 = vpop.f32.mrb[0].mxu0
      %v1439 = vpop.f32.mrb[0].mxu0
      %v1440 = vadd.f32 0.0, %v1439
      %v1441 = vpop.f32.mrb[0].mxu0
      %1442 = vmatprep.mubr.bf16.mxu0 0
      %1443 = vmatmul.mubr.bf16.gmra.mrb[0].mxu0 %v1302
      %v1444 = vpop.f32.mrb[0].mxu0
      %v1445 = vadd.f32 0.0, %v1444
      %v1446 = vpop.f32.mrb[0].mxu0
      %v1447 = vpop.f32.mrb[0].mxu0
      %v1448 = vadd.f32 0.0, %v1447
      %v1449 = vpop.f32.mrb[0].mxu0
      %1450 = vmatprep.mubr.bf16.mxu0 0
      %1451 = vmatmul.mubr.bf16.gmra.mrb[0].mxu0 %v1303
      %v1452 = vpop.f32.mrb[0].mxu0
      %v1453 = vadd.f32 0.0, %v1452
      %v1454 = vpop.f32.mrb[0].mxu0
      %v1455 = vpop.f32.mrb[0].mxu0
      %v1456 = vadd.f32 0.0, %v1455
      %v1457 = vpop.f32.mrb[0].mxu0
      %1458 = vmatprep.mubr.bf16.mxu0 0
      %1459 = vmatmul.mubr.bf16.gmra.mrb[0].mxu0 %v1304
      %v1460 = vpop.f32.mrb[0].mxu0
      %v1461 = vadd.f32 0.0, %v1460
      %v1462 = vpop.f32.mrb[0].mxu0
      %v1463 = vpop.f32.mrb[0].mxu0
      %v1464 = vadd.f32 0.0, %v1463
      %v1465 = vpop.f32.mrb[0].mxu0
      %1466 = vmatprep.mubr.bf16.mxu0 0
      %1467 = vmatmul.mubr.bf16.gmra.mrb[0].mxu0 %v1305
      %v1468 = vpop.f32.mrb[0].mxu0
      %v1469 = vadd.f32 0.0, %v1468
      %v1470 = vpop.f32.mrb[0].mxu0
      %v1471 = vpop.f32.mrb[0].mxu0
      %v1472 = vadd.f32 0.0, %v1471
      %v1473 = vpop.f32.mrb[0].mxu0
      %1474 = vmatprep.mubr.bf16.mxu0 0
      %1475 = vmatmul.mubr.bf16.gmra.mrb[0].mxu0 %v1306
      %v1476 = vpop.f32.mrb[0].mxu0
      %v1477 = vadd.f32 0.0, %v1476
      %v1478 = vpop.f32.mrb[0].mxu0
      %v1479 = vpop.f32.mrb[0].mxu0
      %v1480 = vadd.f32 0.0, %v1479
      %v1481 = vpop.f32.mrb[0].mxu0
      %1482 = vmatprep.mubr.bf16.mxu0 0
      %1483 = vmatmul.mubr.bf16.gmra.mrb[0].mxu0 %v1307
      %v1484 = vpop.f32.mrb[0].mxu0
      %v1485 = vadd.f32 0.0, %v1484
      %v1486 = vpop.f32.mrb[0].mxu0
      %v1487 = vpop.f32.mrb[0].mxu0
      %v1488 = vadd.f32 0.0, %v1487
      %v1489 = vpop.f32.mrb[0].mxu0
      %1490 = vmatprep.mubr.bf16.mxu0 0
      %1491 = vmatmul.mubr.bf16.gmra.mrb[0].mxu0 %v1308
      %v1492 = vpop.f32.mrb[0].mxu0
      %v1493 = vadd.f32 0.0, %v1492
      %v1494 = vpop.f32.mrb[0].mxu0
      %v1495 = vpop.f32.mrb[0].mxu0
      %v1496 = vadd.f32 0.0, %v1495
      %v1497 = vpop.f32.mrb[0].mxu0
      %1498 = vmatprep.mubr.bf16.mxu0 0
      %1499 = vmatmul.mubr.bf16.gmra.mrb[0].mxu0 %v1309
      %v1500 = vpop.f32.mrb[0].mxu0
      %v1501 = vadd.f32 0.0, %v1500
      %v1502 = vpop.f32.mrb[0].mxu0
      %v1503 = vpop.f32.mrb[0].mxu0
      %v1504 = vadd.f32 0.0, %v1503
      %v1505 = vpop.f32.mrb[0].mxu0
      %1506 = vmatprep.mubr.bf16.mxu0 0
      %1507 = vmatmul.mubr.bf16.gmra.mrb[0].mxu0 %v1310
      %v1508 = vpop.f32.mrb[0].mxu0
      %v1509 = vadd.f32 0.0, %v1508
      %v1510 = vpop.f32.mrb[0].mxu0
      %v1511 = vpop.f32.mrb[0].mxu0
      %v1512 = vadd.f32 0.0, %v1511
      %v1513 = vpop.f32.mrb[0].mxu0
      %1514 = vmatprep.mubr.bf16.mxu0 0
      %1515 = vmatmul.mubr.bf16.gmra.mrb[0].mxu0 %v1311
      %v1516 = vpop.f32.mrb[0].mxu0
      %v1517 = vadd.f32 0.0, %v1516
      %v1518 = vpop.f32.mrb[0].mxu0
      %v1519 = vpop.f32.mrb[0].mxu0
      %v1520 = vadd.f32 0.0, %v1519
      %v1521 = vpop.f32.mrb[0].mxu0
      %1522 = vmatprep.mubr.bf16.mxu0 0
      %1523 = vmatmul.mubr.bf16.gmra.mrb[0].mxu0 %v1312
      %v1524 = vpop.f32.mrb[0].mxu0
      %v1525 = vadd.f32 0.0, %v1524
      %v1526 = vpop.f32.mrb[0].mxu0
      %v1527 = vpop.f32.mrb[0].mxu0
      %v1528 = vadd.f32 0.0, %v1527
      %v1529 = vpop.f32.mrb[0].mxu0
      %1530 = vmatprep.mubr.bf16.mxu0 0
      %1531 = vmatmul.mubr.bf16.gmra.mrb[0].mxu0 %v1313
      %v1532 = vpop.f32.mrb[0].mxu0
      %v1533 = vadd.f32 0.0, %v1532
      %v1534 = vpop.f32.mrb[0].mxu0
      %v1535 = vpop.f32.mrb[0].mxu0
      %v1536 = vadd.f32 0.0, %v1535
      %v1537 = vpop.f32.mrb[0].mxu0
      %1538 = vdwg.mxu0
      %v1571 = vunpack.c.l.b16 %v798
      %v1572 = vunpack.c.l.b16 %v799
      %v1573 = vunpack.c.l.b16 %v800
      %v1574 = vunpack.c.l.b16 %v801
      %v1575 = vunpack.c.l.b16 %v802
      %v1576 = vunpack.c.l.b16 %v803
      %v1577 = vunpack.c.l.b16 %v804
      %v1578 = vunpack.c.l.b16 %v805
      %v1579 = vunpack.c.l.b16 %v806
      %v1580 = vunpack.c.l.b16 %v807
      %v1581 = vunpack.c.l.b16 %v808
      %v1582 = vunpack.c.l.b16 %v809
      %v1583 = vunpack.c.l.b16 %v810
      %v1584 = vunpack.c.l.b16 %v811
      %v1585 = vunpack.c.l.b16 %v812
      %v1586 = vunpack.c.l.b16 %v813
      %v1587 = vunpack.c.l.b16 %v814
      %v1588 = vunpack.c.l.b16 %v815
      %v1589 = vunpack.c.l.b16 %v816
      %v1590 = vunpack.c.l.b16 %v817
      %v1591 = vunpack.c.l.b16 %v818
      %v1592 = vunpack.c.l.b16 %v819
      %v1593 = vunpack.c.l.b16 %v820
      %v1594 = vunpack.c.l.b16 %v821
      %v1595 = vunpack.c.l.b16 %v822
      %v1596 = vunpack.c.l.b16 %v823
      %v1597 = vunpack.c.l.b16 %v824
      %v1598 = vunpack.c.l.b16 %v825
      %v1599 = vunpack.c.l.b16 %v826
      %v1600 = vunpack.c.l.b16 %v827
      %v1601 = vunpack.c.l.b16 %v828
      %v1602 = vunpack.c.l.b16 %v829
      %v1603 = vpack.c.b16 %v1572, %v1571
      %v1604 = vpack.c.b16 %v1574, %v1573
      %v1605 = vpack.c.b16 %v1576, %v1575
      %v1606 = vpack.c.b16 %v1578, %v1577
      %v1607 = vpack.c.b16 %v1580, %v1579
      %v1608 = vpack.c.b16 %v1582, %v1581
      %v1609 = vpack.c.b16 %v1584, %v1583
      %v1610 = vpack.c.b16 %v1586, %v1585
      %v1611 = vpack.c.b16 %v1588, %v1587
      %v1612 = vpack.c.b16 %v1590, %v1589
      %v1613 = vpack.c.b16 %v1592, %v1591
      %v1614 = vpack.c.b16 %v1594, %v1593
      %v1615 = vpack.c.b16 %v1596, %v1595
      %v1616 = vpack.c.b16 %v1598, %v1597
      %v1617 = vpack.c.b16 %v1600, %v1599
      %v1618 = vpack.c.b16 %v1602, %v1601
      %v1651 = vunpack.c.l.b16 %v830
      %v1652 = vunpack.c.l.b16 %v831
      %v1653 = vunpack.c.l.b16 %v832
      %v1654 = vunpack.c.l.b16 %v833
      %v1655 = vunpack.c.l.b16 %v834
      %v1656 = vunpack.c.l.b16 %v835
      %v1657 = vunpack.c.l.b16 %v836
      %v1658 = vunpack.c.l.b16 %v837
      %v1659 = vunpack.c.l.b16 %v838
      %v1660 = vunpack.c.l.b16 %v839
      %v1661 = vunpack.c.l.b16 %v840
      %v1662 = vunpack.c.l.b16 %v841
      %v1663 = vunpack.c.l.b16 %v842
      %v1664 = vunpack.c.l.b16 %v843
      %v1665 = vunpack.c.l.b16 %v844
      %v1666 = vunpack.c.l.b16 %v845
      %v1667 = vpack.c.b16 %v1652, %v1651
      %v1668 = vpack.c.b16 %v1654, %v1653
      %v1669 = vpack.c.b16 %v1656, %v1655
      %v1670 = vpack.c.b16 %v1658, %v1657
      %v1671 = vpack.c.b16 %v1660, %v1659
      %v1672 = vpack.c.b16 %v1662, %v1661
      %v1673 = vpack.c.b16 %v1664, %v1663
      %v1674 = vpack.c.b16 %v1666, %v1665
      %1683 = vmatprep.subr.bf16.mxu0 0
      %1684 = vmatpush1.bf16.msra.mxu0 %v1667
      %1685 = vmatprep.subr.bf16.mxu0 0
      %1686 = vmatpush1.bf16.msra.mxu0 %v1668
      %1687 = vmatprep.subr.bf16.mxu0 0
      %1688 = vmatpush1.bf16.msra.mxu0 %v1669
      %1689 = vmatprep.subr.bf16.mxu0 0
      %1690 = vmatpush1.bf16.msra.mxu0 %v1670
      %1691 = vmatprep.subr.bf16.mxu0 0
      %1692 = vmatpush1.bf16.msra.mxu0 %v1671
      %1693 = vmatprep.subr.bf16.mxu0 0
      %1694 = vmatpush1.bf16.msra.mxu0 %v1672
      %1695 = vmatprep.subr.bf16.mxu0 0
      %1696 = vmatpush1.bf16.msra.mxu0 %v1673
      %1697 = vmatprep.subr.bf16.mxu0 0
      %1698 = vmatpush1.bf16.msra.mxu0 %v1674
      %1699 = vmatprep.subr.bf16.mxu0 0
      %1700 = vmatpush1.bf16.msra.mxu0 0
      %1701 = vmatprep.subr.bf16.mxu0 0
      %1702 = vmatpush1.bf16.msra.mxu0 0
      %1703 = vmatprep.subr.bf16.mxu0 0
      %1704 = vmatpush1.bf16.msra.mxu0 0
      %1705 = vmatprep.subr.bf16.mxu0 0
      %1706 = vmatpush1.bf16.msra.mxu0 0
      %1707 = vmatprep.subr.bf16.mxu0 0
      %1708 = vmatpush1.bf16.msra.mxu0 0
      %1709 = vmatprep.subr.bf16.mxu0 0
      %1710 = vmatpush1.bf16.msra.mxu0 0
      %1711 = vmatprep.subr.bf16.mxu0 0
      %1712 = vmatpush1.bf16.msra.mxu0 0
      %1713 = vmatprep.subr.bf16.mxu0 0
      %1714 = vmatpush1.bf16.msra.mxu0 0
      %1715 = vmatprep.mubr.bf16.mxu0 0
      %1716 = vmatmul.mubr.bf16.gmra.mrb[0].mxu0 %v1603
      %v1717 = vpop.f32.mrb[0].mxu0
      %v1718 = vadd.f32 %v1413, %v1717
      %v1719 = vpop.f32.mrb[0].mxu0
      %v1720 = vpop.f32.mrb[0].mxu0
      %v1721 = vadd.f32 %v1416, %v1720
      %v1722 = vpop.f32.mrb[0].mxu0
      %1723 = vmatprep.mubr.bf16.mxu0 0
      %1724 = vmatmul.mubr.bf16.gmra.mrb[0].mxu0 %v1604
      %v1725 = vpop.f32.mrb[0].mxu0
      %v1726 = vadd.f32 %v1421, %v1725
      %v1727 = vpop.f32.mrb[0].mxu0
      %v1728 = vpop.f32.mrb[0].mxu0
      %v1729 = vadd.f32 %v1424, %v1728
      %v1730 = vpop.f32.mrb[0].mxu0
      %1731 = vmatprep.mubr.bf16.mxu0 0
      %1732 = vmatmul.mubr.bf16.gmra.mrb[0].mxu0 %v1605
      %v1733 = vpop.f32.mrb[0].mxu0
      %v1734 = vadd.f32 %v1429, %v1733
      %v1735 = vpop.f32.mrb[0].mxu0
      %v1736 = vpop.f32.mrb[0].mxu0
      %v1737 = vadd.f32 %v1432, %v1736
      %v1738 = vpop.f32.mrb[0].mxu0
      %1739 = vmatprep.mubr.bf16.mxu0 0
      %1740 = vmatmul.mubr.bf16.gmra.mrb[0].mxu0 %v1606
      %v1741 = vpop.f32.mrb[0].mxu0
      %v1742 = vadd.f32 %v1437, %v1741
      %v1743 = vpop.f32.mrb[0].mxu0
      %v1744 = vpop.f32.mrb[0].mxu0
      %v1745 = vadd.f32 %v1440, %v1744
      %v1746 = vpop.f32.mrb[0].mxu0
      %1747 = vmatprep.mubr.bf16.mxu0 0
      %1748 = vmatmul.mubr.bf16.gmra.mrb[0].mxu0 %v1607
      %v1749 = vpop.f32.mrb[0].mxu0
      %v1750 = vadd.f32 %v1445, %v1749
      %v1751 = vpop.f32.mrb[0].mxu0
      %v1752 = vpop.f32.mrb[0].mxu0
      %v1753 = vadd.f32 %v1448, %v1752
      %v1754 = vpop.f32.mrb[0].mxu0
      %1755 = vmatprep.mubr.bf16.mxu0 0
      %1756 = vmatmul.mubr.bf16.gmra.mrb[0].mxu0 %v1608
      %v1757 = vpop.f32.mrb[0].mxu0
      %v1758 = vadd.f32 %v1453, %v1757
      %v1759 = vpop.f32.mrb[0].mxu0
      %v1760 = vpop.f32.mrb[0].mxu0
      %v1761 = vadd.f32 %v1456, %v1760
      %v1762 = vpop.f32.mrb[0].mxu0
      %1763 = vmatprep.mubr.bf16.mxu0 0
      %1764 = vmatmul.mubr.bf16.gmra.mrb[0].mxu0 %v1609
      %v1765 = vpop.f32.mrb[0].mxu0
      %v1766 = vadd.f32 %v1461, %v1765
      %v1767 = vpop.f32.mrb[0].mxu0
      %v1768 = vpop.f32.mrb[0].mxu0
      %v1769 = vadd.f32 %v1464, %v1768
      %v1770 = vpop.f32.mrb[0].mxu0
      %1771 = vmatprep.mubr.bf16.mxu0 0
      %1772 = vmatmul.mubr.bf16.gmra.mrb[0].mxu0 %v1610
      %v1773 = vpop.f32.mrb[0].mxu0
      %v1774 = vadd.f32 %v1469, %v1773
      %v1775 = vpop.f32.mrb[0].mxu0
      %v1776 = vpop.f32.mrb[0].mxu0
      %v1777 = vadd.f32 %v1472, %v1776
      %v1778 = vpop.f32.mrb[0].mxu0
      %1779 = vmatprep.mubr.bf16.mxu0 0
      %1780 = vmatmul.mubr.bf16.gmra.mrb[0].mxu0 %v1611
      %v1781 = vpop.f32.mrb[0].mxu0
      %v1782 = vadd.f32 %v1477, %v1781
      %v1783 = vpop.f32.mrb[0].mxu0
      %v1784 = vpop.f32.mrb[0].mxu0
      %v1785 = vadd.f32 %v1480, %v1784
      %v1786 = vpop.f32.mrb[0].mxu0
      %1787 = vmatprep.mubr.bf16.mxu0 0
      %1788 = vmatmul.mubr.bf16.gmra.mrb[0].mxu0 %v1612
      %v1789 = vpop.f32.mrb[0].mxu0
      %v1790 = vadd.f32 %v1485, %v1789
      %v1791 = vpop.f32.mrb[0].mxu0
      %v1792 = vpop.f32.mrb[0].mxu0
      %v1793 = vadd.f32 %v1488, %v1792
      %v1794 = vpop.f32.mrb[0].mxu0
      %1795 = vmatprep.mubr.bf16.mxu0 0
      %1796 = vmatmul.mubr.bf16.gmra.mrb[0].mxu0 %v1613
      %v1797 = vpop.f32.mrb[0].mxu0
      %v1798 = vadd.f32 %v1493, %v1797
      %v1799 = vpop.f32.mrb[0].mxu0
      %v1800 = vpop.f32.mrb[0].mxu0
      %v1801 = vadd.f32 %v1496, %v1800
      %v1802 = vpop.f32.mrb[0].mxu0
      %1803 = vmatprep.mubr.bf16.mxu0 0
      %1804 = vmatmul.mubr.bf16.gmra.mrb[0].mxu0 %v1614
      %v1805 = vpop.f32.mrb[0].mxu0
      %v1806 = vadd.f32 %v1501, %v1805
      %v1807 = vpop.f32.mrb[0].mxu0
      %v1808 = vpop.f32.mrb[0].mxu0
      %v1809 = vadd.f32 %v1504, %v1808
      %v1810 = vpop.f32.mrb[0].mxu0
      %1811 = vmatprep.mubr.bf16.mxu0 0
      %1812 = vmatmul.mubr.bf16.gmra.mrb[0].mxu0 %v1615
      %v1813 = vpop.f32.mrb[0].mxu0
      %v1814 = vadd.f32 %v1509, %v1813
      %v1815 = vpop.f32.mrb[0].mxu0
      %v1816 = vpop.f32.mrb[0].mxu0
      %v1817 = vadd.f32 %v1512, %v1816
      %v1818 = vpop.f32.mrb[0].mxu0
      %1819 = vmatprep.mubr.bf16.mxu0 0
      %1820 = vmatmul.mubr.bf16.gmra.mrb[0].mxu0 %v1616
      %v1821 = vpop.f32.mrb[0].mxu0
      %v1822 = vadd.f32 %v1517, %v1821
      %v1823 = vpop.f32.mrb[0].mxu0
      %v1824 = vpop.f32.mrb[0].mxu0
      %v1825 = vadd.f32 %v1520, %v1824
      %v1826 = vpop.f32.mrb[0].mxu0
      %1827 = vmatprep.mubr.bf16.mxu0 0
      %1828 = vmatmul.mubr.bf16.gmra.mrb[0].mxu0 %v1617
      %v1829 = vpop.f32.mrb[0].mxu0
      %v1830 = vadd.f32 %v1525, %v1829
      %v1831 = vpop.f32.mrb[0].mxu0
      %v1832 = vpop.f32.mrb[0].mxu0
      %v1833 = vadd.f32 %v1528, %v1832
      %v1834 = vpop.f32.mrb[0].mxu0
      %1835 = vmatprep.mubr.bf16.mxu0 0
      %1836 = vmatmul.mubr.bf16.gmra.mrb[0].mxu0 %v1618
      %v1837 = vpop.f32.mrb[0].mxu0
      %v1838 = vadd.f32 %v1533, %v1837
      %v1839 = vpop.f32.mrb[0].mxu0
      %v1840 = vpop.f32.mrb[0].mxu0
      %v1841 = vadd.f32 %v1536, %v1840
      %v1842 = vpop.f32.mrb[0].mxu0
      %1843 = vdwg.mxu0
      %v1844 = vld [vmem:[#allocation2] sm:$0xe]
      %v1845 = vld [vmem:[#allocation2 + $0xc] sm:$0xe]
      %v1846 = vld [vmem:[#allocation2 + $0x18] sm:$0xe]
      %v1847 = vld [vmem:[#allocation2 + $0x24] sm:$0xe]
      %v1848 = vld [vmem:[#allocation2 + $0x30] sm:$0xe]
      %v1849 = vld [vmem:[#allocation2 + $0x3c] sm:$0xe]
      %v1850 = vld [vmem:[#allocation2 + $0x48] sm:$0xe]
      %v1851 = vld [vmem:[#allocation2 + $0x54] sm:$0xe]
      %v1852 = vld [vmem:[#allocation2 + $0x60] sm:$0xe]
      %v1853 = vld [vmem:[#allocation2 + $0x6c] sm:$0xe]
      %v1854 = vld [vmem:[#allocation2 + $0x78] sm:$0xe]
      %v1855 = vld [vmem:[#allocation2 + $0x84] sm:$0xe]
      %v1856 = vld [vmem:[#allocation2 + $0x90] sm:$0xe]
      %v1857 = vld [vmem:[#allocation2 + $0x9c] sm:$0xe]
      %v1858 = vld [vmem:[#allocation2 + $0xa8] sm:$0xe]
      %v1859 = vld [vmem:[#allocation2 + $0xb4] sm:$0xe]
      %vm1892 = vcmask 1042432
      %vm1893 = vcmask 1046532
      %vm1894 = vmor %vm1892, %vm1893
      %v1895 = vrot.slane %v1844, 5
      %v1896 = vrot.slane %v1895, 4
      %v1897 = vrot.slane %v799, 5
      %v1898 = vsel %vm1894, %v1896, %v1897
      %v1899 = vrot.slane %v1897, 4
      %v1900 = vrot.slane %v846, 5
      %v1901 = vsel %vm1894, %v1899, %v1900
      %v1902 = vrot.slane %v1845, 5
      %v1903 = vrot.slane %v1902, 4
      %v1904 = vrot.slane %v801, 5
      %v1905 = vsel %vm1894, %v1903, %v1904
      %v1906 = vrot.slane %v1904, 4
      %v1907 = vrot.slane %v847, 5
      %v1908 = vsel %vm1894, %v1906, %v1907
      %v1909 = vrot.slane %v1846, 5
      %v1910 = vrot.slane %v1909, 4
      %v1911 = vrot.slane %v803, 5
      %v1912 = vsel %vm1894, %v1910, %v1911
      %v1913 = vrot.slane %v1911, 4
      %v1914 = vrot.slane %v848, 5
      %v1915 = vsel %vm1894, %v1913, %v1914
      %v1916 = vrot.slane %v1847, 5
      %v1917 = vrot.slane %v1916, 4
      %v1918 = vrot.slane %v805, 5
      %v1919 = vsel %vm1894, %v1917, %v1918
      %v1920 = vrot.slane %v1918, 4
      %v1921 = vrot.slane %v849, 5
      %v1922 = vsel %vm1894, %v1920, %v1921
      %v1923 = vrot.slane %v1848, 5
      %v1924 = vrot.slane %v1923, 4
      %v1925 = vrot.slane %v807, 5
      %v1926 = vsel %vm1894, %v1924, %v1925
      %v1927 = vrot.slane %v1925, 4
      %v1928 = vrot.slane %v850, 5
      %v1929 = vsel %vm1894, %v1927, %v1928
      %v1930 = vrot.slane %v1849, 5
      %v1931 = vrot.slane %v1930, 4
      %v1932 = vrot.slane %v809, 5
      %v1933 = vsel %vm1894, %v1931, %v1932
      %v1934 = vrot.slane %v1932, 4
      %v1935 = vrot.slane %v851, 5
      %v1936 = vsel %vm1894, %v1934, %v1935
      %v1937 = vrot.slane %v1850, 5
      %v1938 = vrot.slane %v1937, 4
      %v1939 = vrot.slane %v811, 5
      %v1940 = vsel %vm1894, %v1938, %v1939
      %v1941 = vrot.slane %v1939, 4
      %v1942 = vrot.slane %v852, 5
      %v1943 = vsel %vm1894, %v1941, %v1942
      %v1944 = vrot.slane %v1851, 5
      %v1945 = vrot.slane %v1944, 4
      %v1946 = vrot.slane %v813, 5
      %v1947 = vsel %vm1894, %v1945, %v1946
      %v1948 = vrot.slane %v1946, 4
      %v1949 = vrot.slane %v853, 5
      %v1950 = vsel %vm1894, %v1948, %v1949
      %v1951 = vrot.slane %v1852, 5
      %v1952 = vrot.slane %v1951, 4
      %v1953 = vrot.slane %v815, 5
      %v1954 = vsel %vm1894, %v1952, %v1953
      %v1955 = vrot.slane %v1953, 4
      %v1956 = vrot.slane %v854, 5
      %v1957 = vsel %vm1894, %v1955, %v1956
      %v1958 = vrot.slane %v1853, 5
      %v1959 = vrot.slane %v1958, 4
      %v1960 = vrot.slane %v817, 5
      %v1961 = vsel %vm1894, %v1959, %v1960
      %v1962 = vrot.slane %v1960, 4
      %v1963 = vrot.slane %v855, 5
      %v1964 = vsel %vm1894, %v1962, %v1963
      %v1965 = vrot.slane %v1854, 5
      %v1966 = vrot.slane %v1965, 4
      %v1967 = vrot.slane %v819, 5
      %v1968 = vsel %vm1894, %v1966, %v1967
      %v1969 = vrot.slane %v1967, 4
      %v1970 = vrot.slane %v856, 5
      %v1971 = vsel %vm1894, %v1969, %v1970
      %v1972 = vrot.slane %v1855, 5
      %v1973 = vrot.slane %v1972, 4
      %v1974 = vrot.slane %v821, 5
      %v1975 = vsel %vm1894, %v1973, %v1974
      %v1976 = vrot.slane %v1974, 4
      %v1977 = vrot.slane %v857, 5
      %v1978 = vsel %vm1894, %v1976, %v1977
      %v1979 = vrot.slane %v1856, 5
      %v1980 = vrot.slane %v1979, 4
      %v1981 = vrot.slane %v823, 5
      %v1982 = vsel %vm1894, %v1980, %v1981
      %v1983 = vrot.slane %v1981, 4
      %v1984 = vrot.slane %v858, 5
      %v1985 = vsel %vm1894, %v1983, %v1984
      %v1986 = vrot.slane %v1857, 5
      %v1987 = vrot.slane %v1986, 4
      %v1988 = vrot.slane %v825, 5
      %v1989 = vsel %vm1894, %v1987, %v1988
      %v1990 = vrot.slane %v1988, 4
      %v1991 = vrot.slane %v859, 5
      %v1992 = vsel %vm1894, %v1990, %v1991
      %v1993 = vrot.slane %v1858, 5
      %v1994 = vrot.slane %v1993, 4
      %v1995 = vrot.slane %v827, 5
      %v1996 = vsel %vm1894, %v1994, %v1995
      %v1997 = vrot.slane %v1995, 4
      %v1998 = vrot.slane %v860, 5
      %v1999 = vsel %vm1894, %v1997, %v1998
      %v2000 = vrot.slane %v1859, 5
      %v2001 = vrot.slane %v2000, 4
      %v2002 = vrot.slane %v829, 5
      %v2003 = vsel %vm1894, %v2001, %v2002
      %v2004 = vrot.slane %v2002, 4
      %v2005 = vrot.slane %v861, 5
      %v2006 = vsel %vm1894, %v2004, %v2005
      %s2007 = scalar_lea.vmem %s1, 128
      %v2008 = vld [vmem:[%s2007] sm:$0xf]
      %v2009 = vld [vmem:[%s2007 + $0x4] sm:$0xf]
      %v2010 = vld [vmem:[%s2007 + $0x8] sm:$0xf]
      %v2011 = vld [vmem:[%s2007 + $0xc] sm:$0xf]
      %v2012 = vld [vmem:[%s2007 + $0x10] sm:$0xf]
      %v2013 = vld [vmem:[%s2007 + $0x14] sm:$0xf]
      %v2014 = vld [vmem:[%s2007 + $0x18] sm:$0xf]
      %v2015 = vld [vmem:[%s2007 + $0x1c] sm:$0xf]
      %v2016 = vld [vmem:[%s2007 + $0x20] sm:$0xf]
      %v2017 = vld [vmem:[%s2007 + $0x24] sm:$0xf]
      %v2018 = vld [vmem:[%s2007 + $0x28] sm:$0xf]
      %v2019 = vld [vmem:[%s2007 + $0x2c] sm:$0xf]
      %v2020 = vld [vmem:[%s2007 + $0x30] sm:$0xf]
      %v2021 = vld [vmem:[%s2007 + $0x34] sm:$0xf]
      %v2022 = vld [vmem:[%s2007 + $0x38] sm:$0xf]
      %v2023 = vld [vmem:[%s2007 + $0x3c] sm:$0xf]
      %v2024 = vunpack.c.l.b16 %v1898
      %v2025 = vunpack.c.l.b16 %v1901
      %v2026 = vunpack.c.l.b16 %v1905
      %v2027 = vunpack.c.l.b16 %v1908
      %v2028 = vunpack.c.l.b16 %v1912
      %v2029 = vunpack.c.l.b16 %v1915
      %v2030 = vunpack.c.l.b16 %v1919
      %v2031 = vunpack.c.l.b16 %v1922
      %v2032 = vunpack.c.l.b16 %v1926
      %v2033 = vunpack.c.l.b16 %v1929
      %v2034 = vunpack.c.l.b16 %v1933
      %v2035 = vunpack.c.l.b16 %v1936
      %v2036 = vunpack.c.l.b16 %v1940
      %v2037 = vunpack.c.l.b16 %v1943
      %v2038 = vunpack.c.l.b16 %v1947
      %v2039 = vunpack.c.l.b16 %v1950
      %v2040 = vunpack.c.l.b16 %v1954
      %v2041 = vunpack.c.l.b16 %v1957
      %v2042 = vunpack.c.l.b16 %v1961
      %v2043 = vunpack.c.l.b16 %v1964
      %v2044 = vunpack.c.l.b16 %v1968
      %v2045 = vunpack.c.l.b16 %v1971
      %v2046 = vunpack.c.l.b16 %v1975
      %v2047 = vunpack.c.l.b16 %v1978
      %v2048 = vunpack.c.l.b16 %v1982
      %v2049 = vunpack.c.l.b16 %v1985
      %v2050 = vunpack.c.l.b16 %v1989
      %v2051 = vunpack.c.l.b16 %v1992
      %v2052 = vunpack.c.l.b16 %v1996
      %v2053 = vunpack.c.l.b16 %v1999
      %v2054 = vunpack.c.l.b16 %v2003
      %v2055 = vunpack.c.l.b16 %v2006
      %v2056 = vpack.c.b16 %v2025, %v2024
      %v2057 = vpack.c.b16 %v2027, %v2026
      %v2058 = vpack.c.b16 %v2029, %v2028
      %v2059 = vpack.c.b16 %v2031, %v2030
      %v2060 = vpack.c.b16 %v2033, %v2032
      %v2061 = vpack.c.b16 %v2035, %v2034
      %v2062 = vpack.c.b16 %v2037, %v2036
      %v2063 = vpack.c.b16 %v2039, %v2038
      %v2064 = vpack.c.b16 %v2041, %v2040
      %v2065 = vpack.c.b16 %v2043, %v2042
      %v2066 = vpack.c.b16 %v2045, %v2044
      %v2067 = vpack.c.b16 %v2047, %v2046
      %v2068 = vpack.c.b16 %v2049, %v2048
      %v2069 = vpack.c.b16 %v2051, %v2050
      %v2070 = vpack.c.b16 %v2053, %v2052
      %v2071 = vpack.c.b16 %v2055, %v2054
      %v2104 = vunpack.c.l.b16 %v2008
      %v2105 = vunpack.c.l.b16 %v2009
      %v2106 = vunpack.c.l.b16 %v2010
      %v2107 = vunpack.c.l.b16 %v2011
      %v2108 = vunpack.c.l.b16 %v2012
      %v2109 = vunpack.c.l.b16 %v2013
      %v2110 = vunpack.c.l.b16 %v2014
      %v2111 = vunpack.c.l.b16 %v2015
      %v2112 = vunpack.c.l.b16 %v2016
      %v2113 = vunpack.c.l.b16 %v2017
      %v2114 = vunpack.c.l.b16 %v2018
      %v2115 = vunpack.c.l.b16 %v2019
      %v2116 = vunpack.c.l.b16 %v2020
      %v2117 = vunpack.c.l.b16 %v2021
      %v2118 = vunpack.c.l.b16 %v2022
      %v2119 = vunpack.c.l.b16 %v2023
      %v2120 = vpack.c.b16 %v2105, %v2104
      %v2121 = vpack.c.b16 %v2107, %v2106
      %v2122 = vpack.c.b16 %v2109, %v2108
      %v2123 = vpack.c.b16 %v2111, %v2110
      %v2124 = vpack.c.b16 %v2113, %v2112
      %v2125 = vpack.c.b16 %v2115, %v2114
      %v2126 = vpack.c.b16 %v2117, %v2116
      %v2127 = vpack.c.b16 %v2119, %v2118
      %2136 = vmatprep.subr.bf16.mxu0 0
      %2137 = vmatpush1.bf16.msra.mxu0 %v2120
      %2138 = vmatprep.subr.bf16.mxu0 0
      %2139 = vmatpush1.bf16.msra.mxu0 %v2121
      %2140 = vmatprep.subr.bf16.mxu0 0
      %2141 = vmatpush1.bf16.msra.mxu0 %v2122
      %2142 = vmatprep.subr.bf16.mxu0 0
      %2143 = vmatpush1.bf16.msra.mxu0 %v2123
      %2144 = vmatprep.subr.bf16.mxu0 0
      %2145 = vmatpush1.bf16.msra.mxu0 %v2124
      %2146 = vmatprep.subr.bf16.mxu0 0
      %2147 = vmatpush1.bf16.msra.mxu0 %v2125
      %2148 = vmatprep.subr.bf16.mxu0 0
      %2149 = vmatpush1.bf16.msra.mxu0 %v2126
      %2150 = vmatprep.subr.bf16.mxu0 0
      %2151 = vmatpush1.bf16.msra.mxu0 %v2127
      %2152 = vmatprep.subr.bf16.mxu0 0
      %2153 = vmatpush1.bf16.msra.mxu0 0
      %2154 = vmatprep.subr.bf16.mxu0 0
      %2155 = vmatpush1.bf16.msra.mxu0 0
      %2156 = vmatprep.subr.bf16.mxu0 0
      %2157 = vmatpush1.bf16.msra.mxu0 0
      %2158 = vmatprep.subr.bf16.mxu0 0
      %2159 = vmatpush1.bf16.msra.mxu0 0
      %2160 = vmatprep.subr.bf16.mxu0 0
      %2161 = vmatpush1.bf16.msra.mxu0 0
      %2162 = vmatprep.subr.bf16.mxu0 0
      %2163 = vmatpush1.bf16.msra.mxu0 0
      %2164 = vmatprep.subr.bf16.mxu0 0
      %2165 = vmatpush1.bf16.msra.mxu0 0
      %2166 = vmatprep.subr.bf16.mxu0 0
      %2167 = vmatpush1.bf16.msra.mxu0 0
      %2168 = vmatprep.mubr.bf16.mxu0 0
      %2169 = vmatmul.mubr.bf16.gmra.mrb[0].mxu0 %v2056
      %v2170 = vpop.f32.mrb[0].mxu0
      %v2171 = vadd.f32 0.0, %v2170
      %v2172 = vpop.f32.mrb[0].mxu0
      %v2173 = vpop.f32.mrb[0].mxu0
      %v2174 = vadd.f32 0.0, %v2173
      %v2175 = vpop.f32.mrb[0].mxu0
      %2176 = vmatprep.mubr.bf16.mxu0 0
      %2177 = vmatmul.mubr.bf16.gmra.mrb[0].mxu0 %v2057
      %v2178 = vpop.f32.mrb[0].mxu0
      %v2179 = vadd.f32 0.0, %v2178
      %v2180 = vpop.f32.mrb[0].mxu0
      %v2181 = vpop.f32.mrb[0].mxu0
      %v2182 = vadd.f32 0.0, %v2181
      %v2183 = vpop.f32.mrb[0].mxu0
      %2184 = vmatprep.mubr.bf16.mxu0 0
      %2185 = vmatmul.mubr.bf16.gmra.mrb[0].mxu0 %v2058
      %v2186 = vpop.f32.mrb[0].mxu0
      %v2187 = vadd.f32 0.0, %v2186
      %v2188 = vpop.f32.mrb[0].mxu0
      %v2189 = vpop.f32.mrb[0].mxu0
      %v2190 = vadd.f32 0.0, %v2189
      %v2191 = vpop.f32.mrb[0].mxu0
      %2192 = vmatprep.mubr.bf16.mxu0 0
      %2193 = vmatmul.mubr.bf16.gmra.mrb[0].mxu0 %v2059
      %v2194 = vpop.f32.mrb[0].mxu0
      %v2195 = vadd.f32 0.0, %v2194
      %v2196 = vpop.f32.mrb[0].mxu0
      %v2197 = vpop.f32.mrb[0].mxu0
      %v2198 = vadd.f32 0.0, %v2197
      %v2199 = vpop.f32.mrb[0].mxu0
      %2200 = vmatprep.mubr.bf16.mxu0 0
      %2201 = vmatmul.mubr.bf16.gmra.mrb[0].mxu0 %v2060
      %v2202 = vpop.f32.mrb[0].mxu0
      %v2203 = vadd.f32 0.0, %v2202
      %v2204 = vpop.f32.mrb[0].mxu0
      %v2205 = vpop.f32.mrb[0].mxu0
      %v2206 = vadd.f32 0.0, %v2205
      %v2207 = vpop.f32.mrb[0].mxu0
      %2208 = vmatprep.mubr.bf16.mxu0 0
      %2209 = vmatmul.mubr.bf16.gmra.mrb[0].mxu0 %v2061
      %v2210 = vpop.f32.mrb[0].mxu0
      %v2211 = vadd.f32 0.0, %v2210
      %v2212 = vpop.f32.mrb[0].mxu0
      %v2213 = vpop.f32.mrb[0].mxu0
      %v2214 = vadd.f32 0.0, %v2213
      %v2215 = vpop.f32.mrb[0].mxu0
      %2216 = vmatprep.mubr.bf16.mxu0 0
      %2217 = vmatmul.mubr.bf16.gmra.mrb[0].mxu0 %v2062
      %v2218 = vpop.f32.mrb[0].mxu0
      %v2219 = vadd.f32 0.0, %v2218
      %v2220 = vpop.f32.mrb[0].mxu0
      %v2221 = vpop.f32.mrb[0].mxu0
      %v2222 = vadd.f32 0.0, %v2221
      %v2223 = vpop.f32.mrb[0].mxu0
      %2224 = vmatprep.mubr.bf16.mxu0 0
      %2225 = vmatmul.mubr.bf16.gmra.mrb[0].mxu0 %v2063
      %v2226 = vpop.f32.mrb[0].mxu0
      %v2227 = vadd.f32 0.0, %v2226
      %v2228 = vpop.f32.mrb[0].mxu0
      %v2229 = vpop.f32.mrb[0].mxu0
      %v2230 = vadd.f32 0.0, %v2229
      %v2231 = vpop.f32.mrb[0].mxu0
      %2232 = vmatprep.mubr.bf16.mxu0 0
      %2233 = vmatmul.mubr.bf16.gmra.mrb[0].mxu0 %v2064
      %v2234 = vpop.f32.mrb[0].mxu0
      %v2235 = vadd.f32 0.0, %v2234
      %v2236 = vpop.f32.mrb[0].mxu0
      %v2237 = vpop.f32.mrb[0].mxu0
      %v2238 = vadd.f32 0.0, %v2237
      %v2239 = vpop.f32.mrb[0].mxu0
      %2240 = vmatprep.mubr.bf16.mxu0 0
      %2241 = vmatmul.mubr.bf16.gmra.mrb[0].mxu0 %v2065
      %v2242 = vpop.f32.mrb[0].mxu0
      %v2243 = vadd.f32 0.0, %v2242
      %v2244 = vpop.f32.mrb[0].mxu0
      %v2245 = vpop.f32.mrb[0].mxu0
      %v2246 = vadd.f32 0.0, %v2245
      %v2247 = vpop.f32.mrb[0].mxu0
      %2248 = vmatprep.mubr.bf16.mxu0 0
      %2249 = vmatmul.mubr.bf16.gmra.mrb[0].mxu0 %v2066
      %v2250 = vpop.f32.mrb[0].mxu0
      %v2251 = vadd.f32 0.0, %v2250
      %v2252 = vpop.f32.mrb[0].mxu0
      %v2253 = vpop.f32.mrb[0].mxu0
      %v2254 = vadd.f32 0.0, %v2253
      %v2255 = vpop.f32.mrb[0].mxu0
      %2256 = vmatprep.mubr.bf16.mxu0 0
      %2257 = vmatmul.mubr.bf16.gmra.mrb[0].mxu0 %v2067
      %v2258 = vpop.f32.mrb[0].mxu0
      %v2259 = vadd.f32 0.0, %v2258
      %v2260 = vpop.f32.mrb[0].mxu0
      %v2261 = vpop.f32.mrb[0].mxu0
      %v2262 = vadd.f32 0.0, %v2261
      %v2263 = vpop.f32.mrb[0].mxu0
      %2264 = vmatprep.mubr.bf16.mxu0 0
      %2265 = vmatmul.mubr.bf16.gmra.mrb[0].mxu0 %v2068
      %v2266 = vpop.f32.mrb[0].mxu0
      %v2267 = vadd.f32 0.0, %v2266
      %v2268 = vpop.f32.mrb[0].mxu0
      %v2269 = vpop.f32.mrb[0].mxu0
      %v2270 = vadd.f32 0.0, %v2269
      %v2271 = vpop.f32.mrb[0].mxu0
      %2272 = vmatprep.mubr.bf16.mxu0 0
      %2273 = vmatmul.mubr.bf16.gmra.mrb[0].mxu0 %v2069
      %v2274 = vpop.f32.mrb[0].mxu0
      %v2275 = vadd.f32 0.0, %v2274
      %v2276 = vpop.f32.mrb[0].mxu0
      %v2277 = vpop.f32.mrb[0].mxu0
      %v2278 = vadd.f32 0.0, %v2277
      %v2279 = vpop.f32.mrb[0].mxu0
      %2280 = vmatprep.mubr.bf16.mxu0 0
      %2281 = vmatmul.mubr.bf16.gmra.mrb[0].mxu0 %v2070
      %v2282 = vpop.f32.mrb[0].mxu0
      %v2283 = vadd.f32 0.0, %v2282
      %v2284 = vpop.f32.mrb[0].mxu0
      %v2285 = vpop.f32.mrb[0].mxu0
      %v2286 = vadd.f32 0.0, %v2285
      %v2287 = vpop.f32.mrb[0].mxu0
      %2288 = vmatprep.mubr.bf16.mxu0 0
      %2289 = vmatmul.mubr.bf16.gmra.mrb[0].mxu0 %v2071
      %v2290 = vpop.f32.mrb[0].mxu0
      %v2291 = vadd.f32 0.0, %v2290
      %v2292 = vpop.f32.mrb[0].mxu0
      %v2293 = vpop.f32.mrb[0].mxu0
      %v2294 = vadd.f32 0.0, %v2293
      %v2295 = vpop.f32.mrb[0].mxu0
      %2296 = vdwg.mxu0
      %v2297 = vadd.f32 %v1718, %v2171
      %v2298 = vadd.f32 %v1721, %v2174
      %v2299 = vadd.f32 %v1726, %v2179
      %v2300 = vadd.f32 %v1729, %v2182
      %v2301 = vadd.f32 %v1734, %v2187
      %v2302 = vadd.f32 %v1737, %v2190
      %v2303 = vadd.f32 %v1742, %v2195
      %v2304 = vadd.f32 %v1745, %v2198
      %v2305 = vadd.f32 %v1750, %v2203
      %v2306 = vadd.f32 %v1753, %v2206
      %v2307 = vadd.f32 %v1758, %v2211
      %v2308 = vadd.f32 %v1761, %v2214
      %v2309 = vadd.f32 %v1766, %v2219
      %v2310 = vadd.f32 %v1769, %v2222
      %v2311 = vadd.f32 %v1774, %v2227
      %v2312 = vadd.f32 %v1777, %v2230
      %v2313 = vadd.f32 %v1782, %v2235
      %v2314 = vadd.f32 %v1785, %v2238
      %v2315 = vadd.f32 %v1790, %v2243
      %v2316 = vadd.f32 %v1793, %v2246
      %v2317 = vadd.f32 %v1798, %v2251
      %v2318 = vadd.f32 %v1801, %v2254
      %v2319 = vadd.f32 %v1806, %v2259
      %v2320 = vadd.f32 %v1809, %v2262
      %v2321 = vadd.f32 %v1814, %v2267
      %v2322 = vadd.f32 %v1817, %v2270
      %v2323 = vadd.f32 %v1822, %v2275
      %v2324 = vadd.f32 %v1825, %v2278
      %v2325 = vadd.f32 %v1830, %v2283
      %v2326 = vadd.f32 %v1833, %v2286
      %v2327 = vadd.f32 %v1838, %v2291
      %v2328 = vadd.f32 %v1841, %v2294
      %v2329 = vld [vmem:[%s680] sm:$0xf]
      %v2330 = vld [vmem:[%s680 + $0x4] sm:$0xf]
      %v2331 = vld [vmem:[%s680 + $0xc] sm:$0xf]
      %v2332 = vld [vmem:[%s680 + $0x10] sm:$0xf]
      %v2333 = vld [vmem:[%s680 + $0x18] sm:$0xf]
      %v2334 = vld [vmem:[%s680 + $0x1c] sm:$0xf]
      %v2335 = vld [vmem:[%s680 + $0x24] sm:$0xf]
      %v2336 = vld [vmem:[%s680 + $0x28] sm:$0xf]
      %v2337 = vld [vmem:[%s680 + $0x30] sm:$0xf]
      %v2338 = vld [vmem:[%s680 + $0x34] sm:$0xf]
      %v2339 = vld [vmem:[%s680 + $0x3c] sm:$0xf]
      %v2340 = vld [vmem:[%s680 + $0x40] sm:$0xf]
      %v2341 = vld [vmem:[%s680 + $0x48] sm:$0xf]
      %v2342 = vld [vmem:[%s680 + $0x4c] sm:$0xf]
      %v2343 = vld [vmem:[%s680 + $0x54] sm:$0xf]
      %v2344 = vld [vmem:[%s680 + $0x58] sm:$0xf]
      %v2345 = vld [vmem:[%s680 + $0x60] sm:$0xf]
      %v2346 = vld [vmem:[%s680 + $0x64] sm:$0xf]
      %v2347 = vld [vmem:[%s680 + $0x6c] sm:$0xf]
      %v2348 = vld [vmem:[%s680 + $0x70] sm:$0xf]
      %v2349 = vld [vmem:[%s680 + $0x78] sm:$0xf]
      %v2350 = vld [vmem:[%s680 + $0x7c] sm:$0xf]
      %v2351 = vld [vmem:[%s680 + $0x84] sm:$0xf]
      %v2352 = vld [vmem:[%s680 + $0x88] sm:$0xf]
      %v2353 = vld [vmem:[%s680 + $0x90] sm:$0xf]
      %v2354 = vld [vmem:[%s680 + $0x94] sm:$0xf]
      %v2355 = vld [vmem:[%s680 + $0x9c] sm:$0xf]
      %v2356 = vld [vmem:[%s680 + $0xa0] sm:$0xf]
      %v2357 = vld [vmem:[%s680 + $0xa8] sm:$0xf]
      %v2358 = vld [vmem:[%s680 + $0xac] sm:$0xf]
      %v2359 = vld [vmem:[%s680 + $0xb4] sm:$0xf]
      %v2360 = vld [vmem:[%s680 + $0xb8] sm:$0xf]
      %s2361 = scalar_lea.vmem %s1, 192
      %v2362 = vld [vmem:[%s2361] sm:$0xf]
      %v2363 = vld [vmem:[%s2361 + $0x4] sm:$0xf]
      %v2364 = vld [vmem:[%s2361 + $0x8] sm:$0xf]
      %v2365 = vld [vmem:[%s2361 + $0xc] sm:$0xf]
      %v2366 = vld [vmem:[%s2361 + $0x10] sm:$0xf]
      %v2367 = vld [vmem:[%s2361 + $0x14] sm:$0xf]
      %v2368 = vld [vmem:[%s2361 + $0x18] sm:$0xf]
      %v2369 = vld [vmem:[%s2361 + $0x1c] sm:$0xf]
      %v2370 = vld [vmem:[%s2361 + $0x20] sm:$0xf]
      %v2371 = vld [vmem:[%s2361 + $0x24] sm:$0xf]
      %v2372 = vld [vmem:[%s2361 + $0x28] sm:$0xf]
      %v2373 = vld [vmem:[%s2361 + $0x2c] sm:$0xf]
      %v2374 = vld [vmem:[%s2361 + $0x30] sm:$0xf]
      %v2375 = vld [vmem:[%s2361 + $0x34] sm:$0xf]
      %v2376 = vld [vmem:[%s2361 + $0x38] sm:$0xf]
      %v2377 = vld [vmem:[%s2361 + $0x3c] sm:$0xf]
      %v2410 = vunpack.c.l.b16 %v2329
      %v2411 = vunpack.c.l.b16 %v2330
      %v2412 = vunpack.c.l.b16 %v2331
      %v2413 = vunpack.c.l.b16 %v2332
      %v2414 = vunpack.c.l.b16 %v2333
      %v2415 = vunpack.c.l.b16 %v2334
      %v2416 = vunpack.c.l.b16 %v2335
      %v2417 = vunpack.c.l.b16 %v2336
      %v2418 = vunpack.c.l.b16 %v2337
      %v2419 = vunpack.c.l.b16 %v2338
      %v2420 = vunpack.c.l.b16 %v2339
      %v2421 = vunpack.c.l.b16 %v2340
      %v2422 = vunpack.c.l.b16 %v2341
      %v2423 = vunpack.c.l.b16 %v2342
      %v2424 = vunpack.c.l.b16 %v2343
      %v2425 = vunpack.c.l.b16 %v2344
      %v2426 = vunpack.c.l.b16 %v2345
      %v2427 = vunpack.c.l.b16 %v2346
      %v2428 = vunpack.c.l.b16 %v2347
      %v2429 = vunpack.c.l.b16 %v2348
      %v2430 = vunpack.c.l.b16 %v2349
      %v2431 = vunpack.c.l.b16 %v2350
      %v2432 = vunpack.c.l.b16 %v2351
      %v2433 = vunpack.c.l.b16 %v2352
      %v2434 = vunpack.c.l.b16 %v2353
      %v2435 = vunpack.c.l.b16 %v2354
      %v2436 = vunpack.c.l.b16 %v2355
      %v2437 = vunpack.c.l.b16 %v2356
      %v2438 = vunpack.c.l.b16 %v2357
      %v2439 = vunpack.c.l.b16 %v2358
      %v2440 = vunpack.c.l.b16 %v2359
      %v2441 = vunpack.c.l.b16 %v2360
      %v2442 = vpack.c.b16 %v2411, %v2410
      %v2443 = vpack.c.b16 %v2413, %v2412
      %v2444 = vpack.c.b16 %v2415, %v2414
      %v2445 = vpack.c.b16 %v2417, %v2416
      %v2446 = vpack.c.b16 %v2419, %v2418
      %v2447 = vpack.c.b16 %v2421, %v2420
      %v2448 = vpack.c.b16 %v2423, %v2422
      %v2449 = vpack.c.b16 %v2425, %v2424
      %v2450 = vpack.c.b16 %v2427, %v2426
      %v2451 = vpack.c.b16 %v2429, %v2428
      %v2452 = vpack.c.b16 %v2431, %v2430
      %v2453 = vpack.c.b16 %v2433, %v2432
      %v2454 = vpack.c.b16 %v2435, %v2434
      %v2455 = vpack.c.b16 %v2437, %v2436
      %v2456 = vpack.c.b16 %v2439, %v2438
      %v2457 = vpack.c.b16 %v2441, %v2440
      %v2490 = vunpack.c.l.b16 %v2362
      %v2491 = vunpack.c.l.b16 %v2363
      %v2492 = vunpack.c.l.b16 %v2364
      %v2493 = vunpack.c.l.b16 %v2365
      %v2494 = vunpack.c.l.b16 %v2366
      %v2495 = vunpack.c.l.b16 %v2367
      %v2496 = vunpack.c.l.b16 %v2368
      %v2497 = vunpack.c.l.b16 %v2369
      %v2498 = vunpack.c.l.b16 %v2370
      %v2499 = vunpack.c.l.b16 %v2371
      %v2500 = vunpack.c.l.b16 %v2372
      %v2501 = vunpack.c.l.b16 %v2373
      %v2502 = vunpack.c.l.b16 %v2374
      %v2503 = vunpack.c.l.b16 %v2375
      %v2504 = vunpack.c.l.b16 %v2376
      %v2505 = vunpack.c.l.b16 %v2377
      %v2506 = vpack.c.b16 %v2491, %v2490
      %v2507 = vpack.c.b16 %v2493, %v2492
      %v2508 = vpack.c.b16 %v2495, %v2494
      %v2509 = vpack.c.b16 %v2497, %v2496
      %v2510 = vpack.c.b16 %v2499, %v2498
      %v2511 = vpack.c.b16 %v2501, %v2500
      %v2512 = vpack.c.b16 %v2503, %v2502
      %v2513 = vpack.c.b16 %v2505, %v2504
      %2522 = vmatprep.subr.bf16.mxu0 0
      %2523 = vmatpush1.bf16.msra.mxu0 %v2506
      %2524 = vmatprep.subr.bf16.mxu0 0
      %2525 = vmatpush1.bf16.msra.mxu0 %v2507
      %2526 = vmatprep.subr.bf16.mxu0 0
      %2527 = vmatpush1.bf16.msra.mxu0 %v2508
      %2528 = vmatprep.subr.bf16.mxu0 0
      %2529 = vmatpush1.bf16.msra.mxu0 %v2509
      %2530 = vmatprep.subr.bf16.mxu0 0
      %2531 = vmatpush1.bf16.msra.mxu0 %v2510
      %2532 = vmatprep.subr.bf16.mxu0 0
      %2533 = vmatpush1.bf16.msra.mxu0 %v2511
      %2534 = vmatprep.subr.bf16.mxu0 0
      %2535 = vmatpush1.bf16.msra.mxu0 %v2512
      %2536 = vmatprep.subr.bf16.mxu0 0
      %2537 = vmatpush1.bf16.msra.mxu0 %v2513
      %2538 = vmatprep.subr.bf16.mxu0 0
      %2539 = vmatpush1.bf16.msra.mxu0 0
      %2540 = vmatprep.subr.bf16.mxu0 0
      %2541 = vmatpush1.bf16.msra.mxu0 0
      %2542 = vmatprep.subr.bf16.mxu0 0
      %2543 = vmatpush1.bf16.msra.mxu0 0
      %2544 = vmatprep.subr.bf16.mxu0 0
      %2545 = vmatpush1.bf16.msra.mxu0 0
      %2546 = vmatprep.subr.bf16.mxu0 0
      %2547 = vmatpush1.bf16.msra.mxu0 0
      %2548 = vmatprep.subr.bf16.mxu0 0
      %2549 = vmatpush1.bf16.msra.mxu0 0
      %2550 = vmatprep.subr.bf16.mxu0 0
      %2551 = vmatpush1.bf16.msra.mxu0 0
      %2552 = vmatprep.subr.bf16.mxu0 0
      %2553 = vmatpush1.bf16.msra.mxu0 0
      %2554 = vmatprep.mubr.bf16.mxu0 0
      %2555 = vmatmul.mubr.bf16.gmra.mrb[0].mxu0 %v2442
      %v2556 = vpop.f32.mrb[0].mxu0
      %v2557 = vadd.f32 0.0, %v2556
      %v2558 = vpop.f32.mrb[0].mxu0
      %v2559 = vpop.f32.mrb[0].mxu0
      %v2560 = vadd.f32 0.0, %v2559
      %v2561 = vpop.f32.mrb[0].mxu0
      %2562 = vmatprep.mubr.bf16.mxu0 0
      %2563 = vmatmul.mubr.bf16.gmra.mrb[0].mxu0 %v2443
      %v2564 = vpop.f32.mrb[0].mxu0
      %v2565 = vadd.f32 0.0, %v2564
      %v2566 = vpop.f32.mrb[0].mxu0
      %v2567 = vpop.f32.mrb[0].mxu0
      %v2568 = vadd.f32 0.0, %v2567
      %v2569 = vpop.f32.mrb[0].mxu0
      %2570 = vmatprep.mubr.bf16.mxu0 0
      %2571 = vmatmul.mubr.bf16.gmra.mrb[0].mxu0 %v2444
      %v2572 = vpop.f32.mrb[0].mxu0
      %v2573 = vadd.f32 0.0, %v2572
      %v2574 = vpop.f32.mrb[0].mxu0
      %v2575 = vpop.f32.mrb[0].mxu0
      %v2576 = vadd.f32 0.0, %v2575
      %v2577 = vpop.f32.mrb[0].mxu0
      %2578 = vmatprep.mubr.bf16.mxu0 0
      %2579 = vmatmul.mubr.bf16.gmra.mrb[0].mxu0 %v2445
      %v2580 = vpop.f32.mrb[0].mxu0
      %v2581 = vadd.f32 0.0, %v2580
      %v2582 = vpop.f32.mrb[0].mxu0
      %v2583 = vpop.f32.mrb[0].mxu0
      %v2584 = vadd.f32 0.0, %v2583
      %v2585 = vpop.f32.mrb[0].mxu0
      %2586 = vmatprep.mubr.bf16.mxu0 0
      %2587 = vmatmul.mubr.bf16.gmra.mrb[0].mxu0 %v2446
      %v2588 = vpop.f32.mrb[0].mxu0
      %v2589 = vadd.f32 0.0, %v2588
      %v2590 = vpop.f32.mrb[0].mxu0
      %v2591 = vpop.f32.mrb[0].mxu0
      %v2592 = vadd.f32 0.0, %v2591
      %v2593 = vpop.f32.mrb[0].mxu0
      %2594 = vmatprep.mubr.bf16.mxu0 0
      %2595 = vmatmul.mubr.bf16.gmra.mrb[0].mxu0 %v2447
      %v2596 = vpop.f32.mrb[0].mxu0
      %v2597 = vadd.f32 0.0, %v2596
      %v2598 = vpop.f32.mrb[0].mxu0
      %v2599 = vpop.f32.mrb[0].mxu0
      %v2600 = vadd.f32 0.0, %v2599
      %v2601 = vpop.f32.mrb[0].mxu0
      %2602 = vmatprep.mubr.bf16.mxu0 0
      %2603 = vmatmul.mubr.bf16.gmra.mrb[0].mxu0 %v2448
      %v2604 = vpop.f32.mrb[0].mxu0
      %v2605 = vadd.f32 0.0, %v2604
      %v2606 = vpop.f32.mrb[0].mxu0
      %v2607 = vpop.f32.mrb[0].mxu0
      %v2608 = vadd.f32 0.0, %v2607
      %v2609 = vpop.f32.mrb[0].mxu0
      %2610 = vmatprep.mubr.bf16.mxu0 0
      %2611 = vmatmul.mubr.bf16.gmra.mrb[0].mxu0 %v2449
      %v2612 = vpop.f32.mrb[0].mxu0
      %v2613 = vadd.f32 0.0, %v2612
      %v2614 = vpop.f32.mrb[0].mxu0
      %v2615 = vpop.f32.mrb[0].mxu0
      %v2616 = vadd.f32 0.0, %v2615
      %v2617 = vpop.f32.mrb[0].mxu0
      %2618 = vmatprep.mubr.bf16.mxu0 0
      %2619 = vmatmul.mubr.bf16.gmra.mrb[0].mxu0 %v2450
      %v2620 = vpop.f32.mrb[0].mxu0
      %v2621 = vadd.f32 0.0, %v2620
      %v2622 = vpop.f32.mrb[0].mxu0
      %v2623 = vpop.f32.mrb[0].mxu0
      %v2624 = vadd.f32 0.0, %v2623
      %v2625 = vpop.f32.mrb[0].mxu0
      %2626 = vmatprep.mubr.bf16.mxu0 0
      %2627 = vmatmul.mubr.bf16.gmra.mrb[0].mxu0 %v2451
      %v2628 = vpop.f32.mrb[0].mxu0
      %v2629 = vadd.f32 0.0, %v2628
      %v2630 = vpop.f32.mrb[0].mxu0
      %v2631 = vpop.f32.mrb[0].mxu0
      %v2632 = vadd.f32 0.0, %v2631
      %v2633 = vpop.f32.mrb[0].mxu0
      %2634 = vmatprep.mubr.bf16.mxu0 0
      %2635 = vmatmul.mubr.bf16.gmra.mrb[0].mxu0 %v2452
      %v2636 = vpop.f32.mrb[0].mxu0
      %v2637 = vadd.f32 0.0, %v2636
      %v2638 = vpop.f32.mrb[0].mxu0
      %v2639 = vpop.f32.mrb[0].mxu0
      %v2640 = vadd.f32 0.0, %v2639
      %v2641 = vpop.f32.mrb[0].mxu0
      %2642 = vmatprep.mubr.bf16.mxu0 0
      %2643 = vmatmul.mubr.bf16.gmra.mrb[0].mxu0 %v2453
      %v2644 = vpop.f32.mrb[0].mxu0
      %v2645 = vadd.f32 0.0, %v2644
      %v2646 = vpop.f32.mrb[0].mxu0
      %v2647 = vpop.f32.mrb[0].mxu0
      %v2648 = vadd.f32 0.0, %v2647
      %v2649 = vpop.f32.mrb[0].mxu0
      %2650 = vmatprep.mubr.bf16.mxu0 0
      %2651 = vmatmul.mubr.bf16.gmra.mrb[0].mxu0 %v2454
      %v2652 = vpop.f32.mrb[0].mxu0
      %v2653 = vadd.f32 0.0, %v2652
      %v2654 = vpop.f32.mrb[0].mxu0
      %v2655 = vpop.f32.mrb[0].mxu0
      %v2656 = vadd.f32 0.0, %v2655
      %v2657 = vpop.f32.mrb[0].mxu0
      %2658 = vmatprep.mubr.bf16.mxu0 0
      %2659 = vmatmul.mubr.bf16.gmra.mrb[0].mxu0 %v2455
      %v2660 = vpop.f32.mrb[0].mxu0
      %v2661 = vadd.f32 0.0, %v2660
      %v2662 = vpop.f32.mrb[0].mxu0
      %v2663 = vpop.f32.mrb[0].mxu0
      %v2664 = vadd.f32 0.0, %v2663
      %v2665 = vpop.f32.mrb[0].mxu0
      %2666 = vmatprep.mubr.bf16.mxu0 0
      %2667 = vmatmul.mubr.bf16.gmra.mrb[0].mxu0 %v2456
      %v2668 = vpop.f32.mrb[0].mxu0
      %v2669 = vadd.f32 0.0, %v2668
      %v2670 = vpop.f32.mrb[0].mxu0
      %v2671 = vpop.f32.mrb[0].mxu0
      %v2672 = vadd.f32 0.0, %v2671
      %v2673 = vpop.f32.mrb[0].mxu0
      %2674 = vmatprep.mubr.bf16.mxu0 0
      %2675 = vmatmul.mubr.bf16.gmra.mrb[0].mxu0 %v2457
      %v2676 = vpop.f32.mrb[0].mxu0
      %v2677 = vadd.f32 0.0, %v2676
      %v2678 = vpop.f32.mrb[0].mxu0
      %v2679 = vpop.f32.mrb[0].mxu0
      %v2680 = vadd.f32 0.0, %v2679
      %v2681 = vpop.f32.mrb[0].mxu0
      %2682 = vdwg.mxu0
      %v2683 = vadd.f32 %v2297, %v2557
      %v2684 = vadd.f32 %v2298, %v2560
      %v2685 = vadd.f32 %v2299, %v2565
      %v2686 = vadd.f32 %v2300, %v2568
      %v2687 = vadd.f32 %v2301, %v2573
      %v2688 = vadd.f32 %v2302, %v2576
      %v2689 = vadd.f32 %v2303, %v2581
      %v2690 = vadd.f32 %v2304, %v2584
      %v2691 = vadd.f32 %v2305, %v2589
      %v2692 = vadd.f32 %v2306, %v2592
      %v2693 = vadd.f32 %v2307, %v2597
      %v2694 = vadd.f32 %v2308, %v2600
      %v2695 = vadd.f32 %v2309, %v2605
      %v2696 = vadd.f32 %v2310, %v2608
      %v2697 = vadd.f32 %v2311, %v2613
      %v2698 = vadd.f32 %v2312, %v2616
      %v2699 = vadd.f32 %v2313, %v2621
      %v2700 = vadd.f32 %v2314, %v2624
      %v2701 = vadd.f32 %v2315, %v2629
      %v2702 = vadd.f32 %v2316, %v2632
      %v2703 = vadd.f32 %v2317, %v2637
      %v2704 = vadd.f32 %v2318, %v2640
      %v2705 = vadd.f32 %v2319, %v2645
      %v2706 = vadd.f32 %v2320, %v2648
      %v2707 = vadd.f32 %v2321, %v2653
      %v2708 = vadd.f32 %v2322, %v2656
      %v2709 = vadd.f32 %v2323, %v2661
      %v2710 = vadd.f32 %v2324, %v2664
      %v2711 = vadd.f32 %v2325, %v2669
      %v2712 = vadd.f32 %v2326, %v2672
      %v2713 = vadd.f32 %v2327, %v2677
      %v2714 = vadd.f32 %v2328, %v2680
      %v2715 = vld [vmem:[%s680] sm:$0xf]
      %v2716 = vld [vmem:[%s680 + $0x4] sm:$0xf]
      %v2717 = vld [vmem:[%s680 + $0x8] sm:$0x1]
      %v2718 = vld [vmem:[%s680 + $0xc] sm:$0xf]
      %v2719 = vld [vmem:[%s680 + $0x10] sm:$0xf]
      %v2720 = vld [vmem:[%s680 + $0x14] sm:$0x1]
      %v2721 = vld [vmem:[%s680 + $0x18] sm:$0xf]
      %v2722 = vld [vmem:[%s680 + $0x1c] sm:$0xf]
      %v2723 = vld [vmem:[%s680 + $0x20] sm:$0x1]
      %v2724 = vld [vmem:[%s680 + $0x24] sm:$0xf]
      %v2725 = vld [vmem:[%s680 + $0x28] sm:$0xf]
      %v2726 = vld [vmem:[%s680 + $0x2c] sm:$0x1]
      %v2727 = vld [vmem:[%s680 + $0x30] sm:$0xf]
      %v2728 = vld [vmem:[%s680 + $0x34] sm:$0xf]
      %v2729 = vld [vmem:[%s680 + $0x38] sm:$0x1]
      %v2730 = vld [vmem:[%s680 + $0x3c] sm:$0xf]
      %v2731 = vld [vmem:[%s680 + $0x40] sm:$0xf]
      %v2732 = vld [vmem:[%s680 + $0x44] sm:$0x1]
      %v2733 = vld [vmem:[%s680 + $0x48] sm:$0xf]
      %v2734 = vld [vmem:[%s680 + $0x4c] sm:$0xf]
      %v2735 = vld [vmem:[%s680 + $0x50] sm:$0x1]
      %v2736 = vld [vmem:[%s680 + $0x54] sm:$0xf]
      %v2737 = vld [vmem:[%s680 + $0x58] sm:$0xf]
      %v2738 = vld [vmem:[%s680 + $0x5c] sm:$0x1]
      %v2739 = vld [vmem:[%s680 + $0x60] sm:$0xf]
      %v2740 = vld [vmem:[%s680 + $0x64] sm:$0xf]
      %v2741 = vld [vmem:[%s680 + $0x68] sm:$0x1]
      %v2742 = vld [vmem:[%s680 + $0x6c] sm:$0xf]
      %v2743 = vld [vmem:[%s680 + $0x70] sm:$0xf]
      %v2744 = vld [vmem:[%s680 + $0x74] sm:$0x1]
      %v2745 = vld [vmem:[%s680 + $0x78] sm:$0xf]
      %v2746 = vld [vmem:[%s680 + $0x7c] sm:$0xf]
      %v2747 = vld [vmem:[%s680 + $0x80] sm:$0x1]
      %v2748 = vld [vmem:[%s680 + $0x84] sm:$0xf]
      %v2749 = vld [vmem:[%s680 + $0x88] sm:$0xf]
      %v2750 = vld [vmem:[%s680 + $0x8c] sm:$0x1]
      %v2751 = vld [vmem:[%s680 + $0x90] sm:$0xf]
      %v2752 = vld [vmem:[%s680 + $0x94] sm:$0xf]
      %v2753 = vld [vmem:[%s680 + $0x98] sm:$0x1]
      %v2754 = vld [vmem:[%s680 + $0x9c] sm:$0xf]
      %v2755 = vld [vmem:[%s680 + $0xa0] sm:$0xf]
      %v2756 = vld [vmem:[%s680 + $0xa4] sm:$0x1]
      %v2757 = vld [vmem:[%s680 + $0xa8] sm:$0xf]
      %v2758 = vld [vmem:[%s680 + $0xac] sm:$0xf]
      %v2759 = vld [vmem:[%s680 + $0xb0] sm:$0x1]
      %v2760 = vld [vmem:[%s680 + $0xb4] sm:$0xf]
      %v2761 = vld [vmem:[%s680 + $0xb8] sm:$0xf]
      %v2762 = vld [vmem:[%s680 + $0xbc] sm:$0x1]
      %v2764 = vshrl.u32 %v2715, 16
      %v2766 = vrot.slane %v2764, 4
      %v2767 = vshll.u32 %v2715, 16
      %v2769 = vrot.slane %v2767, 5
      %v2770 = vor.u32 %v2766, %v2769
      %v2771 = vrot.slane %v2770, 4
      %v2773 = vshll.u32 %v2716, 16
      %v2775 = vrot.slane %v2773, 5
      %v2776 = vsel %vm864, %v2771, %v2775
      %v2777 = vshrl.u32 %v2716, 16
      %v2779 = vrot.slane %v2777, 4
      %v2780 = vor.u32 %v2779, %v2775
      %v2781 = vrot.slane %v2780, 4
      %v2783 = vshll.u32 %v2717, 16
      %v2785 = vrot.slane %v2783, 5
      %v2786 = vsel %vm864, %v2781, %v2785
      %v2788 = vshrl.u32 %v2718, 16
      %v2790 = vrot.slane %v2788, 4
      %v2791 = vshll.u32 %v2718, 16
      %v2793 = vrot.slane %v2791, 5
      %v2794 = vor.u32 %v2790, %v2793
      %v2795 = vrot.slane %v2794, 4
      %v2797 = vshll.u32 %v2719, 16
      %v2799 = vrot.slane %v2797, 5
      %v2800 = vsel %vm864, %v2795, %v2799
      %v2801 = vshrl.u32 %v2719, 16
      %v2803 = vrot.slane %v2801, 4
      %v2804 = vor.u32 %v2803, %v2799
      %v2805 = vrot.slane %v2804, 4
      %v2807 = vshll.u32 %v2720, 16
      %v2809 = vrot.slane %v2807, 5
      %v2810 = vsel %vm864, %v2805, %v2809
      %v2812 = vshrl.u32 %v2721, 16
      %v2814 = vrot.slane %v2812, 4
      %v2815 = vshll.u32 %v2721, 16
      %v2817 = vrot.slane %v2815, 5
      %v2818 = vor.u32 %v2814, %v2817
      %v2819 = vrot.slane %v2818, 4
      %v2821 = vshll.u32 %v2722, 16
      %v2823 = vrot.slane %v2821, 5
      %v2824 = vsel %vm864, %v2819, %v2823
      %v2825 = vshrl.u32 %v2722, 16
      %v2827 = vrot.slane %v2825, 4
      %v2828 = vor.u32 %v2827, %v2823
      %v2829 = vrot.slane %v2828, 4
      %v2831 = vshll.u32 %v2723, 16
      %v2833 = vrot.slane %v2831, 5
      %v2834 = vsel %vm864, %v2829, %v2833
      %v2836 = vshrl.u32 %v2724, 16
      %v2838 = vrot.slane %v2836, 4
      %v2839 = vshll.u32 %v2724, 16
      %v2841 = vrot.slane %v2839, 5
      %v2842 = vor.u32 %v2838, %v2841
      %v2843 = vrot.slane %v2842, 4
      %v2845 = vshll.u32 %v2725, 16
      %v2847 = vrot.slane %v2845, 5
      %v2848 = vsel %vm864, %v2843, %v2847
      %v2849 = vshrl.u32 %v2725, 16
      %v2851 = vrot.slane %v2849, 4
      %v2852 = vor.u32 %v2851, %v2847
      %v2853 = vrot.slane %v2852, 4
      %v2855 = vshll.u32 %v2726, 16
      %v2857 = vrot.slane %v2855, 5
      %v2858 = vsel %vm864, %v2853, %v2857
      %v2860 = vshrl.u32 %v2727, 16
      %v2862 = vrot.slane %v2860, 4
      %v2863 = vshll.u32 %v2727, 16
      %v2865 = vrot.slane %v2863, 5
      %v2866 = vor.u32 %v2862, %v2865
      %v2867 = vrot.slane %v2866, 4
      %v2869 = vshll.u32 %v2728, 16
      %v2871 = vrot.slane %v2869, 5
      %v2872 = vsel %vm864, %v2867, %v2871
      %v2873 = vshrl.u32 %v2728, 16
      %v2875 = vrot.slane %v2873, 4
      %v2876 = vor.u32 %v2875, %v2871
      %v2877 = vrot.slane %v2876, 4
      %v2879 = vshll.u32 %v2729, 16
      %v2881 = vrot.slane %v2879, 5
      %v2882 = vsel %vm864, %v2877, %v2881
      %v2884 = vshrl.u32 %v2730, 16
      %v2886 = vrot.slane %v2884, 4
      %v2887 = vshll.u32 %v2730, 16
      %v2889 = vrot.slane %v2887, 5
      %v2890 = vor.u32 %v2886, %v2889
      %v2891 = vrot.slane %v2890, 4
      %v2893 = vshll.u32 %v2731, 16
      %v2895 = vrot.slane %v2893, 5
      %v2896 = vsel %vm864, %v2891, %v2895
      %v2897 = vshrl.u32 %v2731, 16
      %v2899 = vrot.slane %v2897, 4
      %v2900 = vor.u32 %v2899, %v2895
      %v2901 = vrot.slane %v2900, 4
      %v2903 = vshll.u32 %v2732, 16
      %v2905 = vrot.slane %v2903, 5
      %v2906 = vsel %vm864, %v2901, %v2905
      %v2908 = vshrl.u32 %v2733, 16
      %v2910 = vrot.slane %v2908, 4
      %v2911 = vshll.u32 %v2733, 16
      %v2913 = vrot.slane %v2911, 5
      %v2914 = vor.u32 %v2910, %v2913
      %v2915 = vrot.slane %v2914, 4
      %v2917 = vshll.u32 %v2734, 16
      %v2919 = vrot.slane %v2917, 5
      %v2920 = vsel %vm864, %v2915, %v2919
      %v2921 = vshrl.u32 %v2734, 16
      %v2923 = vrot.slane %v2921, 4
      %v2924 = vor.u32 %v2923, %v2919
      %v2925 = vrot.slane %v2924, 4
      %v2927 = vshll.u32 %v2735, 16
      %v2929 = vrot.slane %v2927, 5
      %v2930 = vsel %vm864, %v2925, %v2929
      %v2932 = vshrl.u32 %v2736, 16
      %v2934 = vrot.slane %v2932, 4
      %v2935 = vshll.u32 %v2736, 16
      %v2937 = vrot.slane %v2935, 5
      %v2938 = vor.u32 %v2934, %v2937
      %v2939 = vrot.slane %v2938, 4
      %v2941 = vshll.u32 %v2737, 16
      %v2943 = vrot.slane %v2941, 5
      %v2944 = vsel %vm864, %v2939, %v2943
      %v2945 = vshrl.u32 %v2737, 16
      %v2947 = vrot.slane %v2945, 4
      %v2948 = vor.u32 %v2947, %v2943
      %v2949 = vrot.slane %v2948, 4
      %v2951 = vshll.u32 %v2738, 16
      %v2953 = vrot.slane %v2951, 5
      %v2954 = vsel %vm864, %v2949, %v2953
      %v2956 = vshrl.u32 %v2739, 16
      %v2958 = vrot.slane %v2956, 4
      %v2959 = vshll.u32 %v2739, 16
      %v2961 = vrot.slane %v2959, 5
      %v2962 = vor.u32 %v2958, %v2961
      %v2963 = vrot.slane %v2962, 4
      %v2965 = vshll.u32 %v2740, 16
      %v2967 = vrot.slane %v2965, 5
      %v2968 = vsel %vm864, %v2963, %v2967
      %v2969 = vshrl.u32 %v2740, 16
      %v2971 = vrot.slane %v2969, 4
      %v2972 = vor.u32 %v2971, %v2967
      %v2973 = vrot.slane %v2972, 4
      %v2975 = vshll.u32 %v2741, 16
      %v2977 = vrot.slane %v2975, 5
      %v2978 = vsel %vm864, %v2973, %v2977
      %v2980 = vshrl.u32 %v2742, 16
      %v2982 = vrot.slane %v2980, 4
      %v2983 = vshll.u32 %v2742, 16
      %v2985 = vrot.slane %v2983, 5
      %v2986 = vor.u32 %v2982, %v2985
      %v2987 = vrot.slane %v2986, 4
      %v2989 = vshll.u32 %v2743, 16
      %v2991 = vrot.slane %v2989, 5
      %v2992 = vsel %vm864, %v2987, %v2991
      %v2993 = vshrl.u32 %v2743, 16
      %v2995 = vrot.slane %v2993, 4
      %v2996 = vor.u32 %v2995, %v2991
      %v2997 = vrot.slane %v2996, 4
      %v2999 = vshll.u32 %v2744, 16
      %v3001 = vrot.slane %v2999, 5
      %v3002 = vsel %vm864, %v2997, %v3001
      %v3004 = vshrl.u32 %v2745, 16
      %v3006 = vrot.slane %v3004, 4
      %v3007 = vshll.u32 %v2745, 16
      %v3009 = vrot.slane %v3007, 5
      %v3010 = vor.u32 %v3006, %v3009
      %v3011 = vrot.slane %v3010, 4
      %v3013 = vshll.u32 %v2746, 16
      %v3015 = vrot.slane %v3013, 5
      %v3016 = vsel %vm864, %v3011, %v3015
      %v3017 = vshrl.u32 %v2746, 16
      %v3019 = vrot.slane %v3017, 4
      %v3020 = vor.u32 %v3019, %v3015
      %v3021 = vrot.slane %v3020, 4
      %v3023 = vshll.u32 %v2747, 16
      %v3025 = vrot.slane %v3023, 5
      %v3026 = vsel %vm864, %v3021, %v3025
      %v3028 = vshrl.u32 %v2748, 16
      %v3030 = vrot.slane %v3028, 4
      %v3031 = vshll.u32 %v2748, 16
      %v3033 = vrot.slane %v3031, 5
      %v3034 = vor.u32 %v3030, %v3033
      %v3035 = vrot.slane %v3034, 4
      %v3037 = vshll.u32 %v2749, 16
      %v3039 = vrot.slane %v3037, 5
      %v3040 = vsel %vm864, %v3035, %v3039
      %v3041 = vshrl.u32 %v2749, 16
      %v3043 = vrot.slane %v3041, 4
      %v3044 = vor.u32 %v3043, %v3039
      %v3045 = vrot.slane %v3044, 4
      %v3047 = vshll.u32 %v2750, 16
      %v3049 = vrot.slane %v3047, 5
      %v3050 = vsel %vm864, %v3045, %v3049
      %v3052 = vshrl.u32 %v2751, 16
      %v3054 = vrot.slane %v3052, 4
      %v3055 = vshll.u32 %v2751, 16
      %v3057 = vrot.slane %v3055, 5
      %v3058 = vor.u32 %v3054, %v3057
      %v3059 = vrot.slane %v3058, 4
      %v3061 = vshll.u32 %v2752, 16
      %v3063 = vrot.slane %v3061, 5
      %v3064 = vsel %vm864, %v3059, %v3063
      %v3065 = vshrl.u32 %v2752, 16
      %v3067 = vrot.slane %v3065, 4
      %v3068 = vor.u32 %v3067, %v3063
      %v3069 = vrot.slane %v3068, 4
      %v3071 = vshll.u32 %v2753, 16
      %v3073 = vrot.slane %v3071, 5
      %v3074 = vsel %vm864, %v3069, %v3073
      %v3076 = vshrl.u32 %v2754, 16
      %v3078 = vrot.slane %v3076, 4
      %v3079 = vshll.u32 %v2754, 16
      %v3081 = vrot.slane %v3079, 5
      %v3082 = vor.u32 %v3078, %v3081
      %v3083 = vrot.slane %v3082, 4
      %v3085 = vshll.u32 %v2755, 16
      %v3087 = vrot.slane %v3085, 5
      %v3088 = vsel %vm864, %v3083, %v3087
      %v3089 = vshrl.u32 %v2755, 16
      %v3091 = vrot.slane %v3089, 4
      %v3092 = vor.u32 %v3091, %v3087
      %v3093 = vrot.slane %v3092, 4
      %v3095 = vshll.u32 %v2756, 16
      %v3097 = vrot.slane %v3095, 5
      %v3098 = vsel %vm864, %v3093, %v3097
      %v3100 = vshrl.u32 %v2757, 16
      %v3102 = vrot.slane %v3100, 4
      %v3103 = vshll.u32 %v2757, 16
      %v3105 = vrot.slane %v3103, 5
      %v3106 = vor.u32 %v3102, %v3105
      %v3107 = vrot.slane %v3106, 4
      %v3109 = vshll.u32 %v2758, 16
      %v3111 = vrot.slane %v3109, 5
      %v3112 = vsel %vm864, %v3107, %v3111
      %v3113 = vshrl.u32 %v2758, 16
      %v3115 = vrot.slane %v3113, 4
      %v3116 = vor.u32 %v3115, %v3111
      %v3117 = vrot.slane %v3116, 4
      %v3119 = vshll.u32 %v2759, 16
      %v3121 = vrot.slane %v3119, 5
      %v3122 = vsel %vm864, %v3117, %v3121
      %v3124 = vshrl.u32 %v2760, 16
      %v3126 = vrot.slane %v3124, 4
      %v3127 = vshll.u32 %v2760, 16
      %v3129 = vrot.slane %v3127, 5
      %v3130 = vor.u32 %v3126, %v3129
      %v3131 = vrot.slane %v3130, 4
      %v3133 = vshll.u32 %v2761, 16
      %v3135 = vrot.slane %v3133, 5
      %v3136 = vsel %vm864, %v3131, %v3135
      %v3137 = vshrl.u32 %v2761, 16
      %v3139 = vrot.slane %v3137, 4
      %v3140 = vor.u32 %v3139, %v3135
      %v3141 = vrot.slane %v3140, 4
      %v3143 = vshll.u32 %v2762, 16
      %v3145 = vrot.slane %v3143, 5
      %v3146 = vsel %vm864, %v3141, %v3145
      %s3147 = scalar_lea.vmem %s1, 256
      %v3148 = vld [vmem:[%s3147] sm:$0xf]
      %v3149 = vld [vmem:[%s3147 + $0x4] sm:$0xf]
      %v3150 = vld [vmem:[%s3147 + $0x8] sm:$0xf]
      %v3151 = vld [vmem:[%s3147 + $0xc] sm:$0xf]
      %v3152 = vld [vmem:[%s3147 + $0x10] sm:$0xf]
      %v3153 = vld [vmem:[%s3147 + $0x14] sm:$0xf]
      %v3154 = vld [vmem:[%s3147 + $0x18] sm:$0xf]
      %v3155 = vld [vmem:[%s3147 + $0x1c] sm:$0xf]
      %v3156 = vld [vmem:[%s3147 + $0x20] sm:$0xf]
      %v3157 = vld [vmem:[%s3147 + $0x24] sm:$0xf]
      %v3158 = vld [vmem:[%s3147 + $0x28] sm:$0xf]
      %v3159 = vld [vmem:[%s3147 + $0x2c] sm:$0xf]
      %v3160 = vld [vmem:[%s3147 + $0x30] sm:$0xf]
      %v3161 = vld [vmem:[%s3147 + $0x34] sm:$0xf]
      %v3162 = vld [vmem:[%s3147 + $0x38] sm:$0xf]
      %v3163 = vld [vmem:[%s3147 + $0x3c] sm:$0xf]
      %v3164 = vunpack.c.l.b16 %v2776
      %v3165 = vunpack.c.l.b16 %v2786
      %v3166 = vunpack.c.l.b16 %v2800
      %v3167 = vunpack.c.l.b16 %v2810
      %v3168 = vunpack.c.l.b16 %v2824
      %v3169 = vunpack.c.l.b16 %v2834
      %v3170 = vunpack.c.l.b16 %v2848
      %v3171 = vunpack.c.l.b16 %v2858
      %v3172 = vunpack.c.l.b16 %v2872
      %v3173 = vunpack.c.l.b16 %v2882
      %v3174 = vunpack.c.l.b16 %v2896
      %v3175 = vunpack.c.l.b16 %v2906
      %v3176 = vunpack.c.l.b16 %v2920
      %v3177 = vunpack.c.l.b16 %v2930
      %v3178 = vunpack.c.l.b16 %v2944
      %v3179 = vunpack.c.l.b16 %v2954
      %v3180 = vunpack.c.l.b16 %v2968
      %v3181 = vunpack.c.l.b16 %v2978
      %v3182 = vunpack.c.l.b16 %v2992
      %v3183 = vunpack.c.l.b16 %v3002
      %v3184 = vunpack.c.l.b16 %v3016
      %v3185 = vunpack.c.l.b16 %v3026
      %v3186 = vunpack.c.l.b16 %v3040
      %v3187 = vunpack.c.l.b16 %v3050
      %v3188 = vunpack.c.l.b16 %v3064
      %v3189 = vunpack.c.l.b16 %v3074
      %v3190 = vunpack.c.l.b16 %v3088
      %v3191 = vunpack.c.l.b16 %v3098
      %v3192 = vunpack.c.l.b16 %v3112
      %v3193 = vunpack.c.l.b16 %v3122
      %v3194 = vunpack.c.l.b16 %v3136
      %v3195 = vunpack.c.l.b16 %v3146
      %v3196 = vpack.c.b16 %v3165, %v3164
      %v3197 = vpack.c.b16 %v3167, %v3166
      %v3198 = vpack.c.b16 %v3169, %v3168
      %v3199 = vpack.c.b16 %v3171, %v3170
      %v3200 = vpack.c.b16 %v3173, %v3172
      %v3201 = vpack.c.b16 %v3175, %v3174
      %v3202 = vpack.c.b16 %v3177, %v3176
      %v3203 = vpack.c.b16 %v3179, %v3178
      %v3204 = vpack.c.b16 %v3181, %v3180
      %v3205 = vpack.c.b16 %v3183, %v3182
      %v3206 = vpack.c.b16 %v3185, %v3184
      %v3207 = vpack.c.b16 %v3187, %v3186
      %v3208 = vpack.c.b16 %v3189, %v3188
      %v3209 = vpack.c.b16 %v3191, %v3190
      %v3210 = vpack.c.b16 %v3193, %v3192
      %v3211 = vpack.c.b16 %v3195, %v3194
      %v3244 = vunpack.c.l.b16 %v3148
      %v3245 = vunpack.c.l.b16 %v3149
      %v3246 = vunpack.c.l.b16 %v3150
      %v3247 = vunpack.c.l.b16 %v3151
      %v3248 = vunpack.c.l.b16 %v3152
      %v3249 = vunpack.c.l.b16 %v3153
      %v3250 = vunpack.c.l.b16 %v3154
      %v3251 = vunpack.c.l.b16 %v3155
      %v3252 = vunpack.c.l.b16 %v3156
      %v3253 = vunpack.c.l.b16 %v3157
      %v3254 = vunpack.c.l.b16 %v3158
      %v3255 = vunpack.c.l.b16 %v3159
      %v3256 = vunpack.c.l.b16 %v3160
      %v3257 = vunpack.c.l.b16 %v3161
      %v3258 = vunpack.c.l.b16 %v3162
      %v3259 = vunpack.c.l.b16 %v3163
      %v3260 = vpack.c.b16 %v3245, %v3244
      %v3261 = vpack.c.b16 %v3247, %v3246
      %v3262 = vpack.c.b16 %v3249, %v3248
      %v3263 = vpack.c.b16 %v3251, %v3250
      %v3264 = vpack.c.b16 %v3253, %v3252
      %v3265 = vpack.c.b16 %v3255, %v3254
      %v3266 = vpack.c.b16 %v3257, %v3256
      %v3267 = vpack.c.b16 %v3259, %v3258
      %3276 = vmatprep.subr.bf16.mxu0 0
      %3277 = vmatpush1.bf16.msra.mxu0 %v3260
      %3278 = vmatprep.subr.bf16.mxu0 0
      %3279 = vmatpush1.bf16.msra.mxu0 %v3261
      %3280 = vmatprep.subr.bf16.mxu0 0
      %3281 = vmatpush1.bf16.msra.mxu0 %v3262
      %3282 = vmatprep.subr.bf16.mxu0 0
      %3283 = vmatpush1.bf16.msra.mxu0 %v3263
      %3284 = vmatprep.subr.bf16.mxu0 0
      %3285 = vmatpush1.bf16.msra.mxu0 %v3264
      %3286 = vmatprep.subr.bf16.mxu0 0
      %3287 = vmatpush1.bf16.msra.mxu0 %v3265
      %3288 = vmatprep.subr.bf16.mxu0 0
      %3289 = vmatpush1.bf16.msra.mxu0 %v3266
      %3290 = vmatprep.subr.bf16.mxu0 0
      %3291 = vmatpush1.bf16.msra.mxu0 %v3267
      %3292 = vmatprep.subr.bf16.mxu0 0
      %3293 = vmatpush1.bf16.msra.mxu0 0
      %3294 = vmatprep.subr.bf16.mxu0 0
      %3295 = vmatpush1.bf16.msra.mxu0 0
      %3296 = vmatprep.subr.bf16.mxu0 0
      %3297 = vmatpush1.bf16.msra.mxu0 0
      %3298 = vmatprep.subr.bf16.mxu0 0
      %3299 = vmatpush1.bf16.msra.mxu0 0
      %3300 = vmatprep.subr.bf16.mxu0 0
      %3301 = vmatpush1.bf16.msra.mxu0 0
      %3302 = vmatprep.subr.bf16.mxu0 0
      %3303 = vmatpush1.bf16.msra.mxu0 0
      %3304 = vmatprep.subr.bf16.mxu0 0
      %3305 = vmatpush1.bf16.msra.mxu0 0
      %3306 = vmatprep.subr.bf16.mxu0 0
      %3307 = vmatpush1.bf16.msra.mxu0 0
      %3308 = vmatprep.mubr.bf16.mxu0 0
      %3309 = vmatmul.mubr.bf16.gmra.mrb[0].mxu0 %v3196
      %v3310 = vpop.f32.mrb[0].mxu0
      %v3311 = vadd.f32 0.0, %v3310
      %v3312 = vpop.f32.mrb[0].mxu0
      %v3313 = vpop.f32.mrb[0].mxu0
      %v3314 = vadd.f32 0.0, %v3313
      %v3315 = vpop.f32.mrb[0].mxu0
      %3316 = vmatprep.mubr.bf16.mxu0 0
      %3317 = vmatmul.mubr.bf16.gmra.mrb[0].mxu0 %v3197
      %v3318 = vpop.f32.mrb[0].mxu0
      %v3319 = vadd.f32 0.0, %v3318
      %v3320 = vpop.f32.mrb[0].mxu0
      %v3321 = vpop.f32.mrb[0].mxu0
      %v3322 = vadd.f32 0.0, %v3321
      %v3323 = vpop.f32.mrb[0].mxu0
      %3324 = vmatprep.mubr.bf16.mxu0 0
      %3325 = vmatmul.mubr.bf16.gmra.mrb[0].mxu0 %v3198
      %v3326 = vpop.f32.mrb[0].mxu0
      %v3327 = vadd.f32 0.0, %v3326
      %v3328 = vpop.f32.mrb[0].mxu0
      %v3329 = vpop.f32.mrb[0].mxu0
      %v3330 = vadd.f32 0.0, %v3329
      %v3331 = vpop.f32.mrb[0].mxu0
      %3332 = vmatprep.mubr.bf16.mxu0 0
      %3333 = vmatmul.mubr.bf16.gmra.mrb[0].mxu0 %v3199
      %v3334 = vpop.f32.mrb[0].mxu0
      %v3335 = vadd.f32 0.0, %v3334
      %v3336 = vpop.f32.mrb[0].mxu0
      %v3337 = vpop.f32.mrb[0].mxu0
      %v3338 = vadd.f32 0.0, %v3337
      %v3339 = vpop.f32.mrb[0].mxu0
      %3340 = vmatprep.mubr.bf16.mxu0 0
      %3341 = vmatmul.mubr.bf16.gmra.mrb[0].mxu0 %v3200
      %v3342 = vpop.f32.mrb[0].mxu0
      %v3343 = vadd.f32 0.0, %v3342
      %v3344 = vpop.f32.mrb[0].mxu0
      %v3345 = vpop.f32.mrb[0].mxu0
      %v3346 = vadd.f32 0.0, %v3345
      %v3347 = vpop.f32.mrb[0].mxu0
      %3348 = vmatprep.mubr.bf16.mxu0 0
      %3349 = vmatmul.mubr.bf16.gmra.mrb[0].mxu0 %v3201
      %v3350 = vpop.f32.mrb[0].mxu0
      %v3351 = vadd.f32 0.0, %v3350
      %v3352 = vpop.f32.mrb[0].mxu0
      %v3353 = vpop.f32.mrb[0].mxu0
      %v3354 = vadd.f32 0.0, %v3353
      %v3355 = vpop.f32.mrb[0].mxu0
      %3356 = vmatprep.mubr.bf16.mxu0 0
      %3357 = vmatmul.mubr.bf16.gmra.mrb[0].mxu0 %v3202
      %v3358 = vpop.f32.mrb[0].mxu0
      %v3359 = vadd.f32 0.0, %v3358
      %v3360 = vpop.f32.mrb[0].mxu0
      %v3361 = vpop.f32.mrb[0].mxu0
      %v3362 = vadd.f32 0.0, %v3361
      %v3363 = vpop.f32.mrb[0].mxu0
      %3364 = vmatprep.mubr.bf16.mxu0 0
      %3365 = vmatmul.mubr.bf16.gmra.mrb[0].mxu0 %v3203
      %v3366 = vpop.f32.mrb[0].mxu0
      %v3367 = vadd.f32 0.0, %v3366
      %v3368 = vpop.f32.mrb[0].mxu0
      %v3369 = vpop.f32.mrb[0].mxu0
      %v3370 = vadd.f32 0.0, %v3369
      %v3371 = vpop.f32.mrb[0].mxu0
      %3372 = vmatprep.mubr.bf16.mxu0 0
      %3373 = vmatmul.mubr.bf16.gmra.mrb[0].mxu0 %v3204
      %v3374 = vpop.f32.mrb[0].mxu0
      %v3375 = vadd.f32 0.0, %v3374
      %v3376 = vpop.f32.mrb[0].mxu0
      %v3377 = vpop.f32.mrb[0].mxu0
      %v3378 = vadd.f32 0.0, %v3377
      %v3379 = vpop.f32.mrb[0].mxu0
      %3380 = vmatprep.mubr.bf16.mxu0 0
      %3381 = vmatmul.mubr.bf16.gmra.mrb[0].mxu0 %v3205
      %v3382 = vpop.f32.mrb[0].mxu0
      %v3383 = vadd.f32 0.0, %v3382
      %v3384 = vpop.f32.mrb[0].mxu0
      %v3385 = vpop.f32.mrb[0].mxu0
      %v3386 = vadd.f32 0.0, %v3385
      %v3387 = vpop.f32.mrb[0].mxu0
      %3388 = vmatprep.mubr.bf16.mxu0 0
      %3389 = vmatmul.mubr.bf16.gmra.mrb[0].mxu0 %v3206
      %v3390 = vpop.f32.mrb[0].mxu0
      %v3391 = vadd.f32 0.0, %v3390
      %v3392 = vpop.f32.mrb[0].mxu0
      %v3393 = vpop.f32.mrb[0].mxu0
      %v3394 = vadd.f32 0.0, %v3393
      %v3395 = vpop.f32.mrb[0].mxu0
      %3396 = vmatprep.mubr.bf16.mxu0 0
      %3397 = vmatmul.mubr.bf16.gmra.mrb[0].mxu0 %v3207
      %v3398 = vpop.f32.mrb[0].mxu0
      %v3399 = vadd.f32 0.0, %v3398
      %v3400 = vpop.f32.mrb[0].mxu0
      %v3401 = vpop.f32.mrb[0].mxu0
      %v3402 = vadd.f32 0.0, %v3401
      %v3403 = vpop.f32.mrb[0].mxu0
      %3404 = vmatprep.mubr.bf16.mxu0 0
      %3405 = vmatmul.mubr.bf16.gmra.mrb[0].mxu0 %v3208
      %v3406 = vpop.f32.mrb[0].mxu0
      %v3407 = vadd.f32 0.0, %v3406
      %v3408 = vpop.f32.mrb[0].mxu0
      %v3409 = vpop.f32.mrb[0].mxu0
      %v3410 = vadd.f32 0.0, %v3409
      %v3411 = vpop.f32.mrb[0].mxu0
      %3412 = vmatprep.mubr.bf16.mxu0 0
      %3413 = vmatmul.mubr.bf16.gmra.mrb[0].mxu0 %v3209
      %v3414 = vpop.f32.mrb[0].mxu0
      %v3415 = vadd.f32 0.0, %v3414
      %v3416 = vpop.f32.mrb[0].mxu0
      %v3417 = vpop.f32.mrb[0].mxu0
      %v3418 = vadd.f32 0.0, %v3417
      %v3419 = vpop.f32.mrb[0].mxu0
      %3420 = vmatprep.mubr.bf16.mxu0 0
      %3421 = vmatmul.mubr.bf16.gmra.mrb[0].mxu0 %v3210
      %v3422 = vpop.f32.mrb[0].mxu0
      %v3423 = vadd.f32 0.0, %v3422
      %v3424 = vpop.f32.mrb[0].mxu0
      %v3425 = vpop.f32.mrb[0].mxu0
      %v3426 = vadd.f32 0.0, %v3425
      %v3427 = vpop.f32.mrb[0].mxu0
      %3428 = vmatprep.mubr.bf16.mxu0 0
      %3429 = vmatmul.mubr.bf16.gmra.mrb[0].mxu0 %v3211
      %v3430 = vpop.f32.mrb[0].mxu0
      %v3431 = vadd.f32 0.0, %v3430
      %v3432 = vpop.f32.mrb[0].mxu0
      %v3433 = vpop.f32.mrb[0].mxu0
      %v3434 = vadd.f32 0.0, %v3433
      %v3435 = vpop.f32.mrb[0].mxu0
      %3436 = vdwg.mxu0
      %v3437 = vadd.f32 %v2683, %v3311
      %v3438 = vadd.f32 %v2684, %v3314
      %v3439 = vadd.f32 %v2685, %v3319
      %v3440 = vadd.f32 %v2686, %v3322
      %v3441 = vadd.f32 %v2687, %v3327
      %v3442 = vadd.f32 %v2688, %v3330
      %v3443 = vadd.f32 %v2689, %v3335
      %v3444 = vadd.f32 %v2690, %v3338
      %v3445 = vadd.f32 %v2691, %v3343
      %v3446 = vadd.f32 %v2692, %v3346
      %v3447 = vadd.f32 %v2693, %v3351
      %v3448 = vadd.f32 %v2694, %v3354
      %v3449 = vadd.f32 %v2695, %v3359
      %v3450 = vadd.f32 %v2696, %v3362
      %v3451 = vadd.f32 %v2697, %v3367
      %v3452 = vadd.f32 %v2698, %v3370
      %v3453 = vadd.f32 %v2699, %v3375
      %v3454 = vadd.f32 %v2700, %v3378
      %v3455 = vadd.f32 %v2701, %v3383
      %v3456 = vadd.f32 %v2702, %v3386
      %v3457 = vadd.f32 %v2703, %v3391
      %v3458 = vadd.f32 %v2704, %v3394
      %v3459 = vadd.f32 %v2705, %v3399
      %v3460 = vadd.f32 %v2706, %v3402
      %v3461 = vadd.f32 %v2707, %v3407
      %v3462 = vadd.f32 %v2708, %v3410
      %v3463 = vadd.f32 %v2709, %v3415
      %v3464 = vadd.f32 %v2710, %v3418
      %v3465 = vadd.f32 %v2711, %v3423
      %v3466 = vadd.f32 %v2712, %v3426
      %v3467 = vadd.f32 %v2713, %v3431
      %v3468 = vadd.f32 %v2714, %v3434
      %v3469 = vld [vmem:[%s680] sm:$0xe]
      %v3470 = vld [vmem:[%s680 + $0xc] sm:$0xe]
      %v3471 = vld [vmem:[%s680 + $0x18] sm:$0xe]
      %v3472 = vld [vmem:[%s680 + $0x24] sm:$0xe]
      %v3473 = vld [vmem:[%s680 + $0x30] sm:$0xe]
      %v3474 = vld [vmem:[%s680 + $0x3c] sm:$0xe]
      %v3475 = vld [vmem:[%s680 + $0x48] sm:$0xe]
      %v3476 = vld [vmem:[%s680 + $0x54] sm:$0xe]
      %v3477 = vld [vmem:[%s680 + $0x60] sm:$0xe]
      %v3478 = vld [vmem:[%s680 + $0x6c] sm:$0xe]
      %v3479 = vld [vmem:[%s680 + $0x78] sm:$0xe]
      %v3480 = vld [vmem:[%s680 + $0x84] sm:$0xe]
      %v3481 = vld [vmem:[%s680 + $0x90] sm:$0xe]
      %v3482 = vld [vmem:[%s680 + $0x9c] sm:$0xe]
      %v3483 = vld [vmem:[%s680 + $0xa8] sm:$0xe]
      %v3484 = vld [vmem:[%s680 + $0xb4] sm:$0xe]
      %v3533 = vrot.slane %v3469, 5
      %v3534 = vrot.slane %v3533, 4
      %v3535 = vrot.slane %v2716, 5
      %v3536 = vsel %vm1894, %v3534, %v3535
      %v3537 = vrot.slane %v3535, 4
      %v3538 = vrot.slane %v2717, 5
      %v3539 = vsel %vm1894, %v3537, %v3538
      %v3540 = vrot.slane %v3470, 5
      %v3541 = vrot.slane %v3540, 4
      %v3542 = vrot.slane %v2719, 5
      %v3543 = vsel %vm1894, %v3541, %v3542
      %v3544 = vrot.slane %v3542, 4
      %v3545 = vrot.slane %v2720, 5
      %v3546 = vsel %vm1894, %v3544, %v3545
      %v3547 = vrot.slane %v3471, 5
      %v3548 = vrot.slane %v3547, 4
      %v3549 = vrot.slane %v2722, 5
      %v3550 = vsel %vm1894, %v3548, %v3549
      %v3551 = vrot.slane %v3549, 4
      %v3552 = vrot.slane %v2723, 5
      %v3553 = vsel %vm1894, %v3551, %v3552
      %v3554 = vrot.slane %v3472, 5
      %v3555 = vrot.slane %v3554, 4
      %v3556 = vrot.slane %v2725, 5
      %v3557 = vsel %vm1894, %v3555, %v3556
      %v3558 = vrot.slane %v3556, 4
      %v3559 = vrot.slane %v2726, 5
      %v3560 = vsel %vm1894, %v3558, %v3559
      %v3561 = vrot.slane %v3473, 5
      %v3562 = vrot.slane %v3561, 4
      %v3563 = vrot.slane %v2728, 5
      %v3564 = vsel %vm1894, %v3562, %v3563
      %v3565 = vrot.slane %v3563, 4
      %v3566 = vrot.slane %v2729, 5
      %v3567 = vsel %vm1894, %v3565, %v3566
      %v3568 = vrot.slane %v3474, 5
      %v3569 = vrot.slane %v3568, 4
      %v3570 = vrot.slane %v2731, 5
      %v3571 = vsel %vm1894, %v3569, %v3570
      %v3572 = vrot.slane %v3570, 4
      %v3573 = vrot.slane %v2732, 5
      %v3574 = vsel %vm1894, %v3572, %v3573
      %v3575 = vrot.slane %v3475, 5
      %v3576 = vrot.slane %v3575, 4
      %v3577 = vrot.slane %v2734, 5
      %v3578 = vsel %vm1894, %v3576, %v3577
      %v3579 = vrot.slane %v3577, 4
      %v3580 = vrot.slane %v2735, 5
      %v3581 = vsel %vm1894, %v3579, %v3580
      %v3582 = vrot.slane %v3476, 5
      %v3583 = vrot.slane %v3582, 4
      %v3584 = vrot.slane %v2737, 5
      %v3585 = vsel %vm1894, %v3583, %v3584
      %v3586 = vrot.slane %v3584, 4
      %v3587 = vrot.slane %v2738, 5
      %v3588 = vsel %vm1894, %v3586, %v3587
      %v3589 = vrot.slane %v3477, 5
      %v3590 = vrot.slane %v3589, 4
      %v3591 = vrot.slane %v2740, 5
      %v3592 = vsel %vm1894, %v3590, %v3591
      %v3593 = vrot.slane %v3591, 4
      %v3594 = vrot.slane %v2741, 5
      %v3595 = vsel %vm1894, %v3593, %v3594
      %v3596 = vrot.slane %v3478, 5
      %v3597 = vrot.slane %v3596, 4
      %v3598 = vrot.slane %v2743, 5
      %v3599 = vsel %vm1894, %v3597, %v3598
      %v3600 = vrot.slane %v3598, 4
      %v3601 = vrot.slane %v2744, 5
      %v3602 = vsel %vm1894, %v3600, %v3601
      %v3603 = vrot.slane %v3479, 5
      %v3604 = vrot.slane %v3603, 4
      %v3605 = vrot.slane %v2746, 5
      %v3606 = vsel %vm1894, %v3604, %v3605
      %v3607 = vrot.slane %v3605, 4
      %v3608 = vrot.slane %v2747, 5
      %v3609 = vsel %vm1894, %v3607, %v3608
      %v3610 = vrot.slane %v3480, 5
      %v3611 = vrot.slane %v3610, 4
      %v3612 = vrot.slane %v2749, 5
      %v3613 = vsel %vm1894, %v3611, %v3612
      %v3614 = vrot.slane %v3612, 4
      %v3615 = vrot.slane %v2750, 5
      %v3616 = vsel %vm1894, %v3614, %v3615
      %v3617 = vrot.slane %v3481, 5
      %v3618 = vrot.slane %v3617, 4
      %v3619 = vrot.slane %v2752, 5
      %v3620 = vsel %vm1894, %v3618, %v3619
      %v3621 = vrot.slane %v3619, 4
      %v3622 = vrot.slane %v2753, 5
      %v3623 = vsel %vm1894, %v3621, %v3622
      %v3624 = vrot.slane %v3482, 5
      %v3625 = vrot.slane %v3624, 4
      %v3626 = vrot.slane %v2755, 5
      %v3627 = vsel %vm1894, %v3625, %v3626
      %v3628 = vrot.slane %v3626, 4
      %v3629 = vrot.slane %v2756, 5
      %v3630 = vsel %vm1894, %v3628, %v3629
      %v3631 = vrot.slane %v3483, 5
      %v3632 = vrot.slane %v3631, 4
      %v3633 = vrot.slane %v2758, 5
      %v3634 = vsel %vm1894, %v3632, %v3633
      %v3635 = vrot.slane %v3633, 4
      %v3636 = vrot.slane %v2759, 5
      %v3637 = vsel %vm1894, %v3635, %v3636
      %v3638 = vrot.slane %v3484, 5
      %v3639 = vrot.slane %v3638, 4
      %v3640 = vrot.slane %v2761, 5
      %v3641 = vsel %vm1894, %v3639, %v3640
      %v3642 = vrot.slane %v3640, 4
      %v3643 = vrot.slane %v2762, 5
      %v3644 = vsel %vm1894, %v3642, %v3643
      %s3645 = scalar_lea.vmem %s1, 320
      %v3646 = vld [vmem:[%s3645] sm:$0xf]
      %v3647 = vld [vmem:[%s3645 + $0x4] sm:$0xf]
      %v3648 = vld [vmem:[%s3645 + $0x8] sm:$0xf]
      %v3649 = vld [vmem:[%s3645 + $0xc] sm:$0xf]
      %v3650 = vld [vmem:[%s3645 + $0x10] sm:$0xf]
      %v3651 = vld [vmem:[%s3645 + $0x14] sm:$0xf]
      %v3652 = vld [vmem:[%s3645 + $0x18] sm:$0xf]
      %v3653 = vld [vmem:[%s3645 + $0x1c] sm:$0xf]
      %v3654 = vld [vmem:[%s3645 + $0x20] sm:$0xf]
      %v3655 = vld [vmem:[%s3645 + $0x24] sm:$0xf]
      %v3656 = vld [vmem:[%s3645 + $0x28] sm:$0xf]
      %v3657 = vld [vmem:[%s3645 + $0x2c] sm:$0xf]
      %v3658 = vld [vmem:[%s3645 + $0x30] sm:$0xf]
      %v3659 = vld [vmem:[%s3645 + $0x34] sm:$0xf]
      %v3660 = vld [vmem:[%s3645 + $0x38] sm:$0xf]
      %v3661 = vld [vmem:[%s3645 + $0x3c] sm:$0xf]
      %v3662 = vunpack.c.l.b16 %v3536
      %v3663 = vunpack.c.l.b16 %v3539
      %v3664 = vunpack.c.l.b16 %v3543
      %v3665 = vunpack.c.l.b16 %v3546
      %v3666 = vunpack.c.l.b16 %v3550
      %v3667 = vunpack.c.l.b16 %v3553
      %v3668 = vunpack.c.l.b16 %v3557
      %v3669 = vunpack.c.l.b16 %v3560
      %v3670 = vunpack.c.l.b16 %v3564
      %v3671 = vunpack.c.l.b16 %v3567
      %v3672 = vunpack.c.l.b16 %v3571
      %v3673 = vunpack.c.l.b16 %v3574
      %v3674 = vunpack.c.l.b16 %v3578
      %v3675 = vunpack.c.l.b16 %v3581
      %v3676 = vunpack.c.l.b16 %v3585
      %v3677 = vunpack.c.l.b16 %v3588
      %v3678 = vunpack.c.l.b16 %v3592
      %v3679 = vunpack.c.l.b16 %v3595
      %v3680 = vunpack.c.l.b16 %v3599
      %v3681 = vunpack.c.l.b16 %v3602
      %v3682 = vunpack.c.l.b16 %v3606
      %v3683 = vunpack.c.l.b16 %v3609
      %v3684 = vunpack.c.l.b16 %v3613
      %v3685 = vunpack.c.l.b16 %v3616
      %v3686 = vunpack.c.l.b16 %v3620
      %v3687 = vunpack.c.l.b16 %v3623
      %v3688 = vunpack.c.l.b16 %v3627
      %v3689 = vunpack.c.l.b16 %v3630
      %v3690 = vunpack.c.l.b16 %v3634
      %v3691 = vunpack.c.l.b16 %v3637
      %v3692 = vunpack.c.l.b16 %v3641
      %v3693 = vunpack.c.l.b16 %v3644
      %v3694 = vpack.c.b16 %v3663, %v3662
      %v3695 = vpack.c.b16 %v3665, %v3664
      %v3696 = vpack.c.b16 %v3667, %v3666
      %v3697 = vpack.c.b16 %v3669, %v3668
      %v3698 = vpack.c.b16 %v3671, %v3670
      %v3699 = vpack.c.b16 %v3673, %v3672
      %v3700 = vpack.c.b16 %v3675, %v3674
      %v3701 = vpack.c.b16 %v3677, %v3676
      %v3702 = vpack.c.b16 %v3679, %v3678
      %v3703 = vpack.c.b16 %v3681, %v3680
      %v3704 = vpack.c.b16 %v3683, %v3682
      %v3705 = vpack.c.b16 %v3685, %v3684
      %v3706 = vpack.c.b16 %v3687, %v3686
      %v3707 = vpack.c.b16 %v3689, %v3688
      %v3708 = vpack.c.b16 %v3691, %v3690
      %v3709 = vpack.c.b16 %v3693, %v3692
      %v3742 = vunpack.c.l.b16 %v3646
      %v3743 = vunpack.c.l.b16 %v3647
      %v3744 = vunpack.c.l.b16 %v3648
      %v3745 = vunpack.c.l.b16 %v3649
      %v3746 = vunpack.c.l.b16 %v3650
      %v3747 = vunpack.c.l.b16 %v3651
      %v3748 = vunpack.c.l.b16 %v3652
      %v3749 = vunpack.c.l.b16 %v3653
      %v3750 = vunpack.c.l.b16 %v3654
      %v3751 = vunpack.c.l.b16 %v3655
      %v3752 = vunpack.c.l.b16 %v3656
      %v3753 = vunpack.c.l.b16 %v3657
      %v3754 = vunpack.c.l.b16 %v3658
      %v3755 = vunpack.c.l.b16 %v3659
      %v3756 = vunpack.c.l.b16 %v3660
      %v3757 = vunpack.c.l.b16 %v3661
      %v3758 = vpack.c.b16 %v3743, %v3742
      %v3759 = vpack.c.b16 %v3745, %v3744
      %v3760 = vpack.c.b16 %v3747, %v3746
      %v3761 = vpack.c.b16 %v3749, %v3748
      %v3762 = vpack.c.b16 %v3751, %v3750
      %v3763 = vpack.c.b16 %v3753, %v3752
      %v3764 = vpack.c.b16 %v3755, %v3754
      %v3765 = vpack.c.b16 %v3757, %v3756
      %3774 = vmatprep.subr.bf16.mxu0 0
      %3775 = vmatpush1.bf16.msra.mxu0 %v3758
      %3776 = vmatprep.subr.bf16.mxu0 0
      %3777 = vmatpush1.bf16.msra.mxu0 %v3759
      %3778 = vmatprep.subr.bf16.mxu0 0
      %3779 = vmatpush1.bf16.msra.mxu0 %v3760
      %3780 = vmatprep.subr.bf16.mxu0 0
      %3781 = vmatpush1.bf16.msra.mxu0 %v3761
      %3782 = vmatprep.subr.bf16.mxu0 0
      %3783 = vmatpush1.bf16.msra.mxu0 %v3762
      %3784 = vmatprep.subr.bf16.mxu0 0
      %3785 = vmatpush1.bf16.msra.mxu0 %v3763
      %3786 = vmatprep.subr.bf16.mxu0 0
      %3787 = vmatpush1.bf16.msra.mxu0 %v3764
      %3788 = vmatprep.subr.bf16.mxu0 0
      %3789 = vmatpush1.bf16.msra.mxu0 %v3765
      %3790 = vmatprep.subr.bf16.mxu0 0
      %3791 = vmatpush1.bf16.msra.mxu0 0
      %3792 = vmatprep.subr.bf16.mxu0 0
      %3793 = vmatpush1.bf16.msra.mxu0 0
      %3794 = vmatprep.subr.bf16.mxu0 0
      %3795 = vmatpush1.bf16.msra.mxu0 0
      %3796 = vmatprep.subr.bf16.mxu0 0
      %3797 = vmatpush1.bf16.msra.mxu0 0
      %3798 = vmatprep.subr.bf16.mxu0 0
      %3799 = vmatpush1.bf16.msra.mxu0 0
      %3800 = vmatprep.subr.bf16.mxu0 0
      %3801 = vmatpush1.bf16.msra.mxu0 0
      %3802 = vmatprep.subr.bf16.mxu0 0
      %3803 = vmatpush1.bf16.msra.mxu0 0
      %3804 = vmatprep.subr.bf16.mxu0 0
      %3805 = vmatpush1.bf16.msra.mxu0 0
      %3806 = vmatprep.mubr.bf16.mxu0 0
      %3807 = vmatmul.mubr.bf16.gmra.mrb[0].mxu0 %v3694
      %v3808 = vpop.f32.mrb[0].mxu0
      %v3809 = vadd.f32 0.0, %v3808
      %v3810 = vpop.f32.mrb[0].mxu0
      %v3811 = vpop.f32.mrb[0].mxu0
      %v3812 = vadd.f32 0.0, %v3811
      %v3813 = vpop.f32.mrb[0].mxu0
      %3814 = vmatprep.mubr.bf16.mxu0 0
      %3815 = vmatmul.mubr.bf16.gmra.mrb[0].mxu0 %v3695
      %v3816 = vpop.f32.mrb[0].mxu0
      %v3817 = vadd.f32 0.0, %v3816
      %v3818 = vpop.f32.mrb[0].mxu0
      %v3819 = vpop.f32.mrb[0].mxu0
      %v3820 = vadd.f32 0.0, %v3819
      %v3821 = vpop.f32.mrb[0].mxu0
      %3822 = vmatprep.mubr.bf16.mxu0 0
      %3823 = vmatmul.mubr.bf16.gmra.mrb[0].mxu0 %v3696
      %v3824 = vpop.f32.mrb[0].mxu0
      %v3825 = vadd.f32 0.0, %v3824
      %v3826 = vpop.f32.mrb[0].mxu0
      %v3827 = vpop.f32.mrb[0].mxu0
      %v3828 = vadd.f32 0.0, %v3827
      %v3829 = vpop.f32.mrb[0].mxu0
      %3830 = vmatprep.mubr.bf16.mxu0 0
      %3831 = vmatmul.mubr.bf16.gmra.mrb[0].mxu0 %v3697
      %v3832 = vpop.f32.mrb[0].mxu0
      %v3833 = vadd.f32 0.0, %v3832
      %v3834 = vpop.f32.mrb[0].mxu0
      %v3835 = vpop.f32.mrb[0].mxu0
      %v3836 = vadd.f32 0.0, %v3835
      %v3837 = vpop.f32.mrb[0].mxu0
      %3838 = vmatprep.mubr.bf16.mxu0 0
      %3839 = vmatmul.mubr.bf16.gmra.mrb[0].mxu0 %v3698
      %v3840 = vpop.f32.mrb[0].mxu0
      %v3841 = vadd.f32 0.0, %v3840
      %v3842 = vpop.f32.mrb[0].mxu0
      %v3843 = vpop.f32.mrb[0].mxu0
      %v3844 = vadd.f32 0.0, %v3843
      %v3845 = vpop.f32.mrb[0].mxu0
      %3846 = vmatprep.mubr.bf16.mxu0 0
      %3847 = vmatmul.mubr.bf16.gmra.mrb[0].mxu0 %v3699
      %v3848 = vpop.f32.mrb[0].mxu0
      %v3849 = vadd.f32 0.0, %v3848
      %v3850 = vpop.f32.mrb[0].mxu0
      %v3851 = vpop.f32.mrb[0].mxu0
      %v3852 = vadd.f32 0.0, %v3851
      %v3853 = vpop.f32.mrb[0].mxu0
      %3854 = vmatprep.mubr.bf16.mxu0 0
      %3855 = vmatmul.mubr.bf16.gmra.mrb[0].mxu0 %v3700
      %v3856 = vpop.f32.mrb[0].mxu0
      %v3857 = vadd.f32 0.0, %v3856
      %v3858 = vpop.f32.mrb[0].mxu0
      %v3859 = vpop.f32.mrb[0].mxu0
      %v3860 = vadd.f32 0.0, %v3859
      %v3861 = vpop.f32.mrb[0].mxu0
      %3862 = vmatprep.mubr.bf16.mxu0 0
      %3863 = vmatmul.mubr.bf16.gmra.mrb[0].mxu0 %v3701
      %v3864 = vpop.f32.mrb[0].mxu0
      %v3865 = vadd.f32 0.0, %v3864
      %v3866 = vpop.f32.mrb[0].mxu0
      %v3867 = vpop.f32.mrb[0].mxu0
      %v3868 = vadd.f32 0.0, %v3867
      %v3869 = vpop.f32.mrb[0].mxu0
      %3870 = vmatprep.mubr.bf16.mxu0 0
      %3871 = vmatmul.mubr.bf16.gmra.mrb[0].mxu0 %v3702
      %v3872 = vpop.f32.mrb[0].mxu0
      %v3873 = vadd.f32 0.0, %v3872
      %v3874 = vpop.f32.mrb[0].mxu0
      %v3875 = vpop.f32.mrb[0].mxu0
      %v3876 = vadd.f32 0.0, %v3875
      %v3877 = vpop.f32.mrb[0].mxu0
      %3878 = vmatprep.mubr.bf16.mxu0 0
      %3879 = vmatmul.mubr.bf16.gmra.mrb[0].mxu0 %v3703
      %v3880 = vpop.f32.mrb[0].mxu0
      %v3881 = vadd.f32 0.0, %v3880
      %v3882 = vpop.f32.mrb[0].mxu0
      %v3883 = vpop.f32.mrb[0].mxu0
      %v3884 = vadd.f32 0.0, %v3883
      %v3885 = vpop.f32.mrb[0].mxu0
      %3886 = vmatprep.mubr.bf16.mxu0 0
      %3887 = vmatmul.mubr.bf16.gmra.mrb[0].mxu0 %v3704
      %v3888 = vpop.f32.mrb[0].mxu0
      %v3889 = vadd.f32 0.0, %v3888
      %v3890 = vpop.f32.mrb[0].mxu0
      %v3891 = vpop.f32.mrb[0].mxu0
      %v3892 = vadd.f32 0.0, %v3891
      %v3893 = vpop.f32.mrb[0].mxu0
      %3894 = vmatprep.mubr.bf16.mxu0 0
      %3895 = vmatmul.mubr.bf16.gmra.mrb[0].mxu0 %v3705
      %v3896 = vpop.f32.mrb[0].mxu0
      %v3897 = vadd.f32 0.0, %v3896
      %v3898 = vpop.f32.mrb[0].mxu0
      %v3899 = vpop.f32.mrb[0].mxu0
      %v3900 = vadd.f32 0.0, %v3899
      %v3901 = vpop.f32.mrb[0].mxu0
      %3902 = vmatprep.mubr.bf16.mxu0 0
      %3903 = vmatmul.mubr.bf16.gmra.mrb[0].mxu0 %v3706
      %v3904 = vpop.f32.mrb[0].mxu0
      %v3905 = vadd.f32 0.0, %v3904
      %v3906 = vpop.f32.mrb[0].mxu0
      %v3907 = vpop.f32.mrb[0].mxu0
      %v3908 = vadd.f32 0.0, %v3907
      %v3909 = vpop.f32.mrb[0].mxu0
      %3910 = vmatprep.mubr.bf16.mxu0 0
      %3911 = vmatmul.mubr.bf16.gmra.mrb[0].mxu0 %v3707
      %v3912 = vpop.f32.mrb[0].mxu0
      %v3913 = vadd.f32 0.0, %v3912
      %v3914 = vpop.f32.mrb[0].mxu0
      %v3915 = vpop.f32.mrb[0].mxu0
      %v3916 = vadd.f32 0.0, %v3915
      %v3917 = vpop.f32.mrb[0].mxu0
      %3918 = vmatprep.mubr.bf16.mxu0 0
      %3919 = vmatmul.mubr.bf16.gmra.mrb[0].mxu0 %v3708
      %v3920 = vpop.f32.mrb[0].mxu0
      %v3921 = vadd.f32 0.0, %v3920
      %v3922 = vpop.f32.mrb[0].mxu0
      %v3923 = vpop.f32.mrb[0].mxu0
      %v3924 = vadd.f32 0.0, %v3923
      %v3925 = vpop.f32.mrb[0].mxu0
      %3926 = vmatprep.mubr.bf16.mxu0 0
      %3927 = vmatmul.mubr.bf16.gmra.mrb[0].mxu0 %v3709
      %v3928 = vpop.f32.mrb[0].mxu0
      %v3929 = vadd.f32 0.0, %v3928
      %v3930 = vpop.f32.mrb[0].mxu0
      %v3931 = vpop.f32.mrb[0].mxu0
      %v3932 = vadd.f32 0.0, %v3931
      %v3933 = vpop.f32.mrb[0].mxu0
      %3934 = vdwg.mxu0
      %v3935 = vadd.f32 %v3437, %v3809
      %v3936 = vadd.f32 %v3438, %v3812
      %v3937 = vadd.f32 %v3439, %v3817
      %v3938 = vadd.f32 %v3440, %v3820
      %v3939 = vadd.f32 %v3441, %v3825
      %v3940 = vadd.f32 %v3442, %v3828
      %v3941 = vadd.f32 %v3443, %v3833
      %v3942 = vadd.f32 %v3444, %v3836
      %v3943 = vadd.f32 %v3445, %v3841
      %v3944 = vadd.f32 %v3446, %v3844
      %v3945 = vadd.f32 %v3447, %v3849
      %v3946 = vadd.f32 %v3448, %v3852
      %v3947 = vadd.f32 %v3449, %v3857
      %v3948 = vadd.f32 %v3450, %v3860
      %v3949 = vadd.f32 %v3451, %v3865
      %v3950 = vadd.f32 %v3452, %v3868
      %v3951 = vadd.f32 %v3453, %v3873
      %v3952 = vadd.f32 %v3454, %v3876
      %v3953 = vadd.f32 %v3455, %v3881
      %v3954 = vadd.f32 %v3456, %v3884
      %v3955 = vadd.f32 %v3457, %v3889
      %v3956 = vadd.f32 %v3458, %v3892
      %v3957 = vadd.f32 %v3459, %v3897
      %v3958 = vadd.f32 %v3460, %v3900
      %v3959 = vadd.f32 %v3461, %v3905
      %v3960 = vadd.f32 %v3462, %v3908
      %v3961 = vadd.f32 %v3463, %v3913
      %v3962 = vadd.f32 %v3464, %v3916
      %v3963 = vadd.f32 %v3465, %v3921
      %v3964 = vadd.f32 %v3466, %v3924
      %v3965 = vadd.f32 %v3467, %v3929
      %v3966 = vadd.f32 %v3468, %v3932
      %s3967 = scalar_lea.vmem [#allocation2], 24
      %v3968 = vld [vmem:[%s3967] sm:$0xf]
      %v3969 = vld [vmem:[%s3967 + $0x4] sm:$0xf]
      %v3970 = vld [vmem:[%s3967 + $0xc] sm:$0xf]
      %v3971 = vld [vmem:[%s3967 + $0x10] sm:$0xf]
      %v3972 = vld [vmem:[%s3967 + $0x18] sm:$0xf]
      %v3973 = vld [vmem:[%s3967 + $0x1c] sm:$0xf]
      %v3974 = vld [vmem:[%s3967 + $0x24] sm:$0xf]
      %v3975 = vld [vmem:[%s3967 + $0x28] sm:$0xf]
      %v3976 = vld [vmem:[%s3967 + $0x30] sm:$0xf]
      %v3977 = vld [vmem:[%s3967 + $0x34] sm:$0xf]
      %v3978 = vld [vmem:[%s3967 + $0x3c] sm:$0xf]
      %v3979 = vld [vmem:[%s3967 + $0x40] sm:$0xf]
      %v3980 = vld [vmem:[%s3967 + $0x48] sm:$0xf]
      %v3981 = vld [vmem:[%s3967 + $0x4c] sm:$0xf]
      %v3982 = vld [vmem:[%s3967 + $0x54] sm:$0xf]
      %v3983 = vld [vmem:[%s3967 + $0x58] sm:$0xf]
      %v3984 = vld [vmem:[%s3967 + $0x60] sm:$0xf]
      %v3985 = vld [vmem:[%s3967 + $0x64] sm:$0xf]
      %v3986 = vld [vmem:[%s3967 + $0x6c] sm:$0xf]
      %v3987 = vld [vmem:[%s3967 + $0x70] sm:$0xf]
      %v3988 = vld [vmem:[%s3967 + $0x78] sm:$0xf]
      %v3989 = vld [vmem:[%s3967 + $0x7c] sm:$0xf]
      %v3990 = vld [vmem:[%s3967 + $0x84] sm:$0xf]
      %v3991 = vld [vmem:[%s3967 + $0x88] sm:$0xf]
      %v3992 = vld [vmem:[%s3967 + $0x90] sm:$0xf]
      %v3993 = vld [vmem:[%s3967 + $0x94] sm:$0xf]
      %v3994 = vld [vmem:[%s3967 + $0x9c] sm:$0xf]
      %v3995 = vld [vmem:[%s3967 + $0xa0] sm:$0xf]
      %v3996 = vld [vmem:[%s3967 + $0xa8] sm:$0xf]
      %v3997 = vld [vmem:[%s3967 + $0xac] sm:$0xf]
      %v3998 = vld [vmem:[%s3967 + $0xb4] sm:$0xf]
      %v3999 = vld [vmem:[%s3967 + $0xb8] sm:$0xf]
      %s4000 = scalar_lea.vmem %s1, 384
      %v4001 = vld [vmem:[%s4000] sm:$0xf]
      %v4002 = vld [vmem:[%s4000 + $0x4] sm:$0xf]
      %v4003 = vld [vmem:[%s4000 + $0x8] sm:$0xf]
      %v4004 = vld [vmem:[%s4000 + $0xc] sm:$0xf]
      %v4005 = vld [vmem:[%s4000 + $0x10] sm:$0xf]
      %v4006 = vld [vmem:[%s4000 + $0x14] sm:$0xf]
      %v4007 = vld [vmem:[%s4000 + $0x18] sm:$0xf]
      %v4008 = vld [vmem:[%s4000 + $0x1c] sm:$0xf]
      %v4009 = vld [vmem:[%s4000 + $0x20] sm:$0xf]
      %v4010 = vld [vmem:[%s4000 + $0x24] sm:$0xf]
      %v4011 = vld [vmem:[%s4000 + $0x28] sm:$0xf]
      %v4012 = vld [vmem:[%s4000 + $0x2c] sm:$0xf]
      %v4013 = vld [vmem:[%s4000 + $0x30] sm:$0xf]
      %v4014 = vld [vmem:[%s4000 + $0x34] sm:$0xf]
      %v4015 = vld [vmem:[%s4000 + $0x38] sm:$0xf]
      %v4016 = vld [vmem:[%s4000 + $0x3c] sm:$0xf]
      %v4049 = vunpack.c.l.b16 %v3968
      %v4050 = vunpack.c.l.b16 %v3969
      %v4051 = vunpack.c.l.b16 %v3970
      %v4052 = vunpack.c.l.b16 %v3971
      %v4053 = vunpack.c.l.b16 %v3972
      %v4054 = vunpack.c.l.b16 %v3973
      %v4055 = vunpack.c.l.b16 %v3974
      %v4056 = vunpack.c.l.b16 %v3975
      %v4057 = vunpack.c.l.b16 %v3976
      %v4058 = vunpack.c.l.b16 %v3977
      %v4059 = vunpack.c.l.b16 %v3978
      %v4060 = vunpack.c.l.b16 %v3979
      %v4061 = vunpack.c.l.b16 %v3980
      %v4062 = vunpack.c.l.b16 %v3981
      %v4063 = vunpack.c.l.b16 %v3982
      %v4064 = vunpack.c.l.b16 %v3983
      %v4065 = vunpack.c.l.b16 %v3984
      %v4066 = vunpack.c.l.b16 %v3985
      %v4067 = vunpack.c.l.b16 %v3986
      %v4068 = vunpack.c.l.b16 %v3987
      %v4069 = vunpack.c.l.b16 %v3988
      %v4070 = vunpack.c.l.b16 %v3989
      %v4071 = vunpack.c.l.b16 %v3990
      %v4072 = vunpack.c.l.b16 %v3991
      %v4073 = vunpack.c.l.b16 %v3992
      %v4074 = vunpack.c.l.b16 %v3993
      %v4075 = vunpack.c.l.b16 %v3994
      %v4076 = vunpack.c.l.b16 %v3995
      %v4077 = vunpack.c.l.b16 %v3996
      %v4078 = vunpack.c.l.b16 %v3997
      %v4079 = vunpack.c.l.b16 %v3998
      %v4080 = vunpack.c.l.b16 %v3999
      %v4081 = vpack.c.b16 %v4050, %v4049
      %v4082 = vpack.c.b16 %v4052, %v4051
      %v4083 = vpack.c.b16 %v4054, %v4053
      %v4084 = vpack.c.b16 %v4056, %v4055
      %v4085 = vpack.c.b16 %v4058, %v4057
      %v4086 = vpack.c.b16 %v4060, %v4059
      %v4087 = vpack.c.b16 %v4062, %v4061
      %v4088 = vpack.c.b16 %v4064, %v4063
      %v4089 = vpack.c.b16 %v4066, %v4065
      %v4090 = vpack.c.b16 %v4068, %v4067
      %v4091 = vpack.c.b16 %v4070, %v4069
      %v4092 = vpack.c.b16 %v4072, %v4071
      %v4093 = vpack.c.b16 %v4074, %v4073
      %v4094 = vpack.c.b16 %v4076, %v4075
      %v4095 = vpack.c.b16 %v4078, %v4077
      %v4096 = vpack.c.b16 %v4080, %v4079
      %v4129 = vunpack.c.l.b16 %v4001
      %v4130 = vunpack.c.l.b16 %v4002
      %v4131 = vunpack.c.l.b16 %v4003
      %v4132 = vunpack.c.l.b16 %v4004
      %v4133 = vunpack.c.l.b16 %v4005
      %v4134 = vunpack.c.l.b16 %v4006
      %v4135 = vunpack.c.l.b16 %v4007
      %v4136 = vunpack.c.l.b16 %v4008
      %v4137 = vunpack.c.l.b16 %v4009
      %v4138 = vunpack.c.l.b16 %v4010
      %v4139 = vunpack.c.l.b16 %v4011
      %v4140 = vunpack.c.l.b16 %v4012
      %v4141 = vunpack.c.l.b16 %v4013
      %v4142 = vunpack.c.l.b16 %v4014
      %v4143 = vunpack.c.l.b16 %v4015
      %v4144 = vunpack.c.l.b16 %v4016
      %v4145 = vpack.c.b16 %v4130, %v4129
      %v4146 = vpack.c.b16 %v4132, %v4131
      %v4147 = vpack.c.b16 %v4134, %v4133
      %v4148 = vpack.c.b16 %v4136, %v4135
      %v4149 = vpack.c.b16 %v4138, %v4137
      %v4150 = vpack.c.b16 %v4140, %v4139
      %v4151 = vpack.c.b16 %v4142, %v4141
      %v4152 = vpack.c.b16 %v4144, %v4143
      %4161 = vmatprep.subr.bf16.mxu0 0
      %4162 = vmatpush1.bf16.msra.mxu0 %v4145
      %4163 = vmatprep.subr.bf16.mxu0 0
      %4164 = vmatpush1.bf16.msra.mxu0 %v4146
      %4165 = vmatprep.subr.bf16.mxu0 0
      %4166 = vmatpush1.bf16.msra.mxu0 %v4147
      %4167 = vmatprep.subr.bf16.mxu0 0
      %4168 = vmatpush1.bf16.msra.mxu0 %v4148
      %4169 = vmatprep.subr.bf16.mxu0 0
      %4170 = vmatpush1.bf16.msra.mxu0 %v4149
      %4171 = vmatprep.subr.bf16.mxu0 0
      %4172 = vmatpush1.bf16.msra.mxu0 %v4150
      %4173 = vmatprep.subr.bf16.mxu0 0
      %4174 = vmatpush1.bf16.msra.mxu0 %v4151
      %4175 = vmatprep.subr.bf16.mxu0 0
      %4176 = vmatpush1.bf16.msra.mxu0 %v4152
      %4177 = vmatprep.subr.bf16.mxu0 0
      %4178 = vmatpush1.bf16.msra.mxu0 0
      %4179 = vmatprep.subr.bf16.mxu0 0
      %4180 = vmatpush1.bf16.msra.mxu0 0
      %4181 = vmatprep.subr.bf16.mxu0 0
      %4182 = vmatpush1.bf16.msra.mxu0 0
      %4183 = vmatprep.subr.bf16.mxu0 0
      %4184 = vmatpush1.bf16.msra.mxu0 0
      %4185 = vmatprep.subr.bf16.mxu0 0
      %4186 = vmatpush1.bf16.msra.mxu0 0
      %4187 = vmatprep.subr.bf16.mxu0 0
      %4188 = vmatpush1.bf16.msra.mxu0 0
      %4189 = vmatprep.subr.bf16.mxu0 0
      %4190 = vmatpush1.bf16.msra.mxu0 0
      %4191 = vmatprep.subr.bf16.mxu0 0
      %4192 = vmatpush1.bf16.msra.mxu0 0
      %4193 = vmatprep.mubr.bf16.mxu0 0
      %4194 = vmatmul.mubr.bf16.gmra.mrb[0].mxu0 %v4081
      %v4195 = vpop.f32.mrb[0].mxu0
      %v4196 = vadd.f32 0.0, %v4195
      %v4197 = vpop.f32.mrb[0].mxu0
      %v4198 = vpop.f32.mrb[0].mxu0
      %v4199 = vadd.f32 0.0, %v4198
      %v4200 = vpop.f32.mrb[0].mxu0
      %4201 = vmatprep.mubr.bf16.mxu0 0
      %4202 = vmatmul.mubr.bf16.gmra.mrb[0].mxu0 %v4082
      %v4203 = vpop.f32.mrb[0].mxu0
      %v4204 = vadd.f32 0.0, %v4203
      %v4205 = vpop.f32.mrb[0].mxu0
      %v4206 = vpop.f32.mrb[0].mxu0
      %v4207 = vadd.f32 0.0, %v4206
      %v4208 = vpop.f32.mrb[0].mxu0
      %4209 = vmatprep.mubr.bf16.mxu0 0
      %4210 = vmatmul.mubr.bf16.gmra.mrb[0].mxu0 %v4083
      %v4211 = vpop.f32.mrb[0].mxu0
      %v4212 = vadd.f32 0.0, %v4211
      %v4213 = vpop.f32.mrb[0].mxu0
      %v4214 = vpop.f32.mrb[0].mxu0
      %v4215 = vadd.f32 0.0, %v4214
      %v4216 = vpop.f32.mrb[0].mxu0
      %4217 = vmatprep.mubr.bf16.mxu0 0
      %4218 = vmatmul.mubr.bf16.gmra.mrb[0].mxu0 %v4084
      %v4219 = vpop.f32.mrb[0].mxu0
      %v4220 = vadd.f32 0.0, %v4219
      %v4221 = vpop.f32.mrb[0].mxu0
      %v4222 = vpop.f32.mrb[0].mxu0
      %v4223 = vadd.f32 0.0, %v4222
      %v4224 = vpop.f32.mrb[0].mxu0
      %4225 = vmatprep.mubr.bf16.mxu0 0
      %4226 = vmatmul.mubr.bf16.gmra.mrb[0].mxu0 %v4085
      %v4227 = vpop.f32.mrb[0].mxu0
      %v4228 = vadd.f32 0.0, %v4227
      %v4229 = vpop.f32.mrb[0].mxu0
      %v4230 = vpop.f32.mrb[0].mxu0
      %v4231 = vadd.f32 0.0, %v4230
      %v4232 = vpop.f32.mrb[0].mxu0
      %4233 = vmatprep.mubr.bf16.mxu0 0
      %4234 = vmatmul.mubr.bf16.gmra.mrb[0].mxu0 %v4086
      %v4235 = vpop.f32.mrb[0].mxu0
      %v4236 = vadd.f32 0.0, %v4235
      %v4237 = vpop.f32.mrb[0].mxu0
      %v4238 = vpop.f32.mrb[0].mxu0
      %v4239 = vadd.f32 0.0, %v4238
      %v4240 = vpop.f32.mrb[0].mxu0
      %4241 = vmatprep.mubr.bf16.mxu0 0
      %4242 = vmatmul.mubr.bf16.gmra.mrb[0].mxu0 %v4087
      %v4243 = vpop.f32.mrb[0].mxu0
      %v4244 = vadd.f32 0.0, %v4243
      %v4245 = vpop.f32.mrb[0].mxu0
      %v4246 = vpop.f32.mrb[0].mxu0
      %v4247 = vadd.f32 0.0, %v4246
      %v4248 = vpop.f32.mrb[0].mxu0
      %4249 = vmatprep.mubr.bf16.mxu0 0
      %4250 = vmatmul.mubr.bf16.gmra.mrb[0].mxu0 %v4088
      %v4251 = vpop.f32.mrb[0].mxu0
      %v4252 = vadd.f32 0.0, %v4251
      %v4253 = vpop.f32.mrb[0].mxu0
      %v4254 = vpop.f32.mrb[0].mxu0
      %v4255 = vadd.f32 0.0, %v4254
      %v4256 = vpop.f32.mrb[0].mxu0
      %4257 = vmatprep.mubr.bf16.mxu0 0
      %4258 = vmatmul.mubr.bf16.gmra.mrb[0].mxu0 %v4089
      %v4259 = vpop.f32.mrb[0].mxu0
      %v4260 = vadd.f32 0.0, %v4259
      %v4261 = vpop.f32.mrb[0].mxu0
      %v4262 = vpop.f32.mrb[0].mxu0
      %v4263 = vadd.f32 0.0, %v4262
      %v4264 = vpop.f32.mrb[0].mxu0
      %4265 = vmatprep.mubr.bf16.mxu0 0
      %4266 = vmatmul.mubr.bf16.gmra.mrb[0].mxu0 %v4090
      %v4267 = vpop.f32.mrb[0].mxu0
      %v4268 = vadd.f32 0.0, %v4267
      %v4269 = vpop.f32.mrb[0].mxu0
      %v4270 = vpop.f32.mrb[0].mxu0
      %v4271 = vadd.f32 0.0, %v4270
      %v4272 = vpop.f32.mrb[0].mxu0
      %4273 = vmatprep.mubr.bf16.mxu0 0
      %4274 = vmatmul.mubr.bf16.gmra.mrb[0].mxu0 %v4091
      %v4275 = vpop.f32.mrb[0].mxu0
      %v4276 = vadd.f32 0.0, %v4275
      %v4277 = vpop.f32.mrb[0].mxu0
      %v4278 = vpop.f32.mrb[0].mxu0
      %v4279 = vadd.f32 0.0, %v4278
      %v4280 = vpop.f32.mrb[0].mxu0
      %4281 = vmatprep.mubr.bf16.mxu0 0
      %4282 = vmatmul.mubr.bf16.gmra.mrb[0].mxu0 %v4092
      %v4283 = vpop.f32.mrb[0].mxu0
      %v4284 = vadd.f32 0.0, %v4283
      %v4285 = vpop.f32.mrb[0].mxu0
      %v4286 = vpop.f32.mrb[0].mxu0
      %v4287 = vadd.f32 0.0, %v4286
      %v4288 = vpop.f32.mrb[0].mxu0
      %4289 = vmatprep.mubr.bf16.mxu0 0
      %4290 = vmatmul.mubr.bf16.gmra.mrb[0].mxu0 %v4093
      %v4291 = vpop.f32.mrb[0].mxu0
      %v4292 = vadd.f32 0.0, %v4291
      %v4293 = vpop.f32.mrb[0].mxu0
      %v4294 = vpop.f32.mrb[0].mxu0
      %v4295 = vadd.f32 0.0, %v4294
      %v4296 = vpop.f32.mrb[0].mxu0
      %4297 = vmatprep.mubr.bf16.mxu0 0
      %4298 = vmatmul.mubr.bf16.gmra.mrb[0].mxu0 %v4094
      %v4299 = vpop.f32.mrb[0].mxu0
      %v4300 = vadd.f32 0.0, %v4299
      %v4301 = vpop.f32.mrb[0].mxu0
      %v4302 = vpop.f32.mrb[0].mxu0
      %v4303 = vadd.f32 0.0, %v4302
      %v4304 = vpop.f32.mrb[0].mxu0
      %4305 = vmatprep.mubr.bf16.mxu0 0
      %4306 = vmatmul.mubr.bf16.gmra.mrb[0].mxu0 %v4095
      %v4307 = vpop.f32.mrb[0].mxu0
      %v4308 = vadd.f32 0.0, %v4307
      %v4309 = vpop.f32.mrb[0].mxu0
      %v4310 = vpop.f32.mrb[0].mxu0
      %v4311 = vadd.f32 0.0, %v4310
      %v4312 = vpop.f32.mrb[0].mxu0
      %4313 = vmatprep.mubr.bf16.mxu0 0
      %4314 = vmatmul.mubr.bf16.gmra.mrb[0].mxu0 %v4096
      %v4315 = vpop.f32.mrb[0].mxu0
      %v4316 = vadd.f32 0.0, %v4315
      %v4317 = vpop.f32.mrb[0].mxu0
      %v4318 = vpop.f32.mrb[0].mxu0
      %v4319 = vadd.f32 0.0, %v4318
      %v4320 = vpop.f32.mrb[0].mxu0
      %4321 = vdwg.mxu0
      %v4322 = vadd.f32 %v3935, %v4196
      %v4323 = vadd.f32 %v3936, %v4199
      %v4324 = vadd.f32 %v3937, %v4204
      %v4325 = vadd.f32 %v3938, %v4207
      %v4326 = vadd.f32 %v3939, %v4212
      %v4327 = vadd.f32 %v3940, %v4215
      %v4328 = vadd.f32 %v3941, %v4220
      %v4329 = vadd.f32 %v3942, %v4223
      %v4330 = vadd.f32 %v3943, %v4228
      %v4331 = vadd.f32 %v3944, %v4231
      %v4332 = vadd.f32 %v3945, %v4236
      %v4333 = vadd.f32 %v3946, %v4239
      %v4334 = vadd.f32 %v3947, %v4244
      %v4335 = vadd.f32 %v3948, %v4247
      %v4336 = vadd.f32 %v3949, %v4252
      %v4337 = vadd.f32 %v3950, %v4255
      %v4338 = vadd.f32 %v3951, %v4260
      %v4339 = vadd.f32 %v3952, %v4263
      %v4340 = vadd.f32 %v3953, %v4268
      %v4341 = vadd.f32 %v3954, %v4271
      %v4342 = vadd.f32 %v3955, %v4276
      %v4343 = vadd.f32 %v3956, %v4279
      %v4344 = vadd.f32 %v3957, %v4284
      %v4345 = vadd.f32 %v3958, %v4287
      %v4346 = vadd.f32 %v3959, %v4292
      %v4347 = vadd.f32 %v3960, %v4295
      %v4348 = vadd.f32 %v3961, %v4300
      %v4349 = vadd.f32 %v3962, %v4303
      %v4350 = vadd.f32 %v3963, %v4308
      %v4351 = vadd.f32 %v3964, %v4311
      %v4352 = vadd.f32 %v3965, %v4316
      %v4353 = vadd.f32 %v3966, %v4319
      %v4354 = vld [vmem:[%s3967] sm:$0xf]
      %v4355 = vld [vmem:[%s3967 + $0x4] sm:$0xf]
      %v4356 = vld [vmem:[%s3967 + $0x8] sm:$0x1]
      %v4357 = vld [vmem:[%s3967 + $0xc] sm:$0xf]
      %v4358 = vld [vmem:[%s3967 + $0x10] sm:$0xf]
      %v4359 = vld [vmem:[%s3967 + $0x14] sm:$0x1]
      %v4360 = vld [vmem:[%s3967 + $0x18] sm:$0xf]
      %v4361 = vld [vmem:[%s3967 + $0x1c] sm:$0xf]
      %v4362 = vld [vmem:[%s3967 + $0x20] sm:$0x1]
      %v4363 = vld [vmem:[%s3967 + $0x24] sm:$0xf]
      %v4364 = vld [vmem:[%s3967 + $0x28] sm:$0xf]
      %v4365 = vld [vmem:[%s3967 + $0x2c] sm:$0x1]
      %v4366 = vld [vmem:[%s3967 + $0x30] sm:$0xf]
      %v4367 = vld [vmem:[%s3967 + $0x34] sm:$0xf]
      %v4368 = vld [vmem:[%s3967 + $0x38] sm:$0x1]
      %v4369 = vld [vmem:[%s3967 + $0x3c] sm:$0xf]
      %v4370 = vld [vmem:[%s3967 + $0x40] sm:$0xf]
      %v4371 = vld [vmem:[%s3967 + $0x44] sm:$0x1]
      %v4372 = vld [vmem:[%s3967 + $0x48] sm:$0xf]
      %v4373 = vld [vmem:[%s3967 + $0x4c] sm:$0xf]
      %v4374 = vld [vmem:[%s3967 + $0x50] sm:$0x1]
      %v4375 = vld [vmem:[%s3967 + $0x54] sm:$0xf]
      %v4376 = vld [vmem:[%s3967 + $0x58] sm:$0xf]
      %v4377 = vld [vmem:[%s3967 + $0x5c] sm:$0x1]
      %v4378 = vld [vmem:[%s3967 + $0x60] sm:$0xf]
      %v4379 = vld [vmem:[%s3967 + $0x64] sm:$0xf]
      %v4380 = vld [vmem:[%s3967 + $0x68] sm:$0x1]
      %v4381 = vld [vmem:[%s3967 + $0x6c] sm:$0xf]
      %v4382 = vld [vmem:[%s3967 + $0x70] sm:$0xf]
      %v4383 = vld [vmem:[%s3967 + $0x74] sm:$0x1]
      %v4384 = vld [vmem:[%s3967 + $0x78] sm:$0xf]
      %v4385 = vld [vmem:[%s3967 + $0x7c] sm:$0xf]
      %v4386 = vld [vmem:[%s3967 + $0x80] sm:$0x1]
      %v4387 = vld [vmem:[%s3967 + $0x84] sm:$0xf]
      %v4388 = vld [vmem:[%s3967 + $0x88] sm:$0xf]
      %v4389 = vld [vmem:[%s3967 + $0x8c] sm:$0x1]
      %v4390 = vld [vmem:[%s3967 + $0x90] sm:$0xf]
      %v4391 = vld [vmem:[%s3967 + $0x94] sm:$0xf]
      %v4392 = vld [vmem:[%s3967 + $0x98] sm:$0x1]
      %v4393 = vld [vmem:[%s3967 + $0x9c] sm:$0xf]
      %v4394 = vld [vmem:[%s3967 + $0xa0] sm:$0xf]
      %v4395 = vld [vmem:[%s3967 + $0xa4] sm:$0x1]
      %v4396 = vld [vmem:[%s3967 + $0xa8] sm:$0xf]
      %v4397 = vld [vmem:[%s3967 + $0xac] sm:$0xf]
      %v4398 = vld [vmem:[%s3967 + $0xb0] sm:$0x1]
      %v4399 = vld [vmem:[%s3967 + $0xb4] sm:$0xf]
      %v4400 = vld [vmem:[%s3967 + $0xb8] sm:$0xf]
      %v4401 = vld [vmem:[%s3967 + $0xbc] sm:$0x1]
      %v4403 = vshrl.u32 %v4354, 16
      %v4405 = vrot.slane %v4403, 4
      %v4406 = vshll.u32 %v4354, 16
      %v4408 = vrot.slane %v4406, 5
      %v4409 = vor.u32 %v4405, %v4408
      %v4410 = vrot.slane %v4409, 4
      %v4412 = vshll.u32 %v4355, 16
      %v4414 = vrot.slane %v4412, 5
      %v4415 = vsel %vm864, %v4410, %v4414
      %v4416 = vshrl.u32 %v4355, 16
      %v4418 = vrot.slane %v4416, 4
      %v4419 = vor.u32 %v4418, %v4414
      %v4420 = vrot.slane %v4419, 4
      %v4422 = vshll.u32 %v4356, 16
      %v4424 = vrot.slane %v4422, 5
      %v4425 = vsel %vm864, %v4420, %v4424
      %v4427 = vshrl.u32 %v4357, 16
      %v4429 = vrot.slane %v4427, 4
      %v4430 = vshll.u32 %v4357, 16
      %v4432 = vrot.slane %v4430, 5
      %v4433 = vor.u32 %v4429, %v4432
      %v4434 = vrot.slane %v4433, 4
      %v4436 = vshll.u32 %v4358, 16
      %v4438 = vrot.slane %v4436, 5
      %v4439 = vsel %vm864, %v4434, %v4438
      %v4440 = vshrl.u32 %v4358, 16
      %v4442 = vrot.slane %v4440, 4
      %v4443 = vor.u32 %v4442, %v4438
      %v4444 = vrot.slane %v4443, 4
      %v4446 = vshll.u32 %v4359, 16
      %v4448 = vrot.slane %v4446, 5
      %v4449 = vsel %vm864, %v4444, %v4448
      %v4451 = vshrl.u32 %v4360, 16
      %v4453 = vrot.slane %v4451, 4
      %v4454 = vshll.u32 %v4360, 16
      %v4456 = vrot.slane %v4454, 5
      %v4457 = vor.u32 %v4453, %v4456
      %v4458 = vrot.slane %v4457, 4
      %v4460 = vshll.u32 %v4361, 16
      %v4462 = vrot.slane %v4460, 5
      %v4463 = vsel %vm864, %v4458, %v4462
      %v4464 = vshrl.u32 %v4361, 16
      %v4466 = vrot.slane %v4464, 4
      %v4467 = vor.u32 %v4466, %v4462
      %v4468 = vrot.slane %v4467, 4
      %v4470 = vshll.u32 %v4362, 16
      %v4472 = vrot.slane %v4470, 5
      %v4473 = vsel %vm864, %v4468, %v4472
      %v4475 = vshrl.u32 %v4363, 16
      %v4477 = vrot.slane %v4475, 4
      %v4478 = vshll.u32 %v4363, 16
      %v4480 = vrot.slane %v4478, 5
      %v4481 = vor.u32 %v4477, %v4480
      %v4482 = vrot.slane %v4481, 4
      %v4484 = vshll.u32 %v4364, 16
      %v4486 = vrot.slane %v4484, 5
      %v4487 = vsel %vm864, %v4482, %v4486
      %v4488 = vshrl.u32 %v4364, 16
      %v4490 = vrot.slane %v4488, 4
      %v4491 = vor.u32 %v4490, %v4486
      %v4492 = vrot.slane %v4491, 4
      %v4494 = vshll.u32 %v4365, 16
      %v4496 = vrot.slane %v4494, 5
      %v4497 = vsel %vm864, %v4492, %v4496
      %v4499 = vshrl.u32 %v4366, 16
      %v4501 = vrot.slane %v4499, 4
      %v4502 = vshll.u32 %v4366, 16
      %v4504 = vrot.slane %v4502, 5
      %v4505 = vor.u32 %v4501, %v4504
      %v4506 = vrot.slane %v4505, 4
      %v4508 = vshll.u32 %v4367, 16
      %v4510 = vrot.slane %v4508, 5
      %v4511 = vsel %vm864, %v4506, %v4510
      %v4512 = vshrl.u32 %v4367, 16
      %v4514 = vrot.slane %v4512, 4
      %v4515 = vor.u32 %v4514, %v4510
      %v4516 = vrot.slane %v4515, 4
      %v4518 = vshll.u32 %v4368, 16
      %v4520 = vrot.slane %v4518, 5
      %v4521 = vsel %vm864, %v4516, %v4520
      %v4523 = vshrl.u32 %v4369, 16
      %v4525 = vrot.slane %v4523, 4
      %v4526 = vshll.u32 %v4369, 16
      %v4528 = vrot.slane %v4526, 5
      %v4529 = vor.u32 %v4525, %v4528
      %v4530 = vrot.slane %v4529, 4
      %v4532 = vshll.u32 %v4370, 16
      %v4534 = vrot.slane %v4532, 5
      %v4535 = vsel %vm864, %v4530, %v4534
      %v4536 = vshrl.u32 %v4370, 16
      %v4538 = vrot.slane %v4536, 4
      %v4539 = vor.u32 %v4538, %v4534
      %v4540 = vrot.slane %v4539, 4
      %v4542 = vshll.u32 %v4371, 16
      %v4544 = vrot.slane %v4542, 5
      %v4545 = vsel %vm864, %v4540, %v4544
      %v4547 = vshrl.u32 %v4372, 16
      %v4549 = vrot.slane %v4547, 4
      %v4550 = vshll.u32 %v4372, 16
      %v4552 = vrot.slane %v4550, 5
      %v4553 = vor.u32 %v4549, %v4552
      %v4554 = vrot.slane %v4553, 4
      %v4556 = vshll.u32 %v4373, 16
      %v4558 = vrot.slane %v4556, 5
      %v4559 = vsel %vm864, %v4554, %v4558
      %v4560 = vshrl.u32 %v4373, 16
      %v4562 = vrot.slane %v4560, 4
      %v4563 = vor.u32 %v4562, %v4558
      %v4564 = vrot.slane %v4563, 4
      %v4566 = vshll.u32 %v4374, 16
      %v4568 = vrot.slane %v4566, 5
      %v4569 = vsel %vm864, %v4564, %v4568
      %v4571 = vshrl.u32 %v4375, 16
      %v4573 = vrot.slane %v4571, 4
      %v4574 = vshll.u32 %v4375, 16
      %v4576 = vrot.slane %v4574, 5
      %v4577 = vor.u32 %v4573, %v4576
      %v4578 = vrot.slane %v4577, 4
      %v4580 = vshll.u32 %v4376, 16
      %v4582 = vrot.slane %v4580, 5
      %v4583 = vsel %vm864, %v4578, %v4582
      %v4584 = vshrl.u32 %v4376, 16
      %v4586 = vrot.slane %v4584, 4
      %v4587 = vor.u32 %v4586, %v4582
      %v4588 = vrot.slane %v4587, 4
      %v4590 = vshll.u32 %v4377, 16
      %v4592 = vrot.slane %v4590, 5
      %v4593 = vsel %vm864, %v4588, %v4592
      %v4595 = vshrl.u32 %v4378, 16
      %v4597 = vrot.slane %v4595, 4
      %v4598 = vshll.u32 %v4378, 16
      %v4600 = vrot.slane %v4598, 5
      %v4601 = vor.u32 %v4597, %v4600
      %v4602 = vrot.slane %v4601, 4
      %v4604 = vshll.u32 %v4379, 16
      %v4606 = vrot.slane %v4604, 5
      %v4607 = vsel %vm864, %v4602, %v4606
      %v4608 = vshrl.u32 %v4379, 16
      %v4610 = vrot.slane %v4608, 4
      %v4611 = vor.u32 %v4610, %v4606
      %v4612 = vrot.slane %v4611, 4
      %v4614 = vshll.u32 %v4380, 16
      %v4616 = vrot.slane %v4614, 5
      %v4617 = vsel %vm864, %v4612, %v4616
      %v4619 = vshrl.u32 %v4381, 16
      %v4621 = vrot.slane %v4619, 4
      %v4622 = vshll.u32 %v4381, 16
      %v4624 = vrot.slane %v4622, 5
      %v4625 = vor.u32 %v4621, %v4624
      %v4626 = vrot.slane %v4625, 4
      %v4628 = vshll.u32 %v4382, 16
      %v4630 = vrot.slane %v4628, 5
      %v4631 = vsel %vm864, %v4626, %v4630
      %v4632 = vshrl.u32 %v4382, 16
      %v4634 = vrot.slane %v4632, 4
      %v4635 = vor.u32 %v4634, %v4630
      %v4636 = vrot.slane %v4635, 4
      %v4638 = vshll.u32 %v4383, 16
      %v4640 = vrot.slane %v4638, 5
      %v4641 = vsel %vm864, %v4636, %v4640
      %v4643 = vshrl.u32 %v4384, 16
      %v4645 = vrot.slane %v4643, 4
      %v4646 = vshll.u32 %v4384, 16
      %v4648 = vrot.slane %v4646, 5
      %v4649 = vor.u32 %v4645, %v4648
      %v4650 = vrot.slane %v4649, 4
      %v4652 = vshll.u32 %v4385, 16
      %v4654 = vrot.slane %v4652, 5
      %v4655 = vsel %vm864, %v4650, %v4654
      %v4656 = vshrl.u32 %v4385, 16
      %v4658 = vrot.slane %v4656, 4
      %v4659 = vor.u32 %v4658, %v4654
      %v4660 = vrot.slane %v4659, 4
      %v4662 = vshll.u32 %v4386, 16
      %v4664 = vrot.slane %v4662, 5
      %v4665 = vsel %vm864, %v4660, %v4664
      %v4667 = vshrl.u32 %v4387, 16
      %v4669 = vrot.slane %v4667, 4
      %v4670 = vshll.u32 %v4387, 16
      %v4672 = vrot.slane %v4670, 5
      %v4673 = vor.u32 %v4669, %v4672
      %v4674 = vrot.slane %v4673, 4
      %v4676 = vshll.u32 %v4388, 16
      %v4678 = vrot.slane %v4676, 5
      %v4679 = vsel %vm864, %v4674, %v4678
      %v4680 = vshrl.u32 %v4388, 16
      %v4682 = vrot.slane %v4680, 4
      %v4683 = vor.u32 %v4682, %v4678
      %v4684 = vrot.slane %v4683, 4
      %v4686 = vshll.u32 %v4389, 16
      %v4688 = vrot.slane %v4686, 5
      %v4689 = vsel %vm864, %v4684, %v4688
      %v4691 = vshrl.u32 %v4390, 16
      %v4693 = vrot.slane %v4691, 4
      %v4694 = vshll.u32 %v4390, 16
      %v4696 = vrot.slane %v4694, 5
      %v4697 = vor.u32 %v4693, %v4696
      %v4698 = vrot.slane %v4697, 4
      %v4700 = vshll.u32 %v4391, 16
      %v4702 = vrot.slane %v4700, 5
      %v4703 = vsel %vm864, %v4698, %v4702
      %v4704 = vshrl.u32 %v4391, 16
      %v4706 = vrot.slane %v4704, 4
      %v4707 = vor.u32 %v4706, %v4702
      %v4708 = vrot.slane %v4707, 4
      %v4710 = vshll.u32 %v4392, 16
      %v4712 = vrot.slane %v4710, 5
      %v4713 = vsel %vm864, %v4708, %v4712
      %v4715 = vshrl.u32 %v4393, 16
      %v4717 = vrot.slane %v4715, 4
      %v4718 = vshll.u32 %v4393, 16
      %v4720 = vrot.slane %v4718, 5
      %v4721 = vor.u32 %v4717, %v4720
      %v4722 = vrot.slane %v4721, 4
      %v4724 = vshll.u32 %v4394, 16
      %v4726 = vrot.slane %v4724, 5
      %v4727 = vsel %vm864, %v4722, %v4726
      %v4728 = vshrl.u32 %v4394, 16
      %v4730 = vrot.slane %v4728, 4
      %v4731 = vor.u32 %v4730, %v4726
      %v4732 = vrot.slane %v4731, 4
      %v4734 = vshll.u32 %v4395, 16
      %v4736 = vrot.slane %v4734, 5
      %v4737 = vsel %vm864, %v4732, %v4736
      %v4739 = vshrl.u32 %v4396, 16
      %v4741 = vrot.slane %v4739, 4
      %v4742 = vshll.u32 %v4396, 16
      %v4744 = vrot.slane %v4742, 5
      %v4745 = vor.u32 %v4741, %v4744
      %v4746 = vrot.slane %v4745, 4
      %v4748 = vshll.u32 %v4397, 16
      %v4750 = vrot.slane %v4748, 5
      %v4751 = vsel %vm864, %v4746, %v4750
      %v4752 = vshrl.u32 %v4397, 16
      %v4754 = vrot.slane %v4752, 4
      %v4755 = vor.u32 %v4754, %v4750
      %v4756 = vrot.slane %v4755, 4
      %v4758 = vshll.u32 %v4398, 16
      %v4760 = vrot.slane %v4758, 5
      %v4761 = vsel %vm864, %v4756, %v4760
      %v4763 = vshrl.u32 %v4399, 16
      %v4765 = vrot.slane %v4763, 4
      %v4766 = vshll.u32 %v4399, 16
      %v4768 = vrot.slane %v4766, 5
      %v4769 = vor.u32 %v4765, %v4768
      %v4770 = vrot.slane %v4769, 4
      %v4772 = vshll.u32 %v4400, 16
      %v4774 = vrot.slane %v4772, 5
      %v4775 = vsel %vm864, %v4770, %v4774
      %v4776 = vshrl.u32 %v4400, 16
      %v4778 = vrot.slane %v4776, 4
      %v4779 = vor.u32 %v4778, %v4774
      %v4780 = vrot.slane %v4779, 4
      %v4782 = vshll.u32 %v4401, 16
      %v4784 = vrot.slane %v4782, 5
      %v4785 = vsel %vm864, %v4780, %v4784
      %s4786 = scalar_lea.vmem %s1, 448
      %v4787 = vld [vmem:[%s4786] sm:$0xf]
      %v4788 = vld [vmem:[%s4786 + $0x4] sm:$0xf]
      %v4789 = vld [vmem:[%s4786 + $0x8] sm:$0xf]
      %v4790 = vld [vmem:[%s4786 + $0xc] sm:$0xf]
      %v4791 = vld [vmem:[%s4786 + $0x10] sm:$0xf]
      %v4792 = vld [vmem:[%s4786 + $0x14] sm:$0xf]
      %v4793 = vld [vmem:[%s4786 + $0x18] sm:$0xf]
      %v4794 = vld [vmem:[%s4786 + $0x1c] sm:$0xf]
      %v4795 = vld [vmem:[%s4786 + $0x20] sm:$0xf]
      %v4796 = vld [vmem:[%s4786 + $0x24] sm:$0xf]
      %v4797 = vld [vmem:[%s4786 + $0x28] sm:$0xf]
      %v4798 = vld [vmem:[%s4786 + $0x2c] sm:$0xf]
      %v4799 = vld [vmem:[%s4786 + $0x30] sm:$0xf]
      %v4800 = vld [vmem:[%s4786 + $0x34] sm:$0xf]
      %v4801 = vld [vmem:[%s4786 + $0x38] sm:$0xf]
      %v4802 = vld [vmem:[%s4786 + $0x3c] sm:$0xf]
      %v4803 = vunpack.c.l.b16 %v4415
      %v4804 = vunpack.c.l.b16 %v4425
      %v4805 = vunpack.c.l.b16 %v4439
      %v4806 = vunpack.c.l.b16 %v4449
      %v4807 = vunpack.c.l.b16 %v4463
      %v4808 = vunpack.c.l.b16 %v4473
      %v4809 = vunpack.c.l.b16 %v4487
      %v4810 = vunpack.c.l.b16 %v4497
      %v4811 = vunpack.c.l.b16 %v4511
      %v4812 = vunpack.c.l.b16 %v4521
      %v4813 = vunpack.c.l.b16 %v4535
      %v4814 = vunpack.c.l.b16 %v4545
      %v4815 = vunpack.c.l.b16 %v4559
      %v4816 = vunpack.c.l.b16 %v4569
      %v4817 = vunpack.c.l.b16 %v4583
      %v4818 = vunpack.c.l.b16 %v4593
      %v4819 = vunpack.c.l.b16 %v4607
      %v4820 = vunpack.c.l.b16 %v4617
      %v4821 = vunpack.c.l.b16 %v4631
      %v4822 = vunpack.c.l.b16 %v4641
      %v4823 = vunpack.c.l.b16 %v4655
      %v4824 = vunpack.c.l.b16 %v4665
      %v4825 = vunpack.c.l.b16 %v4679
      %v4826 = vunpack.c.l.b16 %v4689
      %v4827 = vunpack.c.l.b16 %v4703
      %v4828 = vunpack.c.l.b16 %v4713
      %v4829 = vunpack.c.l.b16 %v4727
      %v4830 = vunpack.c.l.b16 %v4737
      %v4831 = vunpack.c.l.b16 %v4751
      %v4832 = vunpack.c.l.b16 %v4761
      %v4833 = vunpack.c.l.b16 %v4775
      %v4834 = vunpack.c.l.b16 %v4785
      %v4835 = vpack.c.b16 %v4804, %v4803
      %v4836 = vpack.c.b16 %v4806, %v4805
      %v4837 = vpack.c.b16 %v4808, %v4807
      %v4838 = vpack.c.b16 %v4810, %v4809
      %v4839 = vpack.c.b16 %v4812, %v4811
      %v4840 = vpack.c.b16 %v4814, %v4813
      %v4841 = vpack.c.b16 %v4816, %v4815
      %v4842 = vpack.c.b16 %v4818, %v4817
      %v4843 = vpack.c.b16 %v4820, %v4819
      %v4844 = vpack.c.b16 %v4822, %v4821
      %v4845 = vpack.c.b16 %v4824, %v4823
      %v4846 = vpack.c.b16 %v4826, %v4825
      %v4847 = vpack.c.b16 %v4828, %v4827
      %v4848 = vpack.c.b16 %v4830, %v4829
      %v4849 = vpack.c.b16 %v4832, %v4831
      %v4850 = vpack.c.b16 %v4834, %v4833
      %v4883 = vunpack.c.l.b16 %v4787
      %v4884 = vunpack.c.l.b16 %v4788
      %v4885 = vunpack.c.l.b16 %v4789
      %v4886 = vunpack.c.l.b16 %v4790
      %v4887 = vunpack.c.l.b16 %v4791
      %v4888 = vunpack.c.l.b16 %v4792
      %v4889 = vunpack.c.l.b16 %v4793
      %v4890 = vunpack.c.l.b16 %v4794
      %v4891 = vunpack.c.l.b16 %v4795
      %v4892 = vunpack.c.l.b16 %v4796
      %v4893 = vunpack.c.l.b16 %v4797
      %v4894 = vunpack.c.l.b16 %v4798
      %v4895 = vunpack.c.l.b16 %v4799
      %v4896 = vunpack.c.l.b16 %v4800
      %v4897 = vunpack.c.l.b16 %v4801
      %v4898 = vunpack.c.l.b16 %v4802
      %v4899 = vpack.c.b16 %v4884, %v4883
      %v4900 = vpack.c.b16 %v4886, %v4885
      %v4901 = vpack.c.b16 %v4888, %v4887
      %v4902 = vpack.c.b16 %v4890, %v4889
      %v4903 = vpack.c.b16 %v4892, %v4891
      %v4904 = vpack.c.b16 %v4894, %v4893
      %v4905 = vpack.c.b16 %v4896, %v4895
      %v4906 = vpack.c.b16 %v4898, %v4897
      %4915 = vmatprep.subr.bf16.mxu0 0
      %4916 = vmatpush1.bf16.msra.mxu0 %v4899
      %4917 = vmatprep.subr.bf16.mxu0 0
      %4918 = vmatpush1.bf16.msra.mxu0 %v4900
      %4919 = vmatprep.subr.bf16.mxu0 0
      %4920 = vmatpush1.bf16.msra.mxu0 %v4901
      %4921 = vmatprep.subr.bf16.mxu0 0
      %4922 = vmatpush1.bf16.msra.mxu0 %v4902
      %4923 = vmatprep.subr.bf16.mxu0 0
      %4924 = vmatpush1.bf16.msra.mxu0 %v4903
      %4925 = vmatprep.subr.bf16.mxu0 0
      %4926 = vmatpush1.bf16.msra.mxu0 %v4904
      %4927 = vmatprep.subr.bf16.mxu0 0
      %4928 = vmatpush1.bf16.msra.mxu0 %v4905
      %4929 = vmatprep.subr.bf16.mxu0 0
      %4930 = vmatpush1.bf16.msra.mxu0 %v4906
      %4931 = vmatprep.subr.bf16.mxu0 0
      %4932 = vmatpush1.bf16.msra.mxu0 0
      %4933 = vmatprep.subr.bf16.mxu0 0
      %4934 = vmatpush1.bf16.msra.mxu0 0
      %4935 = vmatprep.subr.bf16.mxu0 0
      %4936 = vmatpush1.bf16.msra.mxu0 0
      %4937 = vmatprep.subr.bf16.mxu0 0
      %4938 = vmatpush1.bf16.msra.mxu0 0
      %4939 = vmatprep.subr.bf16.mxu0 0
      %4940 = vmatpush1.bf16.msra.mxu0 0
      %4941 = vmatprep.subr.bf16.mxu0 0
      %4942 = vmatpush1.bf16.msra.mxu0 0
      %4943 = vmatprep.subr.bf16.mxu0 0
      %4944 = vmatpush1.bf16.msra.mxu0 0
      %4945 = vmatprep.subr.bf16.mxu0 0
      %4946 = vmatpush1.bf16.msra.mxu0 0
      %4947 = vmatprep.mubr.bf16.mxu0 0
      %4948 = vmatmul.mubr.bf16.gmra.mrb[0].mxu0 %v4835
      %v4949 = vpop.f32.mrb[0].mxu0
      %v4950 = vadd.f32 0.0, %v4949
      %v4951 = vpop.f32.mrb[0].mxu0
      %v4952 = vpop.f32.mrb[0].mxu0
      %v4953 = vadd.f32 0.0, %v4952
      %v4954 = vpop.f32.mrb[0].mxu0
      %4955 = vmatprep.mubr.bf16.mxu0 0
      %4956 = vmatmul.mubr.bf16.gmra.mrb[0].mxu0 %v4836
      %v4957 = vpop.f32.mrb[0].mxu0
      %v4958 = vadd.f32 0.0, %v4957
      %v4959 = vpop.f32.mrb[0].mxu0
      %v4960 = vpop.f32.mrb[0].mxu0
      %v4961 = vadd.f32 0.0, %v4960
      %v4962 = vpop.f32.mrb[0].mxu0
      %4963 = vmatprep.mubr.bf16.mxu0 0
      %4964 = vmatmul.mubr.bf16.gmra.mrb[0].mxu0 %v4837
      %v4965 = vpop.f32.mrb[0].mxu0
      %v4966 = vadd.f32 0.0, %v4965
      %v4967 = vpop.f32.mrb[0].mxu0
      %v4968 = vpop.f32.mrb[0].mxu0
      %v4969 = vadd.f32 0.0, %v4968
      %v4970 = vpop.f32.mrb[0].mxu0
      %4971 = vmatprep.mubr.bf16.mxu0 0
      %4972 = vmatmul.mubr.bf16.gmra.mrb[0].mxu0 %v4838
      %v4973 = vpop.f32.mrb[0].mxu0
      %v4974 = vadd.f32 0.0, %v4973
      %v4975 = vpop.f32.mrb[0].mxu0
      %v4976 = vpop.f32.mrb[0].mxu0
      %v4977 = vadd.f32 0.0, %v4976
      %v4978 = vpop.f32.mrb[0].mxu0
      %4979 = vmatprep.mubr.bf16.mxu0 0
      %4980 = vmatmul.mubr.bf16.gmra.mrb[0].mxu0 %v4839
      %v4981 = vpop.f32.mrb[0].mxu0
      %v4982 = vadd.f32 0.0, %v4981
      %v4983 = vpop.f32.mrb[0].mxu0
      %v4984 = vpop.f32.mrb[0].mxu0
      %v4985 = vadd.f32 0.0, %v4984
      %v4986 = vpop.f32.mrb[0].mxu0
      %4987 = vmatprep.mubr.bf16.mxu0 0
      %4988 = vmatmul.mubr.bf16.gmra.mrb[0].mxu0 %v4840
      %v4989 = vpop.f32.mrb[0].mxu0
      %v4990 = vadd.f32 0.0, %v4989
      %v4991 = vpop.f32.mrb[0].mxu0
      %v4992 = vpop.f32.mrb[0].mxu0
      %v4993 = vadd.f32 0.0, %v4992
      %v4994 = vpop.f32.mrb[0].mxu0
      %4995 = vmatprep.mubr.bf16.mxu0 0
      %4996 = vmatmul.mubr.bf16.gmra.mrb[0].mxu0 %v4841
      %v4997 = vpop.f32.mrb[0].mxu0
      %v4998 = vadd.f32 0.0, %v4997
      %v4999 = vpop.f32.mrb[0].mxu0
      %v5000 = vpop.f32.mrb[0].mxu0
      %v5001 = vadd.f32 0.0, %v5000
      %v5002 = vpop.f32.mrb[0].mxu0
      %5003 = vmatprep.mubr.bf16.mxu0 0
      %5004 = vmatmul.mubr.bf16.gmra.mrb[0].mxu0 %v4842
      %v5005 = vpop.f32.mrb[0].mxu0
      %v5006 = vadd.f32 0.0, %v5005
      %v5007 = vpop.f32.mrb[0].mxu0
      %v5008 = vpop.f32.mrb[0].mxu0
      %v5009 = vadd.f32 0.0, %v5008
      %v5010 = vpop.f32.mrb[0].mxu0
      %5011 = vmatprep.mubr.bf16.mxu0 0
      %5012 = vmatmul.mubr.bf16.gmra.mrb[0].mxu0 %v4843
      %v5013 = vpop.f32.mrb[0].mxu0
      %v5014 = vadd.f32 0.0, %v5013
      %v5015 = vpop.f32.mrb[0].mxu0
      %v5016 = vpop.f32.mrb[0].mxu0
      %v5017 = vadd.f32 0.0, %v5016
      %v5018 = vpop.f32.mrb[0].mxu0
      %5019 = vmatprep.mubr.bf16.mxu0 0
      %5020 = vmatmul.mubr.bf16.gmra.mrb[0].mxu0 %v4844
      %v5021 = vpop.f32.mrb[0].mxu0
      %v5022 = vadd.f32 0.0, %v5021
      %v5023 = vpop.f32.mrb[0].mxu0
      %v5024 = vpop.f32.mrb[0].mxu0
      %v5025 = vadd.f32 0.0, %v5024
      %v5026 = vpop.f32.mrb[0].mxu0
      %5027 = vmatprep.mubr.bf16.mxu0 0
      %5028 = vmatmul.mubr.bf16.gmra.mrb[0].mxu0 %v4845
      %v5029 = vpop.f32.mrb[0].mxu0
      %v5030 = vadd.f32 0.0, %v5029
      %v5031 = vpop.f32.mrb[0].mxu0
      %v5032 = vpop.f32.mrb[0].mxu0
      %v5033 = vadd.f32 0.0, %v5032
      %v5034 = vpop.f32.mrb[0].mxu0
      %5035 = vmatprep.mubr.bf16.mxu0 0
      %5036 = vmatmul.mubr.bf16.gmra.mrb[0].mxu0 %v4846
      %v5037 = vpop.f32.mrb[0].mxu0
      %v5038 = vadd.f32 0.0, %v5037
      %v5039 = vpop.f32.mrb[0].mxu0
      %v5040 = vpop.f32.mrb[0].mxu0
      %v5041 = vadd.f32 0.0, %v5040
      %v5042 = vpop.f32.mrb[0].mxu0
      %5043 = vmatprep.mubr.bf16.mxu0 0
      %5044 = vmatmul.mubr.bf16.gmra.mrb[0].mxu0 %v4847
      %v5045 = vpop.f32.mrb[0].mxu0
      %v5046 = vadd.f32 0.0, %v5045
      %v5047 = vpop.f32.mrb[0].mxu0
      %v5048 = vpop.f32.mrb[0].mxu0
      %v5049 = vadd.f32 0.0, %v5048
      %v5050 = vpop.f32.mrb[0].mxu0
      %5051 = vmatprep.mubr.bf16.mxu0 0
      %5052 = vmatmul.mubr.bf16.gmra.mrb[0].mxu0 %v4848
      %v5053 = vpop.f32.mrb[0].mxu0
      %v5054 = vadd.f32 0.0, %v5053
      %v5055 = vpop.f32.mrb[0].mxu0
      %v5056 = vpop.f32.mrb[0].mxu0
      %v5057 = vadd.f32 0.0, %v5056
      %v5058 = vpop.f32.mrb[0].mxu0
      %5059 = vmatprep.mubr.bf16.mxu0 0
      %5060 = vmatmul.mubr.bf16.gmra.mrb[0].mxu0 %v4849
      %v5061 = vpop.f32.mrb[0].mxu0
      %v5062 = vadd.f32 0.0, %v5061
      %v5063 = vpop.f32.mrb[0].mxu0
      %v5064 = vpop.f32.mrb[0].mxu0
      %v5065 = vadd.f32 0.0, %v5064
      %v5066 = vpop.f32.mrb[0].mxu0
      %5067 = vmatprep.mubr.bf16.mxu0 0
      %5068 = vmatmul.mubr.bf16.gmra.mrb[0].mxu0 %v4850
      %v5069 = vpop.f32.mrb[0].mxu0
      %v5070 = vadd.f32 0.0, %v5069
      %v5071 = vpop.f32.mrb[0].mxu0
      %v5072 = vpop.f32.mrb[0].mxu0
      %v5073 = vadd.f32 0.0, %v5072
      %v5074 = vpop.f32.mrb[0].mxu0
      %5075 = vdwg.mxu0
      %v5076 = vadd.f32 %v4322, %v4950
      %v5077 = vadd.f32 %v4323, %v4953
      %v5078 = vadd.f32 %v4324, %v4958
      %v5079 = vadd.f32 %v4325, %v4961
      %v5080 = vadd.f32 %v4326, %v4966
      %v5081 = vadd.f32 %v4327, %v4969
      %v5082 = vadd.f32 %v4328, %v4974
      %v5083 = vadd.f32 %v4329, %v4977
      %v5084 = vadd.f32 %v4330, %v4982
      %v5085 = vadd.f32 %v4331, %v4985
      %v5086 = vadd.f32 %v4332, %v4990
      %v5087 = vadd.f32 %v4333, %v4993
      %v5088 = vadd.f32 %v4334, %v4998
      %v5089 = vadd.f32 %v4335, %v5001
      %v5090 = vadd.f32 %v4336, %v5006
      %v5091 = vadd.f32 %v4337, %v5009
      %v5092 = vadd.f32 %v4338, %v5014
      %v5093 = vadd.f32 %v4339, %v5017
      %v5094 = vadd.f32 %v4340, %v5022
      %v5095 = vadd.f32 %v4341, %v5025
      %v5096 = vadd.f32 %v4342, %v5030
      %v5097 = vadd.f32 %v4343, %v5033
      %v5098 = vadd.f32 %v4344, %v5038
      %v5099 = vadd.f32 %v4345, %v5041
      %v5100 = vadd.f32 %v4346, %v5046
      %v5101 = vadd.f32 %v4347, %v5049
      %v5102 = vadd.f32 %v4348, %v5054
      %v5103 = vadd.f32 %v4349, %v5057
      %v5104 = vadd.f32 %v4350, %v5062
      %v5105 = vadd.f32 %v4351, %v5065
      %v5106 = vadd.f32 %v4352, %v5070
      %v5107 = vadd.f32 %v4353, %v5073
      %v5108 = vld [vmem:[%s3967] sm:$0xe]
      %v5109 = vld [vmem:[%s3967 + $0xc] sm:$0xe]
      %v5110 = vld [vmem:[%s3967 + $0x18] sm:$0xe]
      %v5111 = vld [vmem:[%s3967 + $0x24] sm:$0xe]
      %v5112 = vld [vmem:[%s3967 + $0x30] sm:$0xe]
      %v5113 = vld [vmem:[%s3967 + $0x3c] sm:$0xe]
      %v5114 = vld [vmem:[%s3967 + $0x48] sm:$0xe]
      %v5115 = vld [vmem:[%s3967 + $0x54] sm:$0xe]
      %v5116 = vld [vmem:[%s3967 + $0x60] sm:$0xe]
      %v5117 = vld [vmem:[%s3967 + $0x6c] sm:$0xe]
      %v5118 = vld [vmem:[%s3967 + $0x78] sm:$0xe]
      %v5119 = vld [vmem:[%s3967 + $0x84] sm:$0xe]
      %v5120 = vld [vmem:[%s3967 + $0x90] sm:$0xe]
      %v5121 = vld [vmem:[%s3967 + $0x9c] sm:$0xe]
      %v5122 = vld [vmem:[%s3967 + $0xa8] sm:$0xe]
      %v5123 = vld [vmem:[%s3967 + $0xb4] sm:$0xe]
      %v5172 = vrot.slane %v5108, 5
      %v5173 = vrot.slane %v5172, 4
      %v5174 = vrot.slane %v4355, 5
      %v5175 = vsel %vm1894, %v5173, %v5174
      %v5176 = vrot.slane %v5174, 4
      %v5177 = vrot.slane %v4356, 5
      %v5178 = vsel %vm1894, %v5176, %v5177
      %v5179 = vrot.slane %v5109, 5
      %v5180 = vrot.slane %v5179, 4
      %v5181 = vrot.slane %v4358, 5
      %v5182 = vsel %vm1894, %v5180, %v5181
      %v5183 = vrot.slane %v5181, 4
      %v5184 = vrot.slane %v4359, 5
      %v5185 = vsel %vm1894, %v5183, %v5184
      %v5186 = vrot.slane %v5110, 5
      %v5187 = vrot.slane %v5186, 4
      %v5188 = vrot.slane %v4361, 5
      %v5189 = vsel %vm1894, %v5187, %v5188
      %v5190 = vrot.slane %v5188, 4
      %v5191 = vrot.slane %v4362, 5
      %v5192 = vsel %vm1894, %v5190, %v5191
      %v5193 = vrot.slane %v5111, 5
      %v5194 = vrot.slane %v5193, 4
      %v5195 = vrot.slane %v4364, 5
      %v5196 = vsel %vm1894, %v5194, %v5195
      %v5197 = vrot.slane %v5195, 4
      %v5198 = vrot.slane %v4365, 5
      %v5199 = vsel %vm1894, %v5197, %v5198
      %v5200 = vrot.slane %v5112, 5
      %v5201 = vrot.slane %v5200, 4
      %v5202 = vrot.slane %v4367, 5
      %v5203 = vsel %vm1894, %v5201, %v5202
      %v5204 = vrot.slane %v5202, 4
      %v5205 = vrot.slane %v4368, 5
      %v5206 = vsel %vm1894, %v5204, %v5205
      %v5207 = vrot.slane %v5113, 5
      %v5208 = vrot.slane %v5207, 4
      %v5209 = vrot.slane %v4370, 5
      %v5210 = vsel %vm1894, %v5208, %v5209
      %v5211 = vrot.slane %v5209, 4
      %v5212 = vrot.slane %v4371, 5
      %v5213 = vsel %vm1894, %v5211, %v5212
      %v5214 = vrot.slane %v5114, 5
      %v5215 = vrot.slane %v5214, 4
      %v5216 = vrot.slane %v4373, 5
      %v5217 = vsel %vm1894, %v5215, %v5216
      %v5218 = vrot.slane %v5216, 4
      %v5219 = vrot.slane %v4374, 5
      %v5220 = vsel %vm1894, %v5218, %v5219
      %v5221 = vrot.slane %v5115, 5
      %v5222 = vrot.slane %v5221, 4
      %v5223 = vrot.slane %v4376, 5
      %v5224 = vsel %vm1894, %v5222, %v5223
      %v5225 = vrot.slane %v5223, 4
      %v5226 = vrot.slane %v4377, 5
      %v5227 = vsel %vm1894, %v5225, %v5226
      %v5228 = vrot.slane %v5116, 5
      %v5229 = vrot.slane %v5228, 4
      %v5230 = vrot.slane %v4379, 5
      %v5231 = vsel %vm1894, %v5229, %v5230
      %v5232 = vrot.slane %v5230, 4
      %v5233 = vrot.slane %v4380, 5
      %v5234 = vsel %vm1894, %v5232, %v5233
      %v5235 = vrot.slane %v5117, 5
      %v5236 = vrot.slane %v5235, 4
      %v5237 = vrot.slane %v4382, 5
      %v5238 = vsel %vm1894, %v5236, %v5237
      %v5239 = vrot.slane %v5237, 4
      %v5240 = vrot.slane %v4383, 5
      %v5241 = vsel %vm1894, %v5239, %v5240
      %v5242 = vrot.slane %v5118, 5
      %v5243 = vrot.slane %v5242, 4
      %v5244 = vrot.slane %v4385, 5
      %v5245 = vsel %vm1894, %v5243, %v5244
      %v5246 = vrot.slane %v5244, 4
      %v5247 = vrot.slane %v4386, 5
      %v5248 = vsel %vm1894, %v5246, %v5247
      %v5249 = vrot.slane %v5119, 5
      %v5250 = vrot.slane %v5249, 4
      %v5251 = vrot.slane %v4388, 5
      %v5252 = vsel %vm1894, %v5250, %v5251
      %v5253 = vrot.slane %v5251, 4
      %v5254 = vrot.slane %v4389, 5
      %v5255 = vsel %vm1894, %v5253, %v5254
      %v5256 = vrot.slane %v5120, 5
      %v5257 = vrot.slane %v5256, 4
      %v5258 = vrot.slane %v4391, 5
      %v5259 = vsel %vm1894, %v5257, %v5258
      %v5260 = vrot.slane %v5258, 4
      %v5261 = vrot.slane %v4392, 5
      %v5262 = vsel %vm1894, %v5260, %v5261
      %v5263 = vrot.slane %v5121, 5
      %v5264 = vrot.slane %v5263, 4
      %v5265 = vrot.slane %v4394, 5
      %v5266 = vsel %vm1894, %v5264, %v5265
      %v5267 = vrot.slane %v5265, 4
      %v5268 = vrot.slane %v4395, 5
      %v5269 = vsel %vm1894, %v5267, %v5268
      %v5270 = vrot.slane %v5122, 5
      %v5271 = vrot.slane %v5270, 4
      %v5272 = vrot.slane %v4397, 5
      %v5273 = vsel %vm1894, %v5271, %v5272
      %v5274 = vrot.slane %v5272, 4
      %v5275 = vrot.slane %v4398, 5
      %v5276 = vsel %vm1894, %v5274, %v5275
      %v5277 = vrot.slane %v5123, 5
      %v5278 = vrot.slane %v5277, 4
      %v5279 = vrot.slane %v4400, 5
      %v5280 = vsel %vm1894, %v5278, %v5279
      %v5281 = vrot.slane %v5279, 4
      %v5282 = vrot.slane %v4401, 5
      %v5283 = vsel %vm1894, %v5281, %v5282
      %s5284 = scalar_lea.vmem %s1, 512
      %v5285 = vld [vmem:[%s5284] sm:$0xf]
      %v5286 = vld [vmem:[%s5284 + $0x4] sm:$0xf]
      %v5287 = vld [vmem:[%s5284 + $0x8] sm:$0xf]
      %v5288 = vld [vmem:[%s5284 + $0xc] sm:$0xf]
      %v5289 = vld [vmem:[%s5284 + $0x10] sm:$0xf]
      %v5290 = vld [vmem:[%s5284 + $0x14] sm:$0xf]
      %v5291 = vld [vmem:[%s5284 + $0x18] sm:$0xf]
      %v5292 = vld [vmem:[%s5284 + $0x1c] sm:$0xf]
      %v5293 = vld [vmem:[%s5284 + $0x20] sm:$0xf]
      %v5294 = vld [vmem:[%s5284 + $0x24] sm:$0xf]
      %v5295 = vld [vmem:[%s5284 + $0x28] sm:$0xf]
      %v5296 = vld [vmem:[%s5284 + $0x2c] sm:$0xf]
      %v5297 = vld [vmem:[%s5284 + $0x30] sm:$0xf]
      %v5298 = vld [vmem:[%s5284 + $0x34] sm:$0xf]
      %v5299 = vld [vmem:[%s5284 + $0x38] sm:$0xf]
      %v5300 = vld [vmem:[%s5284 + $0x3c] sm:$0xf]
      %v5301 = vunpack.c.l.b16 %v5175
      %v5302 = vunpack.c.l.b16 %v5178
      %v5303 = vunpack.c.l.b16 %v5182
      %v5304 = vunpack.c.l.b16 %v5185
      %v5305 = vunpack.c.l.b16 %v5189
      %v5306 = vunpack.c.l.b16 %v5192
      %v5307 = vunpack.c.l.b16 %v5196
      %v5308 = vunpack.c.l.b16 %v5199
      %v5309 = vunpack.c.l.b16 %v5203
      %v5310 = vunpack.c.l.b16 %v5206
      %v5311 = vunpack.c.l.b16 %v5210
      %v5312 = vunpack.c.l.b16 %v5213
      %v5313 = vunpack.c.l.b16 %v5217
      %v5314 = vunpack.c.l.b16 %v5220
      %v5315 = vunpack.c.l.b16 %v5224
      %v5316 = vunpack.c.l.b16 %v5227
      %v5317 = vunpack.c.l.b16 %v5231
      %v5318 = vunpack.c.l.b16 %v5234
      %v5319 = vunpack.c.l.b16 %v5238
      %v5320 = vunpack.c.l.b16 %v5241
      %v5321 = vunpack.c.l.b16 %v5245
      %v5322 = vunpack.c.l.b16 %v5248
      %v5323 = vunpack.c.l.b16 %v5252
      %v5324 = vunpack.c.l.b16 %v5255
      %v5325 = vunpack.c.l.b16 %v5259
      %v5326 = vunpack.c.l.b16 %v5262
      %v5327 = vunpack.c.l.b16 %v5266
      %v5328 = vunpack.c.l.b16 %v5269
      %v5329 = vunpack.c.l.b16 %v5273
      %v5330 = vunpack.c.l.b16 %v5276
      %v5331 = vunpack.c.l.b16 %v5280
      %v5332 = vunpack.c.l.b16 %v5283
      %v5333 = vpack.c.b16 %v5302, %v5301
      %v5334 = vpack.c.b16 %v5304, %v5303
      %v5335 = vpack.c.b16 %v5306, %v5305
      %v5336 = vpack.c.b16 %v5308, %v5307
      %v5337 = vpack.c.b16 %v5310, %v5309
      %v5338 = vpack.c.b16 %v5312, %v5311
      %v5339 = vpack.c.b16 %v5314, %v5313
      %v5340 = vpack.c.b16 %v5316, %v5315
      %v5341 = vpack.c.b16 %v5318, %v5317
      %v5342 = vpack.c.b16 %v5320, %v5319
      %v5343 = vpack.c.b16 %v5322, %v5321
      %v5344 = vpack.c.b16 %v5324, %v5323
      %v5345 = vpack.c.b16 %v5326, %v5325
      %v5346 = vpack.c.b16 %v5328, %v5327
      %v5347 = vpack.c.b16 %v5330, %v5329
      %v5348 = vpack.c.b16 %v5332, %v5331
      %v5381 = vunpack.c.l.b16 %v5285
      %v5382 = vunpack.c.l.b16 %v5286
      %v5383 = vunpack.c.l.b16 %v5287
      %v5384 = vunpack.c.l.b16 %v5288
      %v5385 = vunpack.c.l.b16 %v5289
      %v5386 = vunpack.c.l.b16 %v5290
      %v5387 = vunpack.c.l.b16 %v5291
      %v5388 = vunpack.c.l.b16 %v5292
      %v5389 = vunpack.c.l.b16 %v5293
      %v5390 = vunpack.c.l.b16 %v5294
      %v5391 = vunpack.c.l.b16 %v5295
      %v5392 = vunpack.c.l.b16 %v5296
      %v5393 = vunpack.c.l.b16 %v5297
      %v5394 = vunpack.c.l.b16 %v5298
      %v5395 = vunpack.c.l.b16 %v5299
      %v5396 = vunpack.c.l.b16 %v5300
      %v5397 = vpack.c.b16 %v5382, %v5381
      %v5398 = vpack.c.b16 %v5384, %v5383
      %v5399 = vpack.c.b16 %v5386, %v5385
      %v5400 = vpack.c.b16 %v5388, %v5387
      %v5401 = vpack.c.b16 %v5390, %v5389
      %v5402 = vpack.c.b16 %v5392, %v5391
      %v5403 = vpack.c.b16 %v5394, %v5393
      %v5404 = vpack.c.b16 %v5396, %v5395
      %5413 = vmatprep.subr.bf16.mxu0 0
      %5414 = vmatpush1.bf16.msra.mxu0 %v5397
      %5415 = vmatprep.subr.bf16.mxu0 0
      %5416 = vmatpush1.bf16.msra.mxu0 %v5398
      %5417 = vmatprep.subr.bf16.mxu0 0
      %5418 = vmatpush1.bf16.msra.mxu0 %v5399
      %5419 = vmatprep.subr.bf16.mxu0 0
      %5420 = vmatpush1.bf16.msra.mxu0 %v5400
      %5421 = vmatprep.subr.bf16.mxu0 0
      %5422 = vmatpush1.bf16.msra.mxu0 %v5401
      %5423 = vmatprep.subr.bf16.mxu0 0
      %5424 = vmatpush1.bf16.msra.mxu0 %v5402
      %5425 = vmatprep.subr.bf16.mxu0 0
      %5426 = vmatpush1.bf16.msra.mxu0 %v5403
      %5427 = vmatprep.subr.bf16.mxu0 0
      %5428 = vmatpush1.bf16.msra.mxu0 %v5404
      %5429 = vmatprep.subr.bf16.mxu0 0
      %5430 = vmatpush1.bf16.msra.mxu0 0
      %5431 = vmatprep.subr.bf16.mxu0 0
      %5432 = vmatpush1.bf16.msra.mxu0 0
      %5433 = vmatprep.subr.bf16.mxu0 0
      %5434 = vmatpush1.bf16.msra.mxu0 0
      %5435 = vmatprep.subr.bf16.mxu0 0
      %5436 = vmatpush1.bf16.msra.mxu0 0
      %5437 = vmatprep.subr.bf16.mxu0 0
      %5438 = vmatpush1.bf16.msra.mxu0 0
      %5439 = vmatprep.subr.bf16.mxu0 0
      %5440 = vmatpush1.bf16.msra.mxu0 0
      %5441 = vmatprep.subr.bf16.mxu0 0
      %5442 = vmatpush1.bf16.msra.mxu0 0
      %5443 = vmatprep.subr.bf16.mxu0 0
      %5444 = vmatpush1.bf16.msra.mxu0 0
      %5445 = vmatprep.mubr.bf16.mxu0 0
      %5446 = vmatmul.mubr.bf16.gmra.mrb[0].mxu0 %v5333
      %v5447 = vpop.f32.mrb[0].mxu0
      %v5448 = vadd.f32 0.0, %v5447
      %v5449 = vpop.f32.mrb[0].mxu0
      %v5450 = vpop.f32.mrb[0].mxu0
      %v5451 = vadd.f32 0.0, %v5450
      %v5452 = vpop.f32.mrb[0].mxu0
      %5453 = vmatprep.mubr.bf16.mxu0 0
      %5454 = vmatmul.mubr.bf16.gmra.mrb[0].mxu0 %v5334
      %v5455 = vpop.f32.mrb[0].mxu0
      %v5456 = vadd.f32 0.0, %v5455
      %v5457 = vpop.f32.mrb[0].mxu0
      %v5458 = vpop.f32.mrb[0].mxu0
      %v5459 = vadd.f32 0.0, %v5458
      %v5460 = vpop.f32.mrb[0].mxu0
      %5461 = vmatprep.mubr.bf16.mxu0 0
      %5462 = vmatmul.mubr.bf16.gmra.mrb[0].mxu0 %v5335
      %v5463 = vpop.f32.mrb[0].mxu0
      %v5464 = vadd.f32 0.0, %v5463
      %v5465 = vpop.f32.mrb[0].mxu0
      %v5466 = vpop.f32.mrb[0].mxu0
      %v5467 = vadd.f32 0.0, %v5466
      %v5468 = vpop.f32.mrb[0].mxu0
      %5469 = vmatprep.mubr.bf16.mxu0 0
      %5470 = vmatmul.mubr.bf16.gmra.mrb[0].mxu0 %v5336
      %v5471 = vpop.f32.mrb[0].mxu0
      %v5472 = vadd.f32 0.0, %v5471
      %v5473 = vpop.f32.mrb[0].mxu0
      %v5474 = vpop.f32.mrb[0].mxu0
      %v5475 = vadd.f32 0.0, %v5474
      %v5476 = vpop.f32.mrb[0].mxu0
      %5477 = vmatprep.mubr.bf16.mxu0 0
      %5478 = vmatmul.mubr.bf16.gmra.mrb[0].mxu0 %v5337
      %v5479 = vpop.f32.mrb[0].mxu0
      %v5480 = vadd.f32 0.0, %v5479
      %v5481 = vpop.f32.mrb[0].mxu0
      %v5482 = vpop.f32.mrb[0].mxu0
      %v5483 = vadd.f32 0.0, %v5482
      %v5484 = vpop.f32.mrb[0].mxu0
      %5485 = vmatprep.mubr.bf16.mxu0 0
      %5486 = vmatmul.mubr.bf16.gmra.mrb[0].mxu0 %v5338
      %v5487 = vpop.f32.mrb[0].mxu0
      %v5488 = vadd.f32 0.0, %v5487
      %v5489 = vpop.f32.mrb[0].mxu0
      %v5490 = vpop.f32.mrb[0].mxu0
      %v5491 = vadd.f32 0.0, %v5490
      %v5492 = vpop.f32.mrb[0].mxu0
      %5493 = vmatprep.mubr.bf16.mxu0 0
      %5494 = vmatmul.mubr.bf16.gmra.mrb[0].mxu0 %v5339
      %v5495 = vpop.f32.mrb[0].mxu0
      %v5496 = vadd.f32 0.0, %v5495
      %v5497 = vpop.f32.mrb[0].mxu0
      %v5498 = vpop.f32.mrb[0].mxu0
      %v5499 = vadd.f32 0.0, %v5498
      %v5500 = vpop.f32.mrb[0].mxu0
      %5501 = vmatprep.mubr.bf16.mxu0 0
      %5502 = vmatmul.mubr.bf16.gmra.mrb[0].mxu0 %v5340
      %v5503 = vpop.f32.mrb[0].mxu0
      %v5504 = vadd.f32 0.0, %v5503
      %v5505 = vpop.f32.mrb[0].mxu0
      %v5506 = vpop.f32.mrb[0].mxu0
      %v5507 = vadd.f32 0.0, %v5506
      %v5508 = vpop.f32.mrb[0].mxu0
      %5509 = vmatprep.mubr.bf16.mxu0 0
      %5510 = vmatmul.mubr.bf16.gmra.mrb[0].mxu0 %v5341
      %v5511 = vpop.f32.mrb[0].mxu0
      %v5512 = vadd.f32 0.0, %v5511
      %v5513 = vpop.f32.mrb[0].mxu0
      %v5514 = vpop.f32.mrb[0].mxu0
      %v5515 = vadd.f32 0.0, %v5514
      %v5516 = vpop.f32.mrb[0].mxu0
      %5517 = vmatprep.mubr.bf16.mxu0 0
      %5518 = vmatmul.mubr.bf16.gmra.mrb[0].mxu0 %v5342
      %v5519 = vpop.f32.mrb[0].mxu0
      %v5520 = vadd.f32 0.0, %v5519
      %v5521 = vpop.f32.mrb[0].mxu0
      %v5522 = vpop.f32.mrb[0].mxu0
      %v5523 = vadd.f32 0.0, %v5522
      %v5524 = vpop.f32.mrb[0].mxu0
      %5525 = vmatprep.mubr.bf16.mxu0 0
      %5526 = vmatmul.mubr.bf16.gmra.mrb[0].mxu0 %v5343
      %v5527 = vpop.f32.mrb[0].mxu0
      %v5528 = vadd.f32 0.0, %v5527
      %v5529 = vpop.f32.mrb[0].mxu0
      %v5530 = vpop.f32.mrb[0].mxu0
      %v5531 = vadd.f32 0.0, %v5530
      %v5532 = vpop.f32.mrb[0].mxu0
      %5533 = vmatprep.mubr.bf16.mxu0 0
      %5534 = vmatmul.mubr.bf16.gmra.mrb[0].mxu0 %v5344
      %v5535 = vpop.f32.mrb[0].mxu0
      %v5536 = vadd.f32 0.0, %v5535
      %v5537 = vpop.f32.mrb[0].mxu0
      %v5538 = vpop.f32.mrb[0].mxu0
      %v5539 = vadd.f32 0.0, %v5538
      %v5540 = vpop.f32.mrb[0].mxu0
      %5541 = vmatprep.mubr.bf16.mxu0 0
      %5542 = vmatmul.mubr.bf16.gmra.mrb[0].mxu0 %v5345
      %v5543 = vpop.f32.mrb[0].mxu0
      %v5544 = vadd.f32 0.0, %v5543
      %v5545 = vpop.f32.mrb[0].mxu0
      %v5546 = vpop.f32.mrb[0].mxu0
      %v5547 = vadd.f32 0.0, %v5546
      %v5548 = vpop.f32.mrb[0].mxu0
      %5549 = vmatprep.mubr.bf16.mxu0 0
      %5550 = vmatmul.mubr.bf16.gmra.mrb[0].mxu0 %v5346
      %v5551 = vpop.f32.mrb[0].mxu0
      %v5552 = vadd.f32 0.0, %v5551
      %v5553 = vpop.f32.mrb[0].mxu0
      %v5554 = vpop.f32.mrb[0].mxu0
      %v5555 = vadd.f32 0.0, %v5554
      %v5556 = vpop.f32.mrb[0].mxu0
      %5557 = vmatprep.mubr.bf16.mxu0 0
      %5558 = vmatmul.mubr.bf16.gmra.mrb[0].mxu0 %v5347
      %v5559 = vpop.f32.mrb[0].mxu0
      %v5560 = vadd.f32 0.0, %v5559
      %v5561 = vpop.f32.mrb[0].mxu0
      %v5562 = vpop.f32.mrb[0].mxu0
      %v5563 = vadd.f32 0.0, %v5562
      %v5564 = vpop.f32.mrb[0].mxu0
      %5565 = vmatprep.mubr.bf16.mxu0 0
      %5566 = vmatmul.mubr.bf16.gmra.mrb[0].mxu0 %v5348
      %v5567 = vpop.f32.mrb[0].mxu0
      %v5568 = vadd.f32 0.0, %v5567
      %v5569 = vpop.f32.mrb[0].mxu0
      %v5570 = vpop.f32.mrb[0].mxu0
      %v5571 = vadd.f32 0.0, %v5570
      %v5572 = vpop.f32.mrb[0].mxu0
      %5573 = vdwg.mxu0
      %v5574 = vadd.f32 %v5076, %v5448
      %v5575 = vadd.f32 %v5077, %v5451
      %v5576 = vadd.f32 %v5078, %v5456
      %v5577 = vadd.f32 %v5079, %v5459
      %v5578 = vadd.f32 %v5080, %v5464
      %v5579 = vadd.f32 %v5081, %v5467
      %v5580 = vadd.f32 %v5082, %v5472
      %v5581 = vadd.f32 %v5083, %v5475
      %v5582 = vadd.f32 %v5084, %v5480
      %v5583 = vadd.f32 %v5085, %v5483
      %v5584 = vadd.f32 %v5086, %v5488
      %v5585 = vadd.f32 %v5087, %v5491
      %v5586 = vadd.f32 %v5088, %v5496
      %v5587 = vadd.f32 %v5089, %v5499
      %v5588 = vadd.f32 %v5090, %v5504
      %v5589 = vadd.f32 %v5091, %v5507
      %v5590 = vadd.f32 %v5092, %v5512
      %v5591 = vadd.f32 %v5093, %v5515
      %v5592 = vadd.f32 %v5094, %v5520
      %v5593 = vadd.f32 %v5095, %v5523
      %v5594 = vadd.f32 %v5096, %v5528
      %v5595 = vadd.f32 %v5097, %v5531
      %v5596 = vadd.f32 %v5098, %v5536
      %v5597 = vadd.f32 %v5099, %v5539
      %v5598 = vadd.f32 %v5100, %v5544
      %v5599 = vadd.f32 %v5101, %v5547
      %v5600 = vadd.f32 %v5102, %v5552
      %v5601 = vadd.f32 %v5103, %v5555
      %v5602 = vadd.f32 %v5104, %v5560
      %v5603 = vadd.f32 %v5105, %v5563
      %v5604 = vadd.f32 %v5106, %v5568
      %v5605 = vadd.f32 %v5107, %v5571
      %5606 = vst [vmem:[%s168] sm:$0xff] %v5574
      %5607 = vst [vmem:[%s168 + $0x8] sm:$0xff] %v5575
      %5608 = vst [vmem:[%s168 + $0x10] sm:$0xff] %v5576
      %5609 = vst [vmem:[%s168 + $0x18] sm:$0xff] %v5577
      %5610 = vst [vmem:[%s168 + $0x20] sm:$0xff] %v5578
      %5611 = vst [vmem:[%s168 + $0x28] sm:$0xff] %v5579
      %5612 = vst [vmem:[%s168 + $0x30] sm:$0xff] %v5580
      %5613 = vst [vmem:[%s168 + $0x38] sm:$0xff] %v5581
      %5614 = vst [vmem:[%s168 + $0x40] sm:$0xff] %v5582
      %5615 = vst [vmem:[%s168 + $0x48] sm:$0xff] %v5583
      %5616 = vst [vmem:[%s168 + $0x50] sm:$0xff] %v5584
      %5617 = vst [vmem:[%s168 + $0x58] sm:$0xff] %v5585
      %5618 = vst [vmem:[%s168 + $0x60] sm:$0xff] %v5586
      %5619 = vst [vmem:[%s168 + $0x68] sm:$0xff] %v5587
      %5620 = vst [vmem:[%s168 + $0x70] sm:$0xff] %v5588
      %5621 = vst [vmem:[%s168 + $0x78] sm:$0xff] %v5589
      %5622 = vst [vmem:[%s168 + $0x80] sm:$0xff] %v5590
      %5623 = vst [vmem:[%s168 + $0x88] sm:$0xff] %v5591
      %5624 = vst [vmem:[%s168 + $0x90] sm:$0xff] %v5592
      %5625 = vst [vmem:[%s168 + $0x98] sm:$0xff] %v5593
      %5626 = vst [vmem:[%s168 + $0xa0] sm:$0xff] %v5594
      %5627 = vst [vmem:[%s168 + $0xa8] sm:$0xff] %v5595
      %5628 = vst [vmem:[%s168 + $0xb0] sm:$0xff] %v5596
      %5629 = vst [vmem:[%s168 + $0xb8] sm:$0xff] %v5597
      %5630 = vst [vmem:[%s168 + $0xc0] sm:$0xff] %v5598
      %5631 = vst [vmem:[%s168 + $0xc8] sm:$0xff] %v5599
      %5632 = vst [vmem:[%s168 + $0xd0] sm:$0xff] %v5600
      %5633 = vst [vmem:[%s168 + $0xd8] sm:$0xff] %v5601
      %5634 = vst [vmem:[%s168 + $0xe0] sm:$0xff] %v5602
      %5635 = vst [vmem:[%s168 + $0xe8] sm:$0xff] %v5603
      %5636 = vst [vmem:[%s168 + $0xf0] sm:$0xff] %v5604
      %5637 = vst [vmem:[%s168 + $0xf8] sm:$0xff] %v5605
      %v5638 = vld [vmem:[%s3] sm:$0x1]
      %v5639 = vadd.f32 %v5574, %v5575
      %v5640 = vadd.f32 %v5639, %v5576
      %v5641 = vadd.f32 %v5640, %v5577
      %v5642 = vadd.f32 %v5641, %v5578
      %v5643 = vadd.f32 %v5642, %v5579
      %v5644 = vadd.f32 %v5643, %v5580
      %v5645 = vadd.f32 %v5644, %v5581
      %v5646 = vadd.f32 %v5645, %v5582
      %v5647 = vadd.f32 %v5646, %v5583
      %v5648 = vadd.f32 %v5647, %v5584
      %v5649 = vadd.f32 %v5648, %v5585
      %v5650 = vadd.f32 %v5649, %v5586
      %v5651 = vadd.f32 %v5650, %v5587
      %v5652 = vadd.f32 %v5651, %v5588
      %v5653 = vadd.f32 %v5652, %v5589
      %v5654 = vadd.f32 %v5653, %v5590
      %v5655 = vadd.f32 %v5654, %v5591
      %v5656 = vadd.f32 %v5655, %v5592
      %v5657 = vadd.f32 %v5656, %v5593
      %v5658 = vadd.f32 %v5657, %v5594
      %v5659 = vadd.f32 %v5658, %v5595
      %v5660 = vadd.f32 %v5659, %v5596
      %v5661 = vadd.f32 %v5660, %v5597
      %v5662 = vadd.f32 %v5661, %v5598
      %v5663 = vadd.f32 %v5662, %v5599
      %v5664 = vadd.f32 %v5663, %v5600
      %v5665 = vadd.f32 %v5664, %v5601
      %v5666 = vadd.f32 %v5665, %v5602
      %v5667 = vadd.f32 %v5666, %v5603
      %v5668 = vadd.f32 %v5667, %v5604
      %v5669 = vadd.f32 %v5668, %v5605
      %v5670 = vrot.slane %v5669, 4
      %v5671 = vadd.f32 %v5669, %v5670
      %v5672 = vrot.slane %v5671, 2
      %v5673 = vadd.f32 %v5671, %v5672
      %v5674 = vrot.slane %v5673, 1
      %v5675 = vadd.f32 %v5673, %v5674
      %v5676 = vadd.f32 %v5638, %v5675
      %5677 = vst [vmem:[%s3] sm:$0x1] %v5676
      %v5678 = vld [vmem:[%s3 + $0x1] sm:$0x1]
      %v5679 = vmul.f32 %v5574, %v5574
      %v5680 = vmul.f32 %v5575, %v5575
      %v5681 = vmul.f32 %v5576, %v5576
      %v5682 = vmul.f32 %v5577, %v5577
      %v5683 = vmul.f32 %v5578, %v5578
      %v5684 = vmul.f32 %v5579, %v5579
      %v5685 = vmul.f32 %v5580, %v5580
      %v5686 = vmul.f32 %v5581, %v5581
      %v5687 = vmul.f32 %v5582, %v5582
      %v5688 = vmul.f32 %v5583, %v5583
      %v5689 = vmul.f32 %v5584, %v5584
      %v5690 = vmul.f32 %v5585, %v5585
      %v5691 = vmul.f32 %v5586, %v5586
      %v5692 = vmul.f32 %v5587, %v5587
      %v5693 = vmul.f32 %v5588, %v5588
      %v5694 = vmul.f32 %v5589, %v5589
      %v5695 = vmul.f32 %v5590, %v5590
      %v5696 = vmul.f32 %v5591, %v5591
      %v5697 = vmul.f32 %v5592, %v5592
      %v5698 = vmul.f32 %v5593, %v5593
      %v5699 = vmul.f32 %v5594, %v5594
      %v5700 = vmul.f32 %v5595, %v5595
      %v5701 = vmul.f32 %v5596, %v5596
      %v5702 = vmul.f32 %v5597, %v5597
      %v5703 = vmul.f32 %v5598, %v5598
      %v5704 = vmul.f32 %v5599, %v5599
      %v5705 = vmul.f32 %v5600, %v5600
      %v5706 = vmul.f32 %v5601, %v5601
      %v5707 = vmul.f32 %v5602, %v5602
      %v5708 = vmul.f32 %v5603, %v5603
      %v5709 = vmul.f32 %v5604, %v5604
      %v5710 = vmul.f32 %v5605, %v5605
      %v5711 = vadd.f32 %v5679, %v5680
      %v5712 = vadd.f32 %v5711, %v5681
      %v5713 = vadd.f32 %v5712, %v5682
      %v5714 = vadd.f32 %v5713, %v5683
      %v5715 = vadd.f32 %v5714, %v5684
      %v5716 = vadd.f32 %v5715, %v5685
      %v5717 = vadd.f32 %v5716, %v5686
      %v5718 = vadd.f32 %v5717, %v5687
      %v5719 = vadd.f32 %v5718, %v5688
      %v5720 = vadd.f32 %v5719, %v5689
      %v5721 = vadd.f32 %v5720, %v5690
      %v5722 = vadd.f32 %v5721, %v5691
      %v5723 = vadd.f32 %v5722, %v5692
      %v5724 = vadd.f32 %v5723, %v5693
      %v5725 = vadd.f32 %v5724, %v5694
      %v5726 = vadd.f32 %v5725, %v5695
      %v5727 = vadd.f32 %v5726, %v5696
      %v5728 = vadd.f32 %v5727, %v5697
      %v5729 = vadd.f32 %v5728, %v5698
      %v5730 = vadd.f32 %v5729, %v5699
      %v5731 = vadd.f32 %v5730, %v5700
      %v5732 = vadd.f32 %v5731, %v5701
      %v5733 = vadd.f32 %v5732, %v5702
      %v5734 = vadd.f32 %v5733, %v5703
      %v5735 = vadd.f32 %v5734, %v5704
      %v5736 = vadd.f32 %v5735, %v5705
      %v5737 = vadd.f32 %v5736, %v5706
      %v5738 = vadd.f32 %v5737, %v5707
      %v5739 = vadd.f32 %v5738, %v5708
      %v5740 = vadd.f32 %v5739, %v5709
      %v5741 = vadd.f32 %v5740, %v5710
      %v5742 = vrot.slane %v5741, 4
      %v5743 = vadd.f32 %v5741, %v5742
      %v5744 = vrot.slane %v5743, 2
      %v5745 = vadd.f32 %v5743, %v5744
      %v5746 = vrot.slane %v5745, 1
      %v5747 = vadd.f32 %v5745, %v5746
      %v5748 = vadd.f32 %v5678, %v5747
      %5749 = vst [vmem:[%s3 + $0x1] sm:$0x1] %v5748
      %p5750 = scmp.lt.s32.totalorder %s15, 1
      %s5751 = scalar_select %p5750, %s15, 1
      %s5752 = smul.addr %s5751, 32
      %s5753 = smul.addr %s5752, 8
      %s5754 = scalar_lea.vmem %s2, %s5753
      // Predicated region
      $region33: #{basic_block_forward.3} parent=27 // pred_check
        %p5755 = pneg %p80
      $region34: #{basic_block_forward.3} parent=27 // pred_check_branch
        %5757 = sbr.rel (%p5755) target = $region36
      $region35: #{basic_block_forward.3} parent=27 // pred_region
        _
      $region36: #{basic_block_forward.3} parent=27 // pred_fallthru
        _
      // Predicated region
      $region37: #{basic_block_forward.3} parent=27 // pred_check
        %p5758 = pneg %p101
      $region38: #{basic_block_forward.3} parent=27 // pred_check_branch
        %5760 = sbr.rel (%p5758) target = $region40
      $region39: #{basic_block_forward.3} parent=27 // pred_region
        _
      $region40: #{basic_block_forward.3} parent=27 // pred_fallthru
        _
      // Predicated region
      $region41: #{basic_block_forward.3} parent=27 // pred_check
        %p5761 = pneg %p101
      $region42: #{basic_block_forward.3} parent=27 // pred_check_branch
        %5763 = sbr.rel (%p5761) target = $region44
      $region43: #{basic_block_forward.3} parent=27 // pred_region
        _
      $region44: #{basic_block_forward.3} parent=27 // pred_fallthru
        _
    $region28: #{basic_block_forward.3} parent=5 // pred_fallthru
      _
    %p5764 = scmp.le.s32.totalorder 2, %s10
    // Predicated region
    $region45: #{basic_block_forward.3} parent=5 // pred_check
      %p5765 = pneg %p5764
    $region46: #{basic_block_forward.3} parent=5 // pred_check_branch
      %5767 = sbr.rel (%p5765) target = $region48
    $region47: #{basic_block_forward.3} parent=5 // pred_region
      %s5768 = ssub.s32 %s10, 2
      // Predicated region
      $region49: #{basic_block_forward.3} parent=47 // pred_check
        %p5769 = pneg %p86
      $region50: #{basic_block_forward.3} parent=47 // pred_check_branch
        %5771 = sbr.rel (%p5769) target = $region52
      $region51: #{basic_block_forward.3} parent=47 // pred_region
        %p5772 = scmp.lt.s32.totalorder %s16, 1
        %s5773 = scalar_select %p5772, %s16, 1
        %s5774 = smul.addr %s5773, 32
        %s5775 = smul.addr %s5774, 8
        %s5776 = scalar_lea.vmem %s2, %s5775
      $region52: #{basic_block_forward.3} parent=47 // pred_fallthru
        _
    $region48: #{basic_block_forward.3} parent=5 // pred_fallthru
      _
  $region6: #{basic_block_forward.3} parent=0 // loop_footer
    %s14 = sadd.s32 1, %s10
  $region7: #{basic_block_forward.3} parent=0 // loop_footer_branch
    %9 = sbr.rel target = $region3
  $region8: #{basic_block_forward.3} parent=0 // loop_exit
    _

// kernel: basic_block_forward.4
$region0: #{basic_block_forward.4}
  #allocation0 [shape = 'u32[]', space=smem, size = 0x4, offset = 0x4, fixed_abs, tag = 'smem constant byte address 0x4 - core index']
  #allocation1 [shape = 'u32[144,128]{1,0:T(1,128)}', space=vmem, size = 0x12000, scoped, tag = 'internal scratch']
  #allocation2 [shape = 'bf16[18,18,128]{2,1,0:T(8,128)(2,1)}', space=vmem, size = 0x1b000, scoped, tag = 'scratch operand']
  %s0 = inlined_call_operand.vmem [shape: f32[2,16,16,128], index: 0, kind: input, shape index: {}]
  %s1 = inlined_call_operand.vmem [shape: f32[2,128], index: 1, kind: input, shape index: {}]
  %s2 = inlined_call_operand.vmem [shape: bf16[9,128,128], index: 2, kind: input, shape index: {}]
  %s3 = inlined_call_operand.vmem [shape: f32[2,16,16,128], index: 3, kind: output, shape index: {0}]
  %s4 = inlined_call_operand.vmem [shape: f32[2,128], index: 4, kind: output, shape index: {1}]
  %5 = xla_tuple %s3, %s4
  %s6 = sld [smem:[#allocation0]]
  $region57: #{basic_block_forward.4} parent=0
    _
  %s8 = ssub.s32 1, %s6
  %s9 = scalar_select 0, %s8, %s6
  loop: start=0, step=1, limit=4
  $region2: #{basic_block_forward.4} parent=0 // loop_pre_header
    _
  $region3: #{basic_block_forward.4} parent=0 // loop_header
    %s11 = sphi 0, %s15
    %p12 = scmp.ge.s32.totalorder %s11, 4
    %s21 = sphi 0, %s23
    %s24 = sphi 0, %s21
    %s25 = sphi 0, %s24
    %s41 = sphi 0, %s25
    %s45 = sphi 0, %s45
    %s47 = sphi 0, %s45
    %s48 = sphi 0, %s47
    %s62 = sphi 0, %s48
    %s66 = sphi 0, %s66
    %s68 = sphi 0, %s66
    %s69 = sphi 0, %s68
    %s83 = sphi 0, %s69
    %s89 = sphi 0, %s91
    %s92 = sphi 0, %s89
    %s93 = sphi 0, %s92
    %s109 = sphi 0, %s93
    %s113 = sphi 0, %s113
    %s115 = sphi 0, %s113
    %s116 = sphi 0, %s115
    %s130 = sphi 0, %s116
  $region4: #{basic_block_forward.4} parent=0 // loop_header_branch
    %14 = sbr.rel (%p12) target = $region8
  $region5: #{basic_block_forward.4} parent=0 // loop_body
    %s16 = ssub.s32 %s11, 1
    %s17 = ssub.s32 %s11, 2
    %s18 = sadd.s32 %s11, 1
    %s19 = ssub.s32 %s11, %s18
    %p20 = scmp.eq.s32.totalorder %s19, 0
    %s22 = sadd.s32 %s21, 1
    %s23 = scalar_select %p20, %s21, %s22
    %p26 = pneg %p20
    %p27 = scmp.eq.s32.totalorder %s11, 1
    %p28 = por %p26, %p27
    %p29 = scmp.ne.s32.totalorder %s21, %s24
    %p30 = scmp.eq.s32.totalorder %s11, 0
    %p31 = por %p29, %p30
    %p32 = scmp.ne.s32.totalorder %s21, %s24
    %p33 = scmp.eq.s32.totalorder %s16, 1
    %p34 = por %p32, %p33
    %p35 = scmp.ne.s32.totalorder %s24, %s25
    %p36 = scmp.eq.s32.totalorder %s16, 0
    %p37 = por %p35, %p36
    %p38 = scmp.ne.s32.totalorder %s24, %s25
    %p39 = scmp.eq.s32.totalorder %s17, 1
    %p40 = por %p38, %p39
    %p42 = scmp.ne.s32.totalorder %s25, %s41
    %p43 = scmp.eq.s32.totalorder %s17, 0
    %p44 = por %p42, %p43
    %s46 = sadd.s32 %s45, 1
    %p49 = scmp.eq.s32.totalorder %s11, 1
    %p50 = scmp.ne.s32.totalorder %s45, %s47
    %p51 = scmp.eq.s32.totalorder %s11, 0
    %p52 = por %p50, %p51
    %p53 = scmp.ne.s32.totalorder %s45, %s47
    %p54 = scmp.eq.s32.totalorder %s16, 1
    %p55 = por %p53, %p54
    %p56 = scmp.ne.s32.totalorder %s47, %s48
    %p57 = scmp.eq.s32.totalorder %s16, 0
    %p58 = por %p56, %p57
    %p59 = scmp.ne.s32.totalorder %s47, %s48
    %p60 = scmp.eq.s32.totalorder %s17, 1
    %p61 = por %p59, %p60
    %p63 = scmp.ne.s32.totalorder %s48, %s62
    %p64 = scmp.eq.s32.totalorder %s17, 0
    %p65 = por %p63, %p64
    %s67 = sadd.s32 %s66, 1
    %p70 = scmp.eq.s32.totalorder %s11, 1
    %p71 = scmp.ne.s32.totalorder %s66, %s68
    %p72 = scmp.eq.s32.totalorder %s11, 0
    %p73 = por %p71, %p72
    %p74 = scmp.ne.s32.totalorder %s66, %s68
    %p75 = scmp.eq.s32.totalorder %s16, 1
    %p76 = por %p74, %p75
    %p77 = scmp.ne.s32.totalorder %s68, %s69
    %p78 = scmp.eq.s32.totalorder %s16, 0
    %p79 = por %p77, %p78
    %p80 = scmp.ne.s32.totalorder %s68, %s69
    %p81 = scmp.eq.s32.totalorder %s17, 1
    %p82 = por %p80, %p81
    %p84 = scmp.ne.s32.totalorder %s69, %s83
    %p85 = scmp.eq.s32.totalorder %s17, 0
    %p86 = por %p84, %p85
    %s87 = ssub.s32 %s11, %s18
    %p88 = scmp.eq.s32.totalorder %s87, 0
    %s90 = sadd.s32 %s89, 1
    %s91 = scalar_select %p88, %s89, %s90
    %p94 = pneg %p88
    %p95 = scmp.eq.s32.totalorder %s11, 1
    %p96 = por %p94, %p95
    %p97 = scmp.ne.s32.totalorder %s89, %s92
    %p98 = scmp.eq.s32.totalorder %s11, 0
    %p99 = por %p97, %p98
    %p100 = scmp.ne.s32.totalorder %s89, %s92
    %p101 = scmp.eq.s32.totalorder %s16, 1
    %p102 = por %p100, %p101
    %p103 = scmp.ne.s32.totalorder %s92, %s93
    %p104 = scmp.eq.s32.totalorder %s16, 0
    %p105 = por %p103, %p104
    %p106 = scmp.ne.s32.totalorder %s92, %s93
    %p107 = scmp.eq.s32.totalorder %s17, 1
    %p108 = por %p106, %p107
    %p110 = scmp.ne.s32.totalorder %s93, %s109
    %p111 = scmp.eq.s32.totalorder %s17, 0
    %p112 = por %p110, %p111
    %s114 = sadd.s32 %s113, 1
    %p117 = scmp.eq.s32.totalorder %s11, 1
    %p118 = scmp.ne.s32.totalorder %s113, %s115
    %p119 = scmp.eq.s32.totalorder %s11, 0
    %p120 = por %p118, %p119
    %p121 = scmp.ne.s32.totalorder %s113, %s115
    %p122 = scmp.eq.s32.totalorder %s16, 1
    %p123 = por %p121, %p122
    %p124 = scmp.ne.s32.totalorder %s115, %s116
    %p125 = scmp.eq.s32.totalorder %s16, 0
    %p126 = por %p124, %p125
    %p127 = scmp.ne.s32.totalorder %s115, %s116
    %p128 = scmp.eq.s32.totalorder %s17, 1
    %p129 = por %p127, %p128
    %p131 = scmp.ne.s32.totalorder %s116, %s130
    %p132 = scmp.eq.s32.totalorder %s17, 0
    %p133 = por %p131, %p132
    %p134 = scmp.le.s32.totalorder 1, %s11
    %p135 = scmp.lt.s32.totalorder %s11, 3
    %p136 = pnand %p134, %p135
    %p137 = pneg %p136
    // Predicated region
    $region9: #{basic_block_forward.4} parent=5 // pred_check
      _
    $region10: #{basic_block_forward.4} parent=5 // pred_check_branch
      %139 = sbr.rel (%p136) target = $region12
    $region11: #{basic_block_forward.4} parent=5 // pred_region
      %s140 = ssub.s32 %s11, 1
      // Predicated region
      $region13: #{basic_block_forward.4} parent=11 // pred_check
        %p141 = pneg %p58
      $region14: #{basic_block_forward.4} parent=11 // pred_check_branch
        %143 = sbr.rel (%p141) target = $region16
      $region15: #{basic_block_forward.4} parent=11 // pred_region
        _
      $region16: #{basic_block_forward.4} parent=11 // pred_fallthru
        _
      // Predicated region
      $region17: #{basic_block_forward.4} parent=11 // pred_check
        %p144 = pneg %p79
      $region18: #{basic_block_forward.4} parent=11 // pred_check_branch
        %146 = sbr.rel (%p144) target = $region20
      $region19: #{basic_block_forward.4} parent=11 // pred_region
        _
      $region20: #{basic_block_forward.4} parent=11 // pred_fallthru
        _
    $region12: #{basic_block_forward.4} parent=5 // pred_fallthru
      _
    %p147 = scmp.lt.s32.totalorder %s11, 2
    // Predicated region
    $region21: #{basic_block_forward.4} parent=5 // pred_check
      %p148 = pneg %p147
    $region22: #{basic_block_forward.4} parent=5 // pred_check_branch
      %150 = sbr.rel (%p148) target = $region24
    $region23: #{basic_block_forward.4} parent=5 // pred_region
      // Predicated region
      $region25: #{basic_block_forward.4} parent=23 // pred_check
        %p151 = pneg %p31
      $region26: #{basic_block_forward.4} parent=23 // pred_check_branch
        %153 = sbr.rel (%p151) target = $region28
      $region27: #{basic_block_forward.4} parent=23 // pred_region
        %p154 = scmp.lt.s32.totalorder %s11, 1
        %s155 = scalar_select %p154, %s11, 1
        %s156 = smul.addr %s155, 32
        %s157 = smul.addr %s156, 8
        %s158 = scalar_lea.vmem %s0, %s157
      $region28: #{basic_block_forward.4} parent=23 // pred_fallthru
        _
    $region24: #{basic_block_forward.4} parent=5 // pred_fallthru
      _
    %p159 = scmp.le.s32.totalorder 1, %s11
    %p160 = scmp.lt.s32.totalorder %s11, 3
    %p161 = pnand %p159, %p160
    %p162 = pneg %p161
    // Predicated region
    $region29: #{basic_block_forward.4} parent=5 // pred_check
      _
    $region30: #{basic_block_forward.4} parent=5 // pred_check_branch
      %164 = sbr.rel (%p161) target = $region32
    $region31: #{basic_block_forward.4} parent=5 // pred_region
      %s165 = ssub.s32 %s11, 1
      %p166 = scmp.lt.s32.totalorder %s16, 1
      %s167 = scalar_select %p166, %s16, 1
      %s168 = smul.addr %s167, 32
      %s169 = smul.addr %s168, 8
      %s170 = scalar_lea.vmem %s0, %s169
      %p171 = pneg %p37
      %p172 = pneg %p34
      %p173 = pneg %p58
      %p174 = pneg %p55
      %p175 = pneg %p79
      %p176 = pneg %p76
      %p177 = pneg %p105
      %p178 = pneg %p102
      %p179 = scmp.lt.s32.totalorder %s16, 1
      %s180 = scalar_select %p179, %s16, 1
      %s181 = smul.addr %s180, 32
      %s182 = smul.addr %s181, 8
      %s183 = scalar_lea.vmem %s3, %s182
      %p184 = pneg %p126
      %p185 = pneg %p123
      %p186 = scmp.lt.s32.totalorder %s16, 1
      %s187 = scalar_select %p186, %s16, 1
      %s188 = smul.addr %s187, 32
      %s189 = smul.addr %s188, 8
      %s190 = scalar_lea.vmem %s0, %s189
      %p191 = scmp.lt.s32.totalorder %s16, 1
      %s192 = scalar_select %p191, %s16, 1
      %s193 = smul.addr %s192, 32
      %s194 = smul.addr %s193, 8
      %s195 = scalar_lea.vmem %s3, %s194
      %p197 = scmp.eq.s32.totalorder %s16, 0
      // Predicated region
      $region33: #{basic_block_forward.4} parent=31 // pred_check
        %p198 = pneg %p197
      $region34: #{basic_block_forward.4} parent=31 // pred_check_branch
        %200 = sbr.rel (%p198) target = $region36
      $region35: #{basic_block_forward.4} parent=31 // pred_region
        %201 = vst [vmem:[%s4] sm:$0x3] 0.0
        %202 = vst [vmem:[#allocation2] sm:$0xf] 0
        %203 = vst [vmem:[#allocation2 + $0x4] sm:$0xf] 0
        %204 = vst [vmem:[#allocation2 + $0x8] sm:$0x1] 0
        %205 = vst [vmem:[#allocation2 + $0xc] sm:$0xf] 0
        %206 = vst [vmem:[#allocation2 + $0x10] sm:$0xf] 0
        %207 = vst [vmem:[#allocation2 + $0x14] sm:$0x1] 0
        %208 = vst [vmem:[#allocation2 + $0x18] sm:$0xf] 0
        %209 = vst [vmem:[#allocation2 + $0x1c] sm:$0xf] 0
        %210 = vst [vmem:[#allocation2 + $0x20] sm:$0x1] 0
        %211 = vst [vmem:[#allocation2 + $0x24] sm:$0xf] 0
        %212 = vst [vmem:[#allocation2 + $0x28] sm:$0xf] 0
        %213 = vst [vmem:[#allocation2 + $0x2c] sm:$0x1] 0
        %214 = vst [vmem:[#allocation2 + $0x30] sm:$0xf] 0
        %215 = vst [vmem:[#allocation2 + $0x34] sm:$0xf] 0
        %216 = vst [vmem:[#allocation2 + $0x38] sm:$0x1] 0
        %217 = vst [vmem:[#allocation2 + $0x3c] sm:$0xf] 0
        %218 = vst [vmem:[#allocation2 + $0x40] sm:$0xf] 0
        %219 = vst [vmem:[#allocation2 + $0x44] sm:$0x1] 0
        %220 = vst [vmem:[#allocation2 + $0x48] sm:$0xf] 0
        %221 = vst [vmem:[#allocation2 + $0x4c] sm:$0xf] 0
        %222 = vst [vmem:[#allocation2 + $0x50] sm:$0x1] 0
        %223 = vst [vmem:[#allocation2 + $0x54] sm:$0xf] 0
        %224 = vst [vmem:[#allocation2 + $0x58] sm:$0xf] 0
        %225 = vst [vmem:[#allocation2 + $0x5c] sm:$0x1] 0
        %226 = vst [vmem:[#allocation2 + $0x60] sm:$0xf] 0
        %227 = vst [vmem:[#allocation2 + $0x64] sm:$0xf] 0
        %228 = vst [vmem:[#allocation2 + $0x68] sm:$0x1] 0
        %229 = vst [vmem:[#allocation2 + $0x6c] sm:$0xf] 0
        %230 = vst [vmem:[#allocation2 + $0x70] sm:$0xf] 0
        %231 = vst [vmem:[#allocation2 + $0x74] sm:$0x1] 0
        %232 = vst [vmem:[#allocation2 + $0x78] sm:$0xf] 0
        %233 = vst [vmem:[#allocation2 + $0x7c] sm:$0xf] 0
        %234 = vst [vmem:[#allocation2 + $0x80] sm:$0x1] 0
        %235 = vst [vmem:[#allocation2 + $0x84] sm:$0xf] 0
        %236 = vst [vmem:[#allocation2 + $0x88] sm:$0xf] 0
        %237 = vst [vmem:[#allocation2 + $0x8c] sm:$0x1] 0
        %238 = vst [vmem:[#allocation2 + $0x90] sm:$0xf] 0
        %239 = vst [vmem:[#allocation2 + $0x94] sm:$0xf] 0
        %240 = vst [vmem:[#allocation2 + $0x98] sm:$0x1] 0
        %241 = vst [vmem:[#allocation2 + $0x9c] sm:$0xf] 0
        %242 = vst [vmem:[#allocation2 + $0xa0] sm:$0xf] 0
        %243 = vst [vmem:[#allocation2 + $0xa4] sm:$0x1] 0
        %244 = vst [vmem:[#allocation2 + $0xa8] sm:$0xf] 0
        %245 = vst [vmem:[#allocation2 + $0xac] sm:$0xf] 0
        %246 = vst [vmem:[#allocation2 + $0xb0] sm:$0x1] 0
        %247 = vst [vmem:[#allocation2 + $0xb4] sm:$0xf] 0
        %248 = vst [vmem:[#allocation2 + $0xb8] sm:$0xf] 0
        %249 = vst [vmem:[#allocation2 + $0xbc] sm:$0x1] 0
        %250 = vst [vmem:[#allocation2 + $0xc0] sm:$0xf] 0
        %251 = vst [vmem:[#allocation2 + $0xc4] sm:$0xf] 0
        %252 = vst [vmem:[#allocation2 + $0xc8] sm:$0x1] 0
        %253 = vst [vmem:[#allocation2 + $0xcc] sm:$0xf] 0
        %254 = vst [vmem:[#allocation2 + $0xd0] sm:$0xf] 0
        %255 = vst [vmem:[#allocation2 + $0xd4] sm:$0x1] 0
      $region36: #{basic_block_forward.4} parent=31 // pred_fallthru
        _
      %v256 = vld [vmem:[%s1] sm:$0x1]
      %v257 = vld [vmem:[%s1 + $0x1] sm:$0x1]
      %v258 = vld [vmem:[%s190] sm:$0xff]
      %v259 = vld [vmem:[%s190 + $0x8] sm:$0xff]
      %v260 = vld [vmem:[%s190 + $0x10] sm:$0xff]
      %v261 = vld [vmem:[%s190 + $0x18] sm:$0xff]
      %v262 = vld [vmem:[%s190 + $0x20] sm:$0xff]
      %v263 = vld [vmem:[%s190 + $0x28] sm:$0xff]
      %v264 = vld [vmem:[%s190 + $0x30] sm:$0xff]
      %v265 = vld [vmem:[%s190 + $0x38] sm:$0xff]
      %v266 = vld [vmem:[%s190 + $0x40] sm:$0xff]
      %v267 = vld [vmem:[%s190 + $0x48] sm:$0xff]
      %v268 = vld [vmem:[%s190 + $0x50] sm:$0xff]
      %v269 = vld [vmem:[%s190 + $0x58] sm:$0xff]
      %v270 = vld [vmem:[%s190 + $0x60] sm:$0xff]
      %v271 = vld [vmem:[%s190 + $0x68] sm:$0xff]
      %v272 = vld [vmem:[%s190 + $0x70] sm:$0xff]
      %v273 = vld [vmem:[%s190 + $0x78] sm:$0xff]
      %v274 = vld [vmem:[%s190 + $0x80] sm:$0xff]
      %v275 = vld [vmem:[%s190 + $0x88] sm:$0xff]
      %v276 = vld [vmem:[%s190 + $0x90] sm:$0xff]
      %v277 = vld [vmem:[%s190 + $0x98] sm:$0xff]
      %v278 = vld [vmem:[%s190 + $0xa0] sm:$0xff]
      %v279 = vld [vmem:[%s190 + $0xa8] sm:$0xff]
      %v280 = vld [vmem:[%s190 + $0xb0] sm:$0xff]
      %v281 = vld [vmem:[%s190 + $0xb8] sm:$0xff]
      %v282 = vld [vmem:[%s190 + $0xc0] sm:$0xff]
      %v283 = vld [vmem:[%s190 + $0xc8] sm:$0xff]
      %v284 = vld [vmem:[%s190 + $0xd0] sm:$0xff]
      %v285 = vld [vmem:[%s190 + $0xd8] sm:$0xff]
      %v286 = vld [vmem:[%s190 + $0xe0] sm:$0xff]
      %v287 = vld [vmem:[%s190 + $0xe8] sm:$0xff]
      %v288 = vld [vmem:[%s190 + $0xf0] sm:$0xff]
      %v289 = vld [vmem:[%s190 + $0xf8] sm:$0xff]
      %v290 = vlaneseq
      %v291 = vshrl.u32 %v290, 7
      %v292 = vsub.s32 0, %v291
      %v293 = vrot.slane %v256, %v292
      %v294 = vmul.f32 %v258, %v293
      %v295 = vmul.f32 %v259, %v293
      %v296 = vmul.f32 %v260, %v293
      %v297 = vmul.f32 %v261, %v293
      %v298 = vmul.f32 %v262, %v293
      %v299 = vmul.f32 %v263, %v293
      %v300 = vmul.f32 %v264, %v293
      %v301 = vmul.f32 %v265, %v293
      %v302 = vmul.f32 %v266, %v293
      %v303 = vmul.f32 %v267, %v293
      %v304 = vmul.f32 %v268, %v293
      %v305 = vmul.f32 %v269, %v293
      %v306 = vmul.f32 %v270, %v293
      %v307 = vmul.f32 %v271, %v293
      %v308 = vmul.f32 %v272, %v293
      %v309 = vmul.f32 %v273, %v293
      %v310 = vmul.f32 %v274, %v293
      %v311 = vmul.f32 %v275, %v293
      %v312 = vmul.f32 %v276, %v293
      %v313 = vmul.f32 %v277, %v293
      %v314 = vmul.f32 %v278, %v293
      %v315 = vmul.f32 %v279, %v293
      %v316 = vmul.f32 %v280, %v293
      %v317 = vmul.f32 %v281, %v293
      %v318 = vmul.f32 %v282, %v293
      %v319 = vmul.f32 %v283, %v293
      %v320 = vmul.f32 %v284, %v293
      %v321 = vmul.f32 %v285, %v293
      %v322 = vmul.f32 %v286, %v293
      %v323 = vmul.f32 %v287, %v293
      %v324 = vmul.f32 %v288, %v293
      %v325 = vmul.f32 %v289, %v293
      %v326 = vlaneseq
      %v327 = vshrl.u32 %v326, 7
      %v328 = vsub.s32 0, %v327
      %v329 = vrot.slane %v257, %v328
      %v330 = vadd.f32 %v294, %v329
      %v331 = vadd.f32 %v295, %v329
      %v332 = vadd.f32 %v296, %v329
      %v333 = vadd.f32 %v297, %v329
      %v334 = vadd.f32 %v298, %v329
      %v335 = vadd.f32 %v299, %v329
      %v336 = vadd.f32 %v300, %v329
      %v337 = vadd.f32 %v301, %v329
      %v338 = vadd.f32 %v302, %v329
      %v339 = vadd.f32 %v303, %v329
      %v340 = vadd.f32 %v304, %v329
      %v341 = vadd.f32 %v305, %v329
      %v342 = vadd.f32 %v306, %v329
      %v343 = vadd.f32 %v307, %v329
      %v344 = vadd.f32 %v308, %v329
      %v345 = vadd.f32 %v309, %v329
      %v346 = vadd.f32 %v310, %v329
      %v347 = vadd.f32 %v311, %v329
      %v348 = vadd.f32 %v312, %v329
      %v349 = vadd.f32 %v313, %v329
      %v350 = vadd.f32 %v314, %v329
      %v351 = vadd.f32 %v315, %v329
      %v352 = vadd.f32 %v316, %v329
      %v353 = vadd.f32 %v317, %v329
      %v354 = vadd.f32 %v318, %v329
      %v355 = vadd.f32 %v319, %v329
      %v356 = vadd.f32 %v320, %v329
      %v357 = vadd.f32 %v321, %v329
      %v358 = vadd.f32 %v322, %v329
      %v359 = vadd.f32 %v323, %v329
      %v360 = vadd.f32 %v324, %v329
      %v361 = vadd.f32 %v325, %v329
      %v362 = vmax.f32 %v330, 0.0
      %v363 = vmax.f32 %v331, 0.0
      %v364 = vmax.f32 %v332, 0.0
      %v365 = vmax.f32 %v333, 0.0
      %v366 = vmax.f32 %v334, 0.0
      %v367 = vmax.f32 %v335, 0.0
      %v368 = vmax.f32 %v336, 0.0
      %v369 = vmax.f32 %v337, 0.0
      %v370 = vmax.f32 %v338, 0.0
      %v371 = vmax.f32 %v339, 0.0
      %v372 = vmax.f32 %v340, 0.0
      %v373 = vmax.f32 %v341, 0.0
      %v374 = vmax.f32 %v342, 0.0
      %v375 = vmax.f32 %v343, 0.0
      %v376 = vmax.f32 %v344, 0.0
      %v377 = vmax.f32 %v345, 0.0
      %v378 = vmax.f32 %v346, 0.0
      %v379 = vmax.f32 %v347, 0.0
      %v380 = vmax.f32 %v348, 0.0
      %v381 = vmax.f32 %v349, 0.0
      %v382 = vmax.f32 %v350, 0.0
      %v383 = vmax.f32 %v351, 0.0
      %v384 = vmax.f32 %v352, 0.0
      %v385 = vmax.f32 %v353, 0.0
      %v386 = vmax.f32 %v354, 0.0
      %v387 = vmax.f32 %v355, 0.0
      %v388 = vmax.f32 %v356, 0.0
      %v389 = vmax.f32 %v357, 0.0
      %v390 = vmax.f32 %v358, 0.0
      %v391 = vmax.f32 %v359, 0.0
      %v392 = vmax.f32 %v360, 0.0
      %v393 = vmax.f32 %v361, 0.0
      %v394 = vpack.c.bf16 %v363, %v362
      %v395 = vpack.c.bf16 %v365, %v364
      %v396 = vpack.c.bf16 %v367, %v366
      %v397 = vpack.c.bf16 %v369, %v368
      %v398 = vpack.c.bf16 %v371, %v370
      %v399 = vpack.c.bf16 %v373, %v372
      %v400 = vpack.c.bf16 %v375, %v374
      %v401 = vpack.c.bf16 %v377, %v376
      %v402 = vpack.c.bf16 %v379, %v378
      %v403 = vpack.c.bf16 %v381, %v380
      %v404 = vpack.c.bf16 %v383, %v382
      %v405 = vpack.c.bf16 %v385, %v384
      %v406 = vpack.c.bf16 %v387, %v386
      %v407 = vpack.c.bf16 %v389, %v388
      %v408 = vpack.c.bf16 %v391, %v390
      %v409 = vpack.c.bf16 %v393, %v392
      %v426 = vunpack.c.l.b16 %v394
      %v427 = vunpack.c.h.b16 %v394
      %v428 = vunpack.c.l.b16 %v395
      %v429 = vunpack.c.h.b16 %v395
      %v430 = vunpack.c.l.b16 %v396
      %v431 = vunpack.c.h.b16 %v396
      %v432 = vunpack.c.l.b16 %v397
      %v433 = vunpack.c.h.b16 %v397
      %v434 = vunpack.c.l.b16 %v398
      %v435 = vunpack.c.h.b16 %v398
      %v436 = vunpack.c.l.b16 %v399
      %v437 = vunpack.c.h.b16 %v399
      %v438 = vunpack.c.l.b16 %v400
      %v439 = vunpack.c.h.b16 %v400
      %v440 = vunpack.c.l.b16 %v401
      %v441 = vunpack.c.h.b16 %v401
      %v442 = vunpack.c.l.b16 %v402
      %v443 = vunpack.c.h.b16 %v402
      %v444 = vunpack.c.l.b16 %v403
      %v445 = vunpack.c.h.b16 %v403
      %v446 = vunpack.c.l.b16 %v404
      %v447 = vunpack.c.h.b16 %v404
      %v448 = vunpack.c.l.b16 %v405
      %v449 = vunpack.c.h.b16 %v405
      %v450 = vunpack.c.l.b16 %v406
      %v451 = vunpack.c.h.b16 %v406
      %v452 = vunpack.c.l.b16 %v407
      %v453 = vunpack.c.h.b16 %v407
      %v454 = vunpack.c.l.b16 %v408
      %v455 = vunpack.c.h.b16 %v408
      %v456 = vunpack.c.l.b16 %v409
      %v457 = vunpack.c.h.b16 %v409
      %v458 = vpack.c.b16 %v426, %v426
      %v459 = vpack.c.b16 %v427, %v427
      %v460 = vpack.c.b16 %v428, %v428
      %v461 = vpack.c.b16 %v429, %v429
      %v462 = vpack.c.b16 %v430, %v430
      %v463 = vpack.c.b16 %v431, %v431
      %v464 = vpack.c.b16 %v432, %v432
      %v465 = vpack.c.b16 %v433, %v433
      %v466 = vpack.c.b16 %v434, %v434
      %v467 = vpack.c.b16 %v435, %v435
      %v468 = vpack.c.b16 %v436, %v436
      %v469 = vpack.c.b16 %v437, %v437
      %v470 = vpack.c.b16 %v438, %v438
      %v471 = vpack.c.b16 %v439, %v439
      %v472 = vpack.c.b16 %v440, %v440
      %v473 = vpack.c.b16 %v441, %v441
      %v474 = vpack.c.b16 %v442, %v442
      %v475 = vpack.c.b16 %v443, %v443
      %v476 = vpack.c.b16 %v444, %v444
      %v477 = vpack.c.b16 %v445, %v445
      %v478 = vpack.c.b16 %v446, %v446
      %v479 = vpack.c.b16 %v447, %v447
      %v480 = vpack.c.b16 %v448, %v448
      %v481 = vpack.c.b16 %v449, %v449
      %v482 = vpack.c.b16 %v450, %v450
      %v483 = vpack.c.b16 %v451, %v451
      %v484 = vpack.c.b16 %v452, %v452
      %v485 = vpack.c.b16 %v453, %v453
      %v486 = vpack.c.b16 %v454, %v454
      %v487 = vpack.c.b16 %v455, %v455
      %v488 = vpack.c.b16 %v456, %v456
      %v489 = vpack.c.b16 %v457, %v457
      %vm490 = vsmask.f32 256
      %vm491 = vsmask.f32 4368
      %vm492 = vmor %vm490, %vm491
      %v494 = vshrl.u32 %v458, 16
      %v496 = vrot.slane %v494, 7
      %v497 = vshll.u32 %v458, 16
      %v499 = vor.u32 %v496, %v497
      %v500 = vrot.slane %v496, 4
      %v502 = vshrl.u32 %v459, 16
      %v504 = vrot.slane %v502, 7
      %v505 = vshll.u32 %v459, 16
      %v507 = vor.u32 %v504, %v505
      %v508 = vsel %vm492, %v500, %v507
      %v509 = vrot.slane %v504, 4
      %v511 = vshrl.u32 %v460, 16
      %v513 = vrot.slane %v511, 7
      %v514 = vshll.u32 %v460, 16
      %v516 = vor.u32 %v513, %v514
      %v517 = vrot.slane %v513, 4
      %v519 = vshrl.u32 %v461, 16
      %v521 = vrot.slane %v519, 7
      %v522 = vshll.u32 %v461, 16
      %v524 = vor.u32 %v521, %v522
      %v525 = vsel %vm492, %v517, %v524
      %v526 = vrot.slane %v521, 4
      %v528 = vshrl.u32 %v462, 16
      %v530 = vrot.slane %v528, 7
      %v531 = vshll.u32 %v462, 16
      %v533 = vor.u32 %v530, %v531
      %v534 = vrot.slane %v530, 4
      %v536 = vshrl.u32 %v463, 16
      %v538 = vrot.slane %v536, 7
      %v539 = vshll.u32 %v463, 16
      %v541 = vor.u32 %v538, %v539
      %v542 = vsel %vm492, %v534, %v541
      %v543 = vrot.slane %v538, 4
      %v545 = vshrl.u32 %v464, 16
      %v547 = vrot.slane %v545, 7
      %v548 = vshll.u32 %v464, 16
      %v550 = vor.u32 %v547, %v548
      %v551 = vrot.slane %v547, 4
      %v553 = vshrl.u32 %v465, 16
      %v555 = vrot.slane %v553, 7
      %v556 = vshll.u32 %v465, 16
      %v558 = vor.u32 %v555, %v556
      %v559 = vsel %vm492, %v551, %v558
      %v560 = vrot.slane %v555, 4
      %v562 = vshrl.u32 %v466, 16
      %v564 = vrot.slane %v562, 7
      %v565 = vshll.u32 %v466, 16
      %v567 = vor.u32 %v564, %v565
      %v568 = vrot.slane %v564, 4
      %v570 = vshrl.u32 %v467, 16
      %v572 = vrot.slane %v570, 7
      %v573 = vshll.u32 %v467, 16
      %v575 = vor.u32 %v572, %v573
      %v576 = vsel %vm492, %v568, %v575
      %v577 = vrot.slane %v572, 4
      %v579 = vshrl.u32 %v468, 16
      %v581 = vrot.slane %v579, 7
      %v582 = vshll.u32 %v468, 16
      %v584 = vor.u32 %v581, %v582
      %v585 = vrot.slane %v581, 4
      %v587 = vshrl.u32 %v469, 16
      %v589 = vrot.slane %v587, 7
      %v590 = vshll.u32 %v469, 16
      %v592 = vor.u32 %v589, %v590
      %v593 = vsel %vm492, %v585, %v592
      %v594 = vrot.slane %v589, 4
      %v596 = vshrl.u32 %v470, 16
      %v598 = vrot.slane %v596, 7
      %v599 = vshll.u32 %v470, 16
      %v601 = vor.u32 %v598, %v599
      %v602 = vrot.slane %v598, 4
      %v604 = vshrl.u32 %v471, 16
      %v606 = vrot.slane %v604, 7
      %v607 = vshll.u32 %v471, 16
      %v609 = vor.u32 %v606, %v607
      %v610 = vsel %vm492, %v602, %v609
      %v611 = vrot.slane %v606, 4
      %v613 = vshrl.u32 %v472, 16
      %v615 = vrot.slane %v613, 7
      %v616 = vshll.u32 %v472, 16
      %v618 = vor.u32 %v615, %v616
      %v619 = vrot.slane %v615, 4
      %v621 = vshrl.u32 %v473, 16
      %v623 = vrot.slane %v621, 7
      %v624 = vshll.u32 %v473, 16
      %v626 = vor.u32 %v623, %v624
      %v627 = vsel %vm492, %v619, %v626
      %v628 = vrot.slane %v623, 4
      %v630 = vshrl.u32 %v474, 16
      %v632 = vrot.slane %v630, 7
      %v633 = vshll.u32 %v474, 16
      %v635 = vor.u32 %v632, %v633
      %v636 = vrot.slane %v632, 4
      %v638 = vshrl.u32 %v475, 16
      %v640 = vrot.slane %v638, 7
      %v641 = vshll.u32 %v475, 16
      %v643 = vor.u32 %v640, %v641
      %v644 = vsel %vm492, %v636, %v643
      %v645 = vrot.slane %v640, 4
      %v647 = vshrl.u32 %v476, 16
      %v649 = vrot.slane %v647, 7
      %v650 = vshll.u32 %v476, 16
      %v652 = vor.u32 %v649, %v650
      %v653 = vrot.slane %v649, 4
      %v655 = vshrl.u32 %v477, 16
      %v657 = vrot.slane %v655, 7
      %v658 = vshll.u32 %v477, 16
      %v660 = vor.u32 %v657, %v658
      %v661 = vsel %vm492, %v653, %v660
      %v662 = vrot.slane %v657, 4
      %v664 = vshrl.u32 %v478, 16
      %v666 = vrot.slane %v664, 7
      %v667 = vshll.u32 %v478, 16
      %v669 = vor.u32 %v666, %v667
      %v670 = vrot.slane %v666, 4
      %v672 = vshrl.u32 %v479, 16
      %v674 = vrot.slane %v672, 7
      %v675 = vshll.u32 %v479, 16
      %v677 = vor.u32 %v674, %v675
      %v678 = vsel %vm492, %v670, %v677
      %v679 = vrot.slane %v674, 4
      %v681 = vshrl.u32 %v480, 16
      %v683 = vrot.slane %v681, 7
      %v684 = vshll.u32 %v480, 16
      %v686 = vor.u32 %v683, %v684
      %v687 = vrot.slane %v683, 4
      %v689 = vshrl.u32 %v481, 16
      %v691 = vrot.slane %v689, 7
      %v692 = vshll.u32 %v481, 16
      %v694 = vor.u32 %v691, %v692
      %v695 = vsel %vm492, %v687, %v694
      %v696 = vrot.slane %v691, 4
      %v698 = vshrl.u32 %v482, 16
      %v700 = vrot.slane %v698, 7
      %v701 = vshll.u32 %v482, 16
      %v703 = vor.u32 %v700, %v701
      %v704 = vrot.slane %v700, 4
      %v706 = vshrl.u32 %v483, 16
      %v708 = vrot.slane %v706, 7
      %v709 = vshll.u32 %v483, 16
      %v711 = vor.u32 %v708, %v709
      %v712 = vsel %vm492, %v704, %v711
      %v713 = vrot.slane %v708, 4
      %v715 = vshrl.u32 %v484, 16
      %v717 = vrot.slane %v715, 7
      %v718 = vshll.u32 %v484, 16
      %v720 = vor.u32 %v717, %v718
      %v721 = vrot.slane %v717, 4
      %v723 = vshrl.u32 %v485, 16
      %v725 = vrot.slane %v723, 7
      %v726 = vshll.u32 %v485, 16
      %v728 = vor.u32 %v725, %v726
      %v729 = vsel %vm492, %v721, %v728
      %v730 = vrot.slane %v725, 4
      %v732 = vshrl.u32 %v486, 16
      %v734 = vrot.slane %v732, 7
      %v735 = vshll.u32 %v486, 16
      %v737 = vor.u32 %v734, %v735
      %v738 = vrot.slane %v734, 4
      %v740 = vshrl.u32 %v487, 16
      %v742 = vrot.slane %v740, 7
      %v743 = vshll.u32 %v487, 16
      %v745 = vor.u32 %v742, %v743
      %v746 = vsel %vm492, %v738, %v745
      %v747 = vrot.slane %v742, 4
      %v749 = vshrl.u32 %v488, 16
      %v751 = vrot.slane %v749, 7
      %v752 = vshll.u32 %v488, 16
      %v754 = vor.u32 %v751, %v752
      %v755 = vrot.slane %v751, 4
      %v757 = vshrl.u32 %v489, 16
      %v759 = vrot.slane %v757, 7
      %v760 = vshll.u32 %v489, 16
      %v762 = vor.u32 %v759, %v760
      %v763 = vsel %vm492, %v755, %v762
      %v764 = vrot.slane %v759, 4
      %s813 = scalar_lea.vmem [#allocation2], 12
      %vm814 = vcmask 1043456
      %vm815 = vsmask.f32 7938
      %vm816 = vmand %vm814, %vm815
      %v817 = vld [vmem:[%s813] sm:$0xf]
      %v818 = vsel %vm816, %v499, %v817
      %819 = vst [vmem:[%s813] sm:$0xf] %v818
      %820 = vst [vmem:[%s813 + $0x4] sm:$0xf] %v508
      %vm821 = vcmask 1040384
      %vm822 = vmand %vm821, %vm490
      %v823 = vld [vmem:[%s813 + $0x8] sm:$0x1]
      %v824 = vsel %vm822, %v509, %v823
      %825 = vst [vmem:[%s813 + $0x8] sm:$0x1] %v824
      %v826 = vld [vmem:[%s813 + $0xc] sm:$0xf]
      %v827 = vsel %vm816, %v516, %v826
      %828 = vst [vmem:[%s813 + $0xc] sm:$0xf] %v827
      %829 = vst [vmem:[%s813 + $0x10] sm:$0xf] %v525
      %v830 = vld [vmem:[%s813 + $0x14] sm:$0x1]
      %v831 = vsel %vm822, %v526, %v830
      %832 = vst [vmem:[%s813 + $0x14] sm:$0x1] %v831
      %v833 = vld [vmem:[%s813 + $0x18] sm:$0xf]
      %v834 = vsel %vm816, %v533, %v833
      %835 = vst [vmem:[%s813 + $0x18] sm:$0xf] %v834
      %836 = vst [vmem:[%s813 + $0x1c] sm:$0xf] %v542
      %v837 = vld [vmem:[%s813 + $0x20] sm:$0x1]
      %v838 = vsel %vm822, %v543, %v837
      %839 = vst [vmem:[%s813 + $0x20] sm:$0x1] %v838
      %v840 = vld [vmem:[%s813 + $0x24] sm:$0xf]
      %v841 = vsel %vm816, %v550, %v840
      %842 = vst [vmem:[%s813 + $0x24] sm:$0xf] %v841
      %843 = vst [vmem:[%s813 + $0x28] sm:$0xf] %v559
      %v844 = vld [vmem:[%s813 + $0x2c] sm:$0x1]
      %v845 = vsel %vm822, %v560, %v844
      %846 = vst [vmem:[%s813 + $0x2c] sm:$0x1] %v845
      %v847 = vld [vmem:[%s813 + $0x30] sm:$0xf]
      %v848 = vsel %vm816, %v567, %v847
      %849 = vst [vmem:[%s813 + $0x30] sm:$0xf] %v848
      %850 = vst [vmem:[%s813 + $0x34] sm:$0xf] %v576
      %v851 = vld [vmem:[%s813 + $0x38] sm:$0x1]
      %v852 = vsel %vm822, %v577, %v851
      %853 = vst [vmem:[%s813 + $0x38] sm:$0x1] %v852
      %v854 = vld [vmem:[%s813 + $0x3c] sm:$0xf]
      %v855 = vsel %vm816, %v584, %v854
      %856 = vst [vmem:[%s813 + $0x3c] sm:$0xf] %v855
      %857 = vst [vmem:[%s813 + $0x40] sm:$0xf] %v593
      %v858 = vld [vmem:[%s813 + $0x44] sm:$0x1]
      %v859 = vsel %vm822, %v594, %v858
      %860 = vst [vmem:[%s813 + $0x44] sm:$0x1] %v859
      %v861 = vld [vmem:[%s813 + $0x48] sm:$0xf]
      %v862 = vsel %vm816, %v601, %v861
      %863 = vst [vmem:[%s813 + $0x48] sm:$0xf] %v862
      %864 = vst [vmem:[%s813 + $0x4c] sm:$0xf] %v610
      %v865 = vld [vmem:[%s813 + $0x50] sm:$0x1]
      %v866 = vsel %vm822, %v611, %v865
      %867 = vst [vmem:[%s813 + $0x50] sm:$0x1] %v866
      %v868 = vld [vmem:[%s813 + $0x54] sm:$0xf]
      %v869 = vsel %vm816, %v618, %v868
      %870 = vst [vmem:[%s813 + $0x54] sm:$0xf] %v869
      %871 = vst [vmem:[%s813 + $0x58] sm:$0xf] %v627
      %v872 = vld [vmem:[%s813 + $0x5c] sm:$0x1]
      %v873 = vsel %vm822, %v628, %v872
      %874 = vst [vmem:[%s813 + $0x5c] sm:$0x1] %v873
      %v875 = vld [vmem:[%s813 + $0x60] sm:$0xf]
      %v876 = vsel %vm816, %v635, %v875
      %877 = vst [vmem:[%s813 + $0x60] sm:$0xf] %v876
      %878 = vst [vmem:[%s813 + $0x64] sm:$0xf] %v644
      %v879 = vld [vmem:[%s813 + $0x68] sm:$0x1]
      %v880 = vsel %vm822, %v645, %v879
      %881 = vst [vmem:[%s813 + $0x68] sm:$0x1] %v880
      %v882 = vld [vmem:[%s813 + $0x6c] sm:$0xf]
      %v883 = vsel %vm816, %v652, %v882
      %884 = vst [vmem:[%s813 + $0x6c] sm:$0xf] %v883
      %885 = vst [vmem:[%s813 + $0x70] sm:$0xf] %v661
      %v886 = vld [vmem:[%s813 + $0x74] sm:$0x1]
      %v887 = vsel %vm822, %v662, %v886
      %888 = vst [vmem:[%s813 + $0x74] sm:$0x1] %v887
      %v889 = vld [vmem:[%s813 + $0x78] sm:$0xf]
      %v890 = vsel %vm816, %v669, %v889
      %891 = vst [vmem:[%s813 + $0x78] sm:$0xf] %v890
      %892 = vst [vmem:[%s813 + $0x7c] sm:$0xf] %v678
      %v893 = vld [vmem:[%s813 + $0x80] sm:$0x1]
      %v894 = vsel %vm822, %v679, %v893
      %895 = vst [vmem:[%s813 + $0x80] sm:$0x1] %v894
      %v896 = vld [vmem:[%s813 + $0x84] sm:$0xf]
      %v897 = vsel %vm816, %v686, %v896
      %898 = vst [vmem:[%s813 + $0x84] sm:$0xf] %v897
      %899 = vst [vmem:[%s813 + $0x88] sm:$0xf] %v695
      %v900 = vld [vmem:[%s813 + $0x8c] sm:$0x1]
      %v901 = vsel %vm822, %v696, %v900
      %902 = vst [vmem:[%s813 + $0x8c] sm:$0x1] %v901
      %v903 = vld [vmem:[%s813 + $0x90] sm:$0xf]
      %v904 = vsel %vm816, %v703, %v903
      %905 = vst [vmem:[%s813 + $0x90] sm:$0xf] %v904
      %906 = vst [vmem:[%s813 + $0x94] sm:$0xf] %v712
      %v907 = vld [vmem:[%s813 + $0x98] sm:$0x1]
      %v908 = vsel %vm822, %v713, %v907
      %909 = vst [vmem:[%s813 + $0x98] sm:$0x1] %v908
      %v910 = vld [vmem:[%s813 + $0x9c] sm:$0xf]
      %v911 = vsel %vm816, %v720, %v910
      %912 = vst [vmem:[%s813 + $0x9c] sm:$0xf] %v911
      %913 = vst [vmem:[%s813 + $0xa0] sm:$0xf] %v729
      %v914 = vld [vmem:[%s813 + $0xa4] sm:$0x1]
      %v915 = vsel %vm822, %v730, %v914
      %916 = vst [vmem:[%s813 + $0xa4] sm:$0x1] %v915
      %v917 = vld [vmem:[%s813 + $0xa8] sm:$0xf]
      %v918 = vsel %vm816, %v737, %v917
      %919 = vst [vmem:[%s813 + $0xa8] sm:$0xf] %v918
      %920 = vst [vmem:[%s813 + $0xac] sm:$0xf] %v746
      %v921 = vld [vmem:[%s813 + $0xb0] sm:$0x1]
      %v922 = vsel %vm822, %v747, %v921
      %923 = vst [vmem:[%s813 + $0xb0] sm:$0x1] %v922
      %v924 = vld [vmem:[%s813 + $0xb4] sm:$0xf]
      %v925 = vsel %vm816, %v754, %v924
      %926 = vst [vmem:[%s813 + $0xb4] sm:$0xf] %v925
      %927 = vst [vmem:[%s813 + $0xb8] sm:$0xf] %v763
      %v928 = vld [vmem:[%s813 + $0xbc] sm:$0x1]
      %v929 = vsel %vm822, %v764, %v928
      %930 = vst [vmem:[%s813 + $0xbc] sm:$0x1] %v929
      %v931 = vld [vmem:[#allocation2] sm:$0xf]
      %v932 = vld [vmem:[#allocation2 + $0x4] sm:$0xf]
      %v933 = vld [vmem:[#allocation2 + $0xc] sm:$0xf]
      %v934 = vld [vmem:[#allocation2 + $0x10] sm:$0xf]
      %v935 = vld [vmem:[#allocation2 + $0x18] sm:$0xf]
      %v936 = vld [vmem:[#allocation2 + $0x1c] sm:$0xf]
      %v937 = vld [vmem:[#allocation2 + $0x24] sm:$0xf]
      %v938 = vld [vmem:[#allocation2 + $0x28] sm:$0xf]
      %v939 = vld [vmem:[#allocation2 + $0x30] sm:$0xf]
      %v940 = vld [vmem:[#allocation2 + $0x34] sm:$0xf]
      %v941 = vld [vmem:[#allocation2 + $0x3c] sm:$0xf]
      %v942 = vld [vmem:[#allocation2 + $0x40] sm:$0xf]
      %v943 = vld [vmem:[#allocation2 + $0x48] sm:$0xf]
      %v944 = vld [vmem:[#allocation2 + $0x4c] sm:$0xf]
      %v945 = vld [vmem:[#allocation2 + $0x54] sm:$0xf]
      %v946 = vld [vmem:[#allocation2 + $0x58] sm:$0xf]
      %v947 = vld [vmem:[#allocation2 + $0x60] sm:$0xf]
      %v948 = vld [vmem:[#allocation2 + $0x64] sm:$0xf]
      %v949 = vld [vmem:[#allocation2 + $0x6c] sm:$0xf]
      %v950 = vld [vmem:[#allocation2 + $0x70] sm:$0xf]
      %v951 = vld [vmem:[#allocation2 + $0x78] sm:$0xf]
      %v952 = vld [vmem:[#allocation2 + $0x7c] sm:$0xf]
      %v953 = vld [vmem:[#allocation2 + $0x84] sm:$0xf]
      %v954 = vld [vmem:[#allocation2 + $0x88] sm:$0xf]
      %v955 = vld [vmem:[#allocation2 + $0x90] sm:$0xf]
      %v956 = vld [vmem:[#allocation2 + $0x94] sm:$0xf]
      %v957 = vld [vmem:[#allocation2 + $0x9c] sm:$0xf]
      %v958 = vld [vmem:[#allocation2 + $0xa0] sm:$0xf]
      %v959 = vld [vmem:[#allocation2 + $0xa8] sm:$0xf]
      %v960 = vld [vmem:[#allocation2 + $0xac] sm:$0xf]
      %v961 = vld [vmem:[#allocation2 + $0xb4] sm:$0xf]
      %v962 = vld [vmem:[#allocation2 + $0xb8] sm:$0xf]
      %v963 = vld [vmem:[%s2] sm:$0xf]
      %v964 = vld [vmem:[%s2 + $0x4] sm:$0xf]
      %v965 = vld [vmem:[%s2 + $0x8] sm:$0xf]
      %v966 = vld [vmem:[%s2 + $0xc] sm:$0xf]
      %v967 = vld [vmem:[%s2 + $0x10] sm:$0xf]
      %v968 = vld [vmem:[%s2 + $0x14] sm:$0xf]
      %v969 = vld [vmem:[%s2 + $0x18] sm:$0xf]
      %v970 = vld [vmem:[%s2 + $0x1c] sm:$0xf]
      %v971 = vld [vmem:[%s2 + $0x20] sm:$0xf]
      %v972 = vld [vmem:[%s2 + $0x24] sm:$0xf]
      %v973 = vld [vmem:[%s2 + $0x28] sm:$0xf]
      %v974 = vld [vmem:[%s2 + $0x2c] sm:$0xf]
      %v975 = vld [vmem:[%s2 + $0x30] sm:$0xf]
      %v976 = vld [vmem:[%s2 + $0x34] sm:$0xf]
      %v977 = vld [vmem:[%s2 + $0x38] sm:$0xf]
      %v978 = vld [vmem:[%s2 + $0x3c] sm:$0xf]
      %v979 = vld [vmem:[#allocation2 + $0x8] sm:$0x1]
      %v980 = vld [vmem:[#allocation2 + $0x14] sm:$0x1]
      %v981 = vld [vmem:[#allocation2 + $0x20] sm:$0x1]
      %v982 = vld [vmem:[#allocation2 + $0x2c] sm:$0x1]
      %v983 = vld [vmem:[#allocation2 + $0x38] sm:$0x1]
      %v984 = vld [vmem:[#allocation2 + $0x44] sm:$0x1]
      %v985 = vld [vmem:[#allocation2 + $0x50] sm:$0x1]
      %v986 = vld [vmem:[#allocation2 + $0x5c] sm:$0x1]
      %v987 = vld [vmem:[#allocation2 + $0x68] sm:$0x1]
      %v988 = vld [vmem:[#allocation2 + $0x74] sm:$0x1]
      %v989 = vld [vmem:[#allocation2 + $0x80] sm:$0x1]
      %v990 = vld [vmem:[#allocation2 + $0x8c] sm:$0x1]
      %v991 = vld [vmem:[#allocation2 + $0x98] sm:$0x1]
      %v992 = vld [vmem:[#allocation2 + $0xa4] sm:$0x1]
      %v993 = vld [vmem:[#allocation2 + $0xb0] sm:$0x1]
      %v994 = vld [vmem:[#allocation2 + $0xbc] sm:$0x1]
      %vm995 = vsmask.f32 3328
      %vm996 = vsmask.f32 7440
      %vm997 = vmor %vm995, %vm996
      %v999 = vshrl.u32 %v931, 16
      %v1001 = vrot.slane %v999, 4
      %v1002 = vshll.u32 %v931, 16
      %v1004 = vrot.slane %v1002, 5
      %v1005 = vor.u32 %v1001, %v1004
      %v1006 = vrot.slane %v1005, 4
      %v1008 = vshll.u32 %v932, 16
      %v1010 = vrot.slane %v1008, 5
      %v1011 = vsel %vm997, %v1006, %v1010
      %v1012 = vshrl.u32 %v932, 16
      %v1014 = vrot.slane %v1012, 4
      %v1015 = vor.u32 %v1014, %v1010
      %v1016 = vrot.slane %v1015, 4
      %v1018 = vshll.u32 %v979, 16
      %v1020 = vrot.slane %v1018, 5
      %v1021 = vsel %vm997, %v1016, %v1020
      %v1023 = vshrl.u32 %v933, 16
      %v1025 = vrot.slane %v1023, 4
      %v1026 = vshll.u32 %v933, 16
      %v1028 = vrot.slane %v1026, 5
      %v1029 = vor.u32 %v1025, %v1028
      %v1030 = vrot.slane %v1029, 4
      %v1032 = vshll.u32 %v934, 16
      %v1034 = vrot.slane %v1032, 5
      %v1035 = vsel %vm997, %v1030, %v1034
      %v1036 = vshrl.u32 %v934, 16
      %v1038 = vrot.slane %v1036, 4
      %v1039 = vor.u32 %v1038, %v1034
      %v1040 = vrot.slane %v1039, 4
      %v1042 = vshll.u32 %v980, 16
      %v1044 = vrot.slane %v1042, 5
      %v1045 = vsel %vm997, %v1040, %v1044
      %v1047 = vshrl.u32 %v935, 16
      %v1049 = vrot.slane %v1047, 4
      %v1050 = vshll.u32 %v935, 16
      %v1052 = vrot.slane %v1050, 5
      %v1053 = vor.u32 %v1049, %v1052
      %v1054 = vrot.slane %v1053, 4
      %v1056 = vshll.u32 %v936, 16
      %v1058 = vrot.slane %v1056, 5
      %v1059 = vsel %vm997, %v1054, %v1058
      %v1060 = vshrl.u32 %v936, 16
      %v1062 = vrot.slane %v1060, 4
      %v1063 = vor.u32 %v1062, %v1058
      %v1064 = vrot.slane %v1063, 4
      %v1066 = vshll.u32 %v981, 16
      %v1068 = vrot.slane %v1066, 5
      %v1069 = vsel %vm997, %v1064, %v1068
      %v1071 = vshrl.u32 %v937, 16
      %v1073 = vrot.slane %v1071, 4
      %v1074 = vshll.u32 %v937, 16
      %v1076 = vrot.slane %v1074, 5
      %v1077 = vor.u32 %v1073, %v1076
      %v1078 = vrot.slane %v1077, 4
      %v1080 = vshll.u32 %v938, 16
      %v1082 = vrot.slane %v1080, 5
      %v1083 = vsel %vm997, %v1078, %v1082
      %v1084 = vshrl.u32 %v938, 16
      %v1086 = vrot.slane %v1084, 4
      %v1087 = vor.u32 %v1086, %v1082
      %v1088 = vrot.slane %v1087, 4
      %v1090 = vshll.u32 %v982, 16
      %v1092 = vrot.slane %v1090, 5
      %v1093 = vsel %vm997, %v1088, %v1092
      %v1095 = vshrl.u32 %v939, 16
      %v1097 = vrot.slane %v1095, 4
      %v1098 = vshll.u32 %v939, 16
      %v1100 = vrot.slane %v1098, 5
      %v1101 = vor.u32 %v1097, %v1100
      %v1102 = vrot.slane %v1101, 4
      %v1104 = vshll.u32 %v940, 16
      %v1106 = vrot.slane %v1104, 5
      %v1107 = vsel %vm997, %v1102, %v1106
      %v1108 = vshrl.u32 %v940, 16
      %v1110 = vrot.slane %v1108, 4
      %v1111 = vor.u32 %v1110, %v1106
      %v1112 = vrot.slane %v1111, 4
      %v1114 = vshll.u32 %v983, 16
      %v1116 = vrot.slane %v1114, 5
      %v1117 = vsel %vm997, %v1112, %v1116
      %v1119 = vshrl.u32 %v941, 16
      %v1121 = vrot.slane %v1119, 4
      %v1122 = vshll.u32 %v941, 16
      %v1124 = vrot.slane %v1122, 5
      %v1125 = vor.u32 %v1121, %v1124
      %v1126 = vrot.slane %v1125, 4
      %v1128 = vshll.u32 %v942, 16
      %v1130 = vrot.slane %v1128, 5
      %v1131 = vsel %vm997, %v1126, %v1130
      %v1132 = vshrl.u32 %v942, 16
      %v1134 = vrot.slane %v1132, 4
      %v1135 = vor.u32 %v1134, %v1130
      %v1136 = vrot.slane %v1135, 4
      %v1138 = vshll.u32 %v984, 16
      %v1140 = vrot.slane %v1138, 5
      %v1141 = vsel %vm997, %v1136, %v1140
      %v1143 = vshrl.u32 %v943, 16
      %v1145 = vrot.slane %v1143, 4
      %v1146 = vshll.u32 %v943, 16
      %v1148 = vrot.slane %v1146, 5
      %v1149 = vor.u32 %v1145, %v1148
      %v1150 = vrot.slane %v1149, 4
      %v1152 = vshll.u32 %v944, 16
      %v1154 = vrot.slane %v1152, 5
      %v1155 = vsel %vm997, %v1150, %v1154
      %v1156 = vshrl.u32 %v944, 16
      %v1158 = vrot.slane %v1156, 4
      %v1159 = vor.u32 %v1158, %v1154
      %v1160 = vrot.slane %v1159, 4
      %v1162 = vshll.u32 %v985, 16
      %v1164 = vrot.slane %v1162, 5
      %v1165 = vsel %vm997, %v1160, %v1164
      %v1167 = vshrl.u32 %v945, 16
      %v1169 = vrot.slane %v1167, 4
      %v1170 = vshll.u32 %v945, 16
      %v1172 = vrot.slane %v1170, 5
      %v1173 = vor.u32 %v1169, %v1172
      %v1174 = vrot.slane %v1173, 4
      %v1176 = vshll.u32 %v946, 16
      %v1178 = vrot.slane %v1176, 5
      %v1179 = vsel %vm997, %v1174, %v1178
      %v1180 = vshrl.u32 %v946, 16
      %v1182 = vrot.slane %v1180, 4
      %v1183 = vor.u32 %v1182, %v1178
      %v1184 = vrot.slane %v1183, 4
      %v1186 = vshll.u32 %v986, 16
      %v1188 = vrot.slane %v1186, 5
      %v1189 = vsel %vm997, %v1184, %v1188
      %v1191 = vshrl.u32 %v947, 16
      %v1193 = vrot.slane %v1191, 4
      %v1194 = vshll.u32 %v947, 16
      %v1196 = vrot.slane %v1194, 5
      %v1197 = vor.u32 %v1193, %v1196
      %v1198 = vrot.slane %v1197, 4
      %v1200 = vshll.u32 %v948, 16
      %v1202 = vrot.slane %v1200, 5
      %v1203 = vsel %vm997, %v1198, %v1202
      %v1204 = vshrl.u32 %v948, 16
      %v1206 = vrot.slane %v1204, 4
      %v1207 = vor.u32 %v1206, %v1202
      %v1208 = vrot.slane %v1207, 4
      %v1210 = vshll.u32 %v987, 16
      %v1212 = vrot.slane %v1210, 5
      %v1213 = vsel %vm997, %v1208, %v1212
      %v1215 = vshrl.u32 %v949, 16
      %v1217 = vrot.slane %v1215, 4
      %v1218 = vshll.u32 %v949, 16
      %v1220 = vrot.slane %v1218, 5
      %v1221 = vor.u32 %v1217, %v1220
      %v1222 = vrot.slane %v1221, 4
      %v1224 = vshll.u32 %v950, 16
      %v1226 = vrot.slane %v1224, 5
      %v1227 = vsel %vm997, %v1222, %v1226
      %v1228 = vshrl.u32 %v950, 16
      %v1230 = vrot.slane %v1228, 4
      %v1231 = vor.u32 %v1230, %v1226
      %v1232 = vrot.slane %v1231, 4
      %v1234 = vshll.u32 %v988, 16
      %v1236 = vrot.slane %v1234, 5
      %v1237 = vsel %vm997, %v1232, %v1236
      %v1239 = vshrl.u32 %v951, 16
      %v1241 = vrot.slane %v1239, 4
      %v1242 = vshll.u32 %v951, 16
      %v1244 = vrot.slane %v1242, 5
      %v1245 = vor.u32 %v1241, %v1244
      %v1246 = vrot.slane %v1245, 4
      %v1248 = vshll.u32 %v952, 16
      %v1250 = vrot.slane %v1248, 5
      %v1251 = vsel %vm997, %v1246, %v1250
      %v1252 = vshrl.u32 %v952, 16
      %v1254 = vrot.slane %v1252, 4
      %v1255 = vor.u32 %v1254, %v1250
      %v1256 = vrot.slane %v1255, 4
      %v1258 = vshll.u32 %v989, 16
      %v1260 = vrot.slane %v1258, 5
      %v1261 = vsel %vm997, %v1256, %v1260
      %v1263 = vshrl.u32 %v953, 16
      %v1265 = vrot.slane %v1263, 4
      %v1266 = vshll.u32 %v953, 16
      %v1268 = vrot.slane %v1266, 5
      %v1269 = vor.u32 %v1265, %v1268
      %v1270 = vrot.slane %v1269, 4
      %v1272 = vshll.u32 %v954, 16
      %v1274 = vrot.slane %v1272, 5
      %v1275 = vsel %vm997, %v1270, %v1274
      %v1276 = vshrl.u32 %v954, 16
      %v1278 = vrot.slane %v1276, 4
      %v1279 = vor.u32 %v1278, %v1274
      %v1280 = vrot.slane %v1279, 4
      %v1282 = vshll.u32 %v990, 16
      %v1284 = vrot.slane %v1282, 5
      %v1285 = vsel %vm997, %v1280, %v1284
      %v1287 = vshrl.u32 %v955, 16
      %v1289 = vrot.slane %v1287, 4
      %v1290 = vshll.u32 %v955, 16
      %v1292 = vrot.slane %v1290, 5
      %v1293 = vor.u32 %v1289, %v1292
      %v1294 = vrot.slane %v1293, 4
      %v1296 = vshll.u32 %v956, 16
      %v1298 = vrot.slane %v1296, 5
      %v1299 = vsel %vm997, %v1294, %v1298
      %v1300 = vshrl.u32 %v956, 16
      %v1302 = vrot.slane %v1300, 4
      %v1303 = vor.u32 %v1302, %v1298
      %v1304 = vrot.slane %v1303, 4
      %v1306 = vshll.u32 %v991, 16
      %v1308 = vrot.slane %v1306, 5
      %v1309 = vsel %vm997, %v1304, %v1308
      %v1311 = vshrl.u32 %v957, 16
      %v1313 = vrot.slane %v1311, 4
      %v1314 = vshll.u32 %v957, 16
      %v1316 = vrot.slane %v1314, 5
      %v1317 = vor.u32 %v1313, %v1316
      %v1318 = vrot.slane %v1317, 4
      %v1320 = vshll.u32 %v958, 16
      %v1322 = vrot.slane %v1320, 5
      %v1323 = vsel %vm997, %v1318, %v1322
      %v1324 = vshrl.u32 %v958, 16
      %v1326 = vrot.slane %v1324, 4
      %v1327 = vor.u32 %v1326, %v1322
      %v1328 = vrot.slane %v1327, 4
      %v1330 = vshll.u32 %v992, 16
      %v1332 = vrot.slane %v1330, 5
      %v1333 = vsel %vm997, %v1328, %v1332
      %v1335 = vshrl.u32 %v959, 16
      %v1337 = vrot.slane %v1335, 4
      %v1338 = vshll.u32 %v959, 16
      %v1340 = vrot.slane %v1338, 5
      %v1341 = vor.u32 %v1337, %v1340
      %v1342 = vrot.slane %v1341, 4
      %v1344 = vshll.u32 %v960, 16
      %v1346 = vrot.slane %v1344, 5
      %v1347 = vsel %vm997, %v1342, %v1346
      %v1348 = vshrl.u32 %v960, 16
      %v1350 = vrot.slane %v1348, 4
      %v1351 = vor.u32 %v1350, %v1346
      %v1352 = vrot.slane %v1351, 4
      %v1354 = vshll.u32 %v993, 16
      %v1356 = vrot.slane %v1354, 5
      %v1357 = vsel %vm997, %v1352, %v1356
      %v1359 = vshrl.u32 %v961, 16
      %v1361 = vrot.slane %v1359, 4
      %v1362 = vshll.u32 %v961, 16
      %v1364 = vrot.slane %v1362, 5
      %v1365 = vor.u32 %v1361, %v1364
      %v1366 = vrot.slane %v1365, 4
      %v1368 = vshll.u32 %v962, 16
      %v1370 = vrot.slane %v1368, 5
      %v1371 = vsel %vm997, %v1366, %v1370
      %v1372 = vshrl.u32 %v962, 16
      %v1374 = vrot.slane %v1372, 4
      %v1375 = vor.u32 %v1374, %v1370
      %v1376 = vrot.slane %v1375, 4
      %v1378 = vshll.u32 %v994, 16
      %v1380 = vrot.slane %v1378, 5
      %v1381 = vsel %vm997, %v1376, %v1380
      %s1382 = scalar_lea.vmem %s2, 64
      %v1383 = vld [vmem:[%s1382] sm:$0xf]
      %v1384 = vld [vmem:[%s1382 + $0x4] sm:$0xf]
      %v1385 = vld [vmem:[%s1382 + $0x8] sm:$0xf]
      %v1386 = vld [vmem:[%s1382 + $0xc] sm:$0xf]
      %v1387 = vld [vmem:[%s1382 + $0x10] sm:$0xf]
      %v1388 = vld [vmem:[%s1382 + $0x14] sm:$0xf]
      %v1389 = vld [vmem:[%s1382 + $0x18] sm:$0xf]
      %v1390 = vld [vmem:[%s1382 + $0x1c] sm:$0xf]
      %v1391 = vld [vmem:[%s1382 + $0x20] sm:$0xf]
      %v1392 = vld [vmem:[%s1382 + $0x24] sm:$0xf]
      %v1393 = vld [vmem:[%s1382 + $0x28] sm:$0xf]
      %v1394 = vld [vmem:[%s1382 + $0x2c] sm:$0xf]
      %v1395 = vld [vmem:[%s1382 + $0x30] sm:$0xf]
      %v1396 = vld [vmem:[%s1382 + $0x34] sm:$0xf]
      %v1397 = vld [vmem:[%s1382 + $0x38] sm:$0xf]
      %v1398 = vld [vmem:[%s1382 + $0x3c] sm:$0xf]
      %v1399 = vunpack.c.l.b16 %v1011
      %v1400 = vunpack.c.l.b16 %v1021
      %v1401 = vunpack.c.l.b16 %v1035
      %v1402 = vunpack.c.l.b16 %v1045
      %v1403 = vunpack.c.l.b16 %v1059
      %v1404 = vunpack.c.l.b16 %v1069
      %v1405 = vunpack.c.l.b16 %v1083
      %v1406 = vunpack.c.l.b16 %v1093
      %v1407 = vunpack.c.l.b16 %v1107
      %v1408 = vunpack.c.l.b16 %v1117
      %v1409 = vunpack.c.l.b16 %v1131
      %v1410 = vunpack.c.l.b16 %v1141
      %v1411 = vunpack.c.l.b16 %v1155
      %v1412 = vunpack.c.l.b16 %v1165
      %v1413 = vunpack.c.l.b16 %v1179
      %v1414 = vunpack.c.l.b16 %v1189
      %v1415 = vunpack.c.l.b16 %v1203
      %v1416 = vunpack.c.l.b16 %v1213
      %v1417 = vunpack.c.l.b16 %v1227
      %v1418 = vunpack.c.l.b16 %v1237
      %v1419 = vunpack.c.l.b16 %v1251
      %v1420 = vunpack.c.l.b16 %v1261
      %v1421 = vunpack.c.l.b16 %v1275
      %v1422 = vunpack.c.l.b16 %v1285
      %v1423 = vunpack.c.l.b16 %v1299
      %v1424 = vunpack.c.l.b16 %v1309
      %v1425 = vunpack.c.l.b16 %v1323
      %v1426 = vunpack.c.l.b16 %v1333
      %v1427 = vunpack.c.l.b16 %v1347
      %v1428 = vunpack.c.l.b16 %v1357
      %v1429 = vunpack.c.l.b16 %v1371
      %v1430 = vunpack.c.l.b16 %v1381
      %v1431 = vpack.c.b16 %v1400, %v1399
      %v1432 = vpack.c.b16 %v1402, %v1401
      %v1433 = vpack.c.b16 %v1404, %v1403
      %v1434 = vpack.c.b16 %v1406, %v1405
      %v1435 = vpack.c.b16 %v1408, %v1407
      %v1436 = vpack.c.b16 %v1410, %v1409
      %v1437 = vpack.c.b16 %v1412, %v1411
      %v1438 = vpack.c.b16 %v1414, %v1413
      %v1439 = vpack.c.b16 %v1416, %v1415
      %v1440 = vpack.c.b16 %v1418, %v1417
      %v1441 = vpack.c.b16 %v1420, %v1419
      %v1442 = vpack.c.b16 %v1422, %v1421
      %v1443 = vpack.c.b16 %v1424, %v1423
      %v1444 = vpack.c.b16 %v1426, %v1425
      %v1445 = vpack.c.b16 %v1428, %v1427
      %v1446 = vpack.c.b16 %v1430, %v1429
      %v1479 = vunpack.c.l.b16 %v1383
      %v1480 = vunpack.c.l.b16 %v1384
      %v1481 = vunpack.c.l.b16 %v1385
      %v1482 = vunpack.c.l.b16 %v1386
      %v1483 = vunpack.c.l.b16 %v1387
      %v1484 = vunpack.c.l.b16 %v1388
      %v1485 = vunpack.c.l.b16 %v1389
      %v1486 = vunpack.c.l.b16 %v1390
      %v1487 = vunpack.c.l.b16 %v1391
      %v1488 = vunpack.c.l.b16 %v1392
      %v1489 = vunpack.c.l.b16 %v1393
      %v1490 = vunpack.c.l.b16 %v1394
      %v1491 = vunpack.c.l.b16 %v1395
      %v1492 = vunpack.c.l.b16 %v1396
      %v1493 = vunpack.c.l.b16 %v1397
      %v1494 = vunpack.c.l.b16 %v1398
      %v1495 = vpack.c.b16 %v1480, %v1479
      %v1496 = vpack.c.b16 %v1482, %v1481
      %v1497 = vpack.c.b16 %v1484, %v1483
      %v1498 = vpack.c.b16 %v1486, %v1485
      %v1499 = vpack.c.b16 %v1488, %v1487
      %v1500 = vpack.c.b16 %v1490, %v1489
      %v1501 = vpack.c.b16 %v1492, %v1491
      %v1502 = vpack.c.b16 %v1494, %v1493
      %1511 = vmatprep.subr.bf16.mxu0 0
      %1512 = vmatpush1.bf16.msra.mxu0 %v1495
      %1513 = vmatprep.subr.bf16.mxu0 0
      %1514 = vmatpush1.bf16.msra.mxu0 %v1496
      %1515 = vmatprep.subr.bf16.mxu0 0
      %1516 = vmatpush1.bf16.msra.mxu0 %v1497
      %1517 = vmatprep.subr.bf16.mxu0 0
      %1518 = vmatpush1.bf16.msra.mxu0 %v1498
      %1519 = vmatprep.subr.bf16.mxu0 0
      %1520 = vmatpush1.bf16.msra.mxu0 %v1499
      %1521 = vmatprep.subr.bf16.mxu0 0
      %1522 = vmatpush1.bf16.msra.mxu0 %v1500
      %1523 = vmatprep.subr.bf16.mxu0 0
      %1524 = vmatpush1.bf16.msra.mxu0 %v1501
      %1525 = vmatprep.subr.bf16.mxu0 0
      %1526 = vmatpush1.bf16.msra.mxu0 %v1502
      %1527 = vmatprep.subr.bf16.mxu0 0
      %1528 = vmatpush1.bf16.msra.mxu0 0
      %1529 = vmatprep.subr.bf16.mxu0 0
      %1530 = vmatpush1.bf16.msra.mxu0 0
      %1531 = vmatprep.subr.bf16.mxu0 0
      %1532 = vmatpush1.bf16.msra.mxu0 0
      %1533 = vmatprep.subr.bf16.mxu0 0
      %1534 = vmatpush1.bf16.msra.mxu0 0
      %1535 = vmatprep.subr.bf16.mxu0 0
      %1536 = vmatpush1.bf16.msra.mxu0 0
      %1537 = vmatprep.subr.bf16.mxu0 0
      %1538 = vmatpush1.bf16.msra.mxu0 0
      %1539 = vmatprep.subr.bf16.mxu0 0
      %1540 = vmatpush1.bf16.msra.mxu0 0
      %1541 = vmatprep.subr.bf16.mxu0 0
      %1542 = vmatpush1.bf16.msra.mxu0 0
      %1543 = vmatprep.mubr.bf16.mxu0 0
      %1544 = vmatmul.mubr.bf16.gmra.mrb[0].mxu0 %v1431
      %v1545 = vpop.f32.mrb[0].mxu0
      %v1546 = vadd.f32 0.0, %v1545
      %v1547 = vpop.f32.mrb[0].mxu0
      %v1548 = vpop.f32.mrb[0].mxu0
      %v1549 = vadd.f32 0.0, %v1548
      %v1550 = vpop.f32.mrb[0].mxu0
      %1551 = vmatprep.mubr.bf16.mxu0 0
      %1552 = vmatmul.mubr.bf16.gmra.mrb[0].mxu0 %v1432
      %v1553 = vpop.f32.mrb[0].mxu0
      %v1554 = vadd.f32 0.0, %v1553
      %v1555 = vpop.f32.mrb[0].mxu0
      %v1556 = vpop.f32.mrb[0].mxu0
      %v1557 = vadd.f32 0.0, %v1556
      %v1558 = vpop.f32.mrb[0].mxu0
      %1559 = vmatprep.mubr.bf16.mxu0 0
      %1560 = vmatmul.mubr.bf16.gmra.mrb[0].mxu0 %v1433
      %v1561 = vpop.f32.mrb[0].mxu0
      %v1562 = vadd.f32 0.0, %v1561
      %v1563 = vpop.f32.mrb[0].mxu0
      %v1564 = vpop.f32.mrb[0].mxu0
      %v1565 = vadd.f32 0.0, %v1564
      %v1566 = vpop.f32.mrb[0].mxu0
      %1567 = vmatprep.mubr.bf16.mxu0 0
      %1568 = vmatmul.mubr.bf16.gmra.mrb[0].mxu0 %v1434
      %v1569 = vpop.f32.mrb[0].mxu0
      %v1570 = vadd.f32 0.0, %v1569
      %v1571 = vpop.f32.mrb[0].mxu0
      %v1572 = vpop.f32.mrb[0].mxu0
      %v1573 = vadd.f32 0.0, %v1572
      %v1574 = vpop.f32.mrb[0].mxu0
      %1575 = vmatprep.mubr.bf16.mxu0 0
      %1576 = vmatmul.mubr.bf16.gmra.mrb[0].mxu0 %v1435
      %v1577 = vpop.f32.mrb[0].mxu0
      %v1578 = vadd.f32 0.0, %v1577
      %v1579 = vpop.f32.mrb[0].mxu0
      %v1580 = vpop.f32.mrb[0].mxu0
      %v1581 = vadd.f32 0.0, %v1580
      %v1582 = vpop.f32.mrb[0].mxu0
      %1583 = vmatprep.mubr.bf16.mxu0 0
      %1584 = vmatmul.mubr.bf16.gmra.mrb[0].mxu0 %v1436
      %v1585 = vpop.f32.mrb[0].mxu0
      %v1586 = vadd.f32 0.0, %v1585
      %v1587 = vpop.f32.mrb[0].mxu0
      %v1588 = vpop.f32.mrb[0].mxu0
      %v1589 = vadd.f32 0.0, %v1588
      %v1590 = vpop.f32.mrb[0].mxu0
      %1591 = vmatprep.mubr.bf16.mxu0 0
      %1592 = vmatmul.mubr.bf16.gmra.mrb[0].mxu0 %v1437
      %v1593 = vpop.f32.mrb[0].mxu0
      %v1594 = vadd.f32 0.0, %v1593
      %v1595 = vpop.f32.mrb[0].mxu0
      %v1596 = vpop.f32.mrb[0].mxu0
      %v1597 = vadd.f32 0.0, %v1596
      %v1598 = vpop.f32.mrb[0].mxu0
      %1599 = vmatprep.mubr.bf16.mxu0 0
      %1600 = vmatmul.mubr.bf16.gmra.mrb[0].mxu0 %v1438
      %v1601 = vpop.f32.mrb[0].mxu0
      %v1602 = vadd.f32 0.0, %v1601
      %v1603 = vpop.f32.mrb[0].mxu0
      %v1604 = vpop.f32.mrb[0].mxu0
      %v1605 = vadd.f32 0.0, %v1604
      %v1606 = vpop.f32.mrb[0].mxu0
      %1607 = vmatprep.mubr.bf16.mxu0 0
      %1608 = vmatmul.mubr.bf16.gmra.mrb[0].mxu0 %v1439
      %v1609 = vpop.f32.mrb[0].mxu0
      %v1610 = vadd.f32 0.0, %v1609
      %v1611 = vpop.f32.mrb[0].mxu0
      %v1612 = vpop.f32.mrb[0].mxu0
      %v1613 = vadd.f32 0.0, %v1612
      %v1614 = vpop.f32.mrb[0].mxu0
      %1615 = vmatprep.mubr.bf16.mxu0 0
      %1616 = vmatmul.mubr.bf16.gmra.mrb[0].mxu0 %v1440
      %v1617 = vpop.f32.mrb[0].mxu0
      %v1618 = vadd.f32 0.0, %v1617
      %v1619 = vpop.f32.mrb[0].mxu0
      %v1620 = vpop.f32.mrb[0].mxu0
      %v1621 = vadd.f32 0.0, %v1620
      %v1622 = vpop.f32.mrb[0].mxu0
      %1623 = vmatprep.mubr.bf16.mxu0 0
      %1624 = vmatmul.mubr.bf16.gmra.mrb[0].mxu0 %v1441
      %v1625 = vpop.f32.mrb[0].mxu0
      %v1626 = vadd.f32 0.0, %v1625
      %v1627 = vpop.f32.mrb[0].mxu0
      %v1628 = vpop.f32.mrb[0].mxu0
      %v1629 = vadd.f32 0.0, %v1628
      %v1630 = vpop.f32.mrb[0].mxu0
      %1631 = vmatprep.mubr.bf16.mxu0 0
      %1632 = vmatmul.mubr.bf16.gmra.mrb[0].mxu0 %v1442
      %v1633 = vpop.f32.mrb[0].mxu0
      %v1634 = vadd.f32 0.0, %v1633
      %v1635 = vpop.f32.mrb[0].mxu0
      %v1636 = vpop.f32.mrb[0].mxu0
      %v1637 = vadd.f32 0.0, %v1636
      %v1638 = vpop.f32.mrb[0].mxu0
      %1639 = vmatprep.mubr.bf16.mxu0 0
      %1640 = vmatmul.mubr.bf16.gmra.mrb[0].mxu0 %v1443
      %v1641 = vpop.f32.mrb[0].mxu0
      %v1642 = vadd.f32 0.0, %v1641
      %v1643 = vpop.f32.mrb[0].mxu0
      %v1644 = vpop.f32.mrb[0].mxu0
      %v1645 = vadd.f32 0.0, %v1644
      %v1646 = vpop.f32.mrb[0].mxu0
      %1647 = vmatprep.mubr.bf16.mxu0 0
      %1648 = vmatmul.mubr.bf16.gmra.mrb[0].mxu0 %v1444
      %v1649 = vpop.f32.mrb[0].mxu0
      %v1650 = vadd.f32 0.0, %v1649
      %v1651 = vpop.f32.mrb[0].mxu0
      %v1652 = vpop.f32.mrb[0].mxu0
      %v1653 = vadd.f32 0.0, %v1652
      %v1654 = vpop.f32.mrb[0].mxu0
      %1655 = vmatprep.mubr.bf16.mxu0 0
      %1656 = vmatmul.mubr.bf16.gmra.mrb[0].mxu0 %v1445
      %v1657 = vpop.f32.mrb[0].mxu0
      %v1658 = vadd.f32 0.0, %v1657
      %v1659 = vpop.f32.mrb[0].mxu0
      %v1660 = vpop.f32.mrb[0].mxu0
      %v1661 = vadd.f32 0.0, %v1660
      %v1662 = vpop.f32.mrb[0].mxu0
      %1663 = vmatprep.mubr.bf16.mxu0 0
      %1664 = vmatmul.mubr.bf16.gmra.mrb[0].mxu0 %v1446
      %v1665 = vpop.f32.mrb[0].mxu0
      %v1666 = vadd.f32 0.0, %v1665
      %v1667 = vpop.f32.mrb[0].mxu0
      %v1668 = vpop.f32.mrb[0].mxu0
      %v1669 = vadd.f32 0.0, %v1668
      %v1670 = vpop.f32.mrb[0].mxu0
      %1671 = vdwg.mxu0
      %v1704 = vunpack.c.l.b16 %v931
      %v1705 = vunpack.c.l.b16 %v932
      %v1706 = vunpack.c.l.b16 %v933
      %v1707 = vunpack.c.l.b16 %v934
      %v1708 = vunpack.c.l.b16 %v935
      %v1709 = vunpack.c.l.b16 %v936
      %v1710 = vunpack.c.l.b16 %v937
      %v1711 = vunpack.c.l.b16 %v938
      %v1712 = vunpack.c.l.b16 %v939
      %v1713 = vunpack.c.l.b16 %v940
      %v1714 = vunpack.c.l.b16 %v941
      %v1715 = vunpack.c.l.b16 %v942
      %v1716 = vunpack.c.l.b16 %v943
      %v1717 = vunpack.c.l.b16 %v944
      %v1718 = vunpack.c.l.b16 %v945
      %v1719 = vunpack.c.l.b16 %v946
      %v1720 = vunpack.c.l.b16 %v947
      %v1721 = vunpack.c.l.b16 %v948
      %v1722 = vunpack.c.l.b16 %v949
      %v1723 = vunpack.c.l.b16 %v950
      %v1724 = vunpack.c.l.b16 %v951
      %v1725 = vunpack.c.l.b16 %v952
      %v1726 = vunpack.c.l.b16 %v953
      %v1727 = vunpack.c.l.b16 %v954
      %v1728 = vunpack.c.l.b16 %v955
      %v1729 = vunpack.c.l.b16 %v956
      %v1730 = vunpack.c.l.b16 %v957
      %v1731 = vunpack.c.l.b16 %v958
      %v1732 = vunpack.c.l.b16 %v959
      %v1733 = vunpack.c.l.b16 %v960
      %v1734 = vunpack.c.l.b16 %v961
      %v1735 = vunpack.c.l.b16 %v962
      %v1736 = vpack.c.b16 %v1705, %v1704
      %v1737 = vpack.c.b16 %v1707, %v1706
      %v1738 = vpack.c.b16 %v1709, %v1708
      %v1739 = vpack.c.b16 %v1711, %v1710
      %v1740 = vpack.c.b16 %v1713, %v1712
      %v1741 = vpack.c.b16 %v1715, %v1714
      %v1742 = vpack.c.b16 %v1717, %v1716
      %v1743 = vpack.c.b16 %v1719, %v1718
      %v1744 = vpack.c.b16 %v1721, %v1720
      %v1745 = vpack.c.b16 %v1723, %v1722
      %v1746 = vpack.c.b16 %v1725, %v1724
      %v1747 = vpack.c.b16 %v1727, %v1726
      %v1748 = vpack.c.b16 %v1729, %v1728
      %v1749 = vpack.c.b16 %v1731, %v1730
      %v1750 = vpack.c.b16 %v1733, %v1732
      %v1751 = vpack.c.b16 %v1735, %v1734
      %v1784 = vunpack.c.l.b16 %v963
      %v1785 = vunpack.c.l.b16 %v964
      %v1786 = vunpack.c.l.b16 %v965
      %v1787 = vunpack.c.l.b16 %v966
      %v1788 = vunpack.c.l.b16 %v967
      %v1789 = vunpack.c.l.b16 %v968
      %v1790 = vunpack.c.l.b16 %v969
      %v1791 = vunpack.c.l.b16 %v970
      %v1792 = vunpack.c.l.b16 %v971
      %v1793 = vunpack.c.l.b16 %v972
      %v1794 = vunpack.c.l.b16 %v973
      %v1795 = vunpack.c.l.b16 %v974
      %v1796 = vunpack.c.l.b16 %v975
      %v1797 = vunpack.c.l.b16 %v976
      %v1798 = vunpack.c.l.b16 %v977
      %v1799 = vunpack.c.l.b16 %v978
      %v1800 = vpack.c.b16 %v1785, %v1784
      %v1801 = vpack.c.b16 %v1787, %v1786
      %v1802 = vpack.c.b16 %v1789, %v1788
      %v1803 = vpack.c.b16 %v1791, %v1790
      %v1804 = vpack.c.b16 %v1793, %v1792
      %v1805 = vpack.c.b16 %v1795, %v1794
      %v1806 = vpack.c.b16 %v1797, %v1796
      %v1807 = vpack.c.b16 %v1799, %v1798
      %1816 = vmatprep.subr.bf16.mxu0 0
      %1817 = vmatpush1.bf16.msra.mxu0 %v1800
      %1818 = vmatprep.subr.bf16.mxu0 0
      %1819 = vmatpush1.bf16.msra.mxu0 %v1801
      %1820 = vmatprep.subr.bf16.mxu0 0
      %1821 = vmatpush1.bf16.msra.mxu0 %v1802
      %1822 = vmatprep.subr.bf16.mxu0 0
      %1823 = vmatpush1.bf16.msra.mxu0 %v1803
      %1824 = vmatprep.subr.bf16.mxu0 0
      %1825 = vmatpush1.bf16.msra.mxu0 %v1804
      %1826 = vmatprep.subr.bf16.mxu0 0
      %1827 = vmatpush1.bf16.msra.mxu0 %v1805
      %1828 = vmatprep.subr.bf16.mxu0 0
      %1829 = vmatpush1.bf16.msra.mxu0 %v1806
      %1830 = vmatprep.subr.bf16.mxu0 0
      %1831 = vmatpush1.bf16.msra.mxu0 %v1807
      %1832 = vmatprep.subr.bf16.mxu0 0
      %1833 = vmatpush1.bf16.msra.mxu0 0
      %1834 = vmatprep.subr.bf16.mxu0 0
      %1835 = vmatpush1.bf16.msra.mxu0 0
      %1836 = vmatprep.subr.bf16.mxu0 0
      %1837 = vmatpush1.bf16.msra.mxu0 0
      %1838 = vmatprep.subr.bf16.mxu0 0
      %1839 = vmatpush1.bf16.msra.mxu0 0
      %1840 = vmatprep.subr.bf16.mxu0 0
      %1841 = vmatpush1.bf16.msra.mxu0 0
      %1842 = vmatprep.subr.bf16.mxu0 0
      %1843 = vmatpush1.bf16.msra.mxu0 0
      %1844 = vmatprep.subr.bf16.mxu0 0
      %1845 = vmatpush1.bf16.msra.mxu0 0
      %1846 = vmatprep.subr.bf16.mxu0 0
      %1847 = vmatpush1.bf16.msra.mxu0 0
      %1848 = vmatprep.mubr.bf16.mxu0 0
      %1849 = vmatmul.mubr.bf16.gmra.mrb[0].mxu0 %v1736
      %v1850 = vpop.f32.mrb[0].mxu0
      %v1851 = vadd.f32 %v1546, %v1850
      %v1852 = vpop.f32.mrb[0].mxu0
      %v1853 = vpop.f32.mrb[0].mxu0
      %v1854 = vadd.f32 %v1549, %v1853
      %v1855 = vpop.f32.mrb[0].mxu0
      %1856 = vmatprep.mubr.bf16.mxu0 0
      %1857 = vmatmul.mubr.bf16.gmra.mrb[0].mxu0 %v1737
      %v1858 = vpop.f32.mrb[0].mxu0
      %v1859 = vadd.f32 %v1554, %v1858
      %v1860 = vpop.f32.mrb[0].mxu0
      %v1861 = vpop.f32.mrb[0].mxu0
      %v1862 = vadd.f32 %v1557, %v1861
      %v1863 = vpop.f32.mrb[0].mxu0
      %1864 = vmatprep.mubr.bf16.mxu0 0
      %1865 = vmatmul.mubr.bf16.gmra.mrb[0].mxu0 %v1738
      %v1866 = vpop.f32.mrb[0].mxu0
      %v1867 = vadd.f32 %v1562, %v1866
      %v1868 = vpop.f32.mrb[0].mxu0
      %v1869 = vpop.f32.mrb[0].mxu0
      %v1870 = vadd.f32 %v1565, %v1869
      %v1871 = vpop.f32.mrb[0].mxu0
      %1872 = vmatprep.mubr.bf16.mxu0 0
      %1873 = vmatmul.mubr.bf16.gmra.mrb[0].mxu0 %v1739
      %v1874 = vpop.f32.mrb[0].mxu0
      %v1875 = vadd.f32 %v1570, %v1874
      %v1876 = vpop.f32.mrb[0].mxu0
      %v1877 = vpop.f32.mrb[0].mxu0
      %v1878 = vadd.f32 %v1573, %v1877
      %v1879 = vpop.f32.mrb[0].mxu0
      %1880 = vmatprep.mubr.bf16.mxu0 0
      %1881 = vmatmul.mubr.bf16.gmra.mrb[0].mxu0 %v1740
      %v1882 = vpop.f32.mrb[0].mxu0
      %v1883 = vadd.f32 %v1578, %v1882
      %v1884 = vpop.f32.mrb[0].mxu0
      %v1885 = vpop.f32.mrb[0].mxu0
      %v1886 = vadd.f32 %v1581, %v1885
      %v1887 = vpop.f32.mrb[0].mxu0
      %1888 = vmatprep.mubr.bf16.mxu0 0
      %1889 = vmatmul.mubr.bf16.gmra.mrb[0].mxu0 %v1741
      %v1890 = vpop.f32.mrb[0].mxu0
      %v1891 = vadd.f32 %v1586, %v1890
      %v1892 = vpop.f32.mrb[0].mxu0
      %v1893 = vpop.f32.mrb[0].mxu0
      %v1894 = vadd.f32 %v1589, %v1893
      %v1895 = vpop.f32.mrb[0].mxu0
      %1896 = vmatprep.mubr.bf16.mxu0 0
      %1897 = vmatmul.mubr.bf16.gmra.mrb[0].mxu0 %v1742
      %v1898 = vpop.f32.mrb[0].mxu0
      %v1899 = vadd.f32 %v1594, %v1898
      %v1900 = vpop.f32.mrb[0].mxu0
      %v1901 = vpop.f32.mrb[0].mxu0
      %v1902 = vadd.f32 %v1597, %v1901
      %v1903 = vpop.f32.mrb[0].mxu0
      %1904 = vmatprep.mubr.bf16.mxu0 0
      %1905 = vmatmul.mubr.bf16.gmra.mrb[0].mxu0 %v1743
      %v1906 = vpop.f32.mrb[0].mxu0
      %v1907 = vadd.f32 %v1602, %v1906
      %v1908 = vpop.f32.mrb[0].mxu0
      %v1909 = vpop.f32.mrb[0].mxu0
      %v1910 = vadd.f32 %v1605, %v1909
      %v1911 = vpop.f32.mrb[0].mxu0
      %1912 = vmatprep.mubr.bf16.mxu0 0
      %1913 = vmatmul.mubr.bf16.gmra.mrb[0].mxu0 %v1744
      %v1914 = vpop.f32.mrb[0].mxu0
      %v1915 = vadd.f32 %v1610, %v1914
      %v1916 = vpop.f32.mrb[0].mxu0
      %v1917 = vpop.f32.mrb[0].mxu0
      %v1918 = vadd.f32 %v1613, %v1917
      %v1919 = vpop.f32.mrb[0].mxu0
      %1920 = vmatprep.mubr.bf16.mxu0 0
      %1921 = vmatmul.mubr.bf16.gmra.mrb[0].mxu0 %v1745
      %v1922 = vpop.f32.mrb[0].mxu0
      %v1923 = vadd.f32 %v1618, %v1922
      %v1924 = vpop.f32.mrb[0].mxu0
      %v1925 = vpop.f32.mrb[0].mxu0
      %v1926 = vadd.f32 %v1621, %v1925
      %v1927 = vpop.f32.mrb[0].mxu0
      %1928 = vmatprep.mubr.bf16.mxu0 0
      %1929 = vmatmul.mubr.bf16.gmra.mrb[0].mxu0 %v1746
      %v1930 = vpop.f32.mrb[0].mxu0
      %v1931 = vadd.f32 %v1626, %v1930
      %v1932 = vpop.f32.mrb[0].mxu0
      %v1933 = vpop.f32.mrb[0].mxu0
      %v1934 = vadd.f32 %v1629, %v1933
      %v1935 = vpop.f32.mrb[0].mxu0
      %1936 = vmatprep.mubr.bf16.mxu0 0
      %1937 = vmatmul.mubr.bf16.gmra.mrb[0].mxu0 %v1747
      %v1938 = vpop.f32.mrb[0].mxu0
      %v1939 = vadd.f32 %v1634, %v1938
      %v1940 = vpop.f32.mrb[0].mxu0
      %v1941 = vpop.f32.mrb[0].mxu0
      %v1942 = vadd.f32 %v1637, %v1941
      %v1943 = vpop.f32.mrb[0].mxu0
      %1944 = vmatprep.mubr.bf16.mxu0 0
      %1945 = vmatmul.mubr.bf16.gmra.mrb[0].mxu0 %v1748
      %v1946 = vpop.f32.mrb[0].mxu0
      %v1947 = vadd.f32 %v1642, %v1946
      %v1948 = vpop.f32.mrb[0].mxu0
      %v1949 = vpop.f32.mrb[0].mxu0
      %v1950 = vadd.f32 %v1645, %v1949
      %v1951 = vpop.f32.mrb[0].mxu0
      %1952 = vmatprep.mubr.bf16.mxu0 0
      %1953 = vmatmul.mubr.bf16.gmra.mrb[0].mxu0 %v1749
      %v1954 = vpop.f32.mrb[0].mxu0
      %v1955 = vadd.f32 %v1650, %v1954
      %v1956 = vpop.f32.mrb[0].mxu0
      %v1957 = vpop.f32.mrb[0].mxu0
      %v1958 = vadd.f32 %v1653, %v1957
      %v1959 = vpop.f32.mrb[0].mxu0
      %1960 = vmatprep.mubr.bf16.mxu0 0
      %1961 = vmatmul.mubr.bf16.gmra.mrb[0].mxu0 %v1750
      %v1962 = vpop.f32.mrb[0].mxu0
      %v1963 = vadd.f32 %v1658, %v1962
      %v1964 = vpop.f32.mrb[0].mxu0
      %v1965 = vpop.f32.mrb[0].mxu0
      %v1966 = vadd.f32 %v1661, %v1965
      %v1967 = vpop.f32.mrb[0].mxu0
      %1968 = vmatprep.mubr.bf16.mxu0 0
      %1969 = vmatmul.mubr.bf16.gmra.mrb[0].mxu0 %v1751
      %v1970 = vpop.f32.mrb[0].mxu0
      %v1971 = vadd.f32 %v1666, %v1970
      %v1972 = vpop.f32.mrb[0].mxu0
      %v1973 = vpop.f32.mrb[0].mxu0
      %v1974 = vadd.f32 %v1669, %v1973
      %v1975 = vpop.f32.mrb[0].mxu0
      %1976 = vdwg.mxu0
      %v1977 = vld [vmem:[#allocation2] sm:$0xe]
      %v1978 = vld [vmem:[#allocation2 + $0xc] sm:$0xe]
      %v1979 = vld [vmem:[#allocation2 + $0x18] sm:$0xe]
      %v1980 = vld [vmem:[#allocation2 + $0x24] sm:$0xe]
      %v1981 = vld [vmem:[#allocation2 + $0x30] sm:$0xe]
      %v1982 = vld [vmem:[#allocation2 + $0x3c] sm:$0xe]
      %v1983 = vld [vmem:[#allocation2 + $0x48] sm:$0xe]
      %v1984 = vld [vmem:[#allocation2 + $0x54] sm:$0xe]
      %v1985 = vld [vmem:[#allocation2 + $0x60] sm:$0xe]
      %v1986 = vld [vmem:[#allocation2 + $0x6c] sm:$0xe]
      %v1987 = vld [vmem:[#allocation2 + $0x78] sm:$0xe]
      %v1988 = vld [vmem:[#allocation2 + $0x84] sm:$0xe]
      %v1989 = vld [vmem:[#allocation2 + $0x90] sm:$0xe]
      %v1990 = vld [vmem:[#allocation2 + $0x9c] sm:$0xe]
      %v1991 = vld [vmem:[#allocation2 + $0xa8] sm:$0xe]
      %v1992 = vld [vmem:[#allocation2 + $0xb4] sm:$0xe]
      %vm2025 = vcmask 1042432
      %vm2026 = vcmask 1046532
      %vm2027 = vmor %vm2025, %vm2026
      %v2028 = vrot.slane %v1977, 5
      %v2029 = vrot.slane %v2028, 4
      %v2030 = vrot.slane %v932, 5
      %v2031 = vsel %vm2027, %v2029, %v2030
      %v2032 = vrot.slane %v2030, 4
      %v2033 = vrot.slane %v979, 5
      %v2034 = vsel %vm2027, %v2032, %v2033
      %v2035 = vrot.slane %v1978, 5
      %v2036 = vrot.slane %v2035, 4
      %v2037 = vrot.slane %v934, 5
      %v2038 = vsel %vm2027, %v2036, %v2037
      %v2039 = vrot.slane %v2037, 4
      %v2040 = vrot.slane %v980, 5
      %v2041 = vsel %vm2027, %v2039, %v2040
      %v2042 = vrot.slane %v1979, 5
      %v2043 = vrot.slane %v2042, 4
      %v2044 = vrot.slane %v936, 5
      %v2045 = vsel %vm2027, %v2043, %v2044
      %v2046 = vrot.slane %v2044, 4
      %v2047 = vrot.slane %v981, 5
      %v2048 = vsel %vm2027, %v2046, %v2047
      %v2049 = vrot.slane %v1980, 5
      %v2050 = vrot.slane %v2049, 4
      %v2051 = vrot.slane %v938, 5
      %v2052 = vsel %vm2027, %v2050, %v2051
      %v2053 = vrot.slane %v2051, 4
      %v2054 = vrot.slane %v982, 5
      %v2055 = vsel %vm2027, %v2053, %v2054
      %v2056 = vrot.slane %v1981, 5
      %v2057 = vrot.slane %v2056, 4
      %v2058 = vrot.slane %v940, 5
      %v2059 = vsel %vm2027, %v2057, %v2058
      %v2060 = vrot.slane %v2058, 4
      %v2061 = vrot.slane %v983, 5
      %v2062 = vsel %vm2027, %v2060, %v2061
      %v2063 = vrot.slane %v1982, 5
      %v2064 = vrot.slane %v2063, 4
      %v2065 = vrot.slane %v942, 5
      %v2066 = vsel %vm2027, %v2064, %v2065
      %v2067 = vrot.slane %v2065, 4
      %v2068 = vrot.slane %v984, 5
      %v2069 = vsel %vm2027, %v2067, %v2068
      %v2070 = vrot.slane %v1983, 5
      %v2071 = vrot.slane %v2070, 4
      %v2072 = vrot.slane %v944, 5
      %v2073 = vsel %vm2027, %v2071, %v2072
      %v2074 = vrot.slane %v2072, 4
      %v2075 = vrot.slane %v985, 5
      %v2076 = vsel %vm2027, %v2074, %v2075
      %v2077 = vrot.slane %v1984, 5
      %v2078 = vrot.slane %v2077, 4
      %v2079 = vrot.slane %v946, 5
      %v2080 = vsel %vm2027, %v2078, %v2079
      %v2081 = vrot.slane %v2079, 4
      %v2082 = vrot.slane %v986, 5
      %v2083 = vsel %vm2027, %v2081, %v2082
      %v2084 = vrot.slane %v1985, 5
      %v2085 = vrot.slane %v2084, 4
      %v2086 = vrot.slane %v948, 5
      %v2087 = vsel %vm2027, %v2085, %v2086
      %v2088 = vrot.slane %v2086, 4
      %v2089 = vrot.slane %v987, 5
      %v2090 = vsel %vm2027, %v2088, %v2089
      %v2091 = vrot.slane %v1986, 5
      %v2092 = vrot.slane %v2091, 4
      %v2093 = vrot.slane %v950, 5
      %v2094 = vsel %vm2027, %v2092, %v2093
      %v2095 = vrot.slane %v2093, 4
      %v2096 = vrot.slane %v988, 5
      %v2097 = vsel %vm2027, %v2095, %v2096
      %v2098 = vrot.slane %v1987, 5
      %v2099 = vrot.slane %v2098, 4
      %v2100 = vrot.slane %v952, 5
      %v2101 = vsel %vm2027, %v2099, %v2100
      %v2102 = vrot.slane %v2100, 4
      %v2103 = vrot.slane %v989, 5
      %v2104 = vsel %vm2027, %v2102, %v2103
      %v2105 = vrot.slane %v1988, 5
      %v2106 = vrot.slane %v2105, 4
      %v2107 = vrot.slane %v954, 5
      %v2108 = vsel %vm2027, %v2106, %v2107
      %v2109 = vrot.slane %v2107, 4
      %v2110 = vrot.slane %v990, 5
      %v2111 = vsel %vm2027, %v2109, %v2110
      %v2112 = vrot.slane %v1989, 5
      %v2113 = vrot.slane %v2112, 4
      %v2114 = vrot.slane %v956, 5
      %v2115 = vsel %vm2027, %v2113, %v2114
      %v2116 = vrot.slane %v2114, 4
      %v2117 = vrot.slane %v991, 5
      %v2118 = vsel %vm2027, %v2116, %v2117
      %v2119 = vrot.slane %v1990, 5
      %v2120 = vrot.slane %v2119, 4
      %v2121 = vrot.slane %v958, 5
      %v2122 = vsel %vm2027, %v2120, %v2121
      %v2123 = vrot.slane %v2121, 4
      %v2124 = vrot.slane %v992, 5
      %v2125 = vsel %vm2027, %v2123, %v2124
      %v2126 = vrot.slane %v1991, 5
      %v2127 = vrot.slane %v2126, 4
      %v2128 = vrot.slane %v960, 5
      %v2129 = vsel %vm2027, %v2127, %v2128
      %v2130 = vrot.slane %v2128, 4
      %v2131 = vrot.slane %v993, 5
      %v2132 = vsel %vm2027, %v2130, %v2131
      %v2133 = vrot.slane %v1992, 5
      %v2134 = vrot.slane %v2133, 4
      %v2135 = vrot.slane %v962, 5
      %v2136 = vsel %vm2027, %v2134, %v2135
      %v2137 = vrot.slane %v2135, 4
      %v2138 = vrot.slane %v994, 5
      %v2139 = vsel %vm2027, %v2137, %v2138
      %s2140 = scalar_lea.vmem %s2, 128
      %v2141 = vld [vmem:[%s2140] sm:$0xf]
      %v2142 = vld [vmem:[%s2140 + $0x4] sm:$0xf]
      %v2143 = vld [vmem:[%s2140 + $0x8] sm:$0xf]
      %v2144 = vld [vmem:[%s2140 + $0xc] sm:$0xf]
      %v2145 = vld [vmem:[%s2140 + $0x10] sm:$0xf]
      %v2146 = vld [vmem:[%s2140 + $0x14] sm:$0xf]
      %v2147 = vld [vmem:[%s2140 + $0x18] sm:$0xf]
      %v2148 = vld [vmem:[%s2140 + $0x1c] sm:$0xf]
      %v2149 = vld [vmem:[%s2140 + $0x20] sm:$0xf]
      %v2150 = vld [vmem:[%s2140 + $0x24] sm:$0xf]
      %v2151 = vld [vmem:[%s2140 + $0x28] sm:$0xf]
      %v2152 = vld [vmem:[%s2140 + $0x2c] sm:$0xf]
      %v2153 = vld [vmem:[%s2140 + $0x30] sm:$0xf]
      %v2154 = vld [vmem:[%s2140 + $0x34] sm:$0xf]
      %v2155 = vld [vmem:[%s2140 + $0x38] sm:$0xf]
      %v2156 = vld [vmem:[%s2140 + $0x3c] sm:$0xf]
      %v2157 = vunpack.c.l.b16 %v2031
      %v2158 = vunpack.c.l.b16 %v2034
      %v2159 = vunpack.c.l.b16 %v2038
      %v2160 = vunpack.c.l.b16 %v2041
      %v2161 = vunpack.c.l.b16 %v2045
      %v2162 = vunpack.c.l.b16 %v2048
      %v2163 = vunpack.c.l.b16 %v2052
      %v2164 = vunpack.c.l.b16 %v2055
      %v2165 = vunpack.c.l.b16 %v2059
      %v2166 = vunpack.c.l.b16 %v2062
      %v2167 = vunpack.c.l.b16 %v2066
      %v2168 = vunpack.c.l.b16 %v2069
      %v2169 = vunpack.c.l.b16 %v2073
      %v2170 = vunpack.c.l.b16 %v2076
      %v2171 = vunpack.c.l.b16 %v2080
      %v2172 = vunpack.c.l.b16 %v2083
      %v2173 = vunpack.c.l.b16 %v2087
      %v2174 = vunpack.c.l.b16 %v2090
      %v2175 = vunpack.c.l.b16 %v2094
      %v2176 = vunpack.c.l.b16 %v2097
      %v2177 = vunpack.c.l.b16 %v2101
      %v2178 = vunpack.c.l.b16 %v2104
      %v2179 = vunpack.c.l.b16 %v2108
      %v2180 = vunpack.c.l.b16 %v2111
      %v2181 = vunpack.c.l.b16 %v2115
      %v2182 = vunpack.c.l.b16 %v2118
      %v2183 = vunpack.c.l.b16 %v2122
      %v2184 = vunpack.c.l.b16 %v2125
      %v2185 = vunpack.c.l.b16 %v2129
      %v2186 = vunpack.c.l.b16 %v2132
      %v2187 = vunpack.c.l.b16 %v2136
      %v2188 = vunpack.c.l.b16 %v2139
      %v2189 = vpack.c.b16 %v2158, %v2157
      %v2190 = vpack.c.b16 %v2160, %v2159
      %v2191 = vpack.c.b16 %v2162, %v2161
      %v2192 = vpack.c.b16 %v2164, %v2163
      %v2193 = vpack.c.b16 %v2166, %v2165
      %v2194 = vpack.c.b16 %v2168, %v2167
      %v2195 = vpack.c.b16 %v2170, %v2169
      %v2196 = vpack.c.b16 %v2172, %v2171
      %v2197 = vpack.c.b16 %v2174, %v2173
      %v2198 = vpack.c.b16 %v2176, %v2175
      %v2199 = vpack.c.b16 %v2178, %v2177
      %v2200 = vpack.c.b16 %v2180, %v2179
      %v2201 = vpack.c.b16 %v2182, %v2181
      %v2202 = vpack.c.b16 %v2184, %v2183
      %v2203 = vpack.c.b16 %v2186, %v2185
      %v2204 = vpack.c.b16 %v2188, %v2187
      %v2237 = vunpack.c.l.b16 %v2141
      %v2238 = vunpack.c.l.b16 %v2142
      %v2239 = vunpack.c.l.b16 %v2143
      %v2240 = vunpack.c.l.b16 %v2144
      %v2241 = vunpack.c.l.b16 %v2145
      %v2242 = vunpack.c.l.b16 %v2146
      %v2243 = vunpack.c.l.b16 %v2147
      %v2244 = vunpack.c.l.b16 %v2148
      %v2245 = vunpack.c.l.b16 %v2149
      %v2246 = vunpack.c.l.b16 %v2150
      %v2247 = vunpack.c.l.b16 %v2151
      %v2248 = vunpack.c.l.b16 %v2152
      %v2249 = vunpack.c.l.b16 %v2153
      %v2250 = vunpack.c.l.b16 %v2154
      %v2251 = vunpack.c.l.b16 %v2155
      %v2252 = vunpack.c.l.b16 %v2156
      %v2253 = vpack.c.b16 %v2238, %v2237
      %v2254 = vpack.c.b16 %v2240, %v2239
      %v2255 = vpack.c.b16 %v2242, %v2241
      %v2256 = vpack.c.b16 %v2244, %v2243
      %v2257 = vpack.c.b16 %v2246, %v2245
      %v2258 = vpack.c.b16 %v2248, %v2247
      %v2259 = vpack.c.b16 %v2250, %v2249
      %v2260 = vpack.c.b16 %v2252, %v2251
      %2269 = vmatprep.subr.bf16.mxu0 0
      %2270 = vmatpush1.bf16.msra.mxu0 %v2253
      %2271 = vmatprep.subr.bf16.mxu0 0
      %2272 = vmatpush1.bf16.msra.mxu0 %v2254
      %2273 = vmatprep.subr.bf16.mxu0 0
      %2274 = vmatpush1.bf16.msra.mxu0 %v2255
      %2275 = vmatprep.subr.bf16.mxu0 0
      %2276 = vmatpush1.bf16.msra.mxu0 %v2256
      %2277 = vmatprep.subr.bf16.mxu0 0
      %2278 = vmatpush1.bf16.msra.mxu0 %v2257
      %2279 = vmatprep.subr.bf16.mxu0 0
      %2280 = vmatpush1.bf16.msra.mxu0 %v2258
      %2281 = vmatprep.subr.bf16.mxu0 0
      %2282 = vmatpush1.bf16.msra.mxu0 %v2259
      %2283 = vmatprep.subr.bf16.mxu0 0
      %2284 = vmatpush1.bf16.msra.mxu0 %v2260
      %2285 = vmatprep.subr.bf16.mxu0 0
      %2286 = vmatpush1.bf16.msra.mxu0 0
      %2287 = vmatprep.subr.bf16.mxu0 0
      %2288 = vmatpush1.bf16.msra.mxu0 0
      %2289 = vmatprep.subr.bf16.mxu0 0
      %2290 = vmatpush1.bf16.msra.mxu0 0
      %2291 = vmatprep.subr.bf16.mxu0 0
      %2292 = vmatpush1.bf16.msra.mxu0 0
      %2293 = vmatprep.subr.bf16.mxu0 0
      %2294 = vmatpush1.bf16.msra.mxu0 0
      %2295 = vmatprep.subr.bf16.mxu0 0
      %2296 = vmatpush1.bf16.msra.mxu0 0
      %2297 = vmatprep.subr.bf16.mxu0 0
      %2298 = vmatpush1.bf16.msra.mxu0 0
      %2299 = vmatprep.subr.bf16.mxu0 0
      %2300 = vmatpush1.bf16.msra.mxu0 0
      %2301 = vmatprep.mubr.bf16.mxu0 0
      %2302 = vmatmul.mubr.bf16.gmra.mrb[0].mxu0 %v2189
      %v2303 = vpop.f32.mrb[0].mxu0
      %v2304 = vadd.f32 0.0, %v2303
      %v2305 = vpop.f32.mrb[0].mxu0
      %v2306 = vpop.f32.mrb[0].mxu0
      %v2307 = vadd.f32 0.0, %v2306
      %v2308 = vpop.f32.mrb[0].mxu0
      %2309 = vmatprep.mubr.bf16.mxu0 0
      %2310 = vmatmul.mubr.bf16.gmra.mrb[0].mxu0 %v2190
      %v2311 = vpop.f32.mrb[0].mxu0
      %v2312 = vadd.f32 0.0, %v2311
      %v2313 = vpop.f32.mrb[0].mxu0
      %v2314 = vpop.f32.mrb[0].mxu0
      %v2315 = vadd.f32 0.0, %v2314
      %v2316 = vpop.f32.mrb[0].mxu0
      %2317 = vmatprep.mubr.bf16.mxu0 0
      %2318 = vmatmul.mubr.bf16.gmra.mrb[0].mxu0 %v2191
      %v2319 = vpop.f32.mrb[0].mxu0
      %v2320 = vadd.f32 0.0, %v2319
      %v2321 = vpop.f32.mrb[0].mxu0
      %v2322 = vpop.f32.mrb[0].mxu0
      %v2323 = vadd.f32 0.0, %v2322
      %v2324 = vpop.f32.mrb[0].mxu0
      %2325 = vmatprep.mubr.bf16.mxu0 0
      %2326 = vmatmul.mubr.bf16.gmra.mrb[0].mxu0 %v2192
      %v2327 = vpop.f32.mrb[0].mxu0
      %v2328 = vadd.f32 0.0, %v2327
      %v2329 = vpop.f32.mrb[0].mxu0
      %v2330 = vpop.f32.mrb[0].mxu0
      %v2331 = vadd.f32 0.0, %v2330
      %v2332 = vpop.f32.mrb[0].mxu0
      %2333 = vmatprep.mubr.bf16.mxu0 0
      %2334 = vmatmul.mubr.bf16.gmra.mrb[0].mxu0 %v2193
      %v2335 = vpop.f32.mrb[0].mxu0
      %v2336 = vadd.f32 0.0, %v2335
      %v2337 = vpop.f32.mrb[0].mxu0
      %v2338 = vpop.f32.mrb[0].mxu0
      %v2339 = vadd.f32 0.0, %v2338
      %v2340 = vpop.f32.mrb[0].mxu0
      %2341 = vmatprep.mubr.bf16.mxu0 0
      %2342 = vmatmul.mubr.bf16.gmra.mrb[0].mxu0 %v2194
      %v2343 = vpop.f32.mrb[0].mxu0
      %v2344 = vadd.f32 0.0, %v2343
      %v2345 = vpop.f32.mrb[0].mxu0
      %v2346 = vpop.f32.mrb[0].mxu0
      %v2347 = vadd.f32 0.0, %v2346
      %v2348 = vpop.f32.mrb[0].mxu0
      %2349 = vmatprep.mubr.bf16.mxu0 0
      %2350 = vmatmul.mubr.bf16.gmra.mrb[0].mxu0 %v2195
      %v2351 = vpop.f32.mrb[0].mxu0
      %v2352 = vadd.f32 0.0, %v2351
      %v2353 = vpop.f32.mrb[0].mxu0
      %v2354 = vpop.f32.mrb[0].mxu0
      %v2355 = vadd.f32 0.0, %v2354
      %v2356 = vpop.f32.mrb[0].mxu0
      %2357 = vmatprep.mubr.bf16.mxu0 0
      %2358 = vmatmul.mubr.bf16.gmra.mrb[0].mxu0 %v2196
      %v2359 = vpop.f32.mrb[0].mxu0
      %v2360 = vadd.f32 0.0, %v2359
      %v2361 = vpop.f32.mrb[0].mxu0
      %v2362 = vpop.f32.mrb[0].mxu0
      %v2363 = vadd.f32 0.0, %v2362
      %v2364 = vpop.f32.mrb[0].mxu0
      %2365 = vmatprep.mubr.bf16.mxu0 0
      %2366 = vmatmul.mubr.bf16.gmra.mrb[0].mxu0 %v2197
      %v2367 = vpop.f32.mrb[0].mxu0
      %v2368 = vadd.f32 0.0, %v2367
      %v2369 = vpop.f32.mrb[0].mxu0
      %v2370 = vpop.f32.mrb[0].mxu0
      %v2371 = vadd.f32 0.0, %v2370
      %v2372 = vpop.f32.mrb[0].mxu0
      %2373 = vmatprep.mubr.bf16.mxu0 0
      %2374 = vmatmul.mubr.bf16.gmra.mrb[0].mxu0 %v2198
      %v2375 = vpop.f32.mrb[0].mxu0
      %v2376 = vadd.f32 0.0, %v2375
      %v2377 = vpop.f32.mrb[0].mxu0
      %v2378 = vpop.f32.mrb[0].mxu0
      %v2379 = vadd.f32 0.0, %v2378
      %v2380 = vpop.f32.mrb[0].mxu0
      %2381 = vmatprep.mubr.bf16.mxu0 0
      %2382 = vmatmul.mubr.bf16.gmra.mrb[0].mxu0 %v2199
      %v2383 = vpop.f32.mrb[0].mxu0
      %v2384 = vadd.f32 0.0, %v2383
      %v2385 = vpop.f32.mrb[0].mxu0
      %v2386 = vpop.f32.mrb[0].mxu0
      %v2387 = vadd.f32 0.0, %v2386
      %v2388 = vpop.f32.mrb[0].mxu0
      %2389 = vmatprep.mubr.bf16.mxu0 0
      %2390 = vmatmul.mubr.bf16.gmra.mrb[0].mxu0 %v2200
      %v2391 = vpop.f32.mrb[0].mxu0
      %v2392 = vadd.f32 0.0, %v2391
      %v2393 = vpop.f32.mrb[0].mxu0
      %v2394 = vpop.f32.mrb[0].mxu0
      %v2395 = vadd.f32 0.0, %v2394
      %v2396 = vpop.f32.mrb[0].mxu0
      %2397 = vmatprep.mubr.bf16.mxu0 0
      %2398 = vmatmul.mubr.bf16.gmra.mrb[0].mxu0 %v2201
      %v2399 = vpop.f32.mrb[0].mxu0
      %v2400 = vadd.f32 0.0, %v2399
      %v2401 = vpop.f32.mrb[0].mxu0
      %v2402 = vpop.f32.mrb[0].mxu0
      %v2403 = vadd.f32 0.0, %v2402
      %v2404 = vpop.f32.mrb[0].mxu0
      %2405 = vmatprep.mubr.bf16.mxu0 0
      %2406 = vmatmul.mubr.bf16.gmra.mrb[0].mxu0 %v2202
      %v2407 = vpop.f32.mrb[0].mxu0
      %v2408 = vadd.f32 0.0, %v2407
      %v2409 = vpop.f32.mrb[0].mxu0
      %v2410 = vpop.f32.mrb[0].mxu0
      %v2411 = vadd.f32 0.0, %v2410
      %v2412 = vpop.f32.mrb[0].mxu0
      %2413 = vmatprep.mubr.bf16.mxu0 0
      %2414 = vmatmul.mubr.bf16.gmra.mrb[0].mxu0 %v2203
      %v2415 = vpop.f32.mrb[0].mxu0
      %v2416 = vadd.f32 0.0, %v2415
      %v2417 = vpop.f32.mrb[0].mxu0
      %v2418 = vpop.f32.mrb[0].mxu0
      %v2419 = vadd.f32 0.0, %v2418
      %v2420 = vpop.f32.mrb[0].mxu0
      %2421 = vmatprep.mubr.bf16.mxu0 0
      %2422 = vmatmul.mubr.bf16.gmra.mrb[0].mxu0 %v2204
      %v2423 = vpop.f32.mrb[0].mxu0
      %v2424 = vadd.f32 0.0, %v2423
      %v2425 = vpop.f32.mrb[0].mxu0
      %v2426 = vpop.f32.mrb[0].mxu0
      %v2427 = vadd.f32 0.0, %v2426
      %v2428 = vpop.f32.mrb[0].mxu0
      %2429 = vdwg.mxu0
      %v2430 = vadd.f32 %v1851, %v2304
      %v2431 = vadd.f32 %v1854, %v2307
      %v2432 = vadd.f32 %v1859, %v2312
      %v2433 = vadd.f32 %v1862, %v2315
      %v2434 = vadd.f32 %v1867, %v2320
      %v2435 = vadd.f32 %v1870, %v2323
      %v2436 = vadd.f32 %v1875, %v2328
      %v2437 = vadd.f32 %v1878, %v2331
      %v2438 = vadd.f32 %v1883, %v2336
      %v2439 = vadd.f32 %v1886, %v2339
      %v2440 = vadd.f32 %v1891, %v2344
      %v2441 = vadd.f32 %v1894, %v2347
      %v2442 = vadd.f32 %v1899, %v2352
      %v2443 = vadd.f32 %v1902, %v2355
      %v2444 = vadd.f32 %v1907, %v2360
      %v2445 = vadd.f32 %v1910, %v2363
      %v2446 = vadd.f32 %v1915, %v2368
      %v2447 = vadd.f32 %v1918, %v2371
      %v2448 = vadd.f32 %v1923, %v2376
      %v2449 = vadd.f32 %v1926, %v2379
      %v2450 = vadd.f32 %v1931, %v2384
      %v2451 = vadd.f32 %v1934, %v2387
      %v2452 = vadd.f32 %v1939, %v2392
      %v2453 = vadd.f32 %v1942, %v2395
      %v2454 = vadd.f32 %v1947, %v2400
      %v2455 = vadd.f32 %v1950, %v2403
      %v2456 = vadd.f32 %v1955, %v2408
      %v2457 = vadd.f32 %v1958, %v2411
      %v2458 = vadd.f32 %v1963, %v2416
      %v2459 = vadd.f32 %v1966, %v2419
      %v2460 = vadd.f32 %v1971, %v2424
      %v2461 = vadd.f32 %v1974, %v2427
      %v2462 = vld [vmem:[%s813] sm:$0xf]
      %v2463 = vld [vmem:[%s813 + $0x4] sm:$0xf]
      %v2464 = vld [vmem:[%s813 + $0xc] sm:$0xf]
      %v2465 = vld [vmem:[%s813 + $0x10] sm:$0xf]
      %v2466 = vld [vmem:[%s813 + $0x18] sm:$0xf]
      %v2467 = vld [vmem:[%s813 + $0x1c] sm:$0xf]
      %v2468 = vld [vmem:[%s813 + $0x24] sm:$0xf]
      %v2469 = vld [vmem:[%s813 + $0x28] sm:$0xf]
      %v2470 = vld [vmem:[%s813 + $0x30] sm:$0xf]
      %v2471 = vld [vmem:[%s813 + $0x34] sm:$0xf]
      %v2472 = vld [vmem:[%s813 + $0x3c] sm:$0xf]
      %v2473 = vld [vmem:[%s813 + $0x40] sm:$0xf]
      %v2474 = vld [vmem:[%s813 + $0x48] sm:$0xf]
      %v2475 = vld [vmem:[%s813 + $0x4c] sm:$0xf]
      %v2476 = vld [vmem:[%s813 + $0x54] sm:$0xf]
      %v2477 = vld [vmem:[%s813 + $0x58] sm:$0xf]
      %v2478 = vld [vmem:[%s813 + $0x60] sm:$0xf]
      %v2479 = vld [vmem:[%s813 + $0x64] sm:$0xf]
      %v2480 = vld [vmem:[%s813 + $0x6c] sm:$0xf]
      %v2481 = vld [vmem:[%s813 + $0x70] sm:$0xf]
      %v2482 = vld [vmem:[%s813 + $0x78] sm:$0xf]
      %v2483 = vld [vmem:[%s813 + $0x7c] sm:$0xf]
      %v2484 = vld [vmem:[%s813 + $0x84] sm:$0xf]
      %v2485 = vld [vmem:[%s813 + $0x88] sm:$0xf]
      %v2486 = vld [vmem:[%s813 + $0x90] sm:$0xf]
      %v2487 = vld [vmem:[%s813 + $0x94] sm:$0xf]
      %v2488 = vld [vmem:[%s813 + $0x9c] sm:$0xf]
      %v2489 = vld [vmem:[%s813 + $0xa0] sm:$0xf]
      %v2490 = vld [vmem:[%s813 + $0xa8] sm:$0xf]
      %v2491 = vld [vmem:[%s813 + $0xac] sm:$0xf]
      %v2492 = vld [vmem:[%s813 + $0xb4] sm:$0xf]
      %v2493 = vld [vmem:[%s813 + $0xb8] sm:$0xf]
      %s2494 = scalar_lea.vmem %s2, 192
      %v2495 = vld [vmem:[%s2494] sm:$0xf]
      %v2496 = vld [vmem:[%s2494 + $0x4] sm:$0xf]
      %v2497 = vld [vmem:[%s2494 + $0x8] sm:$0xf]
      %v2498 = vld [vmem:[%s2494 + $0xc] sm:$0xf]
      %v2499 = vld [vmem:[%s2494 + $0x10] sm:$0xf]
      %v2500 = vld [vmem:[%s2494 + $0x14] sm:$0xf]
      %v2501 = vld [vmem:[%s2494 + $0x18] sm:$0xf]
      %v2502 = vld [vmem:[%s2494 + $0x1c] sm:$0xf]
      %v2503 = vld [vmem:[%s2494 + $0x20] sm:$0xf]
      %v2504 = vld [vmem:[%s2494 + $0x24] sm:$0xf]
      %v2505 = vld [vmem:[%s2494 + $0x28] sm:$0xf]
      %v2506 = vld [vmem:[%s2494 + $0x2c] sm:$0xf]
      %v2507 = vld [vmem:[%s2494 + $0x30] sm:$0xf]
      %v2508 = vld [vmem:[%s2494 + $0x34] sm:$0xf]
      %v2509 = vld [vmem:[%s2494 + $0x38] sm:$0xf]
      %v2510 = vld [vmem:[%s2494 + $0x3c] sm:$0xf]
      %v2543 = vunpack.c.l.b16 %v2462
      %v2544 = vunpack.c.l.b16 %v2463
      %v2545 = vunpack.c.l.b16 %v2464
      %v2546 = vunpack.c.l.b16 %v2465
      %v2547 = vunpack.c.l.b16 %v2466
      %v2548 = vunpack.c.l.b16 %v2467
      %v2549 = vunpack.c.l.b16 %v2468
      %v2550 = vunpack.c.l.b16 %v2469
      %v2551 = vunpack.c.l.b16 %v2470
      %v2552 = vunpack.c.l.b16 %v2471
      %v2553 = vunpack.c.l.b16 %v2472
      %v2554 = vunpack.c.l.b16 %v2473
      %v2555 = vunpack.c.l.b16 %v2474
      %v2556 = vunpack.c.l.b16 %v2475
      %v2557 = vunpack.c.l.b16 %v2476
      %v2558 = vunpack.c.l.b16 %v2477
      %v2559 = vunpack.c.l.b16 %v2478
      %v2560 = vunpack.c.l.b16 %v2479
      %v2561 = vunpack.c.l.b16 %v2480
      %v2562 = vunpack.c.l.b16 %v2481
      %v2563 = vunpack.c.l.b16 %v2482
      %v2564 = vunpack.c.l.b16 %v2483
      %v2565 = vunpack.c.l.b16 %v2484
      %v2566 = vunpack.c.l.b16 %v2485
      %v2567 = vunpack.c.l.b16 %v2486
      %v2568 = vunpack.c.l.b16 %v2487
      %v2569 = vunpack.c.l.b16 %v2488
      %v2570 = vunpack.c.l.b16 %v2489
      %v2571 = vunpack.c.l.b16 %v2490
      %v2572 = vunpack.c.l.b16 %v2491
      %v2573 = vunpack.c.l.b16 %v2492
      %v2574 = vunpack.c.l.b16 %v2493
      %v2575 = vpack.c.b16 %v2544, %v2543
      %v2576 = vpack.c.b16 %v2546, %v2545
      %v2577 = vpack.c.b16 %v2548, %v2547
      %v2578 = vpack.c.b16 %v2550, %v2549
      %v2579 = vpack.c.b16 %v2552, %v2551
      %v2580 = vpack.c.b16 %v2554, %v2553
      %v2581 = vpack.c.b16 %v2556, %v2555
      %v2582 = vpack.c.b16 %v2558, %v2557
      %v2583 = vpack.c.b16 %v2560, %v2559
      %v2584 = vpack.c.b16 %v2562, %v2561
      %v2585 = vpack.c.b16 %v2564, %v2563
      %v2586 = vpack.c.b16 %v2566, %v2565
      %v2587 = vpack.c.b16 %v2568, %v2567
      %v2588 = vpack.c.b16 %v2570, %v2569
      %v2589 = vpack.c.b16 %v2572, %v2571
      %v2590 = vpack.c.b16 %v2574, %v2573
      %v2623 = vunpack.c.l.b16 %v2495
      %v2624 = vunpack.c.l.b16 %v2496
      %v2625 = vunpack.c.l.b16 %v2497
      %v2626 = vunpack.c.l.b16 %v2498
      %v2627 = vunpack.c.l.b16 %v2499
      %v2628 = vunpack.c.l.b16 %v2500
      %v2629 = vunpack.c.l.b16 %v2501
      %v2630 = vunpack.c.l.b16 %v2502
      %v2631 = vunpack.c.l.b16 %v2503
      %v2632 = vunpack.c.l.b16 %v2504
      %v2633 = vunpack.c.l.b16 %v2505
      %v2634 = vunpack.c.l.b16 %v2506
      %v2635 = vunpack.c.l.b16 %v2507
      %v2636 = vunpack.c.l.b16 %v2508
      %v2637 = vunpack.c.l.b16 %v2509
      %v2638 = vunpack.c.l.b16 %v2510
      %v2639 = vpack.c.b16 %v2624, %v2623
      %v2640 = vpack.c.b16 %v2626, %v2625
      %v2641 = vpack.c.b16 %v2628, %v2627
      %v2642 = vpack.c.b16 %v2630, %v2629
      %v2643 = vpack.c.b16 %v2632, %v2631
      %v2644 = vpack.c.b16 %v2634, %v2633
      %v2645 = vpack.c.b16 %v2636, %v2635
      %v2646 = vpack.c.b16 %v2638, %v2637
      %2655 = vmatprep.subr.bf16.mxu0 0
      %2656 = vmatpush1.bf16.msra.mxu0 %v2639
      %2657 = vmatprep.subr.bf16.mxu0 0
      %2658 = vmatpush1.bf16.msra.mxu0 %v2640
      %2659 = vmatprep.subr.bf16.mxu0 0
      %2660 = vmatpush1.bf16.msra.mxu0 %v2641
      %2661 = vmatprep.subr.bf16.mxu0 0
      %2662 = vmatpush1.bf16.msra.mxu0 %v2642
      %2663 = vmatprep.subr.bf16.mxu0 0
      %2664 = vmatpush1.bf16.msra.mxu0 %v2643
      %2665 = vmatprep.subr.bf16.mxu0 0
      %2666 = vmatpush1.bf16.msra.mxu0 %v2644
      %2667 = vmatprep.subr.bf16.mxu0 0
      %2668 = vmatpush1.bf16.msra.mxu0 %v2645
      %2669 = vmatprep.subr.bf16.mxu0 0
      %2670 = vmatpush1.bf16.msra.mxu0 %v2646
      %2671 = vmatprep.subr.bf16.mxu0 0
      %2672 = vmatpush1.bf16.msra.mxu0 0
      %2673 = vmatprep.subr.bf16.mxu0 0
      %2674 = vmatpush1.bf16.msra.mxu0 0
      %2675 = vmatprep.subr.bf16.mxu0 0
      %2676 = vmatpush1.bf16.msra.mxu0 0
      %2677 = vmatprep.subr.bf16.mxu0 0
      %2678 = vmatpush1.bf16.msra.mxu0 0
      %2679 = vmatprep.subr.bf16.mxu0 0
      %2680 = vmatpush1.bf16.msra.mxu0 0
      %2681 = vmatprep.subr.bf16.mxu0 0
      %2682 = vmatpush1.bf16.msra.mxu0 0
      %2683 = vmatprep.subr.bf16.mxu0 0
      %2684 = vmatpush1.bf16.msra.mxu0 0
      %2685 = vmatprep.subr.bf16.mxu0 0
      %2686 = vmatpush1.bf16.msra.mxu0 0
      %2687 = vmatprep.mubr.bf16.mxu0 0
      %2688 = vmatmul.mubr.bf16.gmra.mrb[0].mxu0 %v2575
      %v2689 = vpop.f32.mrb[0].mxu0
      %v2690 = vadd.f32 0.0, %v2689
      %v2691 = vpop.f32.mrb[0].mxu0
      %v2692 = vpop.f32.mrb[0].mxu0
      %v2693 = vadd.f32 0.0, %v2692
      %v2694 = vpop.f32.mrb[0].mxu0
      %2695 = vmatprep.mubr.bf16.mxu0 0
      %2696 = vmatmul.mubr.bf16.gmra.mrb[0].mxu0 %v2576
      %v2697 = vpop.f32.mrb[0].mxu0
      %v2698 = vadd.f32 0.0, %v2697
      %v2699 = vpop.f32.mrb[0].mxu0
      %v2700 = vpop.f32.mrb[0].mxu0
      %v2701 = vadd.f32 0.0, %v2700
      %v2702 = vpop.f32.mrb[0].mxu0
      %2703 = vmatprep.mubr.bf16.mxu0 0
      %2704 = vmatmul.mubr.bf16.gmra.mrb[0].mxu0 %v2577
      %v2705 = vpop.f32.mrb[0].mxu0
      %v2706 = vadd.f32 0.0, %v2705
      %v2707 = vpop.f32.mrb[0].mxu0
      %v2708 = vpop.f32.mrb[0].mxu0
      %v2709 = vadd.f32 0.0, %v2708
      %v2710 = vpop.f32.mrb[0].mxu0
      %2711 = vmatprep.mubr.bf16.mxu0 0
      %2712 = vmatmul.mubr.bf16.gmra.mrb[0].mxu0 %v2578
      %v2713 = vpop.f32.mrb[0].mxu0
      %v2714 = vadd.f32 0.0, %v2713
      %v2715 = vpop.f32.mrb[0].mxu0
      %v2716 = vpop.f32.mrb[0].mxu0
      %v2717 = vadd.f32 0.0, %v2716
      %v2718 = vpop.f32.mrb[0].mxu0
      %2719 = vmatprep.mubr.bf16.mxu0 0
      %2720 = vmatmul.mubr.bf16.gmra.mrb[0].mxu0 %v2579
      %v2721 = vpop.f32.mrb[0].mxu0
      %v2722 = vadd.f32 0.0, %v2721
      %v2723 = vpop.f32.mrb[0].mxu0
      %v2724 = vpop.f32.mrb[0].mxu0
      %v2725 = vadd.f32 0.0, %v2724
      %v2726 = vpop.f32.mrb[0].mxu0
      %2727 = vmatprep.mubr.bf16.mxu0 0
      %2728 = vmatmul.mubr.bf16.gmra.mrb[0].mxu0 %v2580
      %v2729 = vpop.f32.mrb[0].mxu0
      %v2730 = vadd.f32 0.0, %v2729
      %v2731 = vpop.f32.mrb[0].mxu0
      %v2732 = vpop.f32.mrb[0].mxu0
      %v2733 = vadd.f32 0.0, %v2732
      %v2734 = vpop.f32.mrb[0].mxu0
      %2735 = vmatprep.mubr.bf16.mxu0 0
      %2736 = vmatmul.mubr.bf16.gmra.mrb[0].mxu0 %v2581
      %v2737 = vpop.f32.mrb[0].mxu0
      %v2738 = vadd.f32 0.0, %v2737
      %v2739 = vpop.f32.mrb[0].mxu0
      %v2740 = vpop.f32.mrb[0].mxu0
      %v2741 = vadd.f32 0.0, %v2740
      %v2742 = vpop.f32.mrb[0].mxu0
      %2743 = vmatprep.mubr.bf16.mxu0 0
      %2744 = vmatmul.mubr.bf16.gmra.mrb[0].mxu0 %v2582
      %v2745 = vpop.f32.mrb[0].mxu0
      %v2746 = vadd.f32 0.0, %v2745
      %v2747 = vpop.f32.mrb[0].mxu0
      %v2748 = vpop.f32.mrb[0].mxu0
      %v2749 = vadd.f32 0.0, %v2748
      %v2750 = vpop.f32.mrb[0].mxu0
      %2751 = vmatprep.mubr.bf16.mxu0 0
      %2752 = vmatmul.mubr.bf16.gmra.mrb[0].mxu0 %v2583
      %v2753 = vpop.f32.mrb[0].mxu0
      %v2754 = vadd.f32 0.0, %v2753
      %v2755 = vpop.f32.mrb[0].mxu0
      %v2756 = vpop.f32.mrb[0].mxu0
      %v2757 = vadd.f32 0.0, %v2756
      %v2758 = vpop.f32.mrb[0].mxu0
      %2759 = vmatprep.mubr.bf16.mxu0 0
      %2760 = vmatmul.mubr.bf16.gmra.mrb[0].mxu0 %v2584
      %v2761 = vpop.f32.mrb[0].mxu0
      %v2762 = vadd.f32 0.0, %v2761
      %v2763 = vpop.f32.mrb[0].mxu0
      %v2764 = vpop.f32.mrb[0].mxu0
      %v2765 = vadd.f32 0.0, %v2764
      %v2766 = vpop.f32.mrb[0].mxu0
      %2767 = vmatprep.mubr.bf16.mxu0 0
      %2768 = vmatmul.mubr.bf16.gmra.mrb[0].mxu0 %v2585
      %v2769 = vpop.f32.mrb[0].mxu0
      %v2770 = vadd.f32 0.0, %v2769
      %v2771 = vpop.f32.mrb[0].mxu0
      %v2772 = vpop.f32.mrb[0].mxu0
      %v2773 = vadd.f32 0.0, %v2772
      %v2774 = vpop.f32.mrb[0].mxu0
      %2775 = vmatprep.mubr.bf16.mxu0 0
      %2776 = vmatmul.mubr.bf16.gmra.mrb[0].mxu0 %v2586
      %v2777 = vpop.f32.mrb[0].mxu0
      %v2778 = vadd.f32 0.0, %v2777
      %v2779 = vpop.f32.mrb[0].mxu0
      %v2780 = vpop.f32.mrb[0].mxu0
      %v2781 = vadd.f32 0.0, %v2780
      %v2782 = vpop.f32.mrb[0].mxu0
      %2783 = vmatprep.mubr.bf16.mxu0 0
      %2784 = vmatmul.mubr.bf16.gmra.mrb[0].mxu0 %v2587
      %v2785 = vpop.f32.mrb[0].mxu0
      %v2786 = vadd.f32 0.0, %v2785
      %v2787 = vpop.f32.mrb[0].mxu0
      %v2788 = vpop.f32.mrb[0].mxu0
      %v2789 = vadd.f32 0.0, %v2788
      %v2790 = vpop.f32.mrb[0].mxu0
      %2791 = vmatprep.mubr.bf16.mxu0 0
      %2792 = vmatmul.mubr.bf16.gmra.mrb[0].mxu0 %v2588
      %v2793 = vpop.f32.mrb[0].mxu0
      %v2794 = vadd.f32 0.0, %v2793
      %v2795 = vpop.f32.mrb[0].mxu0
      %v2796 = vpop.f32.mrb[0].mxu0
      %v2797 = vadd.f32 0.0, %v2796
      %v2798 = vpop.f32.mrb[0].mxu0
      %2799 = vmatprep.mubr.bf16.mxu0 0
      %2800 = vmatmul.mubr.bf16.gmra.mrb[0].mxu0 %v2589
      %v2801 = vpop.f32.mrb[0].mxu0
      %v2802 = vadd.f32 0.0, %v2801
      %v2803 = vpop.f32.mrb[0].mxu0
      %v2804 = vpop.f32.mrb[0].mxu0
      %v2805 = vadd.f32 0.0, %v2804
      %v2806 = vpop.f32.mrb[0].mxu0
      %2807 = vmatprep.mubr.bf16.mxu0 0
      %2808 = vmatmul.mubr.bf16.gmra.mrb[0].mxu0 %v2590
      %v2809 = vpop.f32.mrb[0].mxu0
      %v2810 = vadd.f32 0.0, %v2809
      %v2811 = vpop.f32.mrb[0].mxu0
      %v2812 = vpop.f32.mrb[0].mxu0
      %v2813 = vadd.f32 0.0, %v2812
      %v2814 = vpop.f32.mrb[0].mxu0
      %2815 = vdwg.mxu0
      %v2816 = vadd.f32 %v2430, %v2690
      %v2817 = vadd.f32 %v2431, %v2693
      %v2818 = vadd.f32 %v2432, %v2698
      %v2819 = vadd.f32 %v2433, %v2701
      %v2820 = vadd.f32 %v2434, %v2706
      %v2821 = vadd.f32 %v2435, %v2709
      %v2822 = vadd.f32 %v2436, %v2714
      %v2823 = vadd.f32 %v2437, %v2717
      %v2824 = vadd.f32 %v2438, %v2722
      %v2825 = vadd.f32 %v2439, %v2725
      %v2826 = vadd.f32 %v2440, %v2730
      %v2827 = vadd.f32 %v2441, %v2733
      %v2828 = vadd.f32 %v2442, %v2738
      %v2829 = vadd.f32 %v2443, %v2741
      %v2830 = vadd.f32 %v2444, %v2746
      %v2831 = vadd.f32 %v2445, %v2749
      %v2832 = vadd.f32 %v2446, %v2754
      %v2833 = vadd.f32 %v2447, %v2757
      %v2834 = vadd.f32 %v2448, %v2762
      %v2835 = vadd.f32 %v2449, %v2765
      %v2836 = vadd.f32 %v2450, %v2770
      %v2837 = vadd.f32 %v2451, %v2773
      %v2838 = vadd.f32 %v2452, %v2778
      %v2839 = vadd.f32 %v2453, %v2781
      %v2840 = vadd.f32 %v2454, %v2786
      %v2841 = vadd.f32 %v2455, %v2789
      %v2842 = vadd.f32 %v2456, %v2794
      %v2843 = vadd.f32 %v2457, %v2797
      %v2844 = vadd.f32 %v2458, %v2802
      %v2845 = vadd.f32 %v2459, %v2805
      %v2846 = vadd.f32 %v2460, %v2810
      %v2847 = vadd.f32 %v2461, %v2813
      %v2848 = vld [vmem:[%s813] sm:$0xf]
      %v2849 = vld [vmem:[%s813 + $0x4] sm:$0xf]
      %v2850 = vld [vmem:[%s813 + $0x8] sm:$0x1]
      %v2851 = vld [vmem:[%s813 + $0xc] sm:$0xf]
      %v2852 = vld [vmem:[%s813 + $0x10] sm:$0xf]
      %v2853 = vld [vmem:[%s813 + $0x14] sm:$0x1]
      %v2854 = vld [vmem:[%s813 + $0x18] sm:$0xf]
      %v2855 = vld [vmem:[%s813 + $0x1c] sm:$0xf]
      %v2856 = vld [vmem:[%s813 + $0x20] sm:$0x1]
      %v2857 = vld [vmem:[%s813 + $0x24] sm:$0xf]
      %v2858 = vld [vmem:[%s813 + $0x28] sm:$0xf]
      %v2859 = vld [vmem:[%s813 + $0x2c] sm:$0x1]
      %v2860 = vld [vmem:[%s813 + $0x30] sm:$0xf]
      %v2861 = vld [vmem:[%s813 + $0x34] sm:$0xf]
      %v2862 = vld [vmem:[%s813 + $0x38] sm:$0x1]
      %v2863 = vld [vmem:[%s813 + $0x3c] sm:$0xf]
      %v2864 = vld [vmem:[%s813 + $0x40] sm:$0xf]
      %v2865 = vld [vmem:[%s813 + $0x44] sm:$0x1]
      %v2866 = vld [vmem:[%s813 + $0x48] sm:$0xf]
      %v2867 = vld [vmem:[%s813 + $0x4c] sm:$0xf]
      %v2868 = vld [vmem:[%s813 + $0x50] sm:$0x1]
      %v2869 = vld [vmem:[%s813 + $0x54] sm:$0xf]
      %v2870 = vld [vmem:[%s813 + $0x58] sm:$0xf]
      %v2871 = vld [vmem:[%s813 + $0x5c] sm:$0x1]
      %v2872 = vld [vmem:[%s813 + $0x60] sm:$0xf]
      %v2873 = vld [vmem:[%s813 + $0x64] sm:$0xf]
      %v2874 = vld [vmem:[%s813 + $0x68] sm:$0x1]
      %v2875 = vld [vmem:[%s813 + $0x6c] sm:$0xf]
      %v2876 = vld [vmem:[%s813 + $0x70] sm:$0xf]
      %v2877 = vld [vmem:[%s813 + $0x74] sm:$0x1]
      %v2878 = vld [vmem:[%s813 + $0x78] sm:$0xf]
      %v2879 = vld [vmem:[%s813 + $0x7c] sm:$0xf]
      %v2880 = vld [vmem:[%s813 + $0x80] sm:$0x1]
      %v2881 = vld [vmem:[%s813 + $0x84] sm:$0xf]
      %v2882 = vld [vmem:[%s813 + $0x88] sm:$0xf]
      %v2883 = vld [vmem:[%s813 + $0x8c] sm:$0x1]
      %v2884 = vld [vmem:[%s813 + $0x90] sm:$0xf]
      %v2885 = vld [vmem:[%s813 + $0x94] sm:$0xf]
      %v2886 = vld [vmem:[%s813 + $0x98] sm:$0x1]
      %v2887 = vld [vmem:[%s813 + $0x9c] sm:$0xf]
      %v2888 = vld [vmem:[%s813 + $0xa0] sm:$0xf]
      %v2889 = vld [vmem:[%s813 + $0xa4] sm:$0x1]
      %v2890 = vld [vmem:[%s813 + $0xa8] sm:$0xf]
      %v2891 = vld [vmem:[%s813 + $0xac] sm:$0xf]
      %v2892 = vld [vmem:[%s813 + $0xb0] sm:$0x1]
      %v2893 = vld [vmem:[%s813 + $0xb4] sm:$0xf]
      %v2894 = vld [vmem:[%s813 + $0xb8] sm:$0xf]
      %v2895 = vld [vmem:[%s813 + $0xbc] sm:$0x1]
      %v2897 = vshrl.u32 %v2848, 16
      %v2899 = vrot.slane %v2897, 4
      %v2900 = vshll.u32 %v2848, 16
      %v2902 = vrot.slane %v2900, 5
      %v2903 = vor.u32 %v2899, %v2902
      %v2904 = vrot.slane %v2903, 4
      %v2906 = vshll.u32 %v2849, 16
      %v2908 = vrot.slane %v2906, 5
      %v2909 = vsel %vm997, %v2904, %v2908
      %v2910 = vshrl.u32 %v2849, 16
      %v2912 = vrot.slane %v2910, 4
      %v2913 = vor.u32 %v2912, %v2908
      %v2914 = vrot.slane %v2913, 4
      %v2916 = vshll.u32 %v2850, 16
      %v2918 = vrot.slane %v2916, 5
      %v2919 = vsel %vm997, %v2914, %v2918
      %v2921 = vshrl.u32 %v2851, 16
      %v2923 = vrot.slane %v2921, 4
      %v2924 = vshll.u32 %v2851, 16
      %v2926 = vrot.slane %v2924, 5
      %v2927 = vor.u32 %v2923, %v2926
      %v2928 = vrot.slane %v2927, 4
      %v2930 = vshll.u32 %v2852, 16
      %v2932 = vrot.slane %v2930, 5
      %v2933 = vsel %vm997, %v2928, %v2932
      %v2934 = vshrl.u32 %v2852, 16
      %v2936 = vrot.slane %v2934, 4
      %v2937 = vor.u32 %v2936, %v2932
      %v2938 = vrot.slane %v2937, 4
      %v2940 = vshll.u32 %v2853, 16
      %v2942 = vrot.slane %v2940, 5
      %v2943 = vsel %vm997, %v2938, %v2942
      %v2945 = vshrl.u32 %v2854, 16
      %v2947 = vrot.slane %v2945, 4
      %v2948 = vshll.u32 %v2854, 16
      %v2950 = vrot.slane %v2948, 5
      %v2951 = vor.u32 %v2947, %v2950
      %v2952 = vrot.slane %v2951, 4
      %v2954 = vshll.u32 %v2855, 16
      %v2956 = vrot.slane %v2954, 5
      %v2957 = vsel %vm997, %v2952, %v2956
      %v2958 = vshrl.u32 %v2855, 16
      %v2960 = vrot.slane %v2958, 4
      %v2961 = vor.u32 %v2960, %v2956
      %v2962 = vrot.slane %v2961, 4
      %v2964 = vshll.u32 %v2856, 16
      %v2966 = vrot.slane %v2964, 5
      %v2967 = vsel %vm997, %v2962, %v2966
      %v2969 = vshrl.u32 %v2857, 16
      %v2971 = vrot.slane %v2969, 4
      %v2972 = vshll.u32 %v2857, 16
      %v2974 = vrot.slane %v2972, 5
      %v2975 = vor.u32 %v2971, %v2974
      %v2976 = vrot.slane %v2975, 4
      %v2978 = vshll.u32 %v2858, 16
      %v2980 = vrot.slane %v2978, 5
      %v2981 = vsel %vm997, %v2976, %v2980
      %v2982 = vshrl.u32 %v2858, 16
      %v2984 = vrot.slane %v2982, 4
      %v2985 = vor.u32 %v2984, %v2980
      %v2986 = vrot.slane %v2985, 4
      %v2988 = vshll.u32 %v2859, 16
      %v2990 = vrot.slane %v2988, 5
      %v2991 = vsel %vm997, %v2986, %v2990
      %v2993 = vshrl.u32 %v2860, 16
      %v2995 = vrot.slane %v2993, 4
      %v2996 = vshll.u32 %v2860, 16
      %v2998 = vrot.slane %v2996, 5
      %v2999 = vor.u32 %v2995, %v2998
      %v3000 = vrot.slane %v2999, 4
      %v3002 = vshll.u32 %v2861, 16
      %v3004 = vrot.slane %v3002, 5
      %v3005 = vsel %vm997, %v3000, %v3004
      %v3006 = vshrl.u32 %v2861, 16
      %v3008 = vrot.slane %v3006, 4
      %v3009 = vor.u32 %v3008, %v3004
      %v3010 = vrot.slane %v3009, 4
      %v3012 = vshll.u32 %v2862, 16
      %v3014 = vrot.slane %v3012, 5
      %v3015 = vsel %vm997, %v3010, %v3014
      %v3017 = vshrl.u32 %v2863, 16
      %v3019 = vrot.slane %v3017, 4
      %v3020 = vshll.u32 %v2863, 16
      %v3022 = vrot.slane %v3020, 5
      %v3023 = vor.u32 %v3019, %v3022
      %v3024 = vrot.slane %v3023, 4
      %v3026 = vshll.u32 %v2864, 16
      %v3028 = vrot.slane %v3026, 5
      %v3029 = vsel %vm997, %v3024, %v3028
      %v3030 = vshrl.u32 %v2864, 16
      %v3032 = vrot.slane %v3030, 4
      %v3033 = vor.u32 %v3032, %v3028
      %v3034 = vrot.slane %v3033, 4
      %v3036 = vshll.u32 %v2865, 16
      %v3038 = vrot.slane %v3036, 5
      %v3039 = vsel %vm997, %v3034, %v3038
      %v3041 = vshrl.u32 %v2866, 16
      %v3043 = vrot.slane %v3041, 4
      %v3044 = vshll.u32 %v2866, 16
      %v3046 = vrot.slane %v3044, 5
      %v3047 = vor.u32 %v3043, %v3046
      %v3048 = vrot.slane %v3047, 4
      %v3050 = vshll.u32 %v2867, 16
      %v3052 = vrot.slane %v3050, 5
      %v3053 = vsel %vm997, %v3048, %v3052
      %v3054 = vshrl.u32 %v2867, 16
      %v3056 = vrot.slane %v3054, 4
      %v3057 = vor.u32 %v3056, %v3052
      %v3058 = vrot.slane %v3057, 4
      %v3060 = vshll.u32 %v2868, 16
      %v3062 = vrot.slane %v3060, 5
      %v3063 = vsel %vm997, %v3058, %v3062
      %v3065 = vshrl.u32 %v2869, 16
      %v3067 = vrot.slane %v3065, 4
      %v3068 = vshll.u32 %v2869, 16
      %v3070 = vrot.slane %v3068, 5
      %v3071 = vor.u32 %v3067, %v3070
      %v3072 = vrot.slane %v3071, 4
      %v3074 = vshll.u32 %v2870, 16
      %v3076 = vrot.slane %v3074, 5
      %v3077 = vsel %vm997, %v3072, %v3076
      %v3078 = vshrl.u32 %v2870, 16
      %v3080 = vrot.slane %v3078, 4
      %v3081 = vor.u32 %v3080, %v3076
      %v3082 = vrot.slane %v3081, 4
      %v3084 = vshll.u32 %v2871, 16
      %v3086 = vrot.slane %v3084, 5
      %v3087 = vsel %vm997, %v3082, %v3086
      %v3089 = vshrl.u32 %v2872, 16
      %v3091 = vrot.slane %v3089, 4
      %v3092 = vshll.u32 %v2872, 16
      %v3094 = vrot.slane %v3092, 5
      %v3095 = vor.u32 %v3091, %v3094
      %v3096 = vrot.slane %v3095, 4
      %v3098 = vshll.u32 %v2873, 16
      %v3100 = vrot.slane %v3098, 5
      %v3101 = vsel %vm997, %v3096, %v3100
      %v3102 = vshrl.u32 %v2873, 16
      %v3104 = vrot.slane %v3102, 4
      %v3105 = vor.u32 %v3104, %v3100
      %v3106 = vrot.slane %v3105, 4
      %v3108 = vshll.u32 %v2874, 16
      %v3110 = vrot.slane %v3108, 5
      %v3111 = vsel %vm997, %v3106, %v3110
      %v3113 = vshrl.u32 %v2875, 16
      %v3115 = vrot.slane %v3113, 4
      %v3116 = vshll.u32 %v2875, 16
      %v3118 = vrot.slane %v3116, 5
      %v3119 = vor.u32 %v3115, %v3118
      %v3120 = vrot.slane %v3119, 4
      %v3122 = vshll.u32 %v2876, 16
      %v3124 = vrot.slane %v3122, 5
      %v3125 = vsel %vm997, %v3120, %v3124
      %v3126 = vshrl.u32 %v2876, 16
      %v3128 = vrot.slane %v3126, 4
      %v3129 = vor.u32 %v3128, %v3124
      %v3130 = vrot.slane %v3129, 4
      %v3132 = vshll.u32 %v2877, 16
      %v3134 = vrot.slane %v3132, 5
      %v3135 = vsel %vm997, %v3130, %v3134
      %v3137 = vshrl.u32 %v2878, 16
      %v3139 = vrot.slane %v3137, 4
      %v3140 = vshll.u32 %v2878, 16
      %v3142 = vrot.slane %v3140, 5
      %v3143 = vor.u32 %v3139, %v3142
      %v3144 = vrot.slane %v3143, 4
      %v3146 = vshll.u32 %v2879, 16
      %v3148 = vrot.slane %v3146, 5
      %v3149 = vsel %vm997, %v3144, %v3148
      %v3150 = vshrl.u32 %v2879, 16
      %v3152 = vrot.slane %v3150, 4
      %v3153 = vor.u32 %v3152, %v3148
      %v3154 = vrot.slane %v3153, 4
      %v3156 = vshll.u32 %v2880, 16
      %v3158 = vrot.slane %v3156, 5
      %v3159 = vsel %vm997, %v3154, %v3158
      %v3161 = vshrl.u32 %v2881, 16
      %v3163 = vrot.slane %v3161, 4
      %v3164 = vshll.u32 %v2881, 16
      %v3166 = vrot.slane %v3164, 5
      %v3167 = vor.u32 %v3163, %v3166
      %v3168 = vrot.slane %v3167, 4
      %v3170 = vshll.u32 %v2882, 16
      %v3172 = vrot.slane %v3170, 5
      %v3173 = vsel %vm997, %v3168, %v3172
      %v3174 = vshrl.u32 %v2882, 16
      %v3176 = vrot.slane %v3174, 4
      %v3177 = vor.u32 %v3176, %v3172
      %v3178 = vrot.slane %v3177, 4
      %v3180 = vshll.u32 %v2883, 16
      %v3182 = vrot.slane %v3180, 5
      %v3183 = vsel %vm997, %v3178, %v3182
      %v3185 = vshrl.u32 %v2884, 16
      %v3187 = vrot.slane %v3185, 4
      %v3188 = vshll.u32 %v2884, 16
      %v3190 = vrot.slane %v3188, 5
      %v3191 = vor.u32 %v3187, %v3190
      %v3192 = vrot.slane %v3191, 4
      %v3194 = vshll.u32 %v2885, 16
      %v3196 = vrot.slane %v3194, 5
      %v3197 = vsel %vm997, %v3192, %v3196
      %v3198 = vshrl.u32 %v2885, 16
      %v3200 = vrot.slane %v3198, 4
      %v3201 = vor.u32 %v3200, %v3196
      %v3202 = vrot.slane %v3201, 4
      %v3204 = vshll.u32 %v2886, 16
      %v3206 = vrot.slane %v3204, 5
      %v3207 = vsel %vm997, %v3202, %v3206
      %v3209 = vshrl.u32 %v2887, 16
      %v3211 = vrot.slane %v3209, 4
      %v3212 = vshll.u32 %v2887, 16
      %v3214 = vrot.slane %v3212, 5
      %v3215 = vor.u32 %v3211, %v3214
      %v3216 = vrot.slane %v3215, 4
      %v3218 = vshll.u32 %v2888, 16
      %v3220 = vrot.slane %v3218, 5
      %v3221 = vsel %vm997, %v3216, %v3220
      %v3222 = vshrl.u32 %v2888, 16
      %v3224 = vrot.slane %v3222, 4
      %v3225 = vor.u32 %v3224, %v3220
      %v3226 = vrot.slane %v3225, 4
      %v3228 = vshll.u32 %v2889, 16
      %v3230 = vrot.slane %v3228, 5
      %v3231 = vsel %vm997, %v3226, %v3230
      %v3233 = vshrl.u32 %v2890, 16
      %v3235 = vrot.slane %v3233, 4
      %v3236 = vshll.u32 %v2890, 16
      %v3238 = vrot.slane %v3236, 5
      %v3239 = vor.u32 %v3235, %v3238
      %v3240 = vrot.slane %v3239, 4
      %v3242 = vshll.u32 %v2891, 16
      %v3244 = vrot.slane %v3242, 5
      %v3245 = vsel %vm997, %v3240, %v3244
      %v3246 = vshrl.u32 %v2891, 16
      %v3248 = vrot.slane %v3246, 4
      %v3249 = vor.u32 %v3248, %v3244
      %v3250 = vrot.slane %v3249, 4
      %v3252 = vshll.u32 %v2892, 16
      %v3254 = vrot.slane %v3252, 5
      %v3255 = vsel %vm997, %v3250, %v3254
      %v3257 = vshrl.u32 %v2893, 16
      %v3259 = vrot.slane %v3257, 4
      %v3260 = vshll.u32 %v2893, 16
      %v3262 = vrot.slane %v3260, 5
      %v3263 = vor.u32 %v3259, %v3262
      %v3264 = vrot.slane %v3263, 4
      %v3266 = vshll.u32 %v2894, 16
      %v3268 = vrot.slane %v3266, 5
      %v3269 = vsel %vm997, %v3264, %v3268
      %v3270 = vshrl.u32 %v2894, 16
      %v3272 = vrot.slane %v3270, 4
      %v3273 = vor.u32 %v3272, %v3268
      %v3274 = vrot.slane %v3273, 4
      %v3276 = vshll.u32 %v2895, 16
      %v3278 = vrot.slane %v3276, 5
      %v3279 = vsel %vm997, %v3274, %v3278
      %s3280 = scalar_lea.vmem %s2, 256
      %v3281 = vld [vmem:[%s3280] sm:$0xf]
      %v3282 = vld [vmem:[%s3280 + $0x4] sm:$0xf]
      %v3283 = vld [vmem:[%s3280 + $0x8] sm:$0xf]
      %v3284 = vld [vmem:[%s3280 + $0xc] sm:$0xf]
      %v3285 = vld [vmem:[%s3280 + $0x10] sm:$0xf]
      %v3286 = vld [vmem:[%s3280 + $0x14] sm:$0xf]
      %v3287 = vld [vmem:[%s3280 + $0x18] sm:$0xf]
      %v3288 = vld [vmem:[%s3280 + $0x1c] sm:$0xf]
      %v3289 = vld [vmem:[%s3280 + $0x20] sm:$0xf]
      %v3290 = vld [vmem:[%s3280 + $0x24] sm:$0xf]
      %v3291 = vld [vmem:[%s3280 + $0x28] sm:$0xf]
      %v3292 = vld [vmem:[%s3280 + $0x2c] sm:$0xf]
      %v3293 = vld [vmem:[%s3280 + $0x30] sm:$0xf]
      %v3294 = vld [vmem:[%s3280 + $0x34] sm:$0xf]
      %v3295 = vld [vmem:[%s3280 + $0x38] sm:$0xf]
      %v3296 = vld [vmem:[%s3280 + $0x3c] sm:$0xf]
      %v3297 = vunpack.c.l.b16 %v2909
      %v3298 = vunpack.c.l.b16 %v2919
      %v3299 = vunpack.c.l.b16 %v2933
      %v3300 = vunpack.c.l.b16 %v2943
      %v3301 = vunpack.c.l.b16 %v2957
      %v3302 = vunpack.c.l.b16 %v2967
      %v3303 = vunpack.c.l.b16 %v2981
      %v3304 = vunpack.c.l.b16 %v2991
      %v3305 = vunpack.c.l.b16 %v3005
      %v3306 = vunpack.c.l.b16 %v3015
      %v3307 = vunpack.c.l.b16 %v3029
      %v3308 = vunpack.c.l.b16 %v3039
      %v3309 = vunpack.c.l.b16 %v3053
      %v3310 = vunpack.c.l.b16 %v3063
      %v3311 = vunpack.c.l.b16 %v3077
      %v3312 = vunpack.c.l.b16 %v3087
      %v3313 = vunpack.c.l.b16 %v3101
      %v3314 = vunpack.c.l.b16 %v3111
      %v3315 = vunpack.c.l.b16 %v3125
      %v3316 = vunpack.c.l.b16 %v3135
      %v3317 = vunpack.c.l.b16 %v3149
      %v3318 = vunpack.c.l.b16 %v3159
      %v3319 = vunpack.c.l.b16 %v3173
      %v3320 = vunpack.c.l.b16 %v3183
      %v3321 = vunpack.c.l.b16 %v3197
      %v3322 = vunpack.c.l.b16 %v3207
      %v3323 = vunpack.c.l.b16 %v3221
      %v3324 = vunpack.c.l.b16 %v3231
      %v3325 = vunpack.c.l.b16 %v3245
      %v3326 = vunpack.c.l.b16 %v3255
      %v3327 = vunpack.c.l.b16 %v3269
      %v3328 = vunpack.c.l.b16 %v3279
      %v3329 = vpack.c.b16 %v3298, %v3297
      %v3330 = vpack.c.b16 %v3300, %v3299
      %v3331 = vpack.c.b16 %v3302, %v3301
      %v3332 = vpack.c.b16 %v3304, %v3303
      %v3333 = vpack.c.b16 %v3306, %v3305
      %v3334 = vpack.c.b16 %v3308, %v3307
      %v3335 = vpack.c.b16 %v3310, %v3309
      %v3336 = vpack.c.b16 %v3312, %v3311
      %v3337 = vpack.c.b16 %v3314, %v3313
      %v3338 = vpack.c.b16 %v3316, %v3315
      %v3339 = vpack.c.b16 %v3318, %v3317
      %v3340 = vpack.c.b16 %v3320, %v3319
      %v3341 = vpack.c.b16 %v3322, %v3321
      %v3342 = vpack.c.b16 %v3324, %v3323
      %v3343 = vpack.c.b16 %v3326, %v3325
      %v3344 = vpack.c.b16 %v3328, %v3327
      %v3377 = vunpack.c.l.b16 %v3281
      %v3378 = vunpack.c.l.b16 %v3282
      %v3379 = vunpack.c.l.b16 %v3283
      %v3380 = vunpack.c.l.b16 %v3284
      %v3381 = vunpack.c.l.b16 %v3285
      %v3382 = vunpack.c.l.b16 %v3286
      %v3383 = vunpack.c.l.b16 %v3287
      %v3384 = vunpack.c.l.b16 %v3288
      %v3385 = vunpack.c.l.b16 %v3289
      %v3386 = vunpack.c.l.b16 %v3290
      %v3387 = vunpack.c.l.b16 %v3291
      %v3388 = vunpack.c.l.b16 %v3292
      %v3389 = vunpack.c.l.b16 %v3293
      %v3390 = vunpack.c.l.b16 %v3294
      %v3391 = vunpack.c.l.b16 %v3295
      %v3392 = vunpack.c.l.b16 %v3296
      %v3393 = vpack.c.b16 %v3378, %v3377
      %v3394 = vpack.c.b16 %v3380, %v3379
      %v3395 = vpack.c.b16 %v3382, %v3381
      %v3396 = vpack.c.b16 %v3384, %v3383
      %v3397 = vpack.c.b16 %v3386, %v3385
      %v3398 = vpack.c.b16 %v3388, %v3387
      %v3399 = vpack.c.b16 %v3390, %v3389
      %v3400 = vpack.c.b16 %v3392, %v3391
      %3409 = vmatprep.subr.bf16.mxu0 0
      %3410 = vmatpush1.bf16.msra.mxu0 %v3393
      %3411 = vmatprep.subr.bf16.mxu0 0
      %3412 = vmatpush1.bf16.msra.mxu0 %v3394
      %3413 = vmatprep.subr.bf16.mxu0 0
      %3414 = vmatpush1.bf16.msra.mxu0 %v3395
      %3415 = vmatprep.subr.bf16.mxu0 0
      %3416 = vmatpush1.bf16.msra.mxu0 %v3396
      %3417 = vmatprep.subr.bf16.mxu0 0
      %3418 = vmatpush1.bf16.msra.mxu0 %v3397
      %3419 = vmatprep.subr.bf16.mxu0 0
      %3420 = vmatpush1.bf16.msra.mxu0 %v3398
      %3421 = vmatprep.subr.bf16.mxu0 0
      %3422 = vmatpush1.bf16.msra.mxu0 %v3399
      %3423 = vmatprep.subr.bf16.mxu0 0
      %3424 = vmatpush1.bf16.msra.mxu0 %v3400
      %3425 = vmatprep.subr.bf16.mxu0 0
      %3426 = vmatpush1.bf16.msra.mxu0 0
      %3427 = vmatprep.subr.bf16.mxu0 0
      %3428 = vmatpush1.bf16.msra.mxu0 0
      %3429 = vmatprep.subr.bf16.mxu0 0
      %3430 = vmatpush1.bf16.msra.mxu0 0
      %3431 = vmatprep.subr.bf16.mxu0 0
      %3432 = vmatpush1.bf16.msra.mxu0 0
      %3433 = vmatprep.subr.bf16.mxu0 0
      %3434 = vmatpush1.bf16.msra.mxu0 0
      %3435 = vmatprep.subr.bf16.mxu0 0
      %3436 = vmatpush1.bf16.msra.mxu0 0
      %3437 = vmatprep.subr.bf16.mxu0 0
      %3438 = vmatpush1.bf16.msra.mxu0 0
      %3439 = vmatprep.subr.bf16.mxu0 0
      %3440 = vmatpush1.bf16.msra.mxu0 0
      %3441 = vmatprep.mubr.bf16.mxu0 0
      %3442 = vmatmul.mubr.bf16.gmra.mrb[0].mxu0 %v3329
      %v3443 = vpop.f32.mrb[0].mxu0
      %v3444 = vadd.f32 0.0, %v3443
      %v3445 = vpop.f32.mrb[0].mxu0
      %v3446 = vpop.f32.mrb[0].mxu0
      %v3447 = vadd.f32 0.0, %v3446
      %v3448 = vpop.f32.mrb[0].mxu0
      %3449 = vmatprep.mubr.bf16.mxu0 0
      %3450 = vmatmul.mubr.bf16.gmra.mrb[0].mxu0 %v3330
      %v3451 = vpop.f32.mrb[0].mxu0
      %v3452 = vadd.f32 0.0, %v3451
      %v3453 = vpop.f32.mrb[0].mxu0
      %v3454 = vpop.f32.mrb[0].mxu0
      %v3455 = vadd.f32 0.0, %v3454
      %v3456 = vpop.f32.mrb[0].mxu0
      %3457 = vmatprep.mubr.bf16.mxu0 0
      %3458 = vmatmul.mubr.bf16.gmra.mrb[0].mxu0 %v3331
      %v3459 = vpop.f32.mrb[0].mxu0
      %v3460 = vadd.f32 0.0, %v3459
      %v3461 = vpop.f32.mrb[0].mxu0
      %v3462 = vpop.f32.mrb[0].mxu0
      %v3463 = vadd.f32 0.0, %v3462
      %v3464 = vpop.f32.mrb[0].mxu0
      %3465 = vmatprep.mubr.bf16.mxu0 0
      %3466 = vmatmul.mubr.bf16.gmra.mrb[0].mxu0 %v3332
      %v3467 = vpop.f32.mrb[0].mxu0
      %v3468 = vadd.f32 0.0, %v3467
      %v3469 = vpop.f32.mrb[0].mxu0
      %v3470 = vpop.f32.mrb[0].mxu0
      %v3471 = vadd.f32 0.0, %v3470
      %v3472 = vpop.f32.mrb[0].mxu0
      %3473 = vmatprep.mubr.bf16.mxu0 0
      %3474 = vmatmul.mubr.bf16.gmra.mrb[0].mxu0 %v3333
      %v3475 = vpop.f32.mrb[0].mxu0
      %v3476 = vadd.f32 0.0, %v3475
      %v3477 = vpop.f32.mrb[0].mxu0
      %v3478 = vpop.f32.mrb[0].mxu0
      %v3479 = vadd.f32 0.0, %v3478
      %v3480 = vpop.f32.mrb[0].mxu0
      %3481 = vmatprep.mubr.bf16.mxu0 0
      %3482 = vmatmul.mubr.bf16.gmra.mrb[0].mxu0 %v3334
      %v3483 = vpop.f32.mrb[0].mxu0
      %v3484 = vadd.f32 0.0, %v3483
      %v3485 = vpop.f32.mrb[0].mxu0
      %v3486 = vpop.f32.mrb[0].mxu0
      %v3487 = vadd.f32 0.0, %v3486
      %v3488 = vpop.f32.mrb[0].mxu0
      %3489 = vmatprep.mubr.bf16.mxu0 0
      %3490 = vmatmul.mubr.bf16.gmra.mrb[0].mxu0 %v3335
      %v3491 = vpop.f32.mrb[0].mxu0
      %v3492 = vadd.f32 0.0, %v3491
      %v3493 = vpop.f32.mrb[0].mxu0
      %v3494 = vpop.f32.mrb[0].mxu0
      %v3495 = vadd.f32 0.0, %v3494
      %v3496 = vpop.f32.mrb[0].mxu0
      %3497 = vmatprep.mubr.bf16.mxu0 0
      %3498 = vmatmul.mubr.bf16.gmra.mrb[0].mxu0 %v3336
      %v3499 = vpop.f32.mrb[0].mxu0
      %v3500 = vadd.f32 0.0, %v3499
      %v3501 = vpop.f32.mrb[0].mxu0
      %v3502 = vpop.f32.mrb[0].mxu0
      %v3503 = vadd.f32 0.0, %v3502
      %v3504 = vpop.f32.mrb[0].mxu0
      %3505 = vmatprep.mubr.bf16.mxu0 0
      %3506 = vmatmul.mubr.bf16.gmra.mrb[0].mxu0 %v3337
      %v3507 = vpop.f32.mrb[0].mxu0
      %v3508 = vadd.f32 0.0, %v3507
      %v3509 = vpop.f32.mrb[0].mxu0
      %v3510 = vpop.f32.mrb[0].mxu0
      %v3511 = vadd.f32 0.0, %v3510
      %v3512 = vpop.f32.mrb[0].mxu0
      %3513 = vmatprep.mubr.bf16.mxu0 0
      %3514 = vmatmul.mubr.bf16.gmra.mrb[0].mxu0 %v3338
      %v3515 = vpop.f32.mrb[0].mxu0
      %v3516 = vadd.f32 0.0, %v3515
      %v3517 = vpop.f32.mrb[0].mxu0
      %v3518 = vpop.f32.mrb[0].mxu0
      %v3519 = vadd.f32 0.0, %v3518
      %v3520 = vpop.f32.mrb[0].mxu0
      %3521 = vmatprep.mubr.bf16.mxu0 0
      %3522 = vmatmul.mubr.bf16.gmra.mrb[0].mxu0 %v3339
      %v3523 = vpop.f32.mrb[0].mxu0
      %v3524 = vadd.f32 0.0, %v3523
      %v3525 = vpop.f32.mrb[0].mxu0
      %v3526 = vpop.f32.mrb[0].mxu0
      %v3527 = vadd.f32 0.0, %v3526
      %v3528 = vpop.f32.mrb[0].mxu0
      %3529 = vmatprep.mubr.bf16.mxu0 0
      %3530 = vmatmul.mubr.bf16.gmra.mrb[0].mxu0 %v3340
      %v3531 = vpop.f32.mrb[0].mxu0
      %v3532 = vadd.f32 0.0, %v3531
      %v3533 = vpop.f32.mrb[0].mxu0
      %v3534 = vpop.f32.mrb[0].mxu0
      %v3535 = vadd.f32 0.0, %v3534
      %v3536 = vpop.f32.mrb[0].mxu0
      %3537 = vmatprep.mubr.bf16.mxu0 0
      %3538 = vmatmul.mubr.bf16.gmra.mrb[0].mxu0 %v3341
      %v3539 = vpop.f32.mrb[0].mxu0
      %v3540 = vadd.f32 0.0, %v3539
      %v3541 = vpop.f32.mrb[0].mxu0
      %v3542 = vpop.f32.mrb[0].mxu0
      %v3543 = vadd.f32 0.0, %v3542
      %v3544 = vpop.f32.mrb[0].mxu0
      %3545 = vmatprep.mubr.bf16.mxu0 0
      %3546 = vmatmul.mubr.bf16.gmra.mrb[0].mxu0 %v3342
      %v3547 = vpop.f32.mrb[0].mxu0
      %v3548 = vadd.f32 0.0, %v3547
      %v3549 = vpop.f32.mrb[0].mxu0
      %v3550 = vpop.f32.mrb[0].mxu0
      %v3551 = vadd.f32 0.0, %v3550
      %v3552 = vpop.f32.mrb[0].mxu0
      %3553 = vmatprep.mubr.bf16.mxu0 0
      %3554 = vmatmul.mubr.bf16.gmra.mrb[0].mxu0 %v3343
      %v3555 = vpop.f32.mrb[0].mxu0
      %v3556 = vadd.f32 0.0, %v3555
      %v3557 = vpop.f32.mrb[0].mxu0
      %v3558 = vpop.f32.mrb[0].mxu0
      %v3559 = vadd.f32 0.0, %v3558
      %v3560 = vpop.f32.mrb[0].mxu0
      %3561 = vmatprep.mubr.bf16.mxu0 0
      %3562 = vmatmul.mubr.bf16.gmra.mrb[0].mxu0 %v3344
      %v3563 = vpop.f32.mrb[0].mxu0
      %v3564 = vadd.f32 0.0, %v3563
      %v3565 = vpop.f32.mrb[0].mxu0
      %v3566 = vpop.f32.mrb[0].mxu0
      %v3567 = vadd.f32 0.0, %v3566
      %v3568 = vpop.f32.mrb[0].mxu0
      %3569 = vdwg.mxu0
      %v3570 = vadd.f32 %v2816, %v3444
      %v3571 = vadd.f32 %v2817, %v3447
      %v3572 = vadd.f32 %v2818, %v3452
      %v3573 = vadd.f32 %v2819, %v3455
      %v3574 = vadd.f32 %v2820, %v3460
      %v3575 = vadd.f32 %v2821, %v3463
      %v3576 = vadd.f32 %v2822, %v3468
      %v3577 = vadd.f32 %v2823, %v3471
      %v3578 = vadd.f32 %v2824, %v3476
      %v3579 = vadd.f32 %v2825, %v3479
      %v3580 = vadd.f32 %v2826, %v3484
      %v3581 = vadd.f32 %v2827, %v3487
      %v3582 = vadd.f32 %v2828, %v3492
      %v3583 = vadd.f32 %v2829, %v3495
      %v3584 = vadd.f32 %v2830, %v3500
      %v3585 = vadd.f32 %v2831, %v3503
      %v3586 = vadd.f32 %v2832, %v3508
      %v3587 = vadd.f32 %v2833, %v3511
      %v3588 = vadd.f32 %v2834, %v3516
      %v3589 = vadd.f32 %v2835, %v3519
      %v3590 = vadd.f32 %v2836, %v3524
      %v3591 = vadd.f32 %v2837, %v3527
      %v3592 = vadd.f32 %v2838, %v3532
      %v3593 = vadd.f32 %v2839, %v3535
      %v3594 = vadd.f32 %v2840, %v3540
      %v3595 = vadd.f32 %v2841, %v3543
      %v3596 = vadd.f32 %v2842, %v3548
      %v3597 = vadd.f32 %v2843, %v3551
      %v3598 = vadd.f32 %v2844, %v3556
      %v3599 = vadd.f32 %v2845, %v3559
      %v3600 = vadd.f32 %v2846, %v3564
      %v3601 = vadd.f32 %v2847, %v3567
      %v3602 = vld [vmem:[%s813] sm:$0xe]
      %v3603 = vld [vmem:[%s813 + $0xc] sm:$0xe]
      %v3604 = vld [vmem:[%s813 + $0x18] sm:$0xe]
      %v3605 = vld [vmem:[%s813 + $0x24] sm:$0xe]
      %v3606 = vld [vmem:[%s813 + $0x30] sm:$0xe]
      %v3607 = vld [vmem:[%s813 + $0x3c] sm:$0xe]
      %v3608 = vld [vmem:[%s813 + $0x48] sm:$0xe]
      %v3609 = vld [vmem:[%s813 + $0x54] sm:$0xe]
      %v3610 = vld [vmem:[%s813 + $0x60] sm:$0xe]
      %v3611 = vld [vmem:[%s813 + $0x6c] sm:$0xe]
      %v3612 = vld [vmem:[%s813 + $0x78] sm:$0xe]
      %v3613 = vld [vmem:[%s813 + $0x84] sm:$0xe]
      %v3614 = vld [vmem:[%s813 + $0x90] sm:$0xe]
      %v3615 = vld [vmem:[%s813 + $0x9c] sm:$0xe]
      %v3616 = vld [vmem:[%s813 + $0xa8] sm:$0xe]
      %v3617 = vld [vmem:[%s813 + $0xb4] sm:$0xe]
      %v3666 = vrot.slane %v3602, 5
      %v3667 = vrot.slane %v3666, 4
      %v3668 = vrot.slane %v2849, 5
      %v3669 = vsel %vm2027, %v3667, %v3668
      %v3670 = vrot.slane %v3668, 4
      %v3671 = vrot.slane %v2850, 5
      %v3672 = vsel %vm2027, %v3670, %v3671
      %v3673 = vrot.slane %v3603, 5
      %v3674 = vrot.slane %v3673, 4
      %v3675 = vrot.slane %v2852, 5
      %v3676 = vsel %vm2027, %v3674, %v3675
      %v3677 = vrot.slane %v3675, 4
      %v3678 = vrot.slane %v2853, 5
      %v3679 = vsel %vm2027, %v3677, %v3678
      %v3680 = vrot.slane %v3604, 5
      %v3681 = vrot.slane %v3680, 4
      %v3682 = vrot.slane %v2855, 5
      %v3683 = vsel %vm2027, %v3681, %v3682
      %v3684 = vrot.slane %v3682, 4
      %v3685 = vrot.slane %v2856, 5
      %v3686 = vsel %vm2027, %v3684, %v3685
      %v3687 = vrot.slane %v3605, 5
      %v3688 = vrot.slane %v3687, 4
      %v3689 = vrot.slane %v2858, 5
      %v3690 = vsel %vm2027, %v3688, %v3689
      %v3691 = vrot.slane %v3689, 4
      %v3692 = vrot.slane %v2859, 5
      %v3693 = vsel %vm2027, %v3691, %v3692
      %v3694 = vrot.slane %v3606, 5
      %v3695 = vrot.slane %v3694, 4
      %v3696 = vrot.slane %v2861, 5
      %v3697 = vsel %vm2027, %v3695, %v3696
      %v3698 = vrot.slane %v3696, 4
      %v3699 = vrot.slane %v2862, 5
      %v3700 = vsel %vm2027, %v3698, %v3699
      %v3701 = vrot.slane %v3607, 5
      %v3702 = vrot.slane %v3701, 4
      %v3703 = vrot.slane %v2864, 5
      %v3704 = vsel %vm2027, %v3702, %v3703
      %v3705 = vrot.slane %v3703, 4
      %v3706 = vrot.slane %v2865, 5
      %v3707 = vsel %vm2027, %v3705, %v3706
      %v3708 = vrot.slane %v3608, 5
      %v3709 = vrot.slane %v3708, 4
      %v3710 = vrot.slane %v2867, 5
      %v3711 = vsel %vm2027, %v3709, %v3710
      %v3712 = vrot.slane %v3710, 4
      %v3713 = vrot.slane %v2868, 5
      %v3714 = vsel %vm2027, %v3712, %v3713
      %v3715 = vrot.slane %v3609, 5
      %v3716 = vrot.slane %v3715, 4
      %v3717 = vrot.slane %v2870, 5
      %v3718 = vsel %vm2027, %v3716, %v3717
      %v3719 = vrot.slane %v3717, 4
      %v3720 = vrot.slane %v2871, 5
      %v3721 = vsel %vm2027, %v3719, %v3720
      %v3722 = vrot.slane %v3610, 5
      %v3723 = vrot.slane %v3722, 4
      %v3724 = vrot.slane %v2873, 5
      %v3725 = vsel %vm2027, %v3723, %v3724
      %v3726 = vrot.slane %v3724, 4
      %v3727 = vrot.slane %v2874, 5
      %v3728 = vsel %vm2027, %v3726, %v3727
      %v3729 = vrot.slane %v3611, 5
      %v3730 = vrot.slane %v3729, 4
      %v3731 = vrot.slane %v2876, 5
      %v3732 = vsel %vm2027, %v3730, %v3731
      %v3733 = vrot.slane %v3731, 4
      %v3734 = vrot.slane %v2877, 5
      %v3735 = vsel %vm2027, %v3733, %v3734
      %v3736 = vrot.slane %v3612, 5
      %v3737 = vrot.slane %v3736, 4
      %v3738 = vrot.slane %v2879, 5
      %v3739 = vsel %vm2027, %v3737, %v3738
      %v3740 = vrot.slane %v3738, 4
      %v3741 = vrot.slane %v2880, 5
      %v3742 = vsel %vm2027, %v3740, %v3741
      %v3743 = vrot.slane %v3613, 5
      %v3744 = vrot.slane %v3743, 4
      %v3745 = vrot.slane %v2882, 5
      %v3746 = vsel %vm2027, %v3744, %v3745
      %v3747 = vrot.slane %v3745, 4
      %v3748 = vrot.slane %v2883, 5
      %v3749 = vsel %vm2027, %v3747, %v3748
      %v3750 = vrot.slane %v3614, 5
      %v3751 = vrot.slane %v3750, 4
      %v3752 = vrot.slane %v2885, 5
      %v3753 = vsel %vm2027, %v3751, %v3752
      %v3754 = vrot.slane %v3752, 4
      %v3755 = vrot.slane %v2886, 5
      %v3756 = vsel %vm2027, %v3754, %v3755
      %v3757 = vrot.slane %v3615, 5
      %v3758 = vrot.slane %v3757, 4
      %v3759 = vrot.slane %v2888, 5
      %v3760 = vsel %vm2027, %v3758, %v3759
      %v3761 = vrot.slane %v3759, 4
      %v3762 = vrot.slane %v2889, 5
      %v3763 = vsel %vm2027, %v3761, %v3762
      %v3764 = vrot.slane %v3616, 5
      %v3765 = vrot.slane %v3764, 4
      %v3766 = vrot.slane %v2891, 5
      %v3767 = vsel %vm2027, %v3765, %v3766
      %v3768 = vrot.slane %v3766, 4
      %v3769 = vrot.slane %v2892, 5
      %v3770 = vsel %vm2027, %v3768, %v3769
      %v3771 = vrot.slane %v3617, 5
      %v3772 = vrot.slane %v3771, 4
      %v3773 = vrot.slane %v2894, 5
      %v3774 = vsel %vm2027, %v3772, %v3773
      %v3775 = vrot.slane %v3773, 4
      %v3776 = vrot.slane %v2895, 5
      %v3777 = vsel %vm2027, %v3775, %v3776
      %s3778 = scalar_lea.vmem %s2, 320
      %v3779 = vld [vmem:[%s3778] sm:$0xf]
      %v3780 = vld [vmem:[%s3778 + $0x4] sm:$0xf]
      %v3781 = vld [vmem:[%s3778 + $0x8] sm:$0xf]
      %v3782 = vld [vmem:[%s3778 + $0xc] sm:$0xf]
      %v3783 = vld [vmem:[%s3778 + $0x10] sm:$0xf]
      %v3784 = vld [vmem:[%s3778 + $0x14] sm:$0xf]
      %v3785 = vld [vmem:[%s3778 + $0x18] sm:$0xf]
      %v3786 = vld [vmem:[%s3778 + $0x1c] sm:$0xf]
      %v3787 = vld [vmem:[%s3778 + $0x20] sm:$0xf]
      %v3788 = vld [vmem:[%s3778 + $0x24] sm:$0xf]
      %v3789 = vld [vmem:[%s3778 + $0x28] sm:$0xf]
      %v3790 = vld [vmem:[%s3778 + $0x2c] sm:$0xf]
      %v3791 = vld [vmem:[%s3778 + $0x30] sm:$0xf]
      %v3792 = vld [vmem:[%s3778 + $0x34] sm:$0xf]
      %v3793 = vld [vmem:[%s3778 + $0x38] sm:$0xf]
      %v3794 = vld [vmem:[%s3778 + $0x3c] sm:$0xf]
      %v3795 = vunpack.c.l.b16 %v3669
      %v3796 = vunpack.c.l.b16 %v3672
      %v3797 = vunpack.c.l.b16 %v3676
      %v3798 = vunpack.c.l.b16 %v3679
      %v3799 = vunpack.c.l.b16 %v3683
      %v3800 = vunpack.c.l.b16 %v3686
      %v3801 = vunpack.c.l.b16 %v3690
      %v3802 = vunpack.c.l.b16 %v3693
      %v3803 = vunpack.c.l.b16 %v3697
      %v3804 = vunpack.c.l.b16 %v3700
      %v3805 = vunpack.c.l.b16 %v3704
      %v3806 = vunpack.c.l.b16 %v3707
      %v3807 = vunpack.c.l.b16 %v3711
      %v3808 = vunpack.c.l.b16 %v3714
      %v3809 = vunpack.c.l.b16 %v3718
      %v3810 = vunpack.c.l.b16 %v3721
      %v3811 = vunpack.c.l.b16 %v3725
      %v3812 = vunpack.c.l.b16 %v3728
      %v3813 = vunpack.c.l.b16 %v3732
      %v3814 = vunpack.c.l.b16 %v3735
      %v3815 = vunpack.c.l.b16 %v3739
      %v3816 = vunpack.c.l.b16 %v3742
      %v3817 = vunpack.c.l.b16 %v3746
      %v3818 = vunpack.c.l.b16 %v3749
      %v3819 = vunpack.c.l.b16 %v3753
      %v3820 = vunpack.c.l.b16 %v3756
      %v3821 = vunpack.c.l.b16 %v3760
      %v3822 = vunpack.c.l.b16 %v3763
      %v3823 = vunpack.c.l.b16 %v3767
      %v3824 = vunpack.c.l.b16 %v3770
      %v3825 = vunpack.c.l.b16 %v3774
      %v3826 = vunpack.c.l.b16 %v3777
      %v3827 = vpack.c.b16 %v3796, %v3795
      %v3828 = vpack.c.b16 %v3798, %v3797
      %v3829 = vpack.c.b16 %v3800, %v3799
      %v3830 = vpack.c.b16 %v3802, %v3801
      %v3831 = vpack.c.b16 %v3804, %v3803
      %v3832 = vpack.c.b16 %v3806, %v3805
      %v3833 = vpack.c.b16 %v3808, %v3807
      %v3834 = vpack.c.b16 %v3810, %v3809
      %v3835 = vpack.c.b16 %v3812, %v3811
      %v3836 = vpack.c.b16 %v3814, %v3813
      %v3837 = vpack.c.b16 %v3816, %v3815
      %v3838 = vpack.c.b16 %v3818, %v3817
      %v3839 = vpack.c.b16 %v3820, %v3819
      %v3840 = vpack.c.b16 %v3822, %v3821
      %v3841 = vpack.c.b16 %v3824, %v3823
      %v3842 = vpack.c.b16 %v3826, %v3825
      %v3875 = vunpack.c.l.b16 %v3779
      %v3876 = vunpack.c.l.b16 %v3780
      %v3877 = vunpack.c.l.b16 %v3781
      %v3878 = vunpack.c.l.b16 %v3782
      %v3879 = vunpack.c.l.b16 %v3783
      %v3880 = vunpack.c.l.b16 %v3784
      %v3881 = vunpack.c.l.b16 %v3785
      %v3882 = vunpack.c.l.b16 %v3786
      %v3883 = vunpack.c.l.b16 %v3787
      %v3884 = vunpack.c.l.b16 %v3788
      %v3885 = vunpack.c.l.b16 %v3789
      %v3886 = vunpack.c.l.b16 %v3790
      %v3887 = vunpack.c.l.b16 %v3791
      %v3888 = vunpack.c.l.b16 %v3792
      %v3889 = vunpack.c.l.b16 %v3793
      %v3890 = vunpack.c.l.b16 %v3794
      %v3891 = vpack.c.b16 %v3876, %v3875
      %v3892 = vpack.c.b16 %v3878, %v3877
      %v3893 = vpack.c.b16 %v3880, %v3879
      %v3894 = vpack.c.b16 %v3882, %v3881
      %v3895 = vpack.c.b16 %v3884, %v3883
      %v3896 = vpack.c.b16 %v3886, %v3885
      %v3897 = vpack.c.b16 %v3888, %v3887
      %v3898 = vpack.c.b16 %v3890, %v3889
      %3907 = vmatprep.subr.bf16.mxu0 0
      %3908 = vmatpush1.bf16.msra.mxu0 %v3891
      %3909 = vmatprep.subr.bf16.mxu0 0
      %3910 = vmatpush1.bf16.msra.mxu0 %v3892
      %3911 = vmatprep.subr.bf16.mxu0 0
      %3912 = vmatpush1.bf16.msra.mxu0 %v3893
      %3913 = vmatprep.subr.bf16.mxu0 0
      %3914 = vmatpush1.bf16.msra.mxu0 %v3894
      %3915 = vmatprep.subr.bf16.mxu0 0
      %3916 = vmatpush1.bf16.msra.mxu0 %v3895
      %3917 = vmatprep.subr.bf16.mxu0 0
      %3918 = vmatpush1.bf16.msra.mxu0 %v3896
      %3919 = vmatprep.subr.bf16.mxu0 0
      %3920 = vmatpush1.bf16.msra.mxu0 %v3897
      %3921 = vmatprep.subr.bf16.mxu0 0
      %3922 = vmatpush1.bf16.msra.mxu0 %v3898
      %3923 = vmatprep.subr.bf16.mxu0 0
      %3924 = vmatpush1.bf16.msra.mxu0 0
      %3925 = vmatprep.subr.bf16.mxu0 0
      %3926 = vmatpush1.bf16.msra.mxu0 0
      %3927 = vmatprep.subr.bf16.mxu0 0
      %3928 = vmatpush1.bf16.msra.mxu0 0
      %3929 = vmatprep.subr.bf16.mxu0 0
      %3930 = vmatpush1.bf16.msra.mxu0 0
      %3931 = vmatprep.subr.bf16.mxu0 0
      %3932 = vmatpush1.bf16.msra.mxu0 0
      %3933 = vmatprep.subr.bf16.mxu0 0
      %3934 = vmatpush1.bf16.msra.mxu0 0
      %3935 = vmatprep.subr.bf16.mxu0 0
      %3936 = vmatpush1.bf16.msra.mxu0 0
      %3937 = vmatprep.subr.bf16.mxu0 0
      %3938 = vmatpush1.bf16.msra.mxu0 0
      %3939 = vmatprep.mubr.bf16.mxu0 0
      %3940 = vmatmul.mubr.bf16.gmra.mrb[0].mxu0 %v3827
      %v3941 = vpop.f32.mrb[0].mxu0
      %v3942 = vadd.f32 0.0, %v3941
      %v3943 = vpop.f32.mrb[0].mxu0
      %v3944 = vpop.f32.mrb[0].mxu0
      %v3945 = vadd.f32 0.0, %v3944
      %v3946 = vpop.f32.mrb[0].mxu0
      %3947 = vmatprep.mubr.bf16.mxu0 0
      %3948 = vmatmul.mubr.bf16.gmra.mrb[0].mxu0 %v3828
      %v3949 = vpop.f32.mrb[0].mxu0
      %v3950 = vadd.f32 0.0, %v3949
      %v3951 = vpop.f32.mrb[0].mxu0
      %v3952 = vpop.f32.mrb[0].mxu0
      %v3953 = vadd.f32 0.0, %v3952
      %v3954 = vpop.f32.mrb[0].mxu0
      %3955 = vmatprep.mubr.bf16.mxu0 0
      %3956 = vmatmul.mubr.bf16.gmra.mrb[0].mxu0 %v3829
      %v3957 = vpop.f32.mrb[0].mxu0
      %v3958 = vadd.f32 0.0, %v3957
      %v3959 = vpop.f32.mrb[0].mxu0
      %v3960 = vpop.f32.mrb[0].mxu0
      %v3961 = vadd.f32 0.0, %v3960
      %v3962 = vpop.f32.mrb[0].mxu0
      %3963 = vmatprep.mubr.bf16.mxu0 0
      %3964 = vmatmul.mubr.bf16.gmra.mrb[0].mxu0 %v3830
      %v3965 = vpop.f32.mrb[0].mxu0
      %v3966 = vadd.f32 0.0, %v3965
      %v3967 = vpop.f32.mrb[0].mxu0
      %v3968 = vpop.f32.mrb[0].mxu0
      %v3969 = vadd.f32 0.0, %v3968
      %v3970 = vpop.f32.mrb[0].mxu0
      %3971 = vmatprep.mubr.bf16.mxu0 0
      %3972 = vmatmul.mubr.bf16.gmra.mrb[0].mxu0 %v3831
      %v3973 = vpop.f32.mrb[0].mxu0
      %v3974 = vadd.f32 0.0, %v3973
      %v3975 = vpop.f32.mrb[0].mxu0
      %v3976 = vpop.f32.mrb[0].mxu0
      %v3977 = vadd.f32 0.0, %v3976
      %v3978 = vpop.f32.mrb[0].mxu0
      %3979 = vmatprep.mubr.bf16.mxu0 0
      %3980 = vmatmul.mubr.bf16.gmra.mrb[0].mxu0 %v3832
      %v3981 = vpop.f32.mrb[0].mxu0
      %v3982 = vadd.f32 0.0, %v3981
      %v3983 = vpop.f32.mrb[0].mxu0
      %v3984 = vpop.f32.mrb[0].mxu0
      %v3985 = vadd.f32 0.0, %v3984
      %v3986 = vpop.f32.mrb[0].mxu0
      %3987 = vmatprep.mubr.bf16.mxu0 0
      %3988 = vmatmul.mubr.bf16.gmra.mrb[0].mxu0 %v3833
      %v3989 = vpop.f32.mrb[0].mxu0
      %v3990 = vadd.f32 0.0, %v3989
      %v3991 = vpop.f32.mrb[0].mxu0
      %v3992 = vpop.f32.mrb[0].mxu0
      %v3993 = vadd.f32 0.0, %v3992
      %v3994 = vpop.f32.mrb[0].mxu0
      %3995 = vmatprep.mubr.bf16.mxu0 0
      %3996 = vmatmul.mubr.bf16.gmra.mrb[0].mxu0 %v3834
      %v3997 = vpop.f32.mrb[0].mxu0
      %v3998 = vadd.f32 0.0, %v3997
      %v3999 = vpop.f32.mrb[0].mxu0
      %v4000 = vpop.f32.mrb[0].mxu0
      %v4001 = vadd.f32 0.0, %v4000
      %v4002 = vpop.f32.mrb[0].mxu0
      %4003 = vmatprep.mubr.bf16.mxu0 0
      %4004 = vmatmul.mubr.bf16.gmra.mrb[0].mxu0 %v3835
      %v4005 = vpop.f32.mrb[0].mxu0
      %v4006 = vadd.f32 0.0, %v4005
      %v4007 = vpop.f32.mrb[0].mxu0
      %v4008 = vpop.f32.mrb[0].mxu0
      %v4009 = vadd.f32 0.0, %v4008
      %v4010 = vpop.f32.mrb[0].mxu0
      %4011 = vmatprep.mubr.bf16.mxu0 0
      %4012 = vmatmul.mubr.bf16.gmra.mrb[0].mxu0 %v3836
      %v4013 = vpop.f32.mrb[0].mxu0
      %v4014 = vadd.f32 0.0, %v4013
      %v4015 = vpop.f32.mrb[0].mxu0
      %v4016 = vpop.f32.mrb[0].mxu0
      %v4017 = vadd.f32 0.0, %v4016
      %v4018 = vpop.f32.mrb[0].mxu0
      %4019 = vmatprep.mubr.bf16.mxu0 0
      %4020 = vmatmul.mubr.bf16.gmra.mrb[0].mxu0 %v3837
      %v4021 = vpop.f32.mrb[0].mxu0
      %v4022 = vadd.f32 0.0, %v4021
      %v4023 = vpop.f32.mrb[0].mxu0
      %v4024 = vpop.f32.mrb[0].mxu0
      %v4025 = vadd.f32 0.0, %v4024
      %v4026 = vpop.f32.mrb[0].mxu0
      %4027 = vmatprep.mubr.bf16.mxu0 0
      %4028 = vmatmul.mubr.bf16.gmra.mrb[0].mxu0 %v3838
      %v4029 = vpop.f32.mrb[0].mxu0
      %v4030 = vadd.f32 0.0, %v4029
      %v4031 = vpop.f32.mrb[0].mxu0
      %v4032 = vpop.f32.mrb[0].mxu0
      %v4033 = vadd.f32 0.0, %v4032
      %v4034 = vpop.f32.mrb[0].mxu0
      %4035 = vmatprep.mubr.bf16.mxu0 0
      %4036 = vmatmul.mubr.bf16.gmra.mrb[0].mxu0 %v3839
      %v4037 = vpop.f32.mrb[0].mxu0
      %v4038 = vadd.f32 0.0, %v4037
      %v4039 = vpop.f32.mrb[0].mxu0
      %v4040 = vpop.f32.mrb[0].mxu0
      %v4041 = vadd.f32 0.0, %v4040
      %v4042 = vpop.f32.mrb[0].mxu0
      %4043 = vmatprep.mubr.bf16.mxu0 0
      %4044 = vmatmul.mubr.bf16.gmra.mrb[0].mxu0 %v3840
      %v4045 = vpop.f32.mrb[0].mxu0
      %v4046 = vadd.f32 0.0, %v4045
      %v4047 = vpop.f32.mrb[0].mxu0
      %v4048 = vpop.f32.mrb[0].mxu0
      %v4049 = vadd.f32 0.0, %v4048
      %v4050 = vpop.f32.mrb[0].mxu0
      %4051 = vmatprep.mubr.bf16.mxu0 0
      %4052 = vmatmul.mubr.bf16.gmra.mrb[0].mxu0 %v3841
      %v4053 = vpop.f32.mrb[0].mxu0
      %v4054 = vadd.f32 0.0, %v4053
      %v4055 = vpop.f32.mrb[0].mxu0
      %v4056 = vpop.f32.mrb[0].mxu0
      %v4057 = vadd.f32 0.0, %v4056
      %v4058 = vpop.f32.mrb[0].mxu0
      %4059 = vmatprep.mubr.bf16.mxu0 0
      %4060 = vmatmul.mubr.bf16.gmra.mrb[0].mxu0 %v3842
      %v4061 = vpop.f32.mrb[0].mxu0
      %v4062 = vadd.f32 0.0, %v4061
      %v4063 = vpop.f32.mrb[0].mxu0
      %v4064 = vpop.f32.mrb[0].mxu0
      %v4065 = vadd.f32 0.0, %v4064
      %v4066 = vpop.f32.mrb[0].mxu0
      %4067 = vdwg.mxu0
      %v4068 = vadd.f32 %v3570, %v3942
      %v4069 = vadd.f32 %v3571, %v3945
      %v4070 = vadd.f32 %v3572, %v3950
      %v4071 = vadd.f32 %v3573, %v3953
      %v4072 = vadd.f32 %v3574, %v3958
      %v4073 = vadd.f32 %v3575, %v3961
      %v4074 = vadd.f32 %v3576, %v3966
      %v4075 = vadd.f32 %v3577, %v3969
      %v4076 = vadd.f32 %v3578, %v3974
      %v4077 = vadd.f32 %v3579, %v3977
      %v4078 = vadd.f32 %v3580, %v3982
      %v4079 = vadd.f32 %v3581, %v3985
      %v4080 = vadd.f32 %v3582, %v3990
      %v4081 = vadd.f32 %v3583, %v3993
      %v4082 = vadd.f32 %v3584, %v3998
      %v4083 = vadd.f32 %v3585, %v4001
      %v4084 = vadd.f32 %v3586, %v4006
      %v4085 = vadd.f32 %v3587, %v4009
      %v4086 = vadd.f32 %v3588, %v4014
      %v4087 = vadd.f32 %v3589, %v4017
      %v4088 = vadd.f32 %v3590, %v4022
      %v4089 = vadd.f32 %v3591, %v4025
      %v4090 = vadd.f32 %v3592, %v4030
      %v4091 = vadd.f32 %v3593, %v4033
      %v4092 = vadd.f32 %v3594, %v4038
      %v4093 = vadd.f32 %v3595, %v4041
      %v4094 = vadd.f32 %v3596, %v4046
      %v4095 = vadd.f32 %v3597, %v4049
      %v4096 = vadd.f32 %v3598, %v4054
      %v4097 = vadd.f32 %v3599, %v4057
      %v4098 = vadd.f32 %v3600, %v4062
      %v4099 = vadd.f32 %v3601, %v4065
      %s4100 = scalar_lea.vmem [#allocation2], 24
      %v4101 = vld [vmem:[%s4100] sm:$0xf]
      %v4102 = vld [vmem:[%s4100 + $0x4] sm:$0xf]
      %v4103 = vld [vmem:[%s4100 + $0xc] sm:$0xf]
      %v4104 = vld [vmem:[%s4100 + $0x10] sm:$0xf]
      %v4105 = vld [vmem:[%s4100 + $0x18] sm:$0xf]
      %v4106 = vld [vmem:[%s4100 + $0x1c] sm:$0xf]
      %v4107 = vld [vmem:[%s4100 + $0x24] sm:$0xf]
      %v4108 = vld [vmem:[%s4100 + $0x28] sm:$0xf]
      %v4109 = vld [vmem:[%s4100 + $0x30] sm:$0xf]
      %v4110 = vld [vmem:[%s4100 + $0x34] sm:$0xf]
      %v4111 = vld [vmem:[%s4100 + $0x3c] sm:$0xf]
      %v4112 = vld [vmem:[%s4100 + $0x40] sm:$0xf]
      %v4113 = vld [vmem:[%s4100 + $0x48] sm:$0xf]
      %v4114 = vld [vmem:[%s4100 + $0x4c] sm:$0xf]
      %v4115 = vld [vmem:[%s4100 + $0x54] sm:$0xf]
      %v4116 = vld [vmem:[%s4100 + $0x58] sm:$0xf]
      %v4117 = vld [vmem:[%s4100 + $0x60] sm:$0xf]
      %v4118 = vld [vmem:[%s4100 + $0x64] sm:$0xf]
      %v4119 = vld [vmem:[%s4100 + $0x6c] sm:$0xf]
      %v4120 = vld [vmem:[%s4100 + $0x70] sm:$0xf]
      %v4121 = vld [vmem:[%s4100 + $0x78] sm:$0xf]
      %v4122 = vld [vmem:[%s4100 + $0x7c] sm:$0xf]
      %v4123 = vld [vmem:[%s4100 + $0x84] sm:$0xf]
      %v4124 = vld [vmem:[%s4100 + $0x88] sm:$0xf]
      %v4125 = vld [vmem:[%s4100 + $0x90] sm:$0xf]
      %v4126 = vld [vmem:[%s4100 + $0x94] sm:$0xf]
      %v4127 = vld [vmem:[%s4100 + $0x9c] sm:$0xf]
      %v4128 = vld [vmem:[%s4100 + $0xa0] sm:$0xf]
      %v4129 = vld [vmem:[%s4100 + $0xa8] sm:$0xf]
      %v4130 = vld [vmem:[%s4100 + $0xac] sm:$0xf]
      %v4131 = vld [vmem:[%s4100 + $0xb4] sm:$0xf]
      %v4132 = vld [vmem:[%s4100 + $0xb8] sm:$0xf]
      %s4133 = scalar_lea.vmem %s2, 384
      %v4134 = vld [vmem:[%s4133] sm:$0xf]
      %v4135 = vld [vmem:[%s4133 + $0x4] sm:$0xf]
      %v4136 = vld [vmem:[%s4133 + $0x8] sm:$0xf]
      %v4137 = vld [vmem:[%s4133 + $0xc] sm:$0xf]
      %v4138 = vld [vmem:[%s4133 + $0x10] sm:$0xf]
      %v4139 = vld [vmem:[%s4133 + $0x14] sm:$0xf]
      %v4140 = vld [vmem:[%s4133 + $0x18] sm:$0xf]
      %v4141 = vld [vmem:[%s4133 + $0x1c] sm:$0xf]
      %v4142 = vld [vmem:[%s4133 + $0x20] sm:$0xf]
      %v4143 = vld [vmem:[%s4133 + $0x24] sm:$0xf]
      %v4144 = vld [vmem:[%s4133 + $0x28] sm:$0xf]
      %v4145 = vld [vmem:[%s4133 + $0x2c] sm:$0xf]
      %v4146 = vld [vmem:[%s4133 + $0x30] sm:$0xf]
      %v4147 = vld [vmem:[%s4133 + $0x34] sm:$0xf]
      %v4148 = vld [vmem:[%s4133 + $0x38] sm:$0xf]
      %v4149 = vld [vmem:[%s4133 + $0x3c] sm:$0xf]
      %v4182 = vunpack.c.l.b16 %v4101
      %v4183 = vunpack.c.l.b16 %v4102
      %v4184 = vunpack.c.l.b16 %v4103
      %v4185 = vunpack.c.l.b16 %v4104
      %v4186 = vunpack.c.l.b16 %v4105
      %v4187 = vunpack.c.l.b16 %v4106
      %v4188 = vunpack.c.l.b16 %v4107
      %v4189 = vunpack.c.l.b16 %v4108
      %v4190 = vunpack.c.l.b16 %v4109
      %v4191 = vunpack.c.l.b16 %v4110
      %v4192 = vunpack.c.l.b16 %v4111
      %v4193 = vunpack.c.l.b16 %v4112
      %v4194 = vunpack.c.l.b16 %v4113
      %v4195 = vunpack.c.l.b16 %v4114
      %v4196 = vunpack.c.l.b16 %v4115
      %v4197 = vunpack.c.l.b16 %v4116
      %v4198 = vunpack.c.l.b16 %v4117
      %v4199 = vunpack.c.l.b16 %v4118
      %v4200 = vunpack.c.l.b16 %v4119
      %v4201 = vunpack.c.l.b16 %v4120
      %v4202 = vunpack.c.l.b16 %v4121
      %v4203 = vunpack.c.l.b16 %v4122
      %v4204 = vunpack.c.l.b16 %v4123
      %v4205 = vunpack.c.l.b16 %v4124
      %v4206 = vunpack.c.l.b16 %v4125
      %v4207 = vunpack.c.l.b16 %v4126
      %v4208 = vunpack.c.l.b16 %v4127
      %v4209 = vunpack.c.l.b16 %v4128
      %v4210 = vunpack.c.l.b16 %v4129
      %v4211 = vunpack.c.l.b16 %v4130
      %v4212 = vunpack.c.l.b16 %v4131
      %v4213 = vunpack.c.l.b16 %v4132
      %v4214 = vpack.c.b16 %v4183, %v4182
      %v4215 = vpack.c.b16 %v4185, %v4184
      %v4216 = vpack.c.b16 %v4187, %v4186
      %v4217 = vpack.c.b16 %v4189, %v4188
      %v4218 = vpack.c.b16 %v4191, %v4190
      %v4219 = vpack.c.b16 %v4193, %v4192
      %v4220 = vpack.c.b16 %v4195, %v4194
      %v4221 = vpack.c.b16 %v4197, %v4196
      %v4222 = vpack.c.b16 %v4199, %v4198
      %v4223 = vpack.c.b16 %v4201, %v4200
      %v4224 = vpack.c.b16 %v4203, %v4202
      %v4225 = vpack.c.b16 %v4205, %v4204
      %v4226 = vpack.c.b16 %v4207, %v4206
      %v4227 = vpack.c.b16 %v4209, %v4208
      %v4228 = vpack.c.b16 %v4211, %v4210
      %v4229 = vpack.c.b16 %v4213, %v4212
      %v4262 = vunpack.c.l.b16 %v4134
      %v4263 = vunpack.c.l.b16 %v4135
      %v4264 = vunpack.c.l.b16 %v4136
      %v4265 = vunpack.c.l.b16 %v4137
      %v4266 = vunpack.c.l.b16 %v4138
      %v4267 = vunpack.c.l.b16 %v4139
      %v4268 = vunpack.c.l.b16 %v4140
      %v4269 = vunpack.c.l.b16 %v4141
      %v4270 = vunpack.c.l.b16 %v4142
      %v4271 = vunpack.c.l.b16 %v4143
      %v4272 = vunpack.c.l.b16 %v4144
      %v4273 = vunpack.c.l.b16 %v4145
      %v4274 = vunpack.c.l.b16 %v4146
      %v4275 = vunpack.c.l.b16 %v4147
      %v4276 = vunpack.c.l.b16 %v4148
      %v4277 = vunpack.c.l.b16 %v4149
      %v4278 = vpack.c.b16 %v4263, %v4262
      %v4279 = vpack.c.b16 %v4265, %v4264
      %v4280 = vpack.c.b16 %v4267, %v4266
      %v4281 = vpack.c.b16 %v4269, %v4268
      %v4282 = vpack.c.b16 %v4271, %v4270
      %v4283 = vpack.c.b16 %v4273, %v4272
      %v4284 = vpack.c.b16 %v4275, %v4274
      %v4285 = vpack.c.b16 %v4277, %v4276
      %4294 = vmatprep.subr.bf16.mxu0 0
      %4295 = vmatpush1.bf16.msra.mxu0 %v4278
      %4296 = vmatprep.subr.bf16.mxu0 0
      %4297 = vmatpush1.bf16.msra.mxu0 %v4279
      %4298 = vmatprep.subr.bf16.mxu0 0
      %4299 = vmatpush1.bf16.msra.mxu0 %v4280
      %4300 = vmatprep.subr.bf16.mxu0 0
      %4301 = vmatpush1.bf16.msra.mxu0 %v4281
      %4302 = vmatprep.subr.bf16.mxu0 0
      %4303 = vmatpush1.bf16.msra.mxu0 %v4282
      %4304 = vmatprep.subr.bf16.mxu0 0
      %4305 = vmatpush1.bf16.msra.mxu0 %v4283
      %4306 = vmatprep.subr.bf16.mxu0 0
      %4307 = vmatpush1.bf16.msra.mxu0 %v4284
      %4308 = vmatprep.subr.bf16.mxu0 0
      %4309 = vmatpush1.bf16.msra.mxu0 %v4285
      %4310 = vmatprep.subr.bf16.mxu0 0
      %4311 = vmatpush1.bf16.msra.mxu0 0
      %4312 = vmatprep.subr.bf16.mxu0 0
      %4313 = vmatpush1.bf16.msra.mxu0 0
      %4314 = vmatprep.subr.bf16.mxu0 0
      %4315 = vmatpush1.bf16.msra.mxu0 0
      %4316 = vmatprep.subr.bf16.mxu0 0
      %4317 = vmatpush1.bf16.msra.mxu0 0
      %4318 = vmatprep.subr.bf16.mxu0 0
      %4319 = vmatpush1.bf16.msra.mxu0 0
      %4320 = vmatprep.subr.bf16.mxu0 0
      %4321 = vmatpush1.bf16.msra.mxu0 0
      %4322 = vmatprep.subr.bf16.mxu0 0
      %4323 = vmatpush1.bf16.msra.mxu0 0
      %4324 = vmatprep.subr.bf16.mxu0 0
      %4325 = vmatpush1.bf16.msra.mxu0 0
      %4326 = vmatprep.mubr.bf16.mxu0 0
      %4327 = vmatmul.mubr.bf16.gmra.mrb[0].mxu0 %v4214
      %v4328 = vpop.f32.mrb[0].mxu0
      %v4329 = vadd.f32 0.0, %v4328
      %v4330 = vpop.f32.mrb[0].mxu0
      %v4331 = vpop.f32.mrb[0].mxu0
      %v4332 = vadd.f32 0.0, %v4331
      %v4333 = vpop.f32.mrb[0].mxu0
      %4334 = vmatprep.mubr.bf16.mxu0 0
      %4335 = vmatmul.mubr.bf16.gmra.mrb[0].mxu0 %v4215
      %v4336 = vpop.f32.mrb[0].mxu0
      %v4337 = vadd.f32 0.0, %v4336
      %v4338 = vpop.f32.mrb[0].mxu0
      %v4339 = vpop.f32.mrb[0].mxu0
      %v4340 = vadd.f32 0.0, %v4339
      %v4341 = vpop.f32.mrb[0].mxu0
      %4342 = vmatprep.mubr.bf16.mxu0 0
      %4343 = vmatmul.mubr.bf16.gmra.mrb[0].mxu0 %v4216
      %v4344 = vpop.f32.mrb[0].mxu0
      %v4345 = vadd.f32 0.0, %v4344
      %v4346 = vpop.f32.mrb[0].mxu0
      %v4347 = vpop.f32.mrb[0].mxu0
      %v4348 = vadd.f32 0.0, %v4347
      %v4349 = vpop.f32.mrb[0].mxu0
      %4350 = vmatprep.mubr.bf16.mxu0 0
      %4351 = vmatmul.mubr.bf16.gmra.mrb[0].mxu0 %v4217
      %v4352 = vpop.f32.mrb[0].mxu0
      %v4353 = vadd.f32 0.0, %v4352
      %v4354 = vpop.f32.mrb[0].mxu0
      %v4355 = vpop.f32.mrb[0].mxu0
      %v4356 = vadd.f32 0.0, %v4355
      %v4357 = vpop.f32.mrb[0].mxu0
      %4358 = vmatprep.mubr.bf16.mxu0 0
      %4359 = vmatmul.mubr.bf16.gmra.mrb[0].mxu0 %v4218
      %v4360 = vpop.f32.mrb[0].mxu0
      %v4361 = vadd.f32 0.0, %v4360
      %v4362 = vpop.f32.mrb[0].mxu0
      %v4363 = vpop.f32.mrb[0].mxu0
      %v4364 = vadd.f32 0.0, %v4363
      %v4365 = vpop.f32.mrb[0].mxu0
      %4366 = vmatprep.mubr.bf16.mxu0 0
      %4367 = vmatmul.mubr.bf16.gmra.mrb[0].mxu0 %v4219
      %v4368 = vpop.f32.mrb[0].mxu0
      %v4369 = vadd.f32 0.0, %v4368
      %v4370 = vpop.f32.mrb[0].mxu0
      %v4371 = vpop.f32.mrb[0].mxu0
      %v4372 = vadd.f32 0.0, %v4371
      %v4373 = vpop.f32.mrb[0].mxu0
      %4374 = vmatprep.mubr.bf16.mxu0 0
      %4375 = vmatmul.mubr.bf16.gmra.mrb[0].mxu0 %v4220
      %v4376 = vpop.f32.mrb[0].mxu0
      %v4377 = vadd.f32 0.0, %v4376
      %v4378 = vpop.f32.mrb[0].mxu0
      %v4379 = vpop.f32.mrb[0].mxu0
      %v4380 = vadd.f32 0.0, %v4379
      %v4381 = vpop.f32.mrb[0].mxu0
      %4382 = vmatprep.mubr.bf16.mxu0 0
      %4383 = vmatmul.mubr.bf16.gmra.mrb[0].mxu0 %v4221
      %v4384 = vpop.f32.mrb[0].mxu0
      %v4385 = vadd.f32 0.0, %v4384
      %v4386 = vpop.f32.mrb[0].mxu0
      %v4387 = vpop.f32.mrb[0].mxu0
      %v4388 = vadd.f32 0.0, %v4387
      %v4389 = vpop.f32.mrb[0].mxu0
      %4390 = vmatprep.mubr.bf16.mxu0 0
      %4391 = vmatmul.mubr.bf16.gmra.mrb[0].mxu0 %v4222
      %v4392 = vpop.f32.mrb[0].mxu0
      %v4393 = vadd.f32 0.0, %v4392
      %v4394 = vpop.f32.mrb[0].mxu0
      %v4395 = vpop.f32.mrb[0].mxu0
      %v4396 = vadd.f32 0.0, %v4395
      %v4397 = vpop.f32.mrb[0].mxu0
      %4398 = vmatprep.mubr.bf16.mxu0 0
      %4399 = vmatmul.mubr.bf16.gmra.mrb[0].mxu0 %v4223
      %v4400 = vpop.f32.mrb[0].mxu0
      %v4401 = vadd.f32 0.0, %v4400
      %v4402 = vpop.f32.mrb[0].mxu0
      %v4403 = vpop.f32.mrb[0].mxu0
      %v4404 = vadd.f32 0.0, %v4403
      %v4405 = vpop.f32.mrb[0].mxu0
      %4406 = vmatprep.mubr.bf16.mxu0 0
      %4407 = vmatmul.mubr.bf16.gmra.mrb[0].mxu0 %v4224
      %v4408 = vpop.f32.mrb[0].mxu0
      %v4409 = vadd.f32 0.0, %v4408
      %v4410 = vpop.f32.mrb[0].mxu0
      %v4411 = vpop.f32.mrb[0].mxu0
      %v4412 = vadd.f32 0.0, %v4411
      %v4413 = vpop.f32.mrb[0].mxu0
      %4414 = vmatprep.mubr.bf16.mxu0 0
      %4415 = vmatmul.mubr.bf16.gmra.mrb[0].mxu0 %v4225
      %v4416 = vpop.f32.mrb[0].mxu0
      %v4417 = vadd.f32 0.0, %v4416
      %v4418 = vpop.f32.mrb[0].mxu0
      %v4419 = vpop.f32.mrb[0].mxu0
      %v4420 = vadd.f32 0.0, %v4419
      %v4421 = vpop.f32.mrb[0].mxu0
      %4422 = vmatprep.mubr.bf16.mxu0 0
      %4423 = vmatmul.mubr.bf16.gmra.mrb[0].mxu0 %v4226
      %v4424 = vpop.f32.mrb[0].mxu0
      %v4425 = vadd.f32 0.0, %v4424
      %v4426 = vpop.f32.mrb[0].mxu0
      %v4427 = vpop.f32.mrb[0].mxu0
      %v4428 = vadd.f32 0.0, %v4427
      %v4429 = vpop.f32.mrb[0].mxu0
      %4430 = vmatprep.mubr.bf16.mxu0 0
      %4431 = vmatmul.mubr.bf16.gmra.mrb[0].mxu0 %v4227
      %v4432 = vpop.f32.mrb[0].mxu0
      %v4433 = vadd.f32 0.0, %v4432
      %v4434 = vpop.f32.mrb[0].mxu0
      %v4435 = vpop.f32.mrb[0].mxu0
      %v4436 = vadd.f32 0.0, %v4435
      %v4437 = vpop.f32.mrb[0].mxu0
      %4438 = vmatprep.mubr.bf16.mxu0 0
      %4439 = vmatmul.mubr.bf16.gmra.mrb[0].mxu0 %v4228
      %v4440 = vpop.f32.mrb[0].mxu0
      %v4441 = vadd.f32 0.0, %v4440
      %v4442 = vpop.f32.mrb[0].mxu0
      %v4443 = vpop.f32.mrb[0].mxu0
      %v4444 = vadd.f32 0.0, %v4443
      %v4445 = vpop.f32.mrb[0].mxu0
      %4446 = vmatprep.mubr.bf16.mxu0 0
      %4447 = vmatmul.mubr.bf16.gmra.mrb[0].mxu0 %v4229
      %v4448 = vpop.f32.mrb[0].mxu0
      %v4449 = vadd.f32 0.0, %v4448
      %v4450 = vpop.f32.mrb[0].mxu0
      %v4451 = vpop.f32.mrb[0].mxu0
      %v4452 = vadd.f32 0.0, %v4451
      %v4453 = vpop.f32.mrb[0].mxu0
      %4454 = vdwg.mxu0
      %v4455 = vadd.f32 %v4068, %v4329
      %v4456 = vadd.f32 %v4069, %v4332
      %v4457 = vadd.f32 %v4070, %v4337
      %v4458 = vadd.f32 %v4071, %v4340
      %v4459 = vadd.f32 %v4072, %v4345
      %v4460 = vadd.f32 %v4073, %v4348
      %v4461 = vadd.f32 %v4074, %v4353
      %v4462 = vadd.f32 %v4075, %v4356
      %v4463 = vadd.f32 %v4076, %v4361
      %v4464 = vadd.f32 %v4077, %v4364
      %v4465 = vadd.f32 %v4078, %v4369
      %v4466 = vadd.f32 %v4079, %v4372
      %v4467 = vadd.f32 %v4080, %v4377
      %v4468 = vadd.f32 %v4081, %v4380
      %v4469 = vadd.f32 %v4082, %v4385
      %v4470 = vadd.f32 %v4083, %v4388
      %v4471 = vadd.f32 %v4084, %v4393
      %v4472 = vadd.f32 %v4085, %v4396
      %v4473 = vadd.f32 %v4086, %v4401
      %v4474 = vadd.f32 %v4087, %v4404
      %v4475 = vadd.f32 %v4088, %v4409
      %v4476 = vadd.f32 %v4089, %v4412
      %v4477 = vadd.f32 %v4090, %v4417
      %v4478 = vadd.f32 %v4091, %v4420
      %v4479 = vadd.f32 %v4092, %v4425
      %v4480 = vadd.f32 %v4093, %v4428
      %v4481 = vadd.f32 %v4094, %v4433
      %v4482 = vadd.f32 %v4095, %v4436
      %v4483 = vadd.f32 %v4096, %v4441
      %v4484 = vadd.f32 %v4097, %v4444
      %v4485 = vadd.f32 %v4098, %v4449
      %v4486 = vadd.f32 %v4099, %v4452
      %v4487 = vld [vmem:[%s4100] sm:$0xf]
      %v4488 = vld [vmem:[%s4100 + $0x4] sm:$0xf]
      %v4489 = vld [vmem:[%s4100 + $0x8] sm:$0x1]
      %v4490 = vld [vmem:[%s4100 + $0xc] sm:$0xf]
      %v4491 = vld [vmem:[%s4100 + $0x10] sm:$0xf]
      %v4492 = vld [vmem:[%s4100 + $0x14] sm:$0x1]
      %v4493 = vld [vmem:[%s4100 + $0x18] sm:$0xf]
      %v4494 = vld [vmem:[%s4100 + $0x1c] sm:$0xf]
      %v4495 = vld [vmem:[%s4100 + $0x20] sm:$0x1]
      %v4496 = vld [vmem:[%s4100 + $0x24] sm:$0xf]
      %v4497 = vld [vmem:[%s4100 + $0x28] sm:$0xf]
      %v4498 = vld [vmem:[%s4100 + $0x2c] sm:$0x1]
      %v4499 = vld [vmem:[%s4100 + $0x30] sm:$0xf]
      %v4500 = vld [vmem:[%s4100 + $0x34] sm:$0xf]
      %v4501 = vld [vmem:[%s4100 + $0x38] sm:$0x1]
      %v4502 = vld [vmem:[%s4100 + $0x3c] sm:$0xf]
      %v4503 = vld [vmem:[%s4100 + $0x40] sm:$0xf]
      %v4504 = vld [vmem:[%s4100 + $0x44] sm:$0x1]
      %v4505 = vld [vmem:[%s4100 + $0x48] sm:$0xf]
      %v4506 = vld [vmem:[%s4100 + $0x4c] sm:$0xf]
      %v4507 = vld [vmem:[%s4100 + $0x50] sm:$0x1]
      %v4508 = vld [vmem:[%s4100 + $0x54] sm:$0xf]
      %v4509 = vld [vmem:[%s4100 + $0x58] sm:$0xf]
      %v4510 = vld [vmem:[%s4100 + $0x5c] sm:$0x1]
      %v4511 = vld [vmem:[%s4100 + $0x60] sm:$0xf]
      %v4512 = vld [vmem:[%s4100 + $0x64] sm:$0xf]
      %v4513 = vld [vmem:[%s4100 + $0x68] sm:$0x1]
      %v4514 = vld [vmem:[%s4100 + $0x6c] sm:$0xf]
      %v4515 = vld [vmem:[%s4100 + $0x70] sm:$0xf]
      %v4516 = vld [vmem:[%s4100 + $0x74] sm:$0x1]
      %v4517 = vld [vmem:[%s4100 + $0x78] sm:$0xf]
      %v4518 = vld [vmem:[%s4100 + $0x7c] sm:$0xf]
      %v4519 = vld [vmem:[%s4100 + $0x80] sm:$0x1]
      %v4520 = vld [vmem:[%s4100 + $0x84] sm:$0xf]
      %v4521 = vld [vmem:[%s4100 + $0x88] sm:$0xf]
      %v4522 = vld [vmem:[%s4100 + $0x8c] sm:$0x1]
      %v4523 = vld [vmem:[%s4100 + $0x90] sm:$0xf]
      %v4524 = vld [vmem:[%s4100 + $0x94] sm:$0xf]
      %v4525 = vld [vmem:[%s4100 + $0x98] sm:$0x1]
      %v4526 = vld [vmem:[%s4100 + $0x9c] sm:$0xf]
      %v4527 = vld [vmem:[%s4100 + $0xa0] sm:$0xf]
      %v4528 = vld [vmem:[%s4100 + $0xa4] sm:$0x1]
      %v4529 = vld [vmem:[%s4100 + $0xa8] sm:$0xf]
      %v4530 = vld [vmem:[%s4100 + $0xac] sm:$0xf]
      %v4531 = vld [vmem:[%s4100 + $0xb0] sm:$0x1]
      %v4532 = vld [vmem:[%s4100 + $0xb4] sm:$0xf]
      %v4533 = vld [vmem:[%s4100 + $0xb8] sm:$0xf]
      %v4534 = vld [vmem:[%s4100 + $0xbc] sm:$0x1]
      %v4536 = vshrl.u32 %v4487, 16
      %v4538 = vrot.slane %v4536, 4
      %v4539 = vshll.u32 %v4487, 16
      %v4541 = vrot.slane %v4539, 5
      %v4542 = vor.u32 %v4538, %v4541
      %v4543 = vrot.slane %v4542, 4
      %v4545 = vshll.u32 %v4488, 16
      %v4547 = vrot.slane %v4545, 5
      %v4548 = vsel %vm997, %v4543, %v4547
      %v4549 = vshrl.u32 %v4488, 16
      %v4551 = vrot.slane %v4549, 4
      %v4552 = vor.u32 %v4551, %v4547
      %v4553 = vrot.slane %v4552, 4
      %v4555 = vshll.u32 %v4489, 16
      %v4557 = vrot.slane %v4555, 5
      %v4558 = vsel %vm997, %v4553, %v4557
      %v4560 = vshrl.u32 %v4490, 16
      %v4562 = vrot.slane %v4560, 4
      %v4563 = vshll.u32 %v4490, 16
      %v4565 = vrot.slane %v4563, 5
      %v4566 = vor.u32 %v4562, %v4565
      %v4567 = vrot.slane %v4566, 4
      %v4569 = vshll.u32 %v4491, 16
      %v4571 = vrot.slane %v4569, 5
      %v4572 = vsel %vm997, %v4567, %v4571
      %v4573 = vshrl.u32 %v4491, 16
      %v4575 = vrot.slane %v4573, 4
      %v4576 = vor.u32 %v4575, %v4571
      %v4577 = vrot.slane %v4576, 4
      %v4579 = vshll.u32 %v4492, 16
      %v4581 = vrot.slane %v4579, 5
      %v4582 = vsel %vm997, %v4577, %v4581
      %v4584 = vshrl.u32 %v4493, 16
      %v4586 = vrot.slane %v4584, 4
      %v4587 = vshll.u32 %v4493, 16
      %v4589 = vrot.slane %v4587, 5
      %v4590 = vor.u32 %v4586, %v4589
      %v4591 = vrot.slane %v4590, 4
      %v4593 = vshll.u32 %v4494, 16
      %v4595 = vrot.slane %v4593, 5
      %v4596 = vsel %vm997, %v4591, %v4595
      %v4597 = vshrl.u32 %v4494, 16
      %v4599 = vrot.slane %v4597, 4
      %v4600 = vor.u32 %v4599, %v4595
      %v4601 = vrot.slane %v4600, 4
      %v4603 = vshll.u32 %v4495, 16
      %v4605 = vrot.slane %v4603, 5
      %v4606 = vsel %vm997, %v4601, %v4605
      %v4608 = vshrl.u32 %v4496, 16
      %v4610 = vrot.slane %v4608, 4
      %v4611 = vshll.u32 %v4496, 16
      %v4613 = vrot.slane %v4611, 5
      %v4614 = vor.u32 %v4610, %v4613
      %v4615 = vrot.slane %v4614, 4
      %v4617 = vshll.u32 %v4497, 16
      %v4619 = vrot.slane %v4617, 5
      %v4620 = vsel %vm997, %v4615, %v4619
      %v4621 = vshrl.u32 %v4497, 16
      %v4623 = vrot.slane %v4621, 4
      %v4624 = vor.u32 %v4623, %v4619
      %v4625 = vrot.slane %v4624, 4
      %v4627 = vshll.u32 %v4498, 16
      %v4629 = vrot.slane %v4627, 5
      %v4630 = vsel %vm997, %v4625, %v4629
      %v4632 = vshrl.u32 %v4499, 16
      %v4634 = vrot.slane %v4632, 4
      %v4635 = vshll.u32 %v4499, 16
      %v4637 = vrot.slane %v4635, 5
      %v4638 = vor.u32 %v4634, %v4637
      %v4639 = vrot.slane %v4638, 4
      %v4641 = vshll.u32 %v4500, 16
      %v4643 = vrot.slane %v4641, 5
      %v4644 = vsel %vm997, %v4639, %v4643
      %v4645 = vshrl.u32 %v4500, 16
      %v4647 = vrot.slane %v4645, 4
      %v4648 = vor.u32 %v4647, %v4643
      %v4649 = vrot.slane %v4648, 4
      %v4651 = vshll.u32 %v4501, 16
      %v4653 = vrot.slane %v4651, 5
      %v4654 = vsel %vm997, %v4649, %v4653
      %v4656 = vshrl.u32 %v4502, 16
      %v4658 = vrot.slane %v4656, 4
      %v4659 = vshll.u32 %v4502, 16
      %v4661 = vrot.slane %v4659, 5
      %v4662 = vor.u32 %v4658, %v4661
      %v4663 = vrot.slane %v4662, 4
      %v4665 = vshll.u32 %v4503, 16
      %v4667 = vrot.slane %v4665, 5
      %v4668 = vsel %vm997, %v4663, %v4667
      %v4669 = vshrl.u32 %v4503, 16
      %v4671 = vrot.slane %v4669, 4
      %v4672 = vor.u32 %v4671, %v4667
      %v4673 = vrot.slane %v4672, 4
      %v4675 = vshll.u32 %v4504, 16
      %v4677 = vrot.slane %v4675, 5
      %v4678 = vsel %vm997, %v4673, %v4677
      %v4680 = vshrl.u32 %v4505, 16
      %v4682 = vrot.slane %v4680, 4
      %v4683 = vshll.u32 %v4505, 16
      %v4685 = vrot.slane %v4683, 5
      %v4686 = vor.u32 %v4682, %v4685
      %v4687 = vrot.slane %v4686, 4
      %v4689 = vshll.u32 %v4506, 16
      %v4691 = vrot.slane %v4689, 5
      %v4692 = vsel %vm997, %v4687, %v4691
      %v4693 = vshrl.u32 %v4506, 16
      %v4695 = vrot.slane %v4693, 4
      %v4696 = vor.u32 %v4695, %v4691
      %v4697 = vrot.slane %v4696, 4
      %v4699 = vshll.u32 %v4507, 16
      %v4701 = vrot.slane %v4699, 5
      %v4702 = vsel %vm997, %v4697, %v4701
      %v4704 = vshrl.u32 %v4508, 16
      %v4706 = vrot.slane %v4704, 4
      %v4707 = vshll.u32 %v4508, 16
      %v4709 = vrot.slane %v4707, 5
      %v4710 = vor.u32 %v4706, %v4709
      %v4711 = vrot.slane %v4710, 4
      %v4713 = vshll.u32 %v4509, 16
      %v4715 = vrot.slane %v4713, 5
      %v4716 = vsel %vm997, %v4711, %v4715
      %v4717 = vshrl.u32 %v4509, 16
      %v4719 = vrot.slane %v4717, 4
      %v4720 = vor.u32 %v4719, %v4715
      %v4721 = vrot.slane %v4720, 4
      %v4723 = vshll.u32 %v4510, 16
      %v4725 = vrot.slane %v4723, 5
      %v4726 = vsel %vm997, %v4721, %v4725
      %v4728 = vshrl.u32 %v4511, 16
      %v4730 = vrot.slane %v4728, 4
      %v4731 = vshll.u32 %v4511, 16
      %v4733 = vrot.slane %v4731, 5
      %v4734 = vor.u32 %v4730, %v4733
      %v4735 = vrot.slane %v4734, 4
      %v4737 = vshll.u32 %v4512, 16
      %v4739 = vrot.slane %v4737, 5
      %v4740 = vsel %vm997, %v4735, %v4739
      %v4741 = vshrl.u32 %v4512, 16
      %v4743 = vrot.slane %v4741, 4
      %v4744 = vor.u32 %v4743, %v4739
      %v4745 = vrot.slane %v4744, 4
      %v4747 = vshll.u32 %v4513, 16
      %v4749 = vrot.slane %v4747, 5
      %v4750 = vsel %vm997, %v4745, %v4749
      %v4752 = vshrl.u32 %v4514, 16
      %v4754 = vrot.slane %v4752, 4
      %v4755 = vshll.u32 %v4514, 16
      %v4757 = vrot.slane %v4755, 5
      %v4758 = vor.u32 %v4754, %v4757
      %v4759 = vrot.slane %v4758, 4
      %v4761 = vshll.u32 %v4515, 16
      %v4763 = vrot.slane %v4761, 5
      %v4764 = vsel %vm997, %v4759, %v4763
      %v4765 = vshrl.u32 %v4515, 16
      %v4767 = vrot.slane %v4765, 4
      %v4768 = vor.u32 %v4767, %v4763
      %v4769 = vrot.slane %v4768, 4
      %v4771 = vshll.u32 %v4516, 16
      %v4773 = vrot.slane %v4771, 5
      %v4774 = vsel %vm997, %v4769, %v4773
      %v4776 = vshrl.u32 %v4517, 16
      %v4778 = vrot.slane %v4776, 4
      %v4779 = vshll.u32 %v4517, 16
      %v4781 = vrot.slane %v4779, 5
      %v4782 = vor.u32 %v4778, %v4781
      %v4783 = vrot.slane %v4782, 4
      %v4785 = vshll.u32 %v4518, 16
      %v4787 = vrot.slane %v4785, 5
      %v4788 = vsel %vm997, %v4783, %v4787
      %v4789 = vshrl.u32 %v4518, 16
      %v4791 = vrot.slane %v4789, 4
      %v4792 = vor.u32 %v4791, %v4787
      %v4793 = vrot.slane %v4792, 4
      %v4795 = vshll.u32 %v4519, 16
      %v4797 = vrot.slane %v4795, 5
      %v4798 = vsel %vm997, %v4793, %v4797
      %v4800 = vshrl.u32 %v4520, 16
      %v4802 = vrot.slane %v4800, 4
      %v4803 = vshll.u32 %v4520, 16
      %v4805 = vrot.slane %v4803, 5
      %v4806 = vor.u32 %v4802, %v4805
      %v4807 = vrot.slane %v4806, 4
      %v4809 = vshll.u32 %v4521, 16
      %v4811 = vrot.slane %v4809, 5
      %v4812 = vsel %vm997, %v4807, %v4811
      %v4813 = vshrl.u32 %v4521, 16
      %v4815 = vrot.slane %v4813, 4
      %v4816 = vor.u32 %v4815, %v4811
      %v4817 = vrot.slane %v4816, 4
      %v4819 = vshll.u32 %v4522, 16
      %v4821 = vrot.slane %v4819, 5
      %v4822 = vsel %vm997, %v4817, %v4821
      %v4824 = vshrl.u32 %v4523, 16
      %v4826 = vrot.slane %v4824, 4
      %v4827 = vshll.u32 %v4523, 16
      %v4829 = vrot.slane %v4827, 5
      %v4830 = vor.u32 %v4826, %v4829
      %v4831 = vrot.slane %v4830, 4
      %v4833 = vshll.u32 %v4524, 16
      %v4835 = vrot.slane %v4833, 5
      %v4836 = vsel %vm997, %v4831, %v4835
      %v4837 = vshrl.u32 %v4524, 16
      %v4839 = vrot.slane %v4837, 4
      %v4840 = vor.u32 %v4839, %v4835
      %v4841 = vrot.slane %v4840, 4
      %v4843 = vshll.u32 %v4525, 16
      %v4845 = vrot.slane %v4843, 5
      %v4846 = vsel %vm997, %v4841, %v4845
      %v4848 = vshrl.u32 %v4526, 16
      %v4850 = vrot.slane %v4848, 4
      %v4851 = vshll.u32 %v4526, 16
      %v4853 = vrot.slane %v4851, 5
      %v4854 = vor.u32 %v4850, %v4853
      %v4855 = vrot.slane %v4854, 4
      %v4857 = vshll.u32 %v4527, 16
      %v4859 = vrot.slane %v4857, 5
      %v4860 = vsel %vm997, %v4855, %v4859
      %v4861 = vshrl.u32 %v4527, 16
      %v4863 = vrot.slane %v4861, 4
      %v4864 = vor.u32 %v4863, %v4859
      %v4865 = vrot.slane %v4864, 4
      %v4867 = vshll.u32 %v4528, 16
      %v4869 = vrot.slane %v4867, 5
      %v4870 = vsel %vm997, %v4865, %v4869
      %v4872 = vshrl.u32 %v4529, 16
      %v4874 = vrot.slane %v4872, 4
      %v4875 = vshll.u32 %v4529, 16
      %v4877 = vrot.slane %v4875, 5
      %v4878 = vor.u32 %v4874, %v4877
      %v4879 = vrot.slane %v4878, 4
      %v4881 = vshll.u32 %v4530, 16
      %v4883 = vrot.slane %v4881, 5
      %v4884 = vsel %vm997, %v4879, %v4883
      %v4885 = vshrl.u32 %v4530, 16
      %v4887 = vrot.slane %v4885, 4
      %v4888 = vor.u32 %v4887, %v4883
      %v4889 = vrot.slane %v4888, 4
      %v4891 = vshll.u32 %v4531, 16
      %v4893 = vrot.slane %v4891, 5
      %v4894 = vsel %vm997, %v4889, %v4893
      %v4896 = vshrl.u32 %v4532, 16
      %v4898 = vrot.slane %v4896, 4
      %v4899 = vshll.u32 %v4532, 16
      %v4901 = vrot.slane %v4899, 5
      %v4902 = vor.u32 %v4898, %v4901
      %v4903 = vrot.slane %v4902, 4
      %v4905 = vshll.u32 %v4533, 16
      %v4907 = vrot.slane %v4905, 5
      %v4908 = vsel %vm997, %v4903, %v4907
      %v4909 = vshrl.u32 %v4533, 16
      %v4911 = vrot.slane %v4909, 4
      %v4912 = vor.u32 %v4911, %v4907
      %v4913 = vrot.slane %v4912, 4
      %v4915 = vshll.u32 %v4534, 16
      %v4917 = vrot.slane %v4915, 5
      %v4918 = vsel %vm997, %v4913, %v4917
      %s4919 = scalar_lea.vmem %s2, 448
      %v4920 = vld [vmem:[%s4919] sm:$0xf]
      %v4921 = vld [vmem:[%s4919 + $0x4] sm:$0xf]
      %v4922 = vld [vmem:[%s4919 + $0x8] sm:$0xf]
      %v4923 = vld [vmem:[%s4919 + $0xc] sm:$0xf]
      %v4924 = vld [vmem:[%s4919 + $0x10] sm:$0xf]
      %v4925 = vld [vmem:[%s4919 + $0x14] sm:$0xf]
      %v4926 = vld [vmem:[%s4919 + $0x18] sm:$0xf]
      %v4927 = vld [vmem:[%s4919 + $0x1c] sm:$0xf]
      %v4928 = vld [vmem:[%s4919 + $0x20] sm:$0xf]
      %v4929 = vld [vmem:[%s4919 + $0x24] sm:$0xf]
      %v4930 = vld [vmem:[%s4919 + $0x28] sm:$0xf]
      %v4931 = vld [vmem:[%s4919 + $0x2c] sm:$0xf]
      %v4932 = vld [vmem:[%s4919 + $0x30] sm:$0xf]
      %v4933 = vld [vmem:[%s4919 + $0x34] sm:$0xf]
      %v4934 = vld [vmem:[%s4919 + $0x38] sm:$0xf]
      %v4935 = vld [vmem:[%s4919 + $0x3c] sm:$0xf]
      %v4936 = vunpack.c.l.b16 %v4548
      %v4937 = vunpack.c.l.b16 %v4558
      %v4938 = vunpack.c.l.b16 %v4572
      %v4939 = vunpack.c.l.b16 %v4582
      %v4940 = vunpack.c.l.b16 %v4596
      %v4941 = vunpack.c.l.b16 %v4606
      %v4942 = vunpack.c.l.b16 %v4620
      %v4943 = vunpack.c.l.b16 %v4630
      %v4944 = vunpack.c.l.b16 %v4644
      %v4945 = vunpack.c.l.b16 %v4654
      %v4946 = vunpack.c.l.b16 %v4668
      %v4947 = vunpack.c.l.b16 %v4678
      %v4948 = vunpack.c.l.b16 %v4692
      %v4949 = vunpack.c.l.b16 %v4702
      %v4950 = vunpack.c.l.b16 %v4716
      %v4951 = vunpack.c.l.b16 %v4726
      %v4952 = vunpack.c.l.b16 %v4740
      %v4953 = vunpack.c.l.b16 %v4750
      %v4954 = vunpack.c.l.b16 %v4764
      %v4955 = vunpack.c.l.b16 %v4774
      %v4956 = vunpack.c.l.b16 %v4788
      %v4957 = vunpack.c.l.b16 %v4798
      %v4958 = vunpack.c.l.b16 %v4812
      %v4959 = vunpack.c.l.b16 %v4822
      %v4960 = vunpack.c.l.b16 %v4836
      %v4961 = vunpack.c.l.b16 %v4846
      %v4962 = vunpack.c.l.b16 %v4860
      %v4963 = vunpack.c.l.b16 %v4870
      %v4964 = vunpack.c.l.b16 %v4884
      %v4965 = vunpack.c.l.b16 %v4894
      %v4966 = vunpack.c.l.b16 %v4908
      %v4967 = vunpack.c.l.b16 %v4918
      %v4968 = vpack.c.b16 %v4937, %v4936
      %v4969 = vpack.c.b16 %v4939, %v4938
      %v4970 = vpack.c.b16 %v4941, %v4940
      %v4971 = vpack.c.b16 %v4943, %v4942
      %v4972 = vpack.c.b16 %v4945, %v4944
      %v4973 = vpack.c.b16 %v4947, %v4946
      %v4974 = vpack.c.b16 %v4949, %v4948
      %v4975 = vpack.c.b16 %v4951, %v4950
      %v4976 = vpack.c.b16 %v4953, %v4952
      %v4977 = vpack.c.b16 %v4955, %v4954
      %v4978 = vpack.c.b16 %v4957, %v4956
      %v4979 = vpack.c.b16 %v4959, %v4958
      %v4980 = vpack.c.b16 %v4961, %v4960
      %v4981 = vpack.c.b16 %v4963, %v4962
      %v4982 = vpack.c.b16 %v4965, %v4964
      %v4983 = vpack.c.b16 %v4967, %v4966
      %v5016 = vunpack.c.l.b16 %v4920
      %v5017 = vunpack.c.l.b16 %v4921
      %v5018 = vunpack.c.l.b16 %v4922
      %v5019 = vunpack.c.l.b16 %v4923
      %v5020 = vunpack.c.l.b16 %v4924
      %v5021 = vunpack.c.l.b16 %v4925
      %v5022 = vunpack.c.l.b16 %v4926
      %v5023 = vunpack.c.l.b16 %v4927
      %v5024 = vunpack.c.l.b16 %v4928
      %v5025 = vunpack.c.l.b16 %v4929
      %v5026 = vunpack.c.l.b16 %v4930
      %v5027 = vunpack.c.l.b16 %v4931
      %v5028 = vunpack.c.l.b16 %v4932
      %v5029 = vunpack.c.l.b16 %v4933
      %v5030 = vunpack.c.l.b16 %v4934
      %v5031 = vunpack.c.l.b16 %v4935
      %v5032 = vpack.c.b16 %v5017, %v5016
      %v5033 = vpack.c.b16 %v5019, %v5018
      %v5034 = vpack.c.b16 %v5021, %v5020
      %v5035 = vpack.c.b16 %v5023, %v5022
      %v5036 = vpack.c.b16 %v5025, %v5024
      %v5037 = vpack.c.b16 %v5027, %v5026
      %v5038 = vpack.c.b16 %v5029, %v5028
      %v5039 = vpack.c.b16 %v5031, %v5030
      %5048 = vmatprep.subr.bf16.mxu0 0
      %5049 = vmatpush1.bf16.msra.mxu0 %v5032
      %5050 = vmatprep.subr.bf16.mxu0 0
      %5051 = vmatpush1.bf16.msra.mxu0 %v5033
      %5052 = vmatprep.subr.bf16.mxu0 0
      %5053 = vmatpush1.bf16.msra.mxu0 %v5034
      %5054 = vmatprep.subr.bf16.mxu0 0
      %5055 = vmatpush1.bf16.msra.mxu0 %v5035
      %5056 = vmatprep.subr.bf16.mxu0 0
      %5057 = vmatpush1.bf16.msra.mxu0 %v5036
      %5058 = vmatprep.subr.bf16.mxu0 0
      %5059 = vmatpush1.bf16.msra.mxu0 %v5037
      %5060 = vmatprep.subr.bf16.mxu0 0
      %5061 = vmatpush1.bf16.msra.mxu0 %v5038
      %5062 = vmatprep.subr.bf16.mxu0 0
      %5063 = vmatpush1.bf16.msra.mxu0 %v5039
      %5064 = vmatprep.subr.bf16.mxu0 0
      %5065 = vmatpush1.bf16.msra.mxu0 0
      %5066 = vmatprep.subr.bf16.mxu0 0
      %5067 = vmatpush1.bf16.msra.mxu0 0
      %5068 = vmatprep.subr.bf16.mxu0 0
      %5069 = vmatpush1.bf16.msra.mxu0 0
      %5070 = vmatprep.subr.bf16.mxu0 0
      %5071 = vmatpush1.bf16.msra.mxu0 0
      %5072 = vmatprep.subr.bf16.mxu0 0
      %5073 = vmatpush1.bf16.msra.mxu0 0
      %5074 = vmatprep.subr.bf16.mxu0 0
      %5075 = vmatpush1.bf16.msra.mxu0 0
      %5076 = vmatprep.subr.bf16.mxu0 0
      %5077 = vmatpush1.bf16.msra.mxu0 0
      %5078 = vmatprep.subr.bf16.mxu0 0
      %5079 = vmatpush1.bf16.msra.mxu0 0
      %5080 = vmatprep.mubr.bf16.mxu0 0
      %5081 = vmatmul.mubr.bf16.gmra.mrb[0].mxu0 %v4968
      %v5082 = vpop.f32.mrb[0].mxu0
      %v5083 = vadd.f32 0.0, %v5082
      %v5084 = vpop.f32.mrb[0].mxu0
      %v5085 = vpop.f32.mrb[0].mxu0
      %v5086 = vadd.f32 0.0, %v5085
      %v5087 = vpop.f32.mrb[0].mxu0
      %5088 = vmatprep.mubr.bf16.mxu0 0
      %5089 = vmatmul.mubr.bf16.gmra.mrb[0].mxu0 %v4969
      %v5090 = vpop.f32.mrb[0].mxu0
      %v5091 = vadd.f32 0.0, %v5090
      %v5092 = vpop.f32.mrb[0].mxu0
      %v5093 = vpop.f32.mrb[0].mxu0
      %v5094 = vadd.f32 0.0, %v5093
      %v5095 = vpop.f32.mrb[0].mxu0
      %5096 = vmatprep.mubr.bf16.mxu0 0
      %5097 = vmatmul.mubr.bf16.gmra.mrb[0].mxu0 %v4970
      %v5098 = vpop.f32.mrb[0].mxu0
      %v5099 = vadd.f32 0.0, %v5098
      %v5100 = vpop.f32.mrb[0].mxu0
      %v5101 = vpop.f32.mrb[0].mxu0
      %v5102 = vadd.f32 0.0, %v5101
      %v5103 = vpop.f32.mrb[0].mxu0
      %5104 = vmatprep.mubr.bf16.mxu0 0
      %5105 = vmatmul.mubr.bf16.gmra.mrb[0].mxu0 %v4971
      %v5106 = vpop.f32.mrb[0].mxu0
      %v5107 = vadd.f32 0.0, %v5106
      %v5108 = vpop.f32.mrb[0].mxu0
      %v5109 = vpop.f32.mrb[0].mxu0
      %v5110 = vadd.f32 0.0, %v5109
      %v5111 = vpop.f32.mrb[0].mxu0
      %5112 = vmatprep.mubr.bf16.mxu0 0
      %5113 = vmatmul.mubr.bf16.gmra.mrb[0].mxu0 %v4972
      %v5114 = vpop.f32.mrb[0].mxu0
      %v5115 = vadd.f32 0.0, %v5114
      %v5116 = vpop.f32.mrb[0].mxu0
      %v5117 = vpop.f32.mrb[0].mxu0
      %v5118 = vadd.f32 0.0, %v5117
      %v5119 = vpop.f32.mrb[0].mxu0
      %5120 = vmatprep.mubr.bf16.mxu0 0
      %5121 = vmatmul.mubr.bf16.gmra.mrb[0].mxu0 %v4973
      %v5122 = vpop.f32.mrb[0].mxu0
      %v5123 = vadd.f32 0.0, %v5122
      %v5124 = vpop.f32.mrb[0].mxu0
      %v5125 = vpop.f32.mrb[0].mxu0
      %v5126 = vadd.f32 0.0, %v5125
      %v5127 = vpop.f32.mrb[0].mxu0
      %5128 = vmatprep.mubr.bf16.mxu0 0
      %5129 = vmatmul.mubr.bf16.gmra.mrb[0].mxu0 %v4974
      %v5130 = vpop.f32.mrb[0].mxu0
      %v5131 = vadd.f32 0.0, %v5130
      %v5132 = vpop.f32.mrb[0].mxu0
      %v5133 = vpop.f32.mrb[0].mxu0
      %v5134 = vadd.f32 0.0, %v5133
      %v5135 = vpop.f32.mrb[0].mxu0
      %5136 = vmatprep.mubr.bf16.mxu0 0
      %5137 = vmatmul.mubr.bf16.gmra.mrb[0].mxu0 %v4975
      %v5138 = vpop.f32.mrb[0].mxu0
      %v5139 = vadd.f32 0.0, %v5138
      %v5140 = vpop.f32.mrb[0].mxu0
      %v5141 = vpop.f32.mrb[0].mxu0
      %v5142 = vadd.f32 0.0, %v5141
      %v5143 = vpop.f32.mrb[0].mxu0
      %5144 = vmatprep.mubr.bf16.mxu0 0
      %5145 = vmatmul.mubr.bf16.gmra.mrb[0].mxu0 %v4976
      %v5146 = vpop.f32.mrb[0].mxu0
      %v5147 = vadd.f32 0.0, %v5146
      %v5148 = vpop.f32.mrb[0].mxu0
      %v5149 = vpop.f32.mrb[0].mxu0
      %v5150 = vadd.f32 0.0, %v5149
      %v5151 = vpop.f32.mrb[0].mxu0
      %5152 = vmatprep.mubr.bf16.mxu0 0
      %5153 = vmatmul.mubr.bf16.gmra.mrb[0].mxu0 %v4977
      %v5154 = vpop.f32.mrb[0].mxu0
      %v5155 = vadd.f32 0.0, %v5154
      %v5156 = vpop.f32.mrb[0].mxu0
      %v5157 = vpop.f32.mrb[0].mxu0
      %v5158 = vadd.f32 0.0, %v5157
      %v5159 = vpop.f32.mrb[0].mxu0
      %5160 = vmatprep.mubr.bf16.mxu0 0
      %5161 = vmatmul.mubr.bf16.gmra.mrb[0].mxu0 %v4978
      %v5162 = vpop.f32.mrb[0].mxu0
      %v5163 = vadd.f32 0.0, %v5162
      %v5164 = vpop.f32.mrb[0].mxu0
      %v5165 = vpop.f32.mrb[0].mxu0
      %v5166 = vadd.f32 0.0, %v5165
      %v5167 = vpop.f32.mrb[0].mxu0
      %5168 = vmatprep.mubr.bf16.mxu0 0
      %5169 = vmatmul.mubr.bf16.gmra.mrb[0].mxu0 %v4979
      %v5170 = vpop.f32.mrb[0].mxu0
      %v5171 = vadd.f32 0.0, %v5170
      %v5172 = vpop.f32.mrb[0].mxu0
      %v5173 = vpop.f32.mrb[0].mxu0
      %v5174 = vadd.f32 0.0, %v5173
      %v5175 = vpop.f32.mrb[0].mxu0
      %5176 = vmatprep.mubr.bf16.mxu0 0
      %5177 = vmatmul.mubr.bf16.gmra.mrb[0].mxu0 %v4980
      %v5178 = vpop.f32.mrb[0].mxu0
      %v5179 = vadd.f32 0.0, %v5178
      %v5180 = vpop.f32.mrb[0].mxu0
      %v5181 = vpop.f32.mrb[0].mxu0
      %v5182 = vadd.f32 0.0, %v5181
      %v5183 = vpop.f32.mrb[0].mxu0
      %5184 = vmatprep.mubr.bf16.mxu0 0
      %5185 = vmatmul.mubr.bf16.gmra.mrb[0].mxu0 %v4981
      %v5186 = vpop.f32.mrb[0].mxu0
      %v5187 = vadd.f32 0.0, %v5186
      %v5188 = vpop.f32.mrb[0].mxu0
      %v5189 = vpop.f32.mrb[0].mxu0
      %v5190 = vadd.f32 0.0, %v5189
      %v5191 = vpop.f32.mrb[0].mxu0
      %5192 = vmatprep.mubr.bf16.mxu0 0
      %5193 = vmatmul.mubr.bf16.gmra.mrb[0].mxu0 %v4982
      %v5194 = vpop.f32.mrb[0].mxu0
      %v5195 = vadd.f32 0.0, %v5194
      %v5196 = vpop.f32.mrb[0].mxu0
      %v5197 = vpop.f32.mrb[0].mxu0
      %v5198 = vadd.f32 0.0, %v5197
      %v5199 = vpop.f32.mrb[0].mxu0
      %5200 = vmatprep.mubr.bf16.mxu0 0
      %5201 = vmatmul.mubr.bf16.gmra.mrb[0].mxu0 %v4983
      %v5202 = vpop.f32.mrb[0].mxu0
      %v5203 = vadd.f32 0.0, %v5202
      %v5204 = vpop.f32.mrb[0].mxu0
      %v5205 = vpop.f32.mrb[0].mxu0
      %v5206 = vadd.f32 0.0, %v5205
      %v5207 = vpop.f32.mrb[0].mxu0
      %5208 = vdwg.mxu0
      %v5209 = vadd.f32 %v4455, %v5083
      %v5210 = vadd.f32 %v4456, %v5086
      %v5211 = vadd.f32 %v4457, %v5091
      %v5212 = vadd.f32 %v4458, %v5094
      %v5213 = vadd.f32 %v4459, %v5099
      %v5214 = vadd.f32 %v4460, %v5102
      %v5215 = vadd.f32 %v4461, %v5107
      %v5216 = vadd.f32 %v4462, %v5110
      %v5217 = vadd.f32 %v4463, %v5115
      %v5218 = vadd.f32 %v4464, %v5118
      %v5219 = vadd.f32 %v4465, %v5123
      %v5220 = vadd.f32 %v4466, %v5126
      %v5221 = vadd.f32 %v4467, %v5131
      %v5222 = vadd.f32 %v4468, %v5134
      %v5223 = vadd.f32 %v4469, %v5139
      %v5224 = vadd.f32 %v4470, %v5142
      %v5225 = vadd.f32 %v4471, %v5147
      %v5226 = vadd.f32 %v4472, %v5150
      %v5227 = vadd.f32 %v4473, %v5155
      %v5228 = vadd.f32 %v4474, %v5158
      %v5229 = vadd.f32 %v4475, %v5163
      %v5230 = vadd.f32 %v4476, %v5166
      %v5231 = vadd.f32 %v4477, %v5171
      %v5232 = vadd.f32 %v4478, %v5174
      %v5233 = vadd.f32 %v4479, %v5179
      %v5234 = vadd.f32 %v4480, %v5182
      %v5235 = vadd.f32 %v4481, %v5187
      %v5236 = vadd.f32 %v4482, %v5190
      %v5237 = vadd.f32 %v4483, %v5195
      %v5238 = vadd.f32 %v4484, %v5198
      %v5239 = vadd.f32 %v4485, %v5203
      %v5240 = vadd.f32 %v4486, %v5206
      %v5241 = vld [vmem:[%s4100] sm:$0xe]
      %v5242 = vld [vmem:[%s4100 + $0xc] sm:$0xe]
      %v5243 = vld [vmem:[%s4100 + $0x18] sm:$0xe]
      %v5244 = vld [vmem:[%s4100 + $0x24] sm:$0xe]
      %v5245 = vld [vmem:[%s4100 + $0x30] sm:$0xe]
      %v5246 = vld [vmem:[%s4100 + $0x3c] sm:$0xe]
      %v5247 = vld [vmem:[%s4100 + $0x48] sm:$0xe]
      %v5248 = vld [vmem:[%s4100 + $0x54] sm:$0xe]
      %v5249 = vld [vmem:[%s4100 + $0x60] sm:$0xe]
      %v5250 = vld [vmem:[%s4100 + $0x6c] sm:$0xe]
      %v5251 = vld [vmem:[%s4100 + $0x78] sm:$0xe]
      %v5252 = vld [vmem:[%s4100 + $0x84] sm:$0xe]
      %v5253 = vld [vmem:[%s4100 + $0x90] sm:$0xe]
      %v5254 = vld [vmem:[%s4100 + $0x9c] sm:$0xe]
      %v5255 = vld [vmem:[%s4100 + $0xa8] sm:$0xe]
      %v5256 = vld [vmem:[%s4100 + $0xb4] sm:$0xe]
      %v5305 = vrot.slane %v5241, 5
      %v5306 = vrot.slane %v5305, 4
      %v5307 = vrot.slane %v4488, 5
      %v5308 = vsel %vm2027, %v5306, %v5307
      %v5309 = vrot.slane %v5307, 4
      %v5310 = vrot.slane %v4489, 5
      %v5311 = vsel %vm2027, %v5309, %v5310
      %v5312 = vrot.slane %v5242, 5
      %v5313 = vrot.slane %v5312, 4
      %v5314 = vrot.slane %v4491, 5
      %v5315 = vsel %vm2027, %v5313, %v5314
      %v5316 = vrot.slane %v5314, 4
      %v5317 = vrot.slane %v4492, 5
      %v5318 = vsel %vm2027, %v5316, %v5317
      %v5319 = vrot.slane %v5243, 5
      %v5320 = vrot.slane %v5319, 4
      %v5321 = vrot.slane %v4494, 5
      %v5322 = vsel %vm2027, %v5320, %v5321
      %v5323 = vrot.slane %v5321, 4
      %v5324 = vrot.slane %v4495, 5
      %v5325 = vsel %vm2027, %v5323, %v5324
      %v5326 = vrot.slane %v5244, 5
      %v5327 = vrot.slane %v5326, 4
      %v5328 = vrot.slane %v4497, 5
      %v5329 = vsel %vm2027, %v5327, %v5328
      %v5330 = vrot.slane %v5328, 4
      %v5331 = vrot.slane %v4498, 5
      %v5332 = vsel %vm2027, %v5330, %v5331
      %v5333 = vrot.slane %v5245, 5
      %v5334 = vrot.slane %v5333, 4
      %v5335 = vrot.slane %v4500, 5
      %v5336 = vsel %vm2027, %v5334, %v5335
      %v5337 = vrot.slane %v5335, 4
      %v5338 = vrot.slane %v4501, 5
      %v5339 = vsel %vm2027, %v5337, %v5338
      %v5340 = vrot.slane %v5246, 5
      %v5341 = vrot.slane %v5340, 4
      %v5342 = vrot.slane %v4503, 5
      %v5343 = vsel %vm2027, %v5341, %v5342
      %v5344 = vrot.slane %v5342, 4
      %v5345 = vrot.slane %v4504, 5
      %v5346 = vsel %vm2027, %v5344, %v5345
      %v5347 = vrot.slane %v5247, 5
      %v5348 = vrot.slane %v5347, 4
      %v5349 = vrot.slane %v4506, 5
      %v5350 = vsel %vm2027, %v5348, %v5349
      %v5351 = vrot.slane %v5349, 4
      %v5352 = vrot.slane %v4507, 5
      %v5353 = vsel %vm2027, %v5351, %v5352
      %v5354 = vrot.slane %v5248, 5
      %v5355 = vrot.slane %v5354, 4
      %v5356 = vrot.slane %v4509, 5
      %v5357 = vsel %vm2027, %v5355, %v5356
      %v5358 = vrot.slane %v5356, 4
      %v5359 = vrot.slane %v4510, 5
      %v5360 = vsel %vm2027, %v5358, %v5359
      %v5361 = vrot.slane %v5249, 5
      %v5362 = vrot.slane %v5361, 4
      %v5363 = vrot.slane %v4512, 5
      %v5364 = vsel %vm2027, %v5362, %v5363
      %v5365 = vrot.slane %v5363, 4
      %v5366 = vrot.slane %v4513, 5
      %v5367 = vsel %vm2027, %v5365, %v5366
      %v5368 = vrot.slane %v5250, 5
      %v5369 = vrot.slane %v5368, 4
      %v5370 = vrot.slane %v4515, 5
      %v5371 = vsel %vm2027, %v5369, %v5370
      %v5372 = vrot.slane %v5370, 4
      %v5373 = vrot.slane %v4516, 5
      %v5374 = vsel %vm2027, %v5372, %v5373
      %v5375 = vrot.slane %v5251, 5
      %v5376 = vrot.slane %v5375, 4
      %v5377 = vrot.slane %v4518, 5
      %v5378 = vsel %vm2027, %v5376, %v5377
      %v5379 = vrot.slane %v5377, 4
      %v5380 = vrot.slane %v4519, 5
      %v5381 = vsel %vm2027, %v5379, %v5380
      %v5382 = vrot.slane %v5252, 5
      %v5383 = vrot.slane %v5382, 4
      %v5384 = vrot.slane %v4521, 5
      %v5385 = vsel %vm2027, %v5383, %v5384
      %v5386 = vrot.slane %v5384, 4
      %v5387 = vrot.slane %v4522, 5
      %v5388 = vsel %vm2027, %v5386, %v5387
      %v5389 = vrot.slane %v5253, 5
      %v5390 = vrot.slane %v5389, 4
      %v5391 = vrot.slane %v4524, 5
      %v5392 = vsel %vm2027, %v5390, %v5391
      %v5393 = vrot.slane %v5391, 4
      %v5394 = vrot.slane %v4525, 5
      %v5395 = vsel %vm2027, %v5393, %v5394
      %v5396 = vrot.slane %v5254, 5
      %v5397 = vrot.slane %v5396, 4
      %v5398 = vrot.slane %v4527, 5
      %v5399 = vsel %vm2027, %v5397, %v5398
      %v5400 = vrot.slane %v5398, 4
      %v5401 = vrot.slane %v4528, 5
      %v5402 = vsel %vm2027, %v5400, %v5401
      %v5403 = vrot.slane %v5255, 5
      %v5404 = vrot.slane %v5403, 4
      %v5405 = vrot.slane %v4530, 5
      %v5406 = vsel %vm2027, %v5404, %v5405
      %v5407 = vrot.slane %v5405, 4
      %v5408 = vrot.slane %v4531, 5
      %v5409 = vsel %vm2027, %v5407, %v5408
      %v5410 = vrot.slane %v5256, 5
      %v5411 = vrot.slane %v5410, 4
      %v5412 = vrot.slane %v4533, 5
      %v5413 = vsel %vm2027, %v5411, %v5412
      %v5414 = vrot.slane %v5412, 4
      %v5415 = vrot.slane %v4534, 5
      %v5416 = vsel %vm2027, %v5414, %v5415
      %s5417 = scalar_lea.vmem %s2, 512
      %v5418 = vld [vmem:[%s5417] sm:$0xf]
      %v5419 = vld [vmem:[%s5417 + $0x4] sm:$0xf]
      %v5420 = vld [vmem:[%s5417 + $0x8] sm:$0xf]
      %v5421 = vld [vmem:[%s5417 + $0xc] sm:$0xf]
      %v5422 = vld [vmem:[%s5417 + $0x10] sm:$0xf]
      %v5423 = vld [vmem:[%s5417 + $0x14] sm:$0xf]
      %v5424 = vld [vmem:[%s5417 + $0x18] sm:$0xf]
      %v5425 = vld [vmem:[%s5417 + $0x1c] sm:$0xf]
      %v5426 = vld [vmem:[%s5417 + $0x20] sm:$0xf]
      %v5427 = vld [vmem:[%s5417 + $0x24] sm:$0xf]
      %v5428 = vld [vmem:[%s5417 + $0x28] sm:$0xf]
      %v5429 = vld [vmem:[%s5417 + $0x2c] sm:$0xf]
      %v5430 = vld [vmem:[%s5417 + $0x30] sm:$0xf]
      %v5431 = vld [vmem:[%s5417 + $0x34] sm:$0xf]
      %v5432 = vld [vmem:[%s5417 + $0x38] sm:$0xf]
      %v5433 = vld [vmem:[%s5417 + $0x3c] sm:$0xf]
      %v5434 = vunpack.c.l.b16 %v5308
      %v5435 = vunpack.c.l.b16 %v5311
      %v5436 = vunpack.c.l.b16 %v5315
      %v5437 = vunpack.c.l.b16 %v5318
      %v5438 = vunpack.c.l.b16 %v5322
      %v5439 = vunpack.c.l.b16 %v5325
      %v5440 = vunpack.c.l.b16 %v5329
      %v5441 = vunpack.c.l.b16 %v5332
      %v5442 = vunpack.c.l.b16 %v5336
      %v5443 = vunpack.c.l.b16 %v5339
      %v5444 = vunpack.c.l.b16 %v5343
      %v5445 = vunpack.c.l.b16 %v5346
      %v5446 = vunpack.c.l.b16 %v5350
      %v5447 = vunpack.c.l.b16 %v5353
      %v5448 = vunpack.c.l.b16 %v5357
      %v5449 = vunpack.c.l.b16 %v5360
      %v5450 = vunpack.c.l.b16 %v5364
      %v5451 = vunpack.c.l.b16 %v5367
      %v5452 = vunpack.c.l.b16 %v5371
      %v5453 = vunpack.c.l.b16 %v5374
      %v5454 = vunpack.c.l.b16 %v5378
      %v5455 = vunpack.c.l.b16 %v5381
      %v5456 = vunpack.c.l.b16 %v5385
      %v5457 = vunpack.c.l.b16 %v5388
      %v5458 = vunpack.c.l.b16 %v5392
      %v5459 = vunpack.c.l.b16 %v5395
      %v5460 = vunpack.c.l.b16 %v5399
      %v5461 = vunpack.c.l.b16 %v5402
      %v5462 = vunpack.c.l.b16 %v5406
      %v5463 = vunpack.c.l.b16 %v5409
      %v5464 = vunpack.c.l.b16 %v5413
      %v5465 = vunpack.c.l.b16 %v5416
      %v5466 = vpack.c.b16 %v5435, %v5434
      %v5467 = vpack.c.b16 %v5437, %v5436
      %v5468 = vpack.c.b16 %v5439, %v5438
      %v5469 = vpack.c.b16 %v5441, %v5440
      %v5470 = vpack.c.b16 %v5443, %v5442
      %v5471 = vpack.c.b16 %v5445, %v5444
      %v5472 = vpack.c.b16 %v5447, %v5446
      %v5473 = vpack.c.b16 %v5449, %v5448
      %v5474 = vpack.c.b16 %v5451, %v5450
      %v5475 = vpack.c.b16 %v5453, %v5452
      %v5476 = vpack.c.b16 %v5455, %v5454
      %v5477 = vpack.c.b16 %v5457, %v5456
      %v5478 = vpack.c.b16 %v5459, %v5458
      %v5479 = vpack.c.b16 %v5461, %v5460
      %v5480 = vpack.c.b16 %v5463, %v5462
      %v5481 = vpack.c.b16 %v5465, %v5464
      %v5514 = vunpack.c.l.b16 %v5418
      %v5515 = vunpack.c.l.b16 %v5419
      %v5516 = vunpack.c.l.b16 %v5420
      %v5517 = vunpack.c.l.b16 %v5421
      %v5518 = vunpack.c.l.b16 %v5422
      %v5519 = vunpack.c.l.b16 %v5423
      %v5520 = vunpack.c.l.b16 %v5424
      %v5521 = vunpack.c.l.b16 %v5425
      %v5522 = vunpack.c.l.b16 %v5426
      %v5523 = vunpack.c.l.b16 %v5427
      %v5524 = vunpack.c.l.b16 %v5428
      %v5525 = vunpack.c.l.b16 %v5429
      %v5526 = vunpack.c.l.b16 %v5430
      %v5527 = vunpack.c.l.b16 %v5431
      %v5528 = vunpack.c.l.b16 %v5432
      %v5529 = vunpack.c.l.b16 %v5433
      %v5530 = vpack.c.b16 %v5515, %v5514
      %v5531 = vpack.c.b16 %v5517, %v5516
      %v5532 = vpack.c.b16 %v5519, %v5518
      %v5533 = vpack.c.b16 %v5521, %v5520
      %v5534 = vpack.c.b16 %v5523, %v5522
      %v5535 = vpack.c.b16 %v5525, %v5524
      %v5536 = vpack.c.b16 %v5527, %v5526
      %v5537 = vpack.c.b16 %v5529, %v5528
      %5546 = vmatprep.subr.bf16.mxu0 0
      %5547 = vmatpush1.bf16.msra.mxu0 %v5530
      %5548 = vmatprep.subr.bf16.mxu0 0
      %5549 = vmatpush1.bf16.msra.mxu0 %v5531
      %5550 = vmatprep.subr.bf16.mxu0 0
      %5551 = vmatpush1.bf16.msra.mxu0 %v5532
      %5552 = vmatprep.subr.bf16.mxu0 0
      %5553 = vmatpush1.bf16.msra.mxu0 %v5533
      %5554 = vmatprep.subr.bf16.mxu0 0
      %5555 = vmatpush1.bf16.msra.mxu0 %v5534
      %5556 = vmatprep.subr.bf16.mxu0 0
      %5557 = vmatpush1.bf16.msra.mxu0 %v5535
      %5558 = vmatprep.subr.bf16.mxu0 0
      %5559 = vmatpush1.bf16.msra.mxu0 %v5536
      %5560 = vmatprep.subr.bf16.mxu0 0
      %5561 = vmatpush1.bf16.msra.mxu0 %v5537
      %5562 = vmatprep.subr.bf16.mxu0 0
      %5563 = vmatpush1.bf16.msra.mxu0 0
      %5564 = vmatprep.subr.bf16.mxu0 0
      %5565 = vmatpush1.bf16.msra.mxu0 0
      %5566 = vmatprep.subr.bf16.mxu0 0
      %5567 = vmatpush1.bf16.msra.mxu0 0
      %5568 = vmatprep.subr.bf16.mxu0 0
      %5569 = vmatpush1.bf16.msra.mxu0 0
      %5570 = vmatprep.subr.bf16.mxu0 0
      %5571 = vmatpush1.bf16.msra.mxu0 0
      %5572 = vmatprep.subr.bf16.mxu0 0
      %5573 = vmatpush1.bf16.msra.mxu0 0
      %5574 = vmatprep.subr.bf16.mxu0 0
      %5575 = vmatpush1.bf16.msra.mxu0 0
      %5576 = vmatprep.subr.bf16.mxu0 0
      %5577 = vmatpush1.bf16.msra.mxu0 0
      %5578 = vmatprep.mubr.bf16.mxu0 0
      %5579 = vmatmul.mubr.bf16.gmra.mrb[0].mxu0 %v5466
      %v5580 = vpop.f32.mrb[0].mxu0
      %v5581 = vadd.f32 0.0, %v5580
      %v5582 = vpop.f32.mrb[0].mxu0
      %v5583 = vpop.f32.mrb[0].mxu0
      %v5584 = vadd.f32 0.0, %v5583
      %v5585 = vpop.f32.mrb[0].mxu0
      %5586 = vmatprep.mubr.bf16.mxu0 0
      %5587 = vmatmul.mubr.bf16.gmra.mrb[0].mxu0 %v5467
      %v5588 = vpop.f32.mrb[0].mxu0
      %v5589 = vadd.f32 0.0, %v5588
      %v5590 = vpop.f32.mrb[0].mxu0
      %v5591 = vpop.f32.mrb[0].mxu0
      %v5592 = vadd.f32 0.0, %v5591
      %v5593 = vpop.f32.mrb[0].mxu0
      %5594 = vmatprep.mubr.bf16.mxu0 0
      %5595 = vmatmul.mubr.bf16.gmra.mrb[0].mxu0 %v5468
      %v5596 = vpop.f32.mrb[0].mxu0
      %v5597 = vadd.f32 0.0, %v5596
      %v5598 = vpop.f32.mrb[0].mxu0
      %v5599 = vpop.f32.mrb[0].mxu0
      %v5600 = vadd.f32 0.0, %v5599
      %v5601 = vpop.f32.mrb[0].mxu0
      %5602 = vmatprep.mubr.bf16.mxu0 0
      %5603 = vmatmul.mubr.bf16.gmra.mrb[0].mxu0 %v5469
      %v5604 = vpop.f32.mrb[0].mxu0
      %v5605 = vadd.f32 0.0, %v5604
      %v5606 = vpop.f32.mrb[0].mxu0
      %v5607 = vpop.f32.mrb[0].mxu0
      %v5608 = vadd.f32 0.0, %v5607
      %v5609 = vpop.f32.mrb[0].mxu0
      %5610 = vmatprep.mubr.bf16.mxu0 0
      %5611 = vmatmul.mubr.bf16.gmra.mrb[0].mxu0 %v5470
      %v5612 = vpop.f32.mrb[0].mxu0
      %v5613 = vadd.f32 0.0, %v5612
      %v5614 = vpop.f32.mrb[0].mxu0
      %v5615 = vpop.f32.mrb[0].mxu0
      %v5616 = vadd.f32 0.0, %v5615
      %v5617 = vpop.f32.mrb[0].mxu0
      %5618 = vmatprep.mubr.bf16.mxu0 0
      %5619 = vmatmul.mubr.bf16.gmra.mrb[0].mxu0 %v5471
      %v5620 = vpop.f32.mrb[0].mxu0
      %v5621 = vadd.f32 0.0, %v5620
      %v5622 = vpop.f32.mrb[0].mxu0
      %v5623 = vpop.f32.mrb[0].mxu0
      %v5624 = vadd.f32 0.0, %v5623
      %v5625 = vpop.f32.mrb[0].mxu0
      %5626 = vmatprep.mubr.bf16.mxu0 0
      %5627 = vmatmul.mubr.bf16.gmra.mrb[0].mxu0 %v5472
      %v5628 = vpop.f32.mrb[0].mxu0
      %v5629 = vadd.f32 0.0, %v5628
      %v5630 = vpop.f32.mrb[0].mxu0
      %v5631 = vpop.f32.mrb[0].mxu0
      %v5632 = vadd.f32 0.0, %v5631
      %v5633 = vpop.f32.mrb[0].mxu0
      %5634 = vmatprep.mubr.bf16.mxu0 0
      %5635 = vmatmul.mubr.bf16.gmra.mrb[0].mxu0 %v5473
      %v5636 = vpop.f32.mrb[0].mxu0
      %v5637 = vadd.f32 0.0, %v5636
      %v5638 = vpop.f32.mrb[0].mxu0
      %v5639 = vpop.f32.mrb[0].mxu0
      %v5640 = vadd.f32 0.0, %v5639
      %v5641 = vpop.f32.mrb[0].mxu0
      %5642 = vmatprep.mubr.bf16.mxu0 0
      %5643 = vmatmul.mubr.bf16.gmra.mrb[0].mxu0 %v5474
      %v5644 = vpop.f32.mrb[0].mxu0
      %v5645 = vadd.f32 0.0, %v5644
      %v5646 = vpop.f32.mrb[0].mxu0
      %v5647 = vpop.f32.mrb[0].mxu0
      %v5648 = vadd.f32 0.0, %v5647
      %v5649 = vpop.f32.mrb[0].mxu0
      %5650 = vmatprep.mubr.bf16.mxu0 0
      %5651 = vmatmul.mubr.bf16.gmra.mrb[0].mxu0 %v5475
      %v5652 = vpop.f32.mrb[0].mxu0
      %v5653 = vadd.f32 0.0, %v5652
      %v5654 = vpop.f32.mrb[0].mxu0
      %v5655 = vpop.f32.mrb[0].mxu0
      %v5656 = vadd.f32 0.0, %v5655
      %v5657 = vpop.f32.mrb[0].mxu0
      %5658 = vmatprep.mubr.bf16.mxu0 0
      %5659 = vmatmul.mubr.bf16.gmra.mrb[0].mxu0 %v5476
      %v5660 = vpop.f32.mrb[0].mxu0
      %v5661 = vadd.f32 0.0, %v5660
      %v5662 = vpop.f32.mrb[0].mxu0
      %v5663 = vpop.f32.mrb[0].mxu0
      %v5664 = vadd.f32 0.0, %v5663
      %v5665 = vpop.f32.mrb[0].mxu0
      %5666 = vmatprep.mubr.bf16.mxu0 0
      %5667 = vmatmul.mubr.bf16.gmra.mrb[0].mxu0 %v5477
      %v5668 = vpop.f32.mrb[0].mxu0
      %v5669 = vadd.f32 0.0, %v5668
      %v5670 = vpop.f32.mrb[0].mxu0
      %v5671 = vpop.f32.mrb[0].mxu0
      %v5672 = vadd.f32 0.0, %v5671
      %v5673 = vpop.f32.mrb[0].mxu0
      %5674 = vmatprep.mubr.bf16.mxu0 0
      %5675 = vmatmul.mubr.bf16.gmra.mrb[0].mxu0 %v5478
      %v5676 = vpop.f32.mrb[0].mxu0
      %v5677 = vadd.f32 0.0, %v5676
      %v5678 = vpop.f32.mrb[0].mxu0
      %v5679 = vpop.f32.mrb[0].mxu0
      %v5680 = vadd.f32 0.0, %v5679
      %v5681 = vpop.f32.mrb[0].mxu0
      %5682 = vmatprep.mubr.bf16.mxu0 0
      %5683 = vmatmul.mubr.bf16.gmra.mrb[0].mxu0 %v5479
      %v5684 = vpop.f32.mrb[0].mxu0
      %v5685 = vadd.f32 0.0, %v5684
      %v5686 = vpop.f32.mrb[0].mxu0
      %v5687 = vpop.f32.mrb[0].mxu0
      %v5688 = vadd.f32 0.0, %v5687
      %v5689 = vpop.f32.mrb[0].mxu0
      %5690 = vmatprep.mubr.bf16.mxu0 0
      %5691 = vmatmul.mubr.bf16.gmra.mrb[0].mxu0 %v5480
      %v5692 = vpop.f32.mrb[0].mxu0
      %v5693 = vadd.f32 0.0, %v5692
      %v5694 = vpop.f32.mrb[0].mxu0
      %v5695 = vpop.f32.mrb[0].mxu0
      %v5696 = vadd.f32 0.0, %v5695
      %v5697 = vpop.f32.mrb[0].mxu0
      %5698 = vmatprep.mubr.bf16.mxu0 0
      %5699 = vmatmul.mubr.bf16.gmra.mrb[0].mxu0 %v5481
      %v5700 = vpop.f32.mrb[0].mxu0
      %v5701 = vadd.f32 0.0, %v5700
      %v5702 = vpop.f32.mrb[0].mxu0
      %v5703 = vpop.f32.mrb[0].mxu0
      %v5704 = vadd.f32 0.0, %v5703
      %v5705 = vpop.f32.mrb[0].mxu0
      %5706 = vdwg.mxu0
      %v5707 = vadd.f32 %v5209, %v5581
      %v5708 = vadd.f32 %v5210, %v5584
      %v5709 = vadd.f32 %v5211, %v5589
      %v5710 = vadd.f32 %v5212, %v5592
      %v5711 = vadd.f32 %v5213, %v5597
      %v5712 = vadd.f32 %v5214, %v5600
      %v5713 = vadd.f32 %v5215, %v5605
      %v5714 = vadd.f32 %v5216, %v5608
      %v5715 = vadd.f32 %v5217, %v5613
      %v5716 = vadd.f32 %v5218, %v5616
      %v5717 = vadd.f32 %v5219, %v5621
      %v5718 = vadd.f32 %v5220, %v5624
      %v5719 = vadd.f32 %v5221, %v5629
      %v5720 = vadd.f32 %v5222, %v5632
      %v5721 = vadd.f32 %v5223, %v5637
      %v5722 = vadd.f32 %v5224, %v5640
      %v5723 = vadd.f32 %v5225, %v5645
      %v5724 = vadd.f32 %v5226, %v5648
      %v5725 = vadd.f32 %v5227, %v5653
      %v5726 = vadd.f32 %v5228, %v5656
      %v5727 = vadd.f32 %v5229, %v5661
      %v5728 = vadd.f32 %v5230, %v5664
      %v5729 = vadd.f32 %v5231, %v5669
      %v5730 = vadd.f32 %v5232, %v5672
      %v5731 = vadd.f32 %v5233, %v5677
      %v5732 = vadd.f32 %v5234, %v5680
      %v5733 = vadd.f32 %v5235, %v5685
      %v5734 = vadd.f32 %v5236, %v5688
      %v5735 = vadd.f32 %v5237, %v5693
      %v5736 = vadd.f32 %v5238, %v5696
      %v5737 = vadd.f32 %v5239, %v5701
      %v5738 = vadd.f32 %v5240, %v5704
      %5739 = vst [vmem:[%s195] sm:$0xff] %v5707
      %5740 = vst [vmem:[%s195 + $0x8] sm:$0xff] %v5708
      %5741 = vst [vmem:[%s195 + $0x10] sm:$0xff] %v5709
      %5742 = vst [vmem:[%s195 + $0x18] sm:$0xff] %v5710
      %5743 = vst [vmem:[%s195 + $0x20] sm:$0xff] %v5711
      %5744 = vst [vmem:[%s195 + $0x28] sm:$0xff] %v5712
      %5745 = vst [vmem:[%s195 + $0x30] sm:$0xff] %v5713
      %5746 = vst [vmem:[%s195 + $0x38] sm:$0xff] %v5714
      %5747 = vst [vmem:[%s195 + $0x40] sm:$0xff] %v5715
      %5748 = vst [vmem:[%s195 + $0x48] sm:$0xff] %v5716
      %5749 = vst [vmem:[%s195 + $0x50] sm:$0xff] %v5717
      %5750 = vst [vmem:[%s195 + $0x58] sm:$0xff] %v5718
      %5751 = vst [vmem:[%s195 + $0x60] sm:$0xff] %v5719
      %5752 = vst [vmem:[%s195 + $0x68] sm:$0xff] %v5720
      %5753 = vst [vmem:[%s195 + $0x70] sm:$0xff] %v5721
      %5754 = vst [vmem:[%s195 + $0x78] sm:$0xff] %v5722
      %5755 = vst [vmem:[%s195 + $0x80] sm:$0xff] %v5723
      %5756 = vst [vmem:[%s195 + $0x88] sm:$0xff] %v5724
      %5757 = vst [vmem:[%s195 + $0x90] sm:$0xff] %v5725
      %5758 = vst [vmem:[%s195 + $0x98] sm:$0xff] %v5726
      %5759 = vst [vmem:[%s195 + $0xa0] sm:$0xff] %v5727
      %5760 = vst [vmem:[%s195 + $0xa8] sm:$0xff] %v5728
      %5761 = vst [vmem:[%s195 + $0xb0] sm:$0xff] %v5729
      %5762 = vst [vmem:[%s195 + $0xb8] sm:$0xff] %v5730
      %5763 = vst [vmem:[%s195 + $0xc0] sm:$0xff] %v5731
      %5764 = vst [vmem:[%s195 + $0xc8] sm:$0xff] %v5732
      %5765 = vst [vmem:[%s195 + $0xd0] sm:$0xff] %v5733
      %5766 = vst [vmem:[%s195 + $0xd8] sm:$0xff] %v5734
      %5767 = vst [vmem:[%s195 + $0xe0] sm:$0xff] %v5735
      %5768 = vst [vmem:[%s195 + $0xe8] sm:$0xff] %v5736
      %5769 = vst [vmem:[%s195 + $0xf0] sm:$0xff] %v5737
      %5770 = vst [vmem:[%s195 + $0xf8] sm:$0xff] %v5738
      %v5771 = vld [vmem:[%s4] sm:$0x1]
      %v5772 = vadd.f32 %v5707, %v5708
      %v5773 = vadd.f32 %v5772, %v5709
      %v5774 = vadd.f32 %v5773, %v5710
      %v5775 = vadd.f32 %v5774, %v5711
      %v5776 = vadd.f32 %v5775, %v5712
      %v5777 = vadd.f32 %v5776, %v5713
      %v5778 = vadd.f32 %v5777, %v5714
      %v5779 = vadd.f32 %v5778, %v5715
      %v5780 = vadd.f32 %v5779, %v5716
      %v5781 = vadd.f32 %v5780, %v5717
      %v5782 = vadd.f32 %v5781, %v5718
      %v5783 = vadd.f32 %v5782, %v5719
      %v5784 = vadd.f32 %v5783, %v5720
      %v5785 = vadd.f32 %v5784, %v5721
      %v5786 = vadd.f32 %v5785, %v5722
      %v5787 = vadd.f32 %v5786, %v5723
      %v5788 = vadd.f32 %v5787, %v5724
      %v5789 = vadd.f32 %v5788, %v5725
      %v5790 = vadd.f32 %v5789, %v5726
      %v5791 = vadd.f32 %v5790, %v5727
      %v5792 = vadd.f32 %v5791, %v5728
      %v5793 = vadd.f32 %v5792, %v5729
      %v5794 = vadd.f32 %v5793, %v5730
      %v5795 = vadd.f32 %v5794, %v5731
      %v5796 = vadd.f32 %v5795, %v5732
      %v5797 = vadd.f32 %v5796, %v5733
      %v5798 = vadd.f32 %v5797, %v5734
      %v5799 = vadd.f32 %v5798, %v5735
      %v5800 = vadd.f32 %v5799, %v5736
      %v5801 = vadd.f32 %v5800, %v5737
      %v5802 = vadd.f32 %v5801, %v5738
      %v5803 = vrot.slane %v5802, 4
      %v5804 = vadd.f32 %v5802, %v5803
      %v5805 = vrot.slane %v5804, 2
      %v5806 = vadd.f32 %v5804, %v5805
      %v5807 = vrot.slane %v5806, 1
      %v5808 = vadd.f32 %v5806, %v5807
      %v5809 = vadd.f32 %v5771, %v5808
      %5810 = vst [vmem:[%s4] sm:$0x1] %v5809
      %v5811 = vld [vmem:[%s4 + $0x1] sm:$0x1]
      %v5812 = vmul.f32 %v5707, %v5707
      %v5813 = vmul.f32 %v5708, %v5708
      %v5814 = vmul.f32 %v5709, %v5709
      %v5815 = vmul.f32 %v5710, %v5710
      %v5816 = vmul.f32 %v5711, %v5711
      %v5817 = vmul.f32 %v5712, %v5712
      %v5818 = vmul.f32 %v5713, %v5713
      %v5819 = vmul.f32 %v5714, %v5714
      %v5820 = vmul.f32 %v5715, %v5715
      %v5821 = vmul.f32 %v5716, %v5716
      %v5822 = vmul.f32 %v5717, %v5717
      %v5823 = vmul.f32 %v5718, %v5718
      %v5824 = vmul.f32 %v5719, %v5719
      %v5825 = vmul.f32 %v5720, %v5720
      %v5826 = vmul.f32 %v5721, %v5721
      %v5827 = vmul.f32 %v5722, %v5722
      %v5828 = vmul.f32 %v5723, %v5723
      %v5829 = vmul.f32 %v5724, %v5724
      %v5830 = vmul.f32 %v5725, %v5725
      %v5831 = vmul.f32 %v5726, %v5726
      %v5832 = vmul.f32 %v5727, %v5727
      %v5833 = vmul.f32 %v5728, %v5728
      %v5834 = vmul.f32 %v5729, %v5729
      %v5835 = vmul.f32 %v5730, %v5730
      %v5836 = vmul.f32 %v5731, %v5731
      %v5837 = vmul.f32 %v5732, %v5732
      %v5838 = vmul.f32 %v5733, %v5733
      %v5839 = vmul.f32 %v5734, %v5734
      %v5840 = vmul.f32 %v5735, %v5735
      %v5841 = vmul.f32 %v5736, %v5736
      %v5842 = vmul.f32 %v5737, %v5737
      %v5843 = vmul.f32 %v5738, %v5738
      %v5844 = vadd.f32 %v5812, %v5813
      %v5845 = vadd.f32 %v5844, %v5814
      %v5846 = vadd.f32 %v5845, %v5815
      %v5847 = vadd.f32 %v5846, %v5816
      %v5848 = vadd.f32 %v5847, %v5817
      %v5849 = vadd.f32 %v5848, %v5818
      %v5850 = vadd.f32 %v5849, %v5819
      %v5851 = vadd.f32 %v5850, %v5820
      %v5852 = vadd.f32 %v5851, %v5821
      %v5853 = vadd.f32 %v5852, %v5822
      %v5854 = vadd.f32 %v5853, %v5823
      %v5855 = vadd.f32 %v5854, %v5824
      %v5856 = vadd.f32 %v5855, %v5825
      %v5857 = vadd.f32 %v5856, %v5826
      %v5858 = vadd.f32 %v5857, %v5827
      %v5859 = vadd.f32 %v5858, %v5828
      %v5860 = vadd.f32 %v5859, %v5829
      %v5861 = vadd.f32 %v5860, %v5830
      %v5862 = vadd.f32 %v5861, %v5831
      %v5863 = vadd.f32 %v5862, %v5832
      %v5864 = vadd.f32 %v5863, %v5833
      %v5865 = vadd.f32 %v5864, %v5834
      %v5866 = vadd.f32 %v5865, %v5835
      %v5867 = vadd.f32 %v5866, %v5836
      %v5868 = vadd.f32 %v5867, %v5837
      %v5869 = vadd.f32 %v5868, %v5838
      %v5870 = vadd.f32 %v5869, %v5839
      %v5871 = vadd.f32 %v5870, %v5840
      %v5872 = vadd.f32 %v5871, %v5841
      %v5873 = vadd.f32 %v5872, %v5842
      %v5874 = vadd.f32 %v5873, %v5843
      %v5875 = vrot.slane %v5874, 4
      %v5876 = vadd.f32 %v5874, %v5875
      %v5877 = vrot.slane %v5876, 2
      %v5878 = vadd.f32 %v5876, %v5877
      %v5879 = vrot.slane %v5878, 1
      %v5880 = vadd.f32 %v5878, %v5879
      %v5881 = vadd.f32 %v5811, %v5880
      %5882 = vst [vmem:[%s4 + $0x1] sm:$0x1] %v5881
      %p5883 = scmp.lt.s32.totalorder %s16, 1
      %s5884 = scalar_select %p5883, %s16, 1
      %s5885 = smul.addr %s5884, 32
      %s5886 = smul.addr %s5885, 8
      %s5887 = scalar_lea.vmem %s3, %s5886
      // Predicated region
      $region37: #{basic_block_forward.4} parent=31 // pred_check
        %p5888 = pneg %p102
      $region38: #{basic_block_forward.4} parent=31 // pred_check_branch
        %5890 = sbr.rel (%p5888) target = $region40
      $region39: #{basic_block_forward.4} parent=31 // pred_region
        _
      $region40: #{basic_block_forward.4} parent=31 // pred_fallthru
        _
      // Predicated region
      $region41: #{basic_block_forward.4} parent=31 // pred_check
        %p5891 = pneg %p123
      $region42: #{basic_block_forward.4} parent=31 // pred_check_branch
        %5893 = sbr.rel (%p5891) target = $region44
      $region43: #{basic_block_forward.4} parent=31 // pred_region
        _
      $region44: #{basic_block_forward.4} parent=31 // pred_fallthru
        _
      // Predicated region
      $region45: #{basic_block_forward.4} parent=31 // pred_check
        %p5894 = pneg %p123
      $region46: #{basic_block_forward.4} parent=31 // pred_check_branch
        %5896 = sbr.rel (%p5894) target = $region48
      $region47: #{basic_block_forward.4} parent=31 // pred_region
        _
      $region48: #{basic_block_forward.4} parent=31 // pred_fallthru
        _
    $region32: #{basic_block_forward.4} parent=5 // pred_fallthru
      _
    %p5897 = scmp.le.s32.totalorder 2, %s11
    // Predicated region
    $region49: #{basic_block_forward.4} parent=5 // pred_check
      %p5898 = pneg %p5897
    $region50: #{basic_block_forward.4} parent=5 // pred_check_branch
      %5900 = sbr.rel (%p5898) target = $region52
    $region51: #{basic_block_forward.4} parent=5 // pred_region
      %s5901 = ssub.s32 %s11, 2
      // Predicated region
      $region53: #{basic_block_forward.4} parent=51 // pred_check
        %p5902 = pneg %p108
      $region54: #{basic_block_forward.4} parent=51 // pred_check_branch
        %5904 = sbr.rel (%p5902) target = $region56
      $region55: #{basic_block_forward.4} parent=51 // pred_region
        %p5905 = scmp.lt.s32.totalorder %s17, 1
        %s5906 = scalar_select %p5905, %s17, 1
        %s5907 = smul.addr %s5906, 32
        %s5908 = smul.addr %s5907, 8
        %s5909 = scalar_lea.vmem %s3, %s5908
      $region56: #{basic_block_forward.4} parent=51 // pred_fallthru
        _
    $region52: #{basic_block_forward.4} parent=5 // pred_fallthru
      _
  $region6: #{basic_block_forward.4} parent=0 // loop_footer
    %s15 = sadd.s32 1, %s11
  $region7: #{basic_block_forward.4} parent=0 // loop_footer_branch
    %10 = sbr.rel target = $region3
  $region8: #{basic_block_forward.4} parent=0 // loop_exit
    _

</llo_original>
